<compile_context>
chip_gen: v7x
topology: tpu7x:2x2x1
jax: 0.10.0
libtpu: 0.0.40
codegen_flags: <defaults>
</compile_context>

<pallas_src>
import functools

import jax
import jax.numpy as jnp
from jax.experimental import pallas as pl
from jax.experimental.pallas import tpu as pltpu


# ---------------------------------------------------------------------------
# In-kernel helpers
# ---------------------------------------------------------------------------

def _maxpool2x2(x):
    """2x2 / stride-2 max pool on a (N, Hc, Wc, C) value (Hc, Wc even)."""
    N, Hc, Wc, C = x.shape
    x = jnp.max(x.reshape(N, Hc, Wc // 2, 2, C), axis=3)      # pool along W
    x = jnp.max(x.reshape(N, Hc // 2, 2, Wc // 2, C), axis=2)  # pool along H
    return x                                                    # (N,Hc/2,Wc/2,C)


def _zero_border(ref):
    """Zero the 1-wide spatial border of a (N, Hp, Wp, C) padded scratch."""
    N, Hp, Wp, C = ref.shape
    ref[:, 0:1, :, :] = jnp.zeros((N, 1, Wp, C), ref.dtype)
    ref[:, Hp - 1:Hp, :, :] = jnp.zeros((N, 1, Wp, C), ref.dtype)
    ref[:, :, 0:1, :] = jnp.zeros((N, Hp, 1, C), ref.dtype)
    ref[:, :, Wp - 1:Wp, :] = jnp.zeros((N, Hp, 1, C), ref.dtype)


def _im2col(src_ref, dst_ref, Hc, Wc, Cin, BT):
    """Fill a (BT*Hc*Wc, 9*Cin) patch scratch from a padded activation ref.

    K ordering is (kh, kw, cin)-major/minor, i.e. K index = (kh*3+kw)*Cin + cin,
    matching `_repack_conv_weight`.
    """
    for k in range(9):
        kh, kw = divmod(k, 3)
        blk = src_ref[:, kh:kh + Hc, kw:kw + Wc, :]            # (BT,Hc,Wc,Cin)
        dst_ref[:, k * Cin:(k + 1) * Cin] = blk.reshape(BT * Hc * Wc, Cin)


# ---------------------------------------------------------------------------
# Fused encoder kernel: one grid step == BT images
# ---------------------------------------------------------------------------

def _grid_encoder_kernel(x_ref, w1_ref, b1_ref, w2_ref, b2_ref, w3_ref, b3_ref,
                         o_ref,
                         xbp_ref, a1p_ref, a2p_ref, p2_ref, p3_ref,
                         *, H, W, BT):
    C1 = w1_ref.shape[1]
    C2 = w2_ref.shape[1]
    C3 = w3_ref.shape[1]
    H2, W2 = H // 2, W // 2
    H4, W4 = H // 4, W // 4

    # Re-zero the padding borders every step (tiny stores).  Unconditional so
    # the kernel stays correct when the "parallel" batch axis is sharded
    # across TensorCores (a core may never see program_id == 0).
    _zero_border(xbp_ref)
    _zero_border(a1p_ref)
    _zero_border(a2p_ref)

    # ---- stage 1: conv1 (Cin=1) + ReLU + pool ------------------------------
    # Single channel broadcast into a padded channel-last f32 scratch, then
    # nine dense VPU multiply-accumulates with tap slices read from VMEM.
    x0 = x_ref[...]                                            # (BT, H, W) f32
    xbp_ref[:, 1:H + 1, 1:W + 1, :] = jnp.broadcast_to(
        x0[:, :, :, None], (BT, H, W, C1))

    acc1 = jnp.zeros((BT, H, W, C1), jnp.float32)
    for k in range(9):
        kh, kw = divmod(k, 3)
        acc1 = acc1 + xbp_ref[:, kh:kh + H, kw:kw + W, :] * w1_ref[k]
    x1 = jnp.maximum(acc1 + b1_ref[0], 0.0)                    # (BT, H, W, C1)
    a1p_ref[:, 1:H2 + 1, 1:W2 + 1, :] = _maxpool2x2(x1).astype(jnp.bfloat16)

    # ---- stage 2: conv2 + ReLU + pool (single im2col MXU matmul, K=9*C1) ---
    _im2col(a1p_ref, p2_ref, H2, W2, C1, BT)
    y2 = jnp.dot(p2_ref[...], w2_ref[...], preferred_element_type=jnp.float32)
    y2 = jnp.maximum(y2 + b2_ref[...], 0.0)                    # (BT*H2*W2, C2)
    y2 = _maxpool2x2(y2.reshape(BT, H2, W2, C2))               # (BT,H4,W4,C2)
    a2p_ref[:, 1:H4 + 1, 1:W4 + 1, :] = y2.astype(jnp.bfloat16)

    # ---- stage 3: conv3 + ReLU (single im2col MXU matmul, K=9*C2) ----------
    _im2col(a2p_ref, p3_ref, H4, W4, C2, BT)
    y3 = jnp.dot(p3_ref[...], w3_ref[...], preferred_element_type=jnp.float32)
    y3 = jnp.maximum(y3 + b3_ref[...], 0.0)                    # (BT*H4*W4, C3)
    o_ref[...] = y3.reshape(BT, H4 * W4, C3)                   # lane-dense out


# ---------------------------------------------------------------------------
# Host-side wrapper
# ---------------------------------------------------------------------------

def _repack_conv_weight(w_oihw):
    """PyTorch (Cout, Cin, 3, 3) -> (9*Cin, Cout), K index = (kh*3+kw)*Cin+cin."""
    cout, cin = w_oihw.shape[0], w_oihw.shape[1]
    return jnp.transpose(w_oihw, (2, 3, 1, 0)).reshape(9 * cin, cout)


def _choose_batch_tile(B, max_bt=8):
    """Largest divisor of B that is <= max_bt, preferring >=2 grid steps
    (so the 'parallel' batch axis can shard across v7x's two TensorCores)."""
    divisors = [d for d in range(1, min(B, max_bt) + 1) if B % d == 0]
    two_step = [d for d in divisors if B // d >= 2]
    return max(two_step) if two_step else max(divisors)


def grid_encoder(params, x_nchw):
    B, Cin, H, W = x_nchw.shape
    assert Cin == 1, "GridEncoder is built for input_channels=1"
    assert H % 4 == 0 and W % 4 == 0
    C1 = params["conv1_w"].shape[0]
    C2 = params["conv2_w"].shape[0]
    C3 = params["conv3_w"].shape[0]
    H2, W2, H4, W4 = H // 2, W // 2, H // 4, W // 4
    BT = _choose_batch_tile(B)

    # Cin == 1: NCHW squeezed == NHWC squeezed.  No pad / transpose pre-pass.
    xsq = x_nchw.reshape(B, H, W).astype(jnp.float32)

    # Repack weights: bf16 operands for the MXU convs, f32 for the VPU stencil.
    w1 = _repack_conv_weight(params["conv1_w"]).astype(jnp.float32)   # (9, C1)
    w2 = _repack_conv_weight(params["conv2_w"]).astype(jnp.bfloat16)  # (9*C1,C2)
    w3 = _repack_conv_weight(params["conv3_w"]).astype(jnp.bfloat16)  # (9*C2,C3)
    b1 = params["conv1_b"].reshape(1, C1).astype(jnp.float32)
    b2 = params["conv2_b"].reshape(1, C2).astype(jnp.float32)
    b3 = params["conv3_b"].reshape(1, C3).astype(jnp.float32)

    def resident(shape):
        return pl.BlockSpec(shape, lambda b: (0,) * len(shape))

    flops = 2 * B * 9 * (H * W * 1 * C1 + H2 * W2 * C1 * C2 + H4 * W4 * C2 * C3)
    bytes_accessed = (xsq.size * 4 + B * H4 * W4 * C3 * 4
                      + w1.size * 4 + w2.size * 2 + w3.size * 2
                      + (C1 + C2 + C3) * 4)

    out = pl.pallas_call(
        functools.partial(_grid_encoder_kernel, H=H, W=W, BT=BT),
        grid=(B // BT,),
        in_specs=[
            pl.BlockSpec((BT, H, W), lambda b: (b, 0, 0)),
            resident((9, C1)), resident((1, C1)),
            resident((9 * C1, C2)), resident((1, C2)),
            resident((9 * C2, C3)), resident((1, C3)),
        ],
        out_specs=pl.BlockSpec((BT, H4 * W4, C3), lambda b: (b, 0, 0)),
        out_shape=jax.ShapeDtypeStruct((B, H4 * W4, C3), jnp.float32),
        scratch_shapes=[
            pltpu.VMEM((BT, H + 2, W + 2, C1), jnp.float32),       # conv1 input
            pltpu.VMEM((BT, H2 + 2, W2 + 2, C1), jnp.bfloat16),    # conv2 input
            pltpu.VMEM((BT, H4 + 2, W4 + 2, C2), jnp.bfloat16),    # conv3 input
            pltpu.VMEM((BT * H2 * W2, 9 * C1), jnp.bfloat16),      # conv2 patches
            pltpu.VMEM((BT * H4 * W4, 9 * C2), jnp.bfloat16),      # conv3 patches
        ],
        compiler_params=pltpu.CompilerParams(
            dimension_semantics=("parallel",)),
        cost_estimate=pl.CostEstimate(flops=flops, transcendentals=0,
                                      bytes_accessed=bytes_accessed),
    )(xsq, w1, b1, w2, b2, w3, b3)

    # (B, H4*W4, C3) -> NCHW (B, C3, H4, W4), matching PyTorch.
    return jnp.transpose(out.reshape(B, H4, W4, C3), (0, 3, 1, 2))


def grid_encoder_forward(params, x):
    """Mirrors GridEncoder.forward; accepts (B,1,H,W) or unbatched (1,H,W)."""
    if x.ndim == 3:
        return grid_encoder(params, x[None])[0]
    return grid_encoder(params, x)


# ---------------------------------------------------------------------------
# Parameters and a pure-XLA reference for numerical checking
# ---------------------------------------------------------------------------

def init_params(key):
    def nrm(k, shape, scale=0.05):
        return scale * jax.random.normal(k, shape, jnp.float32)
    ks = jax.random.split(key, 6)
    return {
        "conv1_w": nrm(ks[0], (32, 1, 3, 3)),   "conv1_b": nrm(ks[1], (32,)),
        "conv2_w": nrm(ks[2], (64, 32, 3, 3)),  "conv2_b": nrm(ks[3], (64,)),
        "conv3_w": nrm(ks[4], (128, 64, 3, 3)), "conv3_b": nrm(ks[5], (128,)),
    }


def _reference_forward(params, x_nchw):
    def conv(x, w, b):
        y = jax.lax.conv_general_dilated(
            x, w, window_strides=(1, 1), padding="SAME",
            dimension_numbers=("NCHW", "OIHW", "NCHW"))
        return jax.nn.relu(y + b[None, :, None, None])

    def pool(x):
        return jax.lax.reduce_window(x, -jnp.inf, jax.lax.max,
                                     (1, 1, 2, 2), (1, 1, 2, 2), "VALID")

    x = pool(conv(x_nchw, params["conv1_w"], params["conv1_b"]))
    x = pool(conv(x, params["conv2_w"], params["conv2_b"]))
    return conv(x, params["conv3_w"], params["conv3_b"])


# ---------------------------------------------------------------------------

if __name__ == "__main__":
    key = jax.random.PRNGKey(0)
    pkey, xkey = jax.random.split(key)
    params = init_params(pkey)

    # (batch=2, channels=1, 16x16 grid) -- GridEncoder expects 1 input channel.
    x = jax.random.normal(xkey, (2, 1, 16, 16), jnp.float32)

    out = jax.jit(grid_encoder_forward)(params, x)
    out = jax.block_until_ready(out)

    assert out.shape == (2, 128, 4, 4), out.shape
    assert bool(jnp.all(jnp.isfinite(out)))

    # Numerical check vs pure-XLA reference (loose tol: bf16 MXU operands).
    ref = _reference_forward(params, x)
    max_err = float(jnp.max(jnp.abs(out - ref)))
    assert max_err < 2e-2, f"max abs err vs reference: {max_err}"

    print("KERNEL_OK")
</pallas_src>

<mosaic_0001>
module attributes {stable_mosaic.version = 11 : i64} {
  func.func @_grid_encoder_kernel(%arg0: i32, %arg1: memref<1x16x16xf32, #tpu.memory_space<vmem>>, %arg2: memref<9x32xf32, #tpu.memory_space<vmem>>, %arg3: memref<1x32xf32, #tpu.memory_space<vmem>>, %arg4: memref<288x64xbf16, #tpu.memory_space<vmem>>, %arg5: memref<1x64xf32, #tpu.memory_space<vmem>>, %arg6: memref<576x128xbf16, #tpu.memory_space<vmem>>, %arg7: memref<1x128xf32, #tpu.memory_space<vmem>>, %arg8: memref<1x16x128xf32, #tpu.memory_space<vmem>>, %arg9: memref<1x18x18x32xf32, #tpu.memory_space<vmem>>, %arg10: memref<1x10x10x32xbf16, #tpu.memory_space<vmem>>, %arg11: memref<1x6x6x64xbf16, #tpu.memory_space<vmem>>, %arg12: memref<64x288xbf16, #tpu.memory_space<vmem>>, %arg13: memref<16x576xbf16, #tpu.memory_space<vmem>>) attributes {dimension_semantics = [#tpu.dimension_semantics<parallel>], iteration_bounds = array<i64: 2>, scalar_prefetch = 0 : i64, scratch_operands = 5 : i64, tpu.core_type = #tpu.core_type<tc>, window_params = [{transform_indices = @transform_0, window_bounds = array<i64: 1, 16, 16>}, {pipeline_mode = #tpu.pipeline_mode<synchronous>, transform_indices = @transform_1, window_bounds = array<i64: 9, 32>}, {pipeline_mode = #tpu.pipeline_mode<synchronous>, transform_indices = @transform_2, window_bounds = array<i64: 1, 32>}, {pipeline_mode = #tpu.pipeline_mode<synchronous>, transform_indices = @transform_3, window_bounds = array<i64: 288, 64>}, {pipeline_mode = #tpu.pipeline_mode<synchronous>, transform_indices = @transform_4, window_bounds = array<i64: 1, 64>}, {pipeline_mode = #tpu.pipeline_mode<synchronous>, transform_indices = @transform_5, window_bounds = array<i64: 576, 128>}, {pipeline_mode = #tpu.pipeline_mode<synchronous>, transform_indices = @transform_6, window_bounds = array<i64: 1, 128>}, {transform_indices = @transform_7, window_bounds = array<i64: 1, 16, 128>}]} {
    %cst = arith.constant 0.000000e+00 : f32
    %0 = vector.broadcast %cst : f32 to vector<1x1x18x32xf32>
    %c0 = arith.constant 0 : index
    %c0_0 = arith.constant 0 : index
    %c0_1 = arith.constant 0 : index
    %c0_2 = arith.constant 0 : index
    %1 = vector.load %arg9[%c0, %c0_0, %c0_1, %c0_2] : memref<1x18x18x32xf32, #tpu.memory_space<vmem>>, vector<1x1x18x32xf32>
    tpu.vector_store %arg9[%c0, %c0_0, %c0_1, %c0_2], %0 {strides = array<i32>} : memref<1x18x18x32xf32, #tpu.memory_space<vmem>>, vector<1x1x18x32xf32>,
    %cst_3 = arith.constant 0.000000e+00 : f32
    %2 = vector.broadcast %cst_3 : f32 to vector<1x1x18x32xf32>
    %c0_4 = arith.constant 0 : index
    %c17 = arith.constant 17 : index
    %c0_5 = arith.constant 0 : index
    %c0_6 = arith.constant 0 : index
    %3 = vector.load %arg9[%c0_4, %c17, %c0_5, %c0_6] : memref<1x18x18x32xf32, #tpu.memory_space<vmem>>, vector<1x1x18x32xf32>
    tpu.vector_store %arg9[%c0_4, %c17, %c0_5, %c0_6], %2 {strides = array<i32>} : memref<1x18x18x32xf32, #tpu.memory_space<vmem>>, vector<1x1x18x32xf32>,
    %cst_7 = arith.constant 0.000000e+00 : f32
    %4 = vector.broadcast %cst_7 : f32 to vector<1x18x1x32xf32>
    %c0_8 = arith.constant 0 : index
    %c0_9 = arith.constant 0 : index
    %c0_10 = arith.constant 0 : index
    %c0_11 = arith.constant 0 : index
    %5 = vector.load %arg9[%c0_8, %c0_9, %c0_10, %c0_11] : memref<1x18x18x32xf32, #tpu.memory_space<vmem>>, vector<1x18x1x32xf32>
    tpu.vector_store %arg9[%c0_8, %c0_9, %c0_10, %c0_11], %4 {strides = array<i32>} : memref<1x18x18x32xf32, #tpu.memory_space<vmem>>, vector<1x18x1x32xf32>,
    %cst_12 = arith.constant 0.000000e+00 : f32
    %6 = vector.broadcast %cst_12 : f32 to vector<1x18x1x32xf32>
    %c0_13 = arith.constant 0 : index
    %c0_14 = arith.constant 0 : index
    %c17_15 = arith.constant 17 : index
    %c0_16 = arith.constant 0 : index
    %7 = vector.load %arg9[%c0_13, %c0_14, %c17_15, %c0_16] : memref<1x18x18x32xf32, #tpu.memory_space<vmem>>, vector<1x18x1x32xf32>
    tpu.vector_store %arg9[%c0_13, %c0_14, %c17_15, %c0_16], %6 {strides = array<i32>} : memref<1x18x18x32xf32, #tpu.memory_space<vmem>>, vector<1x18x1x32xf32>,
    %cst_17 = arith.constant 0.000000e+00 : bf16
    %8 = vector.broadcast %cst_17 : bf16 to vector<1x1x10x32xbf16>
    %c0_18 = arith.constant 0 : index
    %c0_19 = arith.constant 0 : index
    %c0_20 = arith.constant 0 : index
    %c0_21 = arith.constant 0 : index
    %9 = vector.load %arg10[%c0_18, %c0_19, %c0_20, %c0_21] : memref<1x10x10x32xbf16, #tpu.memory_space<vmem>>, vector<1x1x10x32xbf16>
    tpu.vector_store %arg10[%c0_18, %c0_19, %c0_20, %c0_21], %8 {strides = array<i32>} : memref<1x10x10x32xbf16, #tpu.memory_space<vmem>>, vector<1x1x10x32xbf16>,
    %cst_22 = arith.constant 0.000000e+00 : bf16
    %10 = vector.broadcast %cst_22 : bf16 to vector<1x1x10x32xbf16>
    %c0_23 = arith.constant 0 : index
    %c9 = arith.constant 9 : index
    %c0_24 = arith.constant 0 : index
    %c0_25 = arith.constant 0 : index
    %11 = vector.load %arg10[%c0_23, %c9, %c0_24, %c0_25] : memref<1x10x10x32xbf16, #tpu.memory_space<vmem>>, vector<1x1x10x32xbf16>
    tpu.vector_store %arg10[%c0_23, %c9, %c0_24, %c0_25], %10 {strides = array<i32>} : memref<1x10x10x32xbf16, #tpu.memory_space<vmem>>, vector<1x1x10x32xbf16>,
    %cst_26 = arith.constant 0.000000e+00 : bf16
    %12 = vector.broadcast %cst_26 : bf16 to vector<1x10x1x32xbf16>
    %c0_27 = arith.constant 0 : index
    %c0_28 = arith.constant 0 : index
    %c0_29 = arith.constant 0 : index
    %c0_30 = arith.constant 0 : index
    %13 = vector.load %arg10[%c0_27, %c0_28, %c0_29, %c0_30] : memref<1x10x10x32xbf16, #tpu.memory_space<vmem>>, vector<1x10x1x32xbf16>
    tpu.vector_store %arg10[%c0_27, %c0_28, %c0_29, %c0_30], %12 {strides = array<i32>} : memref<1x10x10x32xbf16, #tpu.memory_space<vmem>>, vector<1x10x1x32xbf16>,
    %cst_31 = arith.constant 0.000000e+00 : bf16
    %14 = vector.broadcast %cst_31 : bf16 to vector<1x10x1x32xbf16>
    %c0_32 = arith.constant 0 : index
    %c0_33 = arith.constant 0 : index
    %c9_34 = arith.constant 9 : index
    %c0_35 = arith.constant 0 : index
    %15 = vector.load %arg10[%c0_32, %c0_33, %c9_34, %c0_35] : memref<1x10x10x32xbf16, #tpu.memory_space<vmem>>, vector<1x10x1x32xbf16>
    tpu.vector_store %arg10[%c0_32, %c0_33, %c9_34, %c0_35], %14 {strides = array<i32>} : memref<1x10x10x32xbf16, #tpu.memory_space<vmem>>, vector<1x10x1x32xbf16>,
    %cst_36 = arith.constant 0.000000e+00 : bf16
    %16 = vector.broadcast %cst_36 : bf16 to vector<1x1x6x64xbf16>
    %c0_37 = arith.constant 0 : index
    %c0_38 = arith.constant 0 : index
    %c0_39 = arith.constant 0 : index
    %c0_40 = arith.constant 0 : index
    %17 = vector.load %arg11[%c0_37, %c0_38, %c0_39, %c0_40] : memref<1x6x6x64xbf16, #tpu.memory_space<vmem>>, vector<1x1x6x64xbf16>
    tpu.vector_store %arg11[%c0_37, %c0_38, %c0_39, %c0_40], %16 {strides = array<i32>} : memref<1x6x6x64xbf16, #tpu.memory_space<vmem>>, vector<1x1x6x64xbf16>,
    %cst_41 = arith.constant 0.000000e+00 : bf16
    %18 = vector.broadcast %cst_41 : bf16 to vector<1x1x6x64xbf16>
    %c0_42 = arith.constant 0 : index
    %c5 = arith.constant 5 : index
    %c0_43 = arith.constant 0 : index
    %c0_44 = arith.constant 0 : index
    %19 = vector.load %arg11[%c0_42, %c5, %c0_43, %c0_44] : memref<1x6x6x64xbf16, #tpu.memory_space<vmem>>, vector<1x1x6x64xbf16>
    tpu.vector_store %arg11[%c0_42, %c5, %c0_43, %c0_44], %18 {strides = array<i32>} : memref<1x6x6x64xbf16, #tpu.memory_space<vmem>>, vector<1x1x6x64xbf16>,
    %cst_45 = arith.constant 0.000000e+00 : bf16
    %20 = vector.broadcast %cst_45 : bf16 to vector<1x6x1x64xbf16>
    %c0_46 = arith.constant 0 : index
    %c0_47 = arith.constant 0 : index
    %c0_48 = arith.constant 0 : index
    %c0_49 = arith.constant 0 : index
    %21 = vector.load %arg11[%c0_46, %c0_47, %c0_48, %c0_49] : memref<1x6x6x64xbf16, #tpu.memory_space<vmem>>, vector<1x6x1x64xbf16>
    tpu.vector_store %arg11[%c0_46, %c0_47, %c0_48, %c0_49], %20 {strides = array<i32>} : memref<1x6x6x64xbf16, #tpu.memory_space<vmem>>, vector<1x6x1x64xbf16>,
    %cst_50 = arith.constant 0.000000e+00 : bf16
    %22 = vector.broadcast %cst_50 : bf16 to vector<1x6x1x64xbf16>
    %c0_51 = arith.constant 0 : index
    %c0_52 = arith.constant 0 : index
    %c5_53 = arith.constant 5 : index
    %c0_54 = arith.constant 0 : index
    %23 = vector.load %arg11[%c0_51, %c0_52, %c5_53, %c0_54] : memref<1x6x6x64xbf16, #tpu.memory_space<vmem>>, vector<1x6x1x64xbf16>
    tpu.vector_store %arg11[%c0_51, %c0_52, %c5_53, %c0_54], %22 {strides = array<i32>} : memref<1x6x6x64xbf16, #tpu.memory_space<vmem>>, vector<1x6x1x64xbf16>,
    %c0_55 = arith.constant 0 : index
    %c0_56 = arith.constant 0 : index
    %c0_57 = arith.constant 0 : index
    %24 = vector.load %arg1[%c0_55, %c0_56, %c0_57] : memref<1x16x16xf32, #tpu.memory_space<vmem>>, vector<1x16x16xf32>
    %25 = vector.shape_cast %24 : vector<1x16x16xf32> to vector<1x16x16x1xf32>
    %26 = vector.shape_cast %25 : vector<1x16x16x1xf32> to vector<1x16x16x1xf32>
    %27 = vector.broadcast %26 : vector<1x16x16x1xf32> to vector<1x16x16x32xf32>
    %c0_58 = arith.constant 0 : index
    %c1 = arith.constant 1 : index
    %c1_59 = arith.constant 1 : index
    %c0_60 = arith.constant 0 : index
    %28 = vector.load %arg9[%c0_58, %c1, %c1_59, %c0_60] : memref<1x18x18x32xf32, #tpu.memory_space<vmem>>, vector<1x16x16x32xf32>
    tpu.vector_store %arg9[%c0_58, %c1, %c1_59, %c0_60], %27 {strides = array<i32>} : memref<1x18x18x32xf32, #tpu.memory_space<vmem>>, vector<1x16x16x32xf32>,
    %cst_61 = arith.constant 0.000000e+00 : f32
    %29 = vector.broadcast %cst_61 : f32 to vector<1x16x16x32xf32>
    %c0_62 = arith.constant 0 : index
    %c0_63 = arith.constant 0 : index
    %c0_64 = arith.constant 0 : index
    %c0_65 = arith.constant 0 : index
    %30 = vector.load %arg9[%c0_62, %c0_63, %c0_64, %c0_65] : memref<1x18x18x32xf32, #tpu.memory_space<vmem>>, vector<1x16x16x32xf32>
    %c0_66 = arith.constant 0 : index
    %c0_67 = arith.constant 0 : index
    %31 = vector.load %arg2[%c0_66, %c0_67] : memref<9x32xf32, #tpu.memory_space<vmem>>, vector<1x32xf32>
    %32 = vector.shape_cast %31 : vector<1x32xf32> to vector<32xf32>
    %33 = vector.shape_cast %32 : vector<32xf32> to vector<1x1x1x32xf32>
    %34 = vector.broadcast %33 : vector<1x1x1x32xf32> to vector<1x16x16x32xf32>
    %35 = arith.mulf %30, %34 : vector<1x16x16x32xf32>
    %36 = arith.addf %29, %35 : vector<1x16x16x32xf32>
    %c0_68 = arith.constant 0 : index
    %c0_69 = arith.constant 0 : index
    %c1_70 = arith.constant 1 : index
    %c0_71 = arith.constant 0 : index
    %37 = vector.load %arg9[%c0_68, %c0_69, %c1_70, %c0_71] : memref<1x18x18x32xf32, #tpu.memory_space<vmem>>, vector<1x16x16x32xf32>
    %c1_72 = arith.constant 1 : index
    %c0_73 = arith.constant 0 : index
    %38 = vector.load %arg2[%c1_72, %c0_73] : memref<9x32xf32, #tpu.memory_space<vmem>>, vector<1x32xf32>
    %39 = vector.shape_cast %38 : vector<1x32xf32> to vector<32xf32>
    %40 = vector.shape_cast %39 : vector<32xf32> to vector<1x1x1x32xf32>
    %41 = vector.broadcast %40 : vector<1x1x1x32xf32> to vector<1x16x16x32xf32>
    %42 = arith.mulf %37, %41 : vector<1x16x16x32xf32>
    %43 = arith.addf %36, %42 : vector<1x16x16x32xf32>
    %c0_74 = arith.constant 0 : index
    %c0_75 = arith.constant 0 : index
    %c2 = arith.constant 2 : index
    %c0_76 = arith.constant 0 : index
    %44 = vector.load %arg9[%c0_74, %c0_75, %c2, %c0_76] : memref<1x18x18x32xf32, #tpu.memory_space<vmem>>, vector<1x16x16x32xf32>
    %c2_77 = arith.constant 2 : index
    %c0_78 = arith.constant 0 : index
    %45 = vector.load %arg2[%c2_77, %c0_78] : memref<9x32xf32, #tpu.memory_space<vmem>>, vector<1x32xf32>
    %46 = vector.shape_cast %45 : vector<1x32xf32> to vector<32xf32>
    %47 = vector.shape_cast %46 : vector<32xf32> to vector<1x1x1x32xf32>
    %48 = vector.broadcast %47 : vector<1x1x1x32xf32> to vector<1x16x16x32xf32>
    %49 = arith.mulf %44, %48 : vector<1x16x16x32xf32>
    %50 = arith.addf %43, %49 : vector<1x16x16x32xf32>
    %c0_79 = arith.constant 0 : index
    %c1_80 = arith.constant 1 : index
    %c0_81 = arith.constant 0 : index
    %c0_82 = arith.constant 0 : index
    %51 = vector.load %arg9[%c0_79, %c1_80, %c0_81, %c0_82] : memref<1x18x18x32xf32, #tpu.memory_space<vmem>>, vector<1x16x16x32xf32>
    %c3 = arith.constant 3 : index
    %c0_83 = arith.constant 0 : index
    %52 = vector.load %arg2[%c3, %c0_83] : memref<9x32xf32, #tpu.memory_space<vmem>>, vector<1x32xf32>
    %53 = vector.shape_cast %52 : vector<1x32xf32> to vector<32xf32>
    %54 = vector.shape_cast %53 : vector<32xf32> to vector<1x1x1x32xf32>
    %55 = vector.broadcast %54 : vector<1x1x1x32xf32> to vector<1x16x16x32xf32>
    %56 = arith.mulf %51, %55 : vector<1x16x16x32xf32>
    %57 = arith.addf %50, %56 : vector<1x16x16x32xf32>
    %c0_84 = arith.constant 0 : index
    %c1_85 = arith.constant 1 : index
    %c1_86 = arith.constant 1 : index
    %c0_87 = arith.constant 0 : index
    %58 = vector.load %arg9[%c0_84, %c1_85, %c1_86, %c0_87] : memref<1x18x18x32xf32, #tpu.memory_space<vmem>>, vector<1x16x16x32xf32>
    %c4 = arith.constant 4 : index
    %c0_88 = arith.constant 0 : index
    %59 = vector.load %arg2[%c4, %c0_88] : memref<9x32xf32, #tpu.memory_space<vmem>>, vector<1x32xf32>
    %60 = vector.shape_cast %59 : vector<1x32xf32> to vector<32xf32>
    %61 = vector.shape_cast %60 : vector<32xf32> to vector<1x1x1x32xf32>
    %62 = vector.broadcast %61 : vector<1x1x1x32xf32> to vector<1x16x16x32xf32>
    %63 = arith.mulf %58, %62 : vector<1x16x16x32xf32>
    %64 = arith.addf %57, %63 : vector<1x16x16x32xf32>
    %c0_89 = arith.constant 0 : index
    %c1_90 = arith.constant 1 : index
    %c2_91 = arith.constant 2 : index
    %c0_92 = arith.constant 0 : index
    %65 = vector.load %arg9[%c0_89, %c1_90, %c2_91, %c0_92] : memref<1x18x18x32xf32, #tpu.memory_space<vmem>>, vector<1x16x16x32xf32>
    %c5_93 = arith.constant 5 : index
    %c0_94 = arith.constant 0 : index
    %66 = vector.load %arg2[%c5_93, %c0_94] : memref<9x32xf32, #tpu.memory_space<vmem>>, vector<1x32xf32>
    %67 = vector.shape_cast %66 : vector<1x32xf32> to vector<32xf32>
    %68 = vector.shape_cast %67 : vector<32xf32> to vector<1x1x1x32xf32>
    %69 = vector.broadcast %68 : vector<1x1x1x32xf32> to vector<1x16x16x32xf32>
    %70 = arith.mulf %65, %69 : vector<1x16x16x32xf32>
    %71 = arith.addf %64, %70 : vector<1x16x16x32xf32>
    %c0_95 = arith.constant 0 : index
    %c2_96 = arith.constant 2 : index
    %c0_97 = arith.constant 0 : index
    %c0_98 = arith.constant 0 : index
    %72 = vector.load %arg9[%c0_95, %c2_96, %c0_97, %c0_98] : memref<1x18x18x32xf32, #tpu.memory_space<vmem>>, vector<1x16x16x32xf32>
    %c6 = arith.constant 6 : index
    %c0_99 = arith.constant 0 : index
    %73 = vector.load %arg2[%c6, %c0_99] : memref<9x32xf32, #tpu.memory_space<vmem>>, vector<1x32xf32>
    %74 = vector.shape_cast %73 : vector<1x32xf32> to vector<32xf32>
    %75 = vector.shape_cast %74 : vector<32xf32> to vector<1x1x1x32xf32>
    %76 = vector.broadcast %75 : vector<1x1x1x32xf32> to vector<1x16x16x32xf32>
    %77 = arith.mulf %72, %76 : vector<1x16x16x32xf32>
    %78 = arith.addf %71, %77 : vector<1x16x16x32xf32>
    %c0_100 = arith.constant 0 : index
    %c2_101 = arith.constant 2 : index
    %c1_102 = arith.constant 1 : index
    %c0_103 = arith.constant 0 : index
    %79 = vector.load %arg9[%c0_100, %c2_101, %c1_102, %c0_103] : memref<1x18x18x32xf32, #tpu.memory_space<vmem>>, vector<1x16x16x32xf32>
    %c7 = arith.constant 7 : index
    %c0_104 = arith.constant 0 : index
    %80 = vector.load %arg2[%c7, %c0_104] : memref<9x32xf32, #tpu.memory_space<vmem>>, vector<1x32xf32>
    %81 = vector.shape_cast %80 : vector<1x32xf32> to vector<32xf32>
    %82 = vector.shape_cast %81 : vector<32xf32> to vector<1x1x1x32xf32>
    %83 = vector.broadcast %82 : vector<1x1x1x32xf32> to vector<1x16x16x32xf32>
    %84 = arith.mulf %79, %83 : vector<1x16x16x32xf32>
    %85 = arith.addf %78, %84 : vector<1x16x16x32xf32>
    %c0_105 = arith.constant 0 : index
    %c2_106 = arith.constant 2 : index
    %c2_107 = arith.constant 2 : index
    %c0_108 = arith.constant 0 : index
    %86 = vector.load %arg9[%c0_105, %c2_106, %c2_107, %c0_108] : memref<1x18x18x32xf32, #tpu.memory_space<vmem>>, vector<1x16x16x32xf32>
    %c8 = arith.constant 8 : index
    %c0_109 = arith.constant 0 : index
    %87 = vector.load %arg2[%c8, %c0_109] : memref<9x32xf32, #tpu.memory_space<vmem>>, vector<1x32xf32>
    %88 = vector.shape_cast %87 : vector<1x32xf32> to vector<32xf32>
    %89 = vector.shape_cast %88 : vector<32xf32> to vector<1x1x1x32xf32>
    %90 = vector.broadcast %89 : vector<1x1x1x32xf32> to vector<1x16x16x32xf32>
    %91 = arith.mulf %86, %90 : vector<1x16x16x32xf32>
    %92 = arith.addf %85, %91 : vector<1x16x16x32xf32>
    %c0_110 = arith.constant 0 : index
    %c0_111 = arith.constant 0 : index
    %93 = vector.load %arg3[%c0_110, %c0_111] : memref<1x32xf32, #tpu.memory_space<vmem>>, vector<1x32xf32>
    %94 = vector.shape_cast %93 : vector<1x32xf32> to vector<32xf32>
    %95 = vector.shape_cast %94 : vector<32xf32> to vector<1x1x1x32xf32>
    %96 = vector.broadcast %95 : vector<1x1x1x32xf32> to vector<1x16x16x32xf32>
    %97 = arith.addf %92, %96 : vector<1x16x16x32xf32>
    %cst_112 = arith.constant 0.000000e+00 : f32
    %98 = vector.broadcast %cst_112 : f32 to vector<1x16x16x32xf32>
    %99 = arith.maximumf %97, %98 : vector<1x16x16x32xf32>
    %100 = vector.shape_cast %99 : vector<1x16x16x32xf32> to vector<1x16x8x2x32xf32>
    %cst_113 = arith.constant dense<0xFF800000> : vector<1x16x8x32xf32>
    %101 = vector.multi_reduction <maximumf>, %100, %cst_113 [3] : vector<1x16x8x2x32xf32> to vector<1x16x8x32xf32>
    %102 = vector.shape_cast %101 : vector<1x16x8x32xf32> to vector<1x8x2x8x32xf32>
    %cst_114 = arith.constant dense<0xFF800000> : vector<1x8x8x32xf32>
    %103 = vector.multi_reduction <maximumf>, %102, %cst_114 [2] : vector<1x8x2x8x32xf32> to vector<1x8x8x32xf32>
    %104 = arith.truncf %103 : vector<1x8x8x32xf32> to vector<1x8x8x32xbf16>
    %c0_115 = arith.constant 0 : index
    %c1_116 = arith.constant 1 : index
    %c1_117 = arith.constant 1 : index
    %c0_118 = arith.constant 0 : index
    %105 = vector.load %arg10[%c0_115, %c1_116, %c1_117, %c0_118] : memref<1x10x10x32xbf16, #tpu.memory_space<vmem>>, vector<1x8x8x32xbf16>
    tpu.vector_store %arg10[%c0_115, %c1_116, %c1_117, %c0_118], %104 {strides = array<i32>} : memref<1x10x10x32xbf16, #tpu.memory_space<vmem>>, vector<1x8x8x32xbf16>,
    %c0_119 = arith.constant 0 : index
    %c0_120 = arith.constant 0 : index
    %c0_121 = arith.constant 0 : index
    %c0_122 = arith.constant 0 : index
    %106 = vector.load %arg10[%c0_119, %c0_120, %c0_121, %c0_122] : memref<1x10x10x32xbf16, #tpu.memory_space<vmem>>, vector<1x8x8x32xbf16>
    %107 = vector.shape_cast %106 : vector<1x8x8x32xbf16> to vector<64x32xbf16>
    %c0_123 = arith.constant 0 : index
    %c0_124 = arith.constant 0 : index
    %108 = vector.load %arg12[%c0_123, %c0_124] : memref<64x288xbf16, #tpu.memory_space<vmem>>, vector<64x32xbf16>
    tpu.vector_store %arg12[%c0_123, %c0_124], %107 {strides = array<i32>} : memref<64x288xbf16, #tpu.memory_space<vmem>>, vector<64x32xbf16>,
    %c0_125 = arith.constant 0 : index
    %c0_126 = arith.constant 0 : index
    %c1_127 = arith.constant 1 : index
    %c0_128 = arith.constant 0 : index
    %109 = vector.load %arg10[%c0_125, %c0_126, %c1_127, %c0_128] : memref<1x10x10x32xbf16, #tpu.memory_space<vmem>>, vector<1x8x8x32xbf16>
    %110 = vector.shape_cast %109 : vector<1x8x8x32xbf16> to vector<64x32xbf16>
    %c0_129 = arith.constant 0 : index
    %c32 = arith.constant 32 : index
    %111 = vector.load %arg12[%c0_129, %c32] : memref<64x288xbf16, #tpu.memory_space<vmem>>, vector<64x32xbf16>
    tpu.vector_store %arg12[%c0_129, %c32], %110 {strides = array<i32>} : memref<64x288xbf16, #tpu.memory_space<vmem>>, vector<64x32xbf16>,
    %c0_130 = arith.constant 0 : index
    %c0_131 = arith.constant 0 : index
    %c2_132 = arith.constant 2 : index
    %c0_133 = arith.constant 0 : index
    %112 = vector.load %arg10[%c0_130, %c0_131, %c2_132, %c0_133] : memref<1x10x10x32xbf16, #tpu.memory_space<vmem>>, vector<1x8x8x32xbf16>
    %113 = vector.shape_cast %112 : vector<1x8x8x32xbf16> to vector<64x32xbf16>
    %c0_134 = arith.constant 0 : index
    %c64 = arith.constant 64 : index
    %114 = vector.load %arg12[%c0_134, %c64] : memref<64x288xbf16, #tpu.memory_space<vmem>>, vector<64x32xbf16>
    tpu.vector_store %arg12[%c0_134, %c64], %113 {strides = array<i32>} : memref<64x288xbf16, #tpu.memory_space<vmem>>, vector<64x32xbf16>,
    %c0_135 = arith.constant 0 : index
    %c1_136 = arith.constant 1 : index
    %c0_137 = arith.constant 0 : index
    %c0_138 = arith.constant 0 : index
    %115 = vector.load %arg10[%c0_135, %c1_136, %c0_137, %c0_138] : memref<1x10x10x32xbf16, #tpu.memory_space<vmem>>, vector<1x8x8x32xbf16>
    %116 = vector.shape_cast %115 : vector<1x8x8x32xbf16> to vector<64x32xbf16>
    %c0_139 = arith.constant 0 : index
    %c96 = arith.constant 96 : index
    %117 = vector.load %arg12[%c0_139, %c96] : memref<64x288xbf16, #tpu.memory_space<vmem>>, vector<64x32xbf16>
    tpu.vector_store %arg12[%c0_139, %c96], %116 {strides = array<i32>} : memref<64x288xbf16, #tpu.memory_space<vmem>>, vector<64x32xbf16>,
    %c0_140 = arith.constant 0 : index
    %c1_141 = arith.constant 1 : index
    %c1_142 = arith.constant 1 : index
    %c0_143 = arith.constant 0 : index
    %118 = vector.load %arg10[%c0_140, %c1_141, %c1_142, %c0_143] : memref<1x10x10x32xbf16, #tpu.memory_space<vmem>>, vector<1x8x8x32xbf16>
    %119 = vector.shape_cast %118 : vector<1x8x8x32xbf16> to vector<64x32xbf16>
    %c0_144 = arith.constant 0 : index
    %c128 = arith.constant 128 : index
    %120 = vector.load %arg12[%c0_144, %c128] : memref<64x288xbf16, #tpu.memory_space<vmem>>, vector<64x32xbf16>
    tpu.vector_store %arg12[%c0_144, %c128], %119 {strides = array<i32>} : memref<64x288xbf16, #tpu.memory_space<vmem>>, vector<64x32xbf16>,
    %c0_145 = arith.constant 0 : index
    %c1_146 = arith.constant 1 : index
    %c2_147 = arith.constant 2 : index
    %c0_148 = arith.constant 0 : index
    %121 = vector.load %arg10[%c0_145, %c1_146, %c2_147, %c0_148] : memref<1x10x10x32xbf16, #tpu.memory_space<vmem>>, vector<1x8x8x32xbf16>
    %122 = vector.shape_cast %121 : vector<1x8x8x32xbf16> to vector<64x32xbf16>
    %c0_149 = arith.constant 0 : index
    %c160 = arith.constant 160 : index
    %123 = vector.load %arg12[%c0_149, %c160] : memref<64x288xbf16, #tpu.memory_space<vmem>>, vector<64x32xbf16>
    tpu.vector_store %arg12[%c0_149, %c160], %122 {strides = array<i32>} : memref<64x288xbf16, #tpu.memory_space<vmem>>, vector<64x32xbf16>,
    %c0_150 = arith.constant 0 : index
    %c2_151 = arith.constant 2 : index
    %c0_152 = arith.constant 0 : index
    %c0_153 = arith.constant 0 : index
    %124 = vector.load %arg10[%c0_150, %c2_151, %c0_152, %c0_153] : memref<1x10x10x32xbf16, #tpu.memory_space<vmem>>, vector<1x8x8x32xbf16>
    %125 = vector.shape_cast %124 : vector<1x8x8x32xbf16> to vector<64x32xbf16>
    %c0_154 = arith.constant 0 : index
    %c192 = arith.constant 192 : index
    %126 = vector.load %arg12[%c0_154, %c192] : memref<64x288xbf16, #tpu.memory_space<vmem>>, vector<64x32xbf16>
    tpu.vector_store %arg12[%c0_154, %c192], %125 {strides = array<i32>} : memref<64x288xbf16, #tpu.memory_space<vmem>>, vector<64x32xbf16>,
    %c0_155 = arith.constant 0 : index
    %c2_156 = arith.constant 2 : index
    %c1_157 = arith.constant 1 : index
    %c0_158 = arith.constant 0 : index
    %127 = vector.load %arg10[%c0_155, %c2_156, %c1_157, %c0_158] : memref<1x10x10x32xbf16, #tpu.memory_space<vmem>>, vector<1x8x8x32xbf16>
    %128 = vector.shape_cast %127 : vector<1x8x8x32xbf16> to vector<64x32xbf16>
    %c0_159 = arith.constant 0 : index
    %c224 = arith.constant 224 : index
    %129 = vector.load %arg12[%c0_159, %c224] : memref<64x288xbf16, #tpu.memory_space<vmem>>, vector<64x32xbf16>
    tpu.vector_store %arg12[%c0_159, %c224], %128 {strides = array<i32>} : memref<64x288xbf16, #tpu.memory_space<vmem>>, vector<64x32xbf16>,
    %c0_160 = arith.constant 0 : index
    %c2_161 = arith.constant 2 : index
    %c2_162 = arith.constant 2 : index
    %c0_163 = arith.constant 0 : index
    %130 = vector.load %arg10[%c0_160, %c2_161, %c2_162, %c0_163] : memref<1x10x10x32xbf16, #tpu.memory_space<vmem>>, vector<1x8x8x32xbf16>
    %131 = vector.shape_cast %130 : vector<1x8x8x32xbf16> to vector<64x32xbf16>
    %c0_164 = arith.constant 0 : index
    %c256 = arith.constant 256 : index
    %132 = vector.load %arg12[%c0_164, %c256] : memref<64x288xbf16, #tpu.memory_space<vmem>>, vector<64x32xbf16>
    tpu.vector_store %arg12[%c0_164, %c256], %131 {strides = array<i32>} : memref<64x288xbf16, #tpu.memory_space<vmem>>, vector<64x32xbf16>,
    %c0_165 = arith.constant 0 : index
    %c0_166 = arith.constant 0 : index
    %133 = vector.load %arg12[%c0_165, %c0_166] : memref<64x288xbf16, #tpu.memory_space<vmem>>, vector<64x288xbf16>
    %c0_167 = arith.constant 0 : index
    %c0_168 = arith.constant 0 : index
    %134 = vector.load %arg4[%c0_167, %c0_168] : memref<288x64xbf16, #tpu.memory_space<vmem>>, vector<288x64xbf16>
    %cst_169 = arith.constant dense<0.000000e+00> : vector<64x64xf32>
    %135 = tpu.matmul %133, %134, %cst_169 {dimension_numbers = #tpu.dot_dimension_numbers<[1], [0], [0], [1], [0, 0, 1, 1], [], []>} : vector<64x288xbf16>, vector<288x64xbf16>, vector<64x64xf32> -> vector<64x64xf32>
    %c0_170 = arith.constant 0 : index
    %c0_171 = arith.constant 0 : index
    %136 = vector.load %arg5[%c0_170, %c0_171] : memref<1x64xf32, #tpu.memory_space<vmem>>, vector<1x64xf32>
    %137 = vector.broadcast %136 : vector<1x64xf32> to vector<64x64xf32>
    %138 = arith.addf %135, %137 : vector<64x64xf32>
    %cst_172 = arith.constant 0.000000e+00 : f32
    %139 = vector.broadcast %cst_172 : f32 to vector<64x64xf32>
    %140 = arith.maximumf %138, %139 : vector<64x64xf32>
    %141 = vector.shape_cast %140 : vector<64x64xf32> to vector<1x8x8x64xf32>
    %142 = vector.shape_cast %141 : vector<1x8x8x64xf32> to vector<1x8x4x2x64xf32>
    %cst_173 = arith.constant dense<0xFF800000> : vector<1x8x4x64xf32>
    %143 = vector.multi_reduction <maximumf>, %142, %cst_173 [3] : vector<1x8x4x2x64xf32> to vector<1x8x4x64xf32>
    %144 = vector.shape_cast %143 : vector<1x8x4x64xf32> to vector<1x4x2x4x64xf32>
    %cst_174 = arith.constant dense<0xFF800000> : vector<1x4x4x64xf32>
    %145 = vector.multi_reduction <maximumf>, %144, %cst_174 [2] : vector<1x4x2x4x64xf32> to vector<1x4x4x64xf32>
    %146 = arith.truncf %145 : vector<1x4x4x64xf32> to vector<1x4x4x64xbf16>
    %c0_175 = arith.constant 0 : index
    %c1_176 = arith.constant 1 : index
    %c1_177 = arith.constant 1 : index
    %c0_178 = arith.constant 0 : index
    %147 = vector.load %arg11[%c0_175, %c1_176, %c1_177, %c0_178] : memref<1x6x6x64xbf16, #tpu.memory_space<vmem>>, vector<1x4x4x64xbf16>
    tpu.vector_store %arg11[%c0_175, %c1_176, %c1_177, %c0_178], %146 {strides = array<i32>} : memref<1x6x6x64xbf16, #tpu.memory_space<vmem>>, vector<1x4x4x64xbf16>,
    %c0_179 = arith.constant 0 : index
    %c0_180 = arith.constant 0 : index
    %c0_181 = arith.constant 0 : index
    %c0_182 = arith.constant 0 : index
    %148 = vector.load %arg11[%c0_179, %c0_180, %c0_181, %c0_182] : memref<1x6x6x64xbf16, #tpu.memory_space<vmem>>, vector<1x4x4x64xbf16>
    %149 = vector.shape_cast %148 : vector<1x4x4x64xbf16> to vector<16x64xbf16>
    %c0_183 = arith.constant 0 : index
    %c0_184 = arith.constant 0 : index
    %150 = vector.load %arg13[%c0_183, %c0_184] : memref<16x576xbf16, #tpu.memory_space<vmem>>, vector<16x64xbf16>
    tpu.vector_store %arg13[%c0_183, %c0_184], %149 {strides = array<i32>} : memref<16x576xbf16, #tpu.memory_space<vmem>>, vector<16x64xbf16>,
    %c0_185 = arith.constant 0 : index
    %c0_186 = arith.constant 0 : index
    %c1_187 = arith.constant 1 : index
    %c0_188 = arith.constant 0 : index
    %151 = vector.load %arg11[%c0_185, %c0_186, %c1_187, %c0_188] : memref<1x6x6x64xbf16, #tpu.memory_space<vmem>>, vector<1x4x4x64xbf16>
    %152 = vector.shape_cast %151 : vector<1x4x4x64xbf16> to vector<16x64xbf16>
    %c0_189 = arith.constant 0 : index
    %c64_190 = arith.constant 64 : index
    %153 = vector.load %arg13[%c0_189, %c64_190] : memref<16x576xbf16, #tpu.memory_space<vmem>>, vector<16x64xbf16>
    tpu.vector_store %arg13[%c0_189, %c64_190], %152 {strides = array<i32>} : memref<16x576xbf16, #tpu.memory_space<vmem>>, vector<16x64xbf16>,
    %c0_191 = arith.constant 0 : index
    %c0_192 = arith.constant 0 : index
    %c2_193 = arith.constant 2 : index
    %c0_194 = arith.constant 0 : index
    %154 = vector.load %arg11[%c0_191, %c0_192, %c2_193, %c0_194] : memref<1x6x6x64xbf16, #tpu.memory_space<vmem>>, vector<1x4x4x64xbf16>
    %155 = vector.shape_cast %154 : vector<1x4x4x64xbf16> to vector<16x64xbf16>
    %c0_195 = arith.constant 0 : index
    %c128_196 = arith.constant 128 : index
    %156 = vector.load %arg13[%c0_195, %c128_196] : memref<16x576xbf16, #tpu.memory_space<vmem>>, vector<16x64xbf16>
    tpu.vector_store %arg13[%c0_195, %c128_196], %155 {strides = array<i32>} : memref<16x576xbf16, #tpu.memory_space<vmem>>, vector<16x64xbf16>,
    %c0_197 = arith.constant 0 : index
    %c1_198 = arith.constant 1 : index
    %c0_199 = arith.constant 0 : index
    %c0_200 = arith.constant 0 : index
    %157 = vector.load %arg11[%c0_197, %c1_198, %c0_199, %c0_200] : memref<1x6x6x64xbf16, #tpu.memory_space<vmem>>, vector<1x4x4x64xbf16>
    %158 = vector.shape_cast %157 : vector<1x4x4x64xbf16> to vector<16x64xbf16>
    %c0_201 = arith.constant 0 : index
    %c192_202 = arith.constant 192 : index
    %159 = vector.load %arg13[%c0_201, %c192_202] : memref<16x576xbf16, #tpu.memory_space<vmem>>, vector<16x64xbf16>
    tpu.vector_store %arg13[%c0_201, %c192_202], %158 {strides = array<i32>} : memref<16x576xbf16, #tpu.memory_space<vmem>>, vector<16x64xbf16>,
    %c0_203 = arith.constant 0 : index
    %c1_204 = arith.constant 1 : index
    %c1_205 = arith.constant 1 : index
    %c0_206 = arith.constant 0 : index
    %160 = vector.load %arg11[%c0_203, %c1_204, %c1_205, %c0_206] : memref<1x6x6x64xbf16, #tpu.memory_space<vmem>>, vector<1x4x4x64xbf16>
    %161 = vector.shape_cast %160 : vector<1x4x4x64xbf16> to vector<16x64xbf16>
    %c0_207 = arith.constant 0 : index
    %c256_208 = arith.constant 256 : index
    %162 = vector.load %arg13[%c0_207, %c256_208] : memref<16x576xbf16, #tpu.memory_space<vmem>>, vector<16x64xbf16>
    tpu.vector_store %arg13[%c0_207, %c256_208], %161 {strides = array<i32>} : memref<16x576xbf16, #tpu.memory_space<vmem>>, vector<16x64xbf16>,
    %c0_209 = arith.constant 0 : index
    %c1_210 = arith.constant 1 : index
    %c2_211 = arith.constant 2 : index
    %c0_212 = arith.constant 0 : index
    %163 = vector.load %arg11[%c0_209, %c1_210, %c2_211, %c0_212] : memref<1x6x6x64xbf16, #tpu.memory_space<vmem>>, vector<1x4x4x64xbf16>
    %164 = vector.shape_cast %163 : vector<1x4x4x64xbf16> to vector<16x64xbf16>
    %c0_213 = arith.constant 0 : index
    %c320 = arith.constant 320 : index
    %165 = vector.load %arg13[%c0_213, %c320] : memref<16x576xbf16, #tpu.memory_space<vmem>>, vector<16x64xbf16>
    tpu.vector_store %arg13[%c0_213, %c320], %164 {strides = array<i32>} : memref<16x576xbf16, #tpu.memory_space<vmem>>, vector<16x64xbf16>,
    %c0_214 = arith.constant 0 : index
    %c2_215 = arith.constant 2 : index
    %c0_216 = arith.constant 0 : index
    %c0_217 = arith.constant 0 : index
    %166 = vector.load %arg11[%c0_214, %c2_215, %c0_216, %c0_217] : memref<1x6x6x64xbf16, #tpu.memory_space<vmem>>, vector<1x4x4x64xbf16>
    %167 = vector.shape_cast %166 : vector<1x4x4x64xbf16> to vector<16x64xbf16>
    %c0_218 = arith.constant 0 : index
    %c384 = arith.constant 384 : index
    %168 = vector.load %arg13[%c0_218, %c384] : memref<16x576xbf16, #tpu.memory_space<vmem>>, vector<16x64xbf16>
    tpu.vector_store %arg13[%c0_218, %c384], %167 {strides = array<i32>} : memref<16x576xbf16, #tpu.memory_space<vmem>>, vector<16x64xbf16>,
    %c0_219 = arith.constant 0 : index
    %c2_220 = arith.constant 2 : index
    %c1_221 = arith.constant 1 : index
    %c0_222 = arith.constant 0 : index
    %169 = vector.load %arg11[%c0_219, %c2_220, %c1_221, %c0_222] : memref<1x6x6x64xbf16, #tpu.memory_space<vmem>>, vector<1x4x4x64xbf16>
    %170 = vector.shape_cast %169 : vector<1x4x4x64xbf16> to vector<16x64xbf16>
    %c0_223 = arith.constant 0 : index
    %c448 = arith.constant 448 : index
    %171 = vector.load %arg13[%c0_223, %c448] : memref<16x576xbf16, #tpu.memory_space<vmem>>, vector<16x64xbf16>
    tpu.vector_store %arg13[%c0_223, %c448], %170 {strides = array<i32>} : memref<16x576xbf16, #tpu.memory_space<vmem>>, vector<16x64xbf16>,
    %c0_224 = arith.constant 0 : index
    %c2_225 = arith.constant 2 : index
    %c2_226 = arith.constant 2 : index
    %c0_227 = arith.constant 0 : index
    %172 = vector.load %arg11[%c0_224, %c2_225, %c2_226, %c0_227] : memref<1x6x6x64xbf16, #tpu.memory_space<vmem>>, vector<1x4x4x64xbf16>
    %173 = vector.shape_cast %172 : vector<1x4x4x64xbf16> to vector<16x64xbf16>
    %c0_228 = arith.constant 0 : index
    %c512 = arith.constant 512 : index
    %174 = vector.load %arg13[%c0_228, %c512] : memref<16x576xbf16, #tpu.memory_space<vmem>>, vector<16x64xbf16>
    tpu.vector_store %arg13[%c0_228, %c512], %173 {strides = array<i32>} : memref<16x576xbf16, #tpu.memory_space<vmem>>, vector<16x64xbf16>,
    %c0_229 = arith.constant 0 : index
    %c0_230 = arith.constant 0 : index
    %175 = vector.load %arg13[%c0_229, %c0_230] : memref<16x576xbf16, #tpu.memory_space<vmem>>, vector<16x576xbf16>
    %c0_231 = arith.constant 0 : index
    %c0_232 = arith.constant 0 : index
    %176 = vector.load %arg6[%c0_231, %c0_232] : memref<576x128xbf16, #tpu.memory_space<vmem>>, vector<576x128xbf16>
    %cst_233 = arith.constant dense<0.000000e+00> : vector<16x128xf32>
    %177 = tpu.matmul %175, %176, %cst_233 {dimension_numbers = #tpu.dot_dimension_numbers<[1], [0], [0], [1], [0, 0, 1, 1], [], []>} : vector<16x576xbf16>, vector<576x128xbf16>, vector<16x128xf32> -> vector<16x128xf32>
    %c0_234 = arith.constant 0 : index
    %c0_235 = arith.constant 0 : index
    %178 = vector.load %arg7[%c0_234, %c0_235] : memref<1x128xf32, #tpu.memory_space<vmem>>, vector<1x128xf32>
    %179 = vector.broadcast %178 : vector<1x128xf32> to vector<16x128xf32>
    %180 = arith.addf %177, %179 : vector<16x128xf32>
    %cst_236 = arith.constant 0.000000e+00 : f32
    %181 = vector.broadcast %cst_236 : f32 to vector<16x128xf32>
    %182 = arith.maximumf %180, %181 : vector<16x128xf32>
    %183 = vector.shape_cast %182 : vector<16x128xf32> to vector<1x16x128xf32>
    %c0_237 = arith.constant 0 : index
    %c0_238 = arith.constant 0 : index
    %c0_239 = arith.constant 0 : index
    %184 = vector.load %arg8[%c0_237, %c0_238, %c0_239] : memref<1x16x128xf32, #tpu.memory_space<vmem>>, vector<1x16x128xf32>
    tpu.vector_store %arg8[%c0_237, %c0_238, %c0_239], %183 {strides = array<i32>} : memref<1x16x128xf32, #tpu.memory_space<vmem>>, vector<1x16x128xf32>,
    return
  }
  func.func @transform_0(%arg0: i32) -> (i32, i32, i32) {
    %c0_i32 = arith.constant 0 : i32
    %c0_i32_0 = arith.constant 0 : i32
    %c0_i32_1 = arith.constant 0 : i32
    return %arg0, %c0_i32, %c0_i32_0 : i32, i32, i32
  }
  func.func @transform_1(%arg0: i32) -> (i32, i32) {
    %c0_i32 = arith.constant 0 : i32
    %c0_i32_0 = arith.constant 0 : i32
    %c0_i32_1 = arith.constant 0 : i32
    return %c0_i32, %c0_i32_0 : i32, i32
  }
  func.func @transform_2(%arg0: i32) -> (i32, i32) {
    %c0_i32 = arith.constant 0 : i32
    %c0_i32_0 = arith.constant 0 : i32
    %c0_i32_1 = arith.constant 0 : i32
    return %c0_i32, %c0_i32_0 : i32, i32
  }
  func.func @transform_3(%arg0: i32) -> (i32, i32) {
    %c0_i32 = arith.constant 0 : i32
    %c0_i32_0 = arith.constant 0 : i32
    %c0_i32_1 = arith.constant 0 : i32
    return %c0_i32, %c0_i32_0 : i32, i32
  }
  func.func @transform_4(%arg0: i32) -> (i32, i32) {
    %c0_i32 = arith.constant 0 : i32
    %c0_i32_0 = arith.constant 0 : i32
    %c0_i32_1 = arith.constant 0 : i32
    return %c0_i32, %c0_i32_0 : i32, i32
  }
  func.func @transform_5(%arg0: i32) -> (i32, i32) {
    %c0_i32 = arith.constant 0 : i32
    %c0_i32_0 = arith.constant 0 : i32
    %c0_i32_1 = arith.constant 0 : i32
    return %c0_i32, %c0_i32_0 : i32, i32
  }
  func.func @transform_6(%arg0: i32) -> (i32, i32) {
    %c0_i32 = arith.constant 0 : i32
    %c0_i32_0 = arith.constant 0 : i32
    %c0_i32_1 = arith.constant 0 : i32
    return %c0_i32, %c0_i32_0 : i32, i32
  }
  func.func @transform_7(%arg0: i32) -> (i32, i32, i32) {
    %c0_i32 = arith.constant 0 : i32
    %c0_i32_0 = arith.constant 0 : i32
    %c0_i32_1 = arith.constant 0 : i32
    return %arg0, %c0_i32, %c0_i32_0 : i32, i32, i32
  }
}

</mosaic_0001>

<llo_original>
// kernel: grid_encoder_forward.1
$region0: #{grid_encoder_forward.1}
  #allocation0 [shape = 'u32[]', space=smem, size = 0x4, offset = 0x4, fixed_abs, tag = 'smem constant byte address 0x4 - core index']
  #allocation1 [shape = 'u32[144,128]{1,0:T(1,128)}', space=vmem, size = 0x12000, scoped, tag = 'internal scratch']
  #allocation2 [shape = 'f32[1,18,18,32]{3,2,1,0:T(8,128)}', space=vmem, size = 0x36000, scoped, tag = 'scratch operand']
  #allocation3 [shape = 'bf16[1,10,10,32]{3,2,1,0:T(8,128)(2,1)}', space=vmem, size = 0xa000, scoped, tag = 'scratch operand']
  #allocation4 [shape = 'bf16[1,6,6,64]{3,2,1,0:T(8,128)(2,1)}', space=vmem, size = 0x3000, scoped, tag = 'scratch operand']
  #allocation5 [shape = 'bf16[64,288]{1,0:T(16,128)(2,1)}', space=vmem, size = 0xc000, scoped, tag = 'scratch operand']
  #allocation6 [shape = 'bf16[16,576]{1,0:T(16,128)(2,1)}', space=vmem, size = 0x5000, scoped, tag = 'scratch operand']
  %s0 = inlined_call_operand.vmem [shape: f32[2,16,16], index: 0, kind: input, shape index: {}]
  %s1 = inlined_call_operand.vmem [shape: f32[9,32], index: 1, kind: input, shape index: {}]
  %s2 = inlined_call_operand.vmem [shape: f32[1,32], index: 2, kind: input, shape index: {}]
  %s3 = inlined_call_operand.vmem [shape: bf16[288,64], index: 3, kind: input, shape index: {}]
  %s4 = inlined_call_operand.vmem [shape: f32[1,64], index: 4, kind: input, shape index: {}]
  %s5 = inlined_call_operand.vmem [shape: bf16[576,128], index: 5, kind: input, shape index: {}]
  %s6 = inlined_call_operand.vmem [shape: f32[1,128], index: 6, kind: input, shape index: {}]
  %s7 = inlined_call_operand.hbm [shape: f32[2,16,128], index: 7, kind: output, shape index: {}]
  %s8 = sld [smem:[#allocation0]]
  $region61: #{grid_encoder_forward.1} parent=0
    _
  %s10 = ssub.s32 1, %s8
  %s11 = scalar_select 0, %s10, %s8
  $region1: #{grid_encoder_forward.1} parent=0
    #allocation7 [shape = 'u8[16384]{0}', space=vmem, size = 0x4000, scoped, tag = 'output window, operand 0']
    #allocation8 [shape = 's32[2]{0}', space=sflag, size = 0x8, scoped, tag = 'scoped memory for grid_encoder_forward.1']
    %12 = vsyncpa [#allocation8], 0
    %s13 = scalar_lea.sflag [#allocation8], 1
    %14 = vsyncpa %s13, 0
    loop: start=0, step=1, limit=4
    $region2: #{grid_encoder_forward.1} parent=1 // loop_pre_header
      _
    $region3: #{grid_encoder_forward.1} parent=1 // loop_header
      %s16 = sphi 0, %s20
      %p17 = scmp.ge.s32.totalorder %s16, 4
      %s26 = sphi 0, %s28
      %s29 = sphi 0, %s26
      %s30 = sphi 0, %s29
      %s46 = sphi 0, %s30
      %s50 = sphi 0, %s50
      %s52 = sphi 0, %s50
      %s53 = sphi 0, %s52
      %s67 = sphi 0, %s53
      %s71 = sphi 0, %s71
      %s73 = sphi 0, %s71
      %s74 = sphi 0, %s73
      %s88 = sphi 0, %s74
      %s92 = sphi 0, %s92
      %s94 = sphi 0, %s92
      %s95 = sphi 0, %s94
      %s109 = sphi 0, %s95
      %s113 = sphi 0, %s113
      %s115 = sphi 0, %s113
      %s116 = sphi 0, %s115
      %s130 = sphi 0, %s116
      %s134 = sphi 0, %s134
      %s136 = sphi 0, %s134
      %s137 = sphi 0, %s136
      %s151 = sphi 0, %s137
      %s155 = sphi 0, %s155
      %s157 = sphi 0, %s155
      %s158 = sphi 0, %s157
      %s172 = sphi 0, %s158
      %s178 = sphi 0, %s180
      %s181 = sphi 0, %s178
      %s182 = sphi 0, %s181
      %s198 = sphi 0, %s182
    $region4: #{grid_encoder_forward.1} parent=1 // loop_header_branch
      %19 = sbr.rel (%p17) target = $region8
    $region5: #{grid_encoder_forward.1} parent=1 // loop_body
      %s21 = ssub.s32 %s16, 1
      %s22 = ssub.s32 %s16, 2
      %s23 = sadd.s32 %s16, 1
      %s24 = ssub.s32 %s16, %s23
      %p25 = scmp.eq.s32.totalorder %s24, 0
      %s27 = sadd.s32 %s26, 1
      %s28 = scalar_select %p25, %s26, %s27
      %p31 = pneg %p25
      %p32 = scmp.eq.s32.totalorder %s16, 1
      %p33 = por %p31, %p32
      %p34 = scmp.ne.s32.totalorder %s26, %s29
      %p35 = scmp.eq.s32.totalorder %s16, 0
      %p36 = por %p34, %p35
      %p37 = scmp.ne.s32.totalorder %s26, %s29
      %p38 = scmp.eq.s32.totalorder %s21, 1
      %p39 = por %p37, %p38
      %p40 = scmp.ne.s32.totalorder %s29, %s30
      %p41 = scmp.eq.s32.totalorder %s21, 0
      %p42 = por %p40, %p41
      %p43 = scmp.ne.s32.totalorder %s29, %s30
      %p44 = scmp.eq.s32.totalorder %s22, 1
      %p45 = por %p43, %p44
      %p47 = scmp.ne.s32.totalorder %s30, %s46
      %p48 = scmp.eq.s32.totalorder %s22, 0
      %p49 = por %p47, %p48
      %s51 = sadd.s32 %s50, 1
      %p54 = scmp.eq.s32.totalorder %s16, 1
      %p55 = scmp.ne.s32.totalorder %s50, %s52
      %p56 = scmp.eq.s32.totalorder %s16, 0
      %p57 = por %p55, %p56
      %p58 = scmp.ne.s32.totalorder %s50, %s52
      %p59 = scmp.eq.s32.totalorder %s21, 1
      %p60 = por %p58, %p59
      %p61 = scmp.ne.s32.totalorder %s52, %s53
      %p62 = scmp.eq.s32.totalorder %s21, 0
      %p63 = por %p61, %p62
      %p64 = scmp.ne.s32.totalorder %s52, %s53
      %p65 = scmp.eq.s32.totalorder %s22, 1
      %p66 = por %p64, %p65
      %p68 = scmp.ne.s32.totalorder %s53, %s67
      %p69 = scmp.eq.s32.totalorder %s22, 0
      %p70 = por %p68, %p69
      %s72 = sadd.s32 %s71, 1
      %p75 = scmp.eq.s32.totalorder %s16, 1
      %p76 = scmp.ne.s32.totalorder %s71, %s73
      %p77 = scmp.eq.s32.totalorder %s16, 0
      %p78 = por %p76, %p77
      %p79 = scmp.ne.s32.totalorder %s71, %s73
      %p80 = scmp.eq.s32.totalorder %s21, 1
      %p81 = por %p79, %p80
      %p82 = scmp.ne.s32.totalorder %s73, %s74
      %p83 = scmp.eq.s32.totalorder %s21, 0
      %p84 = por %p82, %p83
      %p85 = scmp.ne.s32.totalorder %s73, %s74
      %p86 = scmp.eq.s32.totalorder %s22, 1
      %p87 = por %p85, %p86
      %p89 = scmp.ne.s32.totalorder %s74, %s88
      %p90 = scmp.eq.s32.totalorder %s22, 0
      %p91 = por %p89, %p90
      %s93 = sadd.s32 %s92, 1
      %p96 = scmp.eq.s32.totalorder %s16, 1
      %p97 = scmp.ne.s32.totalorder %s92, %s94
      %p98 = scmp.eq.s32.totalorder %s16, 0
      %p99 = por %p97, %p98
      %p100 = scmp.ne.s32.totalorder %s92, %s94
      %p101 = scmp.eq.s32.totalorder %s21, 1
      %p102 = por %p100, %p101
      %p103 = scmp.ne.s32.totalorder %s94, %s95
      %p104 = scmp.eq.s32.totalorder %s21, 0
      %p105 = por %p103, %p104
      %p106 = scmp.ne.s32.totalorder %s94, %s95
      %p107 = scmp.eq.s32.totalorder %s22, 1
      %p108 = por %p106, %p107
      %p110 = scmp.ne.s32.totalorder %s95, %s109
      %p111 = scmp.eq.s32.totalorder %s22, 0
      %p112 = por %p110, %p111
      %s114 = sadd.s32 %s113, 1
      %p117 = scmp.eq.s32.totalorder %s16, 1
      %p118 = scmp.ne.s32.totalorder %s113, %s115
      %p119 = scmp.eq.s32.totalorder %s16, 0
      %p120 = por %p118, %p119
      %p121 = scmp.ne.s32.totalorder %s113, %s115
      %p122 = scmp.eq.s32.totalorder %s21, 1
      %p123 = por %p121, %p122
      %p124 = scmp.ne.s32.totalorder %s115, %s116
      %p125 = scmp.eq.s32.totalorder %s21, 0
      %p126 = por %p124, %p125
      %p127 = scmp.ne.s32.totalorder %s115, %s116
      %p128 = scmp.eq.s32.totalorder %s22, 1
      %p129 = por %p127, %p128
      %p131 = scmp.ne.s32.totalorder %s116, %s130
      %p132 = scmp.eq.s32.totalorder %s22, 0
      %p133 = por %p131, %p132
      %s135 = sadd.s32 %s134, 1
      %p138 = scmp.eq.s32.totalorder %s16, 1
      %p139 = scmp.ne.s32.totalorder %s134, %s136
      %p140 = scmp.eq.s32.totalorder %s16, 0
      %p141 = por %p139, %p140
      %p142 = scmp.ne.s32.totalorder %s134, %s136
      %p143 = scmp.eq.s32.totalorder %s21, 1
      %p144 = por %p142, %p143
      %p145 = scmp.ne.s32.totalorder %s136, %s137
      %p146 = scmp.eq.s32.totalorder %s21, 0
      %p147 = por %p145, %p146
      %p148 = scmp.ne.s32.totalorder %s136, %s137
      %p149 = scmp.eq.s32.totalorder %s22, 1
      %p150 = por %p148, %p149
      %p152 = scmp.ne.s32.totalorder %s137, %s151
      %p153 = scmp.eq.s32.totalorder %s22, 0
      %p154 = por %p152, %p153
      %s156 = sadd.s32 %s155, 1
      %p159 = scmp.eq.s32.totalorder %s16, 1
      %p160 = scmp.ne.s32.totalorder %s155, %s157
      %p161 = scmp.eq.s32.totalorder %s16, 0
      %p162 = por %p160, %p161
      %p163 = scmp.ne.s32.totalorder %s155, %s157
      %p164 = scmp.eq.s32.totalorder %s21, 1
      %p165 = por %p163, %p164
      %p166 = scmp.ne.s32.totalorder %s157, %s158
      %p167 = scmp.eq.s32.totalorder %s21, 0
      %p168 = por %p166, %p167
      %p169 = scmp.ne.s32.totalorder %s157, %s158
      %p170 = scmp.eq.s32.totalorder %s22, 1
      %p171 = por %p169, %p170
      %p173 = scmp.ne.s32.totalorder %s158, %s172
      %p174 = scmp.eq.s32.totalorder %s22, 0
      %p175 = por %p173, %p174
      %s176 = ssub.s32 %s16, %s23
      %p177 = scmp.eq.s32.totalorder %s176, 0
      %s179 = sadd.s32 %s178, 1
      %s180 = scalar_select %p177, %s178, %s179
      %p183 = pneg %p177
      %p184 = scmp.eq.s32.totalorder %s16, 1
      %p185 = por %p183, %p184
      %p186 = scmp.ne.s32.totalorder %s178, %s181
      %p187 = scmp.eq.s32.totalorder %s16, 0
      %p188 = por %p186, %p187
      %p189 = scmp.ne.s32.totalorder %s178, %s181
      %p190 = scmp.eq.s32.totalorder %s21, 1
      %p191 = por %p189, %p190
      %p192 = scmp.ne.s32.totalorder %s181, %s182
      %p193 = scmp.eq.s32.totalorder %s21, 0
      %p194 = por %p192, %p193
      %p195 = scmp.ne.s32.totalorder %s181, %s182
      %p196 = scmp.eq.s32.totalorder %s22, 1
      %p197 = por %p195, %p196
      %p199 = scmp.ne.s32.totalorder %s182, %s198
      %p200 = scmp.eq.s32.totalorder %s22, 0
      %p201 = por %p199, %p200
      %p202 = scmp.le.s32.totalorder 1, %s16
      %p203 = scmp.lt.s32.totalorder %s16, 3
      %p204 = pnand %p202, %p203
      %p205 = pneg %p204
      // Predicated region
      $region9: #{grid_encoder_forward.1} parent=5 // pred_check
        _
      $region10: #{grid_encoder_forward.1} parent=5 // pred_check_branch
        %207 = sbr.rel (%p204) target = $region12
      $region11: #{grid_encoder_forward.1} parent=5 // pred_region
        %s208 = ssub.s32 %s16, 1
        // Predicated region
        $region13: #{grid_encoder_forward.1} parent=11 // pred_check
          %p209 = pneg %p63
        $region14: #{grid_encoder_forward.1} parent=11 // pred_check_branch
          %211 = sbr.rel (%p209) target = $region16
        $region15: #{grid_encoder_forward.1} parent=11 // pred_region
          _
        $region16: #{grid_encoder_forward.1} parent=11 // pred_fallthru
          _
        // Predicated region
        $region17: #{grid_encoder_forward.1} parent=11 // pred_check
          %p212 = pneg %p84
        $region18: #{grid_encoder_forward.1} parent=11 // pred_check_branch
          %214 = sbr.rel (%p212) target = $region20
        $region19: #{grid_encoder_forward.1} parent=11 // pred_region
          _
        $region20: #{grid_encoder_forward.1} parent=11 // pred_fallthru
          _
        // Predicated region
        $region21: #{grid_encoder_forward.1} parent=11 // pred_check
          %p215 = pneg %p105
        $region22: #{grid_encoder_forward.1} parent=11 // pred_check_branch
          %217 = sbr.rel (%p215) target = $region24
        $region23: #{grid_encoder_forward.1} parent=11 // pred_region
          _
        $region24: #{grid_encoder_forward.1} parent=11 // pred_fallthru
          _
        // Predicated region
        $region25: #{grid_encoder_forward.1} parent=11 // pred_check
          %p218 = pneg %p126
        $region26: #{grid_encoder_forward.1} parent=11 // pred_check_branch
          %220 = sbr.rel (%p218) target = $region28
        $region27: #{grid_encoder_forward.1} parent=11 // pred_region
          _
        $region28: #{grid_encoder_forward.1} parent=11 // pred_fallthru
          _
        // Predicated region
        $region29: #{grid_encoder_forward.1} parent=11 // pred_check
          %p221 = pneg %p147
        $region30: #{grid_encoder_forward.1} parent=11 // pred_check_branch
          %223 = sbr.rel (%p221) target = $region32
        $region31: #{grid_encoder_forward.1} parent=11 // pred_region
          _
        $region32: #{grid_encoder_forward.1} parent=11 // pred_fallthru
          _
        // Predicated region
        $region33: #{grid_encoder_forward.1} parent=11 // pred_check
          %p224 = pneg %p168
        $region34: #{grid_encoder_forward.1} parent=11 // pred_check_branch
          %226 = sbr.rel (%p224) target = $region36
        $region35: #{grid_encoder_forward.1} parent=11 // pred_region
          _
        $region36: #{grid_encoder_forward.1} parent=11 // pred_fallthru
          _
      $region12: #{grid_encoder_forward.1} parent=5 // pred_fallthru
        _
      %p227 = scmp.lt.s32.totalorder %s16, 2
      // Predicated region
      $region37: #{grid_encoder_forward.1} parent=5 // pred_check
        %p228 = pneg %p227
      $region38: #{grid_encoder_forward.1} parent=5 // pred_check_branch
        %230 = sbr.rel (%p228) target = $region40
      $region39: #{grid_encoder_forward.1} parent=5 // pred_region
        // Predicated region
        $region41: #{grid_encoder_forward.1} parent=39 // pred_check
          %p231 = pneg %p36
        $region42: #{grid_encoder_forward.1} parent=39 // pred_check_branch
          %233 = sbr.rel (%p231) target = $region44
        $region43: #{grid_encoder_forward.1} parent=39 // pred_region
          %p234 = scmp.lt.s32.totalorder %s16, 1
          %s235 = scalar_select %p234, %s16, 1
          %s236 = smul.addr %s235, 2
          %s237 = smul.addr %s236, 8
          %s238 = scalar_lea.vmem %s0, %s237
        $region44: #{grid_encoder_forward.1} parent=39 // pred_fallthru
          _
      $region40: #{grid_encoder_forward.1} parent=5 // pred_fallthru
        _
      %p239 = scmp.le.s32.totalorder 1, %s16
      %p240 = scmp.lt.s32.totalorder %s16, 3
      %p241 = pnand %p239, %p240
      %p242 = pneg %p241
      // Predicated region
      $region45: #{grid_encoder_forward.1} parent=5 // pred_check
        _
      $region46: #{grid_encoder_forward.1} parent=5 // pred_check_branch
        %244 = sbr.rel (%p241) target = $region48
      $region47: #{grid_encoder_forward.1} parent=5 // pred_region
        %s245 = ssub.s32 %s16, 1
        %p246 = scmp.lt.s32.totalorder %s21, 1
        %s247 = scalar_select %p246, %s21, 1
        %s248 = smul.addr %s247, 2
        %s249 = smul.addr %s248, 8
        %s250 = scalar_lea.vmem %s0, %s249
        %p251 = pneg %p42
        %p252 = pneg %p39
        %p253 = pneg %p63
        %p254 = pneg %p60
        %p255 = pneg %p84
        %p256 = pneg %p81
        %p257 = pneg %p105
        %p258 = pneg %p102
        %p259 = pneg %p126
        %p260 = pneg %p123
        %p261 = pneg %p147
        %p262 = pneg %p144
        %p263 = pneg %p168
        %p264 = pneg %p165
        %p265 = pneg %p194
        %p266 = pneg %p191
        %s267 = sand.u32 %s181, 1
        %s268 = scalar_lea.sflag [#allocation8], %s267
        %s269 = sand.u32 %s181, 1
        %s270 = smul.addr %s269, 16
        %s271 = scalar_lea.vmem [#allocation7], %s270
        %p272 = scmp.lt.s32.totalorder %s21, 1
        %s273 = scalar_select %p272, %s21, 1
        %s274 = smul.addr %s273, 2
        %s275 = smul.addr %s274, 8
        %s276 = scalar_lea.vmem %s0, %s275
        %vm278 = vcmask 261120
        %279 = vst.msk [vmem:[#allocation2] sm:$0xff] %vm278, 0.0
        %280 = vst.msk [vmem:[#allocation2 + $0x8] sm:$0xff] %vm278, 0.0
        %vm281 = vcmask 254976
        %282 = vst.msk [vmem:[#allocation2 + $0x10] sm:$0x3] %vm281, 0.0
        %s283 = scalar_lea.vmem [#allocation2], 408
        %284 = vst.msk [vmem:[%s283] sm:$0xff] %vm278, 0.0
        %285 = vst.msk [vmem:[%s283 + $0x8] sm:$0xff] %vm278, 0.0
        %286 = vst.msk [vmem:[%s283 + $0x10] sm:$0x3] %vm281, 0.0
        %vm287 = vcmask 253952
        %288 = vst.msk [vmem:[#allocation2] sm:$0x1] %vm287, 0.0
        %289 = vst.msk [vmem:[#allocation2 + $0x18] sm:$0x1] %vm287, 0.0
        %290 = vst.msk [vmem:[#allocation2 + $0x30] sm:$0x1] %vm287, 0.0
        %291 = vst.msk [vmem:[#allocation2 + $0x48] sm:$0x1] %vm287, 0.0
        %292 = vst.msk [vmem:[#allocation2 + $0x60] sm:$0x1] %vm287, 0.0
        %293 = vst.msk [vmem:[#allocation2 + $0x78] sm:$0x1] %vm287, 0.0
        %294 = vst.msk [vmem:[#allocation2 + $0x90] sm:$0x1] %vm287, 0.0
        %295 = vst.msk [vmem:[#allocation2 + $0xa8] sm:$0x1] %vm287, 0.0
        %296 = vst.msk [vmem:[#allocation2 + $0xc0] sm:$0x1] %vm287, 0.0
        %297 = vst.msk [vmem:[#allocation2 + $0xd8] sm:$0x1] %vm287, 0.0
        %298 = vst.msk [vmem:[#allocation2 + $0xf0] sm:$0x1] %vm287, 0.0
        %299 = vst.msk [vmem:[#allocation2 + $0x108] sm:$0x1] %vm287, 0.0
        %300 = vst.msk [vmem:[#allocation2 + $0x120] sm:$0x1] %vm287, 0.0
        %301 = vst.msk [vmem:[#allocation2 + $0x138] sm:$0x1] %vm287, 0.0
        %302 = vst.msk [vmem:[#allocation2 + $0x150] sm:$0x1] %vm287, 0.0
        %303 = vst.msk [vmem:[#allocation2 + $0x168] sm:$0x1] %vm287, 0.0
        %304 = vst.msk [vmem:[#allocation2 + $0x180] sm:$0x1] %vm287, 0.0
        %305 = vst.msk [vmem:[#allocation2 + $0x198] sm:$0x1] %vm287, 0.0
        %306 = vst.msk [vmem:[#allocation2 + $0x11] sm:$0x1] %vm287, 0.0
        %307 = vst.msk [vmem:[#allocation2 + $0x29] sm:$0x1] %vm287, 0.0
        %308 = vst.msk [vmem:[#allocation2 + $0x41] sm:$0x1] %vm287, 0.0
        %309 = vst.msk [vmem:[#allocation2 + $0x59] sm:$0x1] %vm287, 0.0
        %310 = vst.msk [vmem:[#allocation2 + $0x71] sm:$0x1] %vm287, 0.0
        %311 = vst.msk [vmem:[#allocation2 + $0x89] sm:$0x1] %vm287, 0.0
        %312 = vst.msk [vmem:[#allocation2 + $0xa1] sm:$0x1] %vm287, 0.0
        %313 = vst.msk [vmem:[#allocation2 + $0xb9] sm:$0x1] %vm287, 0.0
        %314 = vst.msk [vmem:[#allocation2 + $0xd1] sm:$0x1] %vm287, 0.0
        %315 = vst.msk [vmem:[#allocation2 + $0xe9] sm:$0x1] %vm287, 0.0
        %316 = vst.msk [vmem:[#allocation2 + $0x101] sm:$0x1] %vm287, 0.0
        %317 = vst.msk [vmem:[#allocation2 + $0x119] sm:$0x1] %vm287, 0.0
        %318 = vst.msk [vmem:[#allocation2 + $0x131] sm:$0x1] %vm287, 0.0
        %319 = vst.msk [vmem:[#allocation2 + $0x149] sm:$0x1] %vm287, 0.0
        %320 = vst.msk [vmem:[#allocation2 + $0x161] sm:$0x1] %vm287, 0.0
        %321 = vst.msk [vmem:[#allocation2 + $0x179] sm:$0x1] %vm287, 0.0
        %322 = vst.msk [vmem:[#allocation2 + $0x191] sm:$0x1] %vm287, 0.0
        %323 = vst.msk [vmem:[#allocation2 + $0x1a9] sm:$0x1] %vm287, 0.0
        %vm324 = vcmask 257024
        %325 = vst.msk [vmem:[#allocation3] sm:$0xf] %vm324, 0
        %326 = vst.msk [vmem:[#allocation3 + $0x4] sm:$0x1] %vm287, 0
        %s327 = scalar_lea.vmem [#allocation3], 72
        %328 = vst.msk [vmem:[%s327] sm:$0xf] %vm324, 0
        %329 = vst.msk [vmem:[%s327 + $0x4] sm:$0x1] %vm287, 0
        %vm330 = vcmask 253952
        %vm331 = vsmask.f32 256
        %vm332 = vmand %vm330, %vm331
        %v333 = vld [vmem:[#allocation3] sm:$0x1]
        %v334 = vsel %vm332, 0, %v333
        %335 = vst [vmem:[#allocation3] sm:$0x1] %v334
        %v336 = vld [vmem:[#allocation3 + $0x8] sm:$0x1]
        %v337 = vsel %vm332, 0, %v336
        %338 = vst [vmem:[#allocation3 + $0x8] sm:$0x1] %v337
        %v339 = vld [vmem:[#allocation3 + $0x10] sm:$0x1]
        %v340 = vsel %vm332, 0, %v339
        %341 = vst [vmem:[#allocation3 + $0x10] sm:$0x1] %v340
        %v342 = vld [vmem:[#allocation3 + $0x18] sm:$0x1]
        %v343 = vsel %vm332, 0, %v342
        %344 = vst [vmem:[#allocation3 + $0x18] sm:$0x1] %v343
        %v345 = vld [vmem:[#allocation3 + $0x20] sm:$0x1]
        %v346 = vsel %vm332, 0, %v345
        %347 = vst [vmem:[#allocation3 + $0x20] sm:$0x1] %v346
        %v348 = vld [vmem:[#allocation3 + $0x28] sm:$0x1]
        %v349 = vsel %vm332, 0, %v348
        %350 = vst [vmem:[#allocation3 + $0x28] sm:$0x1] %v349
        %v351 = vld [vmem:[#allocation3 + $0x30] sm:$0x1]
        %v352 = vsel %vm332, 0, %v351
        %353 = vst [vmem:[#allocation3 + $0x30] sm:$0x1] %v352
        %v354 = vld [vmem:[#allocation3 + $0x38] sm:$0x1]
        %v355 = vsel %vm332, 0, %v354
        %356 = vst [vmem:[#allocation3 + $0x38] sm:$0x1] %v355
        %v357 = vld [vmem:[#allocation3 + $0x40] sm:$0x1]
        %v358 = vsel %vm332, 0, %v357
        %359 = vst [vmem:[#allocation3 + $0x40] sm:$0x1] %v358
        %v360 = vld [vmem:[#allocation3 + $0x48] sm:$0x1]
        %v361 = vsel %vm332, 0, %v360
        %362 = vst [vmem:[#allocation3 + $0x48] sm:$0x1] %v361
        %vm363 = vsmask.f32 7938
        %vm364 = vmand %vm330, %vm363
        %v365 = vld [vmem:[#allocation3 + $0x4] sm:$0x1]
        %v366 = vsel %vm364, 0, %v365
        %367 = vst [vmem:[#allocation3 + $0x4] sm:$0x1] %v366
        %v368 = vld [vmem:[#allocation3 + $0xc] sm:$0x1]
        %v369 = vsel %vm364, 0, %v368
        %370 = vst [vmem:[#allocation3 + $0xc] sm:$0x1] %v369
        %v371 = vld [vmem:[#allocation3 + $0x14] sm:$0x1]
        %v372 = vsel %vm364, 0, %v371
        %373 = vst [vmem:[#allocation3 + $0x14] sm:$0x1] %v372
        %v374 = vld [vmem:[#allocation3 + $0x1c] sm:$0x1]
        %v375 = vsel %vm364, 0, %v374
        %376 = vst [vmem:[#allocation3 + $0x1c] sm:$0x1] %v375
        %v377 = vld [vmem:[#allocation3 + $0x24] sm:$0x1]
        %v378 = vsel %vm364, 0, %v377
        %379 = vst [vmem:[#allocation3 + $0x24] sm:$0x1] %v378
        %v380 = vld [vmem:[#allocation3 + $0x2c] sm:$0x1]
        %v381 = vsel %vm364, 0, %v380
        %382 = vst [vmem:[#allocation3 + $0x2c] sm:$0x1] %v381
        %v383 = vld [vmem:[#allocation3 + $0x34] sm:$0x1]
        %v384 = vsel %vm364, 0, %v383
        %385 = vst [vmem:[#allocation3 + $0x34] sm:$0x1] %v384
        %v386 = vld [vmem:[#allocation3 + $0x3c] sm:$0x1]
        %v387 = vsel %vm364, 0, %v386
        %388 = vst [vmem:[#allocation3 + $0x3c] sm:$0x1] %v387
        %v389 = vld [vmem:[#allocation3 + $0x44] sm:$0x1]
        %v390 = vsel %vm364, 0, %v389
        %391 = vst [vmem:[#allocation3 + $0x44] sm:$0x1] %v390
        %v392 = vld [vmem:[#allocation3 + $0x4c] sm:$0x1]
        %v393 = vsel %vm364, 0, %v392
        %394 = vst [vmem:[#allocation3 + $0x4c] sm:$0x1] %v393
        %vm395 = vcmask 518144
        %396 = vst.msk [vmem:[#allocation4] sm:$0x7] %vm395, 0
        %s397 = scalar_lea.vmem [#allocation4], 20
        %398 = vst.msk [vmem:[%s397] sm:$0x7] %vm395, 0
        %vm399 = vcmask 516096
        %vm400 = vmand %vm399, %vm331
        %v401 = vld [vmem:[#allocation4] sm:$0x1]
        %v402 = vsel %vm400, 0, %v401
        %403 = vst [vmem:[#allocation4] sm:$0x1] %v402
        %v404 = vld [vmem:[#allocation4 + $0x4] sm:$0x1]
        %v405 = vsel %vm400, 0, %v404
        %406 = vst [vmem:[#allocation4 + $0x4] sm:$0x1] %v405
        %v407 = vld [vmem:[#allocation4 + $0x8] sm:$0x1]
        %v408 = vsel %vm400, 0, %v407
        %409 = vst [vmem:[#allocation4 + $0x8] sm:$0x1] %v408
        %v410 = vld [vmem:[#allocation4 + $0xc] sm:$0x1]
        %v411 = vsel %vm400, 0, %v410
        %412 = vst [vmem:[#allocation4 + $0xc] sm:$0x1] %v411
        %v413 = vld [vmem:[#allocation4 + $0x10] sm:$0x1]
        %v414 = vsel %vm400, 0, %v413
        %415 = vst [vmem:[#allocation4 + $0x10] sm:$0x1] %v414
        %v416 = vld [vmem:[#allocation4 + $0x14] sm:$0x1]
        %v417 = vsel %vm400, 0, %v416
        %418 = vst [vmem:[#allocation4 + $0x14] sm:$0x1] %v417
        %vm419 = vcmask 518146
        %vm420 = vsmask.f32 7946
        %vm421 = vmand %vm419, %vm420
        %v422 = vld [vmem:[#allocation4] sm:$0x4]
        %v423 = vsel %vm421, 0, %v422
        %424 = vst [vmem:[#allocation4] sm:$0x4] %v423
        %v425 = vld [vmem:[#allocation4 + $0x4] sm:$0x4]
        %v426 = vsel %vm421, 0, %v425
        %427 = vst [vmem:[#allocation4 + $0x4] sm:$0x4] %v426
        %v428 = vld [vmem:[#allocation4 + $0x8] sm:$0x4]
        %v429 = vsel %vm421, 0, %v428
        %430 = vst [vmem:[#allocation4 + $0x8] sm:$0x4] %v429
        %v431 = vld [vmem:[#allocation4 + $0xc] sm:$0x4]
        %v432 = vsel %vm421, 0, %v431
        %433 = vst [vmem:[#allocation4 + $0xc] sm:$0x4] %v432
        %v434 = vld [vmem:[#allocation4 + $0x10] sm:$0x4]
        %v435 = vsel %vm421, 0, %v434
        %436 = vst [vmem:[#allocation4 + $0x10] sm:$0x4] %v435
        %v437 = vld [vmem:[#allocation4 + $0x14] sm:$0x4]
        %v438 = vsel %vm421, 0, %v437
        %439 = vst [vmem:[#allocation4 + $0x14] sm:$0x4] %v438
        %v440 = vld [vmem:[%s276] sm:$0xff]
        %v441 = vld [vmem:[%s276 + $0x8] sm:$0xff]
        %v442 = vlaneseq
        %v443 = vshrl.u32 %v442, 7
        %v444 = vsub.s32 0, %v443
        %v445 = vrot.slane %v440, %v444
        %447 = vbcast.lane.b32.xlu0 %v445, 256
        %v448 = vpop.permute.xlu0 %447
        %s450 = sor.u32 256, 8
        %451 = vbcast.lane.b32.xlu0 %v445, %s450
        %v452 = vpop.permute.xlu0 %451
        %v453 = vlaneseq
        %v454 = vshrl.u32 %v453, 7
        %v455 = vsub.s32 1, %v454
        %v456 = vrot.slane %v440, %v455
        %458 = vbcast.lane.b32.xlu0 %v456, 256
        %v459 = vpop.permute.xlu0 %458
        %s461 = sor.u32 256, 8
        %462 = vbcast.lane.b32.xlu0 %v456, %s461
        %v463 = vpop.permute.xlu0 %462
        %v464 = vlaneseq
        %v465 = vshrl.u32 %v464, 7
        %v466 = vsub.s32 2, %v465
        %v467 = vrot.slane %v440, %v466
        %469 = vbcast.lane.b32.xlu0 %v467, 256
        %v470 = vpop.permute.xlu0 %469
        %s472 = sor.u32 256, 8
        %473 = vbcast.lane.b32.xlu0 %v467, %s472
        %v474 = vpop.permute.xlu0 %473
        %v475 = vlaneseq
        %v476 = vshrl.u32 %v475, 7
        %v477 = vsub.s32 3, %v476
        %v478 = vrot.slane %v440, %v477
        %480 = vbcast.lane.b32.xlu0 %v478, 256
        %v481 = vpop.permute.xlu0 %480
        %s483 = sor.u32 256, 8
        %484 = vbcast.lane.b32.xlu0 %v478, %s483
        %v485 = vpop.permute.xlu0 %484
        %v486 = vlaneseq
        %v487 = vshrl.u32 %v486, 7
        %v488 = vsub.s32 4, %v487
        %v489 = vrot.slane %v440, %v488
        %491 = vbcast.lane.b32.xlu0 %v489, 256
        %v492 = vpop.permute.xlu0 %491
        %s494 = sor.u32 256, 8
        %495 = vbcast.lane.b32.xlu0 %v489, %s494
        %v496 = vpop.permute.xlu0 %495
        %v497 = vlaneseq
        %v498 = vshrl.u32 %v497, 7
        %v499 = vsub.s32 5, %v498
        %v500 = vrot.slane %v440, %v499
        %502 = vbcast.lane.b32.xlu0 %v500, 256
        %v503 = vpop.permute.xlu0 %502
        %s505 = sor.u32 256, 8
        %506 = vbcast.lane.b32.xlu0 %v500, %s505
        %v507 = vpop.permute.xlu0 %506
        %v508 = vlaneseq
        %v509 = vshrl.u32 %v508, 7
        %v510 = vsub.s32 6, %v509
        %v511 = vrot.slane %v440, %v510
        %513 = vbcast.lane.b32.xlu0 %v511, 256
        %v514 = vpop.permute.xlu0 %513
        %s516 = sor.u32 256, 8
        %517 = vbcast.lane.b32.xlu0 %v511, %s516
        %v518 = vpop.permute.xlu0 %517
        %v519 = vlaneseq
        %v520 = vshrl.u32 %v519, 7
        %v521 = vsub.s32 7, %v520
        %v522 = vrot.slane %v440, %v521
        %524 = vbcast.lane.b32.xlu0 %v522, 256
        %v525 = vpop.permute.xlu0 %524
        %s527 = sor.u32 256, 8
        %528 = vbcast.lane.b32.xlu0 %v522, %s527
        %v529 = vpop.permute.xlu0 %528
        %v530 = vlaneseq
        %v531 = vshrl.u32 %v530, 7
        %v532 = vsub.s32 0, %v531
        %v533 = vrot.slane %v441, %v532
        %535 = vbcast.lane.b32.xlu0 %v533, 256
        %v536 = vpop.permute.xlu0 %535
        %s538 = sor.u32 256, 8
        %539 = vbcast.lane.b32.xlu0 %v533, %s538
        %v540 = vpop.permute.xlu0 %539
        %v541 = vlaneseq
        %v542 = vshrl.u32 %v541, 7
        %v543 = vsub.s32 1, %v542
        %v544 = vrot.slane %v441, %v543
        %546 = vbcast.lane.b32.xlu0 %v544, 256
        %v547 = vpop.permute.xlu0 %546
        %s549 = sor.u32 256, 8
        %550 = vbcast.lane.b32.xlu0 %v544, %s549
        %v551 = vpop.permute.xlu0 %550
        %v552 = vlaneseq
        %v553 = vshrl.u32 %v552, 7
        %v554 = vsub.s32 2, %v553
        %v555 = vrot.slane %v441, %v554
        %557 = vbcast.lane.b32.xlu0 %v555, 256
        %v558 = vpop.permute.xlu0 %557
        %s560 = sor.u32 256, 8
        %561 = vbcast.lane.b32.xlu0 %v555, %s560
        %v562 = vpop.permute.xlu0 %561
        %v563 = vlaneseq
        %v564 = vshrl.u32 %v563, 7
        %v565 = vsub.s32 3, %v564
        %v566 = vrot.slane %v441, %v565
        %568 = vbcast.lane.b32.xlu0 %v566, 256
        %v569 = vpop.permute.xlu0 %568
        %s571 = sor.u32 256, 8
        %572 = vbcast.lane.b32.xlu0 %v566, %s571
        %v573 = vpop.permute.xlu0 %572
        %v574 = vlaneseq
        %v575 = vshrl.u32 %v574, 7
        %v576 = vsub.s32 4, %v575
        %v577 = vrot.slane %v441, %v576
        %579 = vbcast.lane.b32.xlu0 %v577, 256
        %v580 = vpop.permute.xlu0 %579
        %s582 = sor.u32 256, 8
        %583 = vbcast.lane.b32.xlu0 %v577, %s582
        %v584 = vpop.permute.xlu0 %583
        %v585 = vlaneseq
        %v586 = vshrl.u32 %v585, 7
        %v587 = vsub.s32 5, %v586
        %v588 = vrot.slane %v441, %v587
        %590 = vbcast.lane.b32.xlu0 %v588, 256
        %v591 = vpop.permute.xlu0 %590
        %s593 = sor.u32 256, 8
        %594 = vbcast.lane.b32.xlu0 %v588, %s593
        %v595 = vpop.permute.xlu0 %594
        %v596 = vlaneseq
        %v597 = vshrl.u32 %v596, 7
        %v598 = vsub.s32 6, %v597
        %v599 = vrot.slane %v441, %v598
        %601 = vbcast.lane.b32.xlu0 %v599, 256
        %v602 = vpop.permute.xlu0 %601
        %s604 = sor.u32 256, 8
        %605 = vbcast.lane.b32.xlu0 %v599, %s604
        %v606 = vpop.permute.xlu0 %605
        %v607 = vlaneseq
        %v608 = vshrl.u32 %v607, 7
        %v609 = vsub.s32 7, %v608
        %v610 = vrot.slane %v441, %v609
        %612 = vbcast.lane.b32.xlu0 %v610, 256
        %v613 = vpop.permute.xlu0 %612
        %s615 = sor.u32 256, 8
        %616 = vbcast.lane.b32.xlu0 %v610, %s615
        %v617 = vpop.permute.xlu0 %616
        %s618 = scalar_lea.vmem [#allocation2], 24
        %619 = vst.msk [vmem:[%s618 + $0x1] sm:$0xff] %vm278, %v448
        %620 = vst.msk [vmem:[%s618 + $0x9] sm:$0xff] %vm278, %v452
        %621 = vst.msk [vmem:[%s618 + $0x19] sm:$0xff] %vm278, %v459
        %622 = vst.msk [vmem:[%s618 + $0x21] sm:$0xff] %vm278, %v463
        %623 = vst.msk [vmem:[%s618 + $0x31] sm:$0xff] %vm278, %v470
        %624 = vst.msk [vmem:[%s618 + $0x39] sm:$0xff] %vm278, %v474
        %625 = vst.msk [vmem:[%s618 + $0x49] sm:$0xff] %vm278, %v481
        %626 = vst.msk [vmem:[%s618 + $0x51] sm:$0xff] %vm278, %v485
        %627 = vst.msk [vmem:[%s618 + $0x61] sm:$0xff] %vm278, %v492
        %628 = vst.msk [vmem:[%s618 + $0x69] sm:$0xff] %vm278, %v496
        %629 = vst.msk [vmem:[%s618 + $0x79] sm:$0xff] %vm278, %v503
        %630 = vst.msk [vmem:[%s618 + $0x81] sm:$0xff] %vm278, %v507
        %631 = vst.msk [vmem:[%s618 + $0x91] sm:$0xff] %vm278, %v514
        %632 = vst.msk [vmem:[%s618 + $0x99] sm:$0xff] %vm278, %v518
        %633 = vst.msk [vmem:[%s618 + $0xa9] sm:$0xff] %vm278, %v525
        %634 = vst.msk [vmem:[%s618 + $0xb1] sm:$0xff] %vm278, %v529
        %635 = vst.msk [vmem:[%s618 + $0xc1] sm:$0xff] %vm278, %v536
        %636 = vst.msk [vmem:[%s618 + $0xc9] sm:$0xff] %vm278, %v540
        %637 = vst.msk [vmem:[%s618 + $0xd9] sm:$0xff] %vm278, %v547
        %638 = vst.msk [vmem:[%s618 + $0xe1] sm:$0xff] %vm278, %v551
        %639 = vst.msk [vmem:[%s618 + $0xf1] sm:$0xff] %vm278, %v558
        %640 = vst.msk [vmem:[%s618 + $0xf9] sm:$0xff] %vm278, %v562
        %641 = vst.msk [vmem:[%s618 + $0x109] sm:$0xff] %vm278, %v569
        %642 = vst.msk [vmem:[%s618 + $0x111] sm:$0xff] %vm278, %v573
        %643 = vst.msk [vmem:[%s618 + $0x121] sm:$0xff] %vm278, %v580
        %644 = vst.msk [vmem:[%s618 + $0x129] sm:$0xff] %vm278, %v584
        %645 = vst.msk [vmem:[%s618 + $0x139] sm:$0xff] %vm278, %v591
        %646 = vst.msk [vmem:[%s618 + $0x141] sm:$0xff] %vm278, %v595
        %647 = vst.msk [vmem:[%s618 + $0x151] sm:$0xff] %vm278, %v602
        %648 = vst.msk [vmem:[%s618 + $0x159] sm:$0xff] %vm278, %v606
        %649 = vst.msk [vmem:[%s618 + $0x169] sm:$0xff] %vm278, %v613
        %650 = vst.msk [vmem:[%s618 + $0x171] sm:$0xff] %vm278, %v617
        %v651 = vld [vmem:[#allocation2] sm:$0xff]
        %v652 = vld [vmem:[#allocation2 + $0x8] sm:$0xff]
        %v653 = vld [vmem:[#allocation2 + $0x18] sm:$0xff]
        %v654 = vld [vmem:[#allocation2 + $0x20] sm:$0xff]
        %v655 = vld [vmem:[#allocation2 + $0x30] sm:$0xff]
        %v656 = vld [vmem:[#allocation2 + $0x38] sm:$0xff]
        %v657 = vld [vmem:[#allocation2 + $0x48] sm:$0xff]
        %v658 = vld [vmem:[#allocation2 + $0x50] sm:$0xff]
        %v659 = vld [vmem:[#allocation2 + $0x60] sm:$0xff]
        %v660 = vld [vmem:[#allocation2 + $0x68] sm:$0xff]
        %v661 = vld [vmem:[#allocation2 + $0x78] sm:$0xff]
        %v662 = vld [vmem:[#allocation2 + $0x80] sm:$0xff]
        %v663 = vld [vmem:[#allocation2 + $0x90] sm:$0xff]
        %v664 = vld [vmem:[#allocation2 + $0x98] sm:$0xff]
        %v665 = vld [vmem:[#allocation2 + $0xa8] sm:$0xff]
        %v666 = vld [vmem:[#allocation2 + $0xb0] sm:$0xff]
        %v667 = vld [vmem:[#allocation2 + $0xc0] sm:$0xff]
        %v668 = vld [vmem:[#allocation2 + $0xc8] sm:$0xff]
        %v669 = vld [vmem:[#allocation2 + $0xd8] sm:$0xff]
        %v670 = vld [vmem:[#allocation2 + $0xe0] sm:$0xff]
        %v671 = vld [vmem:[#allocation2 + $0xf0] sm:$0xff]
        %v672 = vld [vmem:[#allocation2 + $0xf8] sm:$0xff]
        %v673 = vld [vmem:[#allocation2 + $0x108] sm:$0xff]
        %v674 = vld [vmem:[#allocation2 + $0x110] sm:$0xff]
        %v675 = vld [vmem:[#allocation2 + $0x120] sm:$0xff]
        %v676 = vld [vmem:[#allocation2 + $0x128] sm:$0xff]
        %v677 = vld [vmem:[#allocation2 + $0x138] sm:$0xff]
        %v678 = vld [vmem:[#allocation2 + $0x140] sm:$0xff]
        %v679 = vld [vmem:[#allocation2 + $0x150] sm:$0xff]
        %v680 = vld [vmem:[#allocation2 + $0x158] sm:$0xff]
        %v681 = vld [vmem:[#allocation2 + $0x168] sm:$0xff]
        %v682 = vld [vmem:[#allocation2 + $0x170] sm:$0xff]
        %v683 = vld [vmem:[%s1] sm:$0x1]
        %v684 = vlaneseq
        %v685 = vshrl.u32 %v684, 7
        %v686 = vsub.s32 0, %v685
        %v687 = vrot.slane %v683, %v686
        %v688 = vmul.f32 %v651, %v687
        %v689 = vmul.f32 %v652, %v687
        %v690 = vmul.f32 %v653, %v687
        %v691 = vmul.f32 %v654, %v687
        %v692 = vmul.f32 %v655, %v687
        %v693 = vmul.f32 %v656, %v687
        %v694 = vmul.f32 %v657, %v687
        %v695 = vmul.f32 %v658, %v687
        %v696 = vmul.f32 %v659, %v687
        %v697 = vmul.f32 %v660, %v687
        %v698 = vmul.f32 %v661, %v687
        %v699 = vmul.f32 %v662, %v687
        %v700 = vmul.f32 %v663, %v687
        %v701 = vmul.f32 %v664, %v687
        %v702 = vmul.f32 %v665, %v687
        %v703 = vmul.f32 %v666, %v687
        %v704 = vmul.f32 %v667, %v687
        %v705 = vmul.f32 %v668, %v687
        %v706 = vmul.f32 %v669, %v687
        %v707 = vmul.f32 %v670, %v687
        %v708 = vmul.f32 %v671, %v687
        %v709 = vmul.f32 %v672, %v687
        %v710 = vmul.f32 %v673, %v687
        %v711 = vmul.f32 %v674, %v687
        %v712 = vmul.f32 %v675, %v687
        %v713 = vmul.f32 %v676, %v687
        %v714 = vmul.f32 %v677, %v687
        %v715 = vmul.f32 %v678, %v687
        %v716 = vmul.f32 %v679, %v687
        %v717 = vmul.f32 %v680, %v687
        %v718 = vmul.f32 %v681, %v687
        %v719 = vmul.f32 %v682, %v687
        %v720 = vadd.f32 %v688, 0.0
        %v721 = vadd.f32 %v689, 0.0
        %v722 = vadd.f32 %v690, 0.0
        %v723 = vadd.f32 %v691, 0.0
        %v724 = vadd.f32 %v692, 0.0
        %v725 = vadd.f32 %v693, 0.0
        %v726 = vadd.f32 %v694, 0.0
        %v727 = vadd.f32 %v695, 0.0
        %v728 = vadd.f32 %v696, 0.0
        %v729 = vadd.f32 %v697, 0.0
        %v730 = vadd.f32 %v698, 0.0
        %v731 = vadd.f32 %v699, 0.0
        %v732 = vadd.f32 %v700, 0.0
        %v733 = vadd.f32 %v701, 0.0
        %v734 = vadd.f32 %v702, 0.0
        %v735 = vadd.f32 %v703, 0.0
        %v736 = vadd.f32 %v704, 0.0
        %v737 = vadd.f32 %v705, 0.0
        %v738 = vadd.f32 %v706, 0.0
        %v739 = vadd.f32 %v707, 0.0
        %v740 = vadd.f32 %v708, 0.0
        %v741 = vadd.f32 %v709, 0.0
        %v742 = vadd.f32 %v710, 0.0
        %v743 = vadd.f32 %v711, 0.0
        %v744 = vadd.f32 %v712, 0.0
        %v745 = vadd.f32 %v713, 0.0
        %v746 = vadd.f32 %v714, 0.0
        %v747 = vadd.f32 %v715, 0.0
        %v748 = vadd.f32 %v716, 0.0
        %v749 = vadd.f32 %v717, 0.0
        %v750 = vadd.f32 %v718, 0.0
        %v751 = vadd.f32 %v719, 0.0
        %v752 = vld [vmem:[#allocation2 + $0x1] sm:$0xff]
        %v753 = vld [vmem:[#allocation2 + $0x9] sm:$0xff]
        %v754 = vld [vmem:[#allocation2 + $0x19] sm:$0xff]
        %v755 = vld [vmem:[#allocation2 + $0x21] sm:$0xff]
        %v756 = vld [vmem:[#allocation2 + $0x31] sm:$0xff]
        %v757 = vld [vmem:[#allocation2 + $0x39] sm:$0xff]
        %v758 = vld [vmem:[#allocation2 + $0x49] sm:$0xff]
        %v759 = vld [vmem:[#allocation2 + $0x51] sm:$0xff]
        %v760 = vld [vmem:[#allocation2 + $0x61] sm:$0xff]
        %v761 = vld [vmem:[#allocation2 + $0x69] sm:$0xff]
        %v762 = vld [vmem:[#allocation2 + $0x79] sm:$0xff]
        %v763 = vld [vmem:[#allocation2 + $0x81] sm:$0xff]
        %v764 = vld [vmem:[#allocation2 + $0x91] sm:$0xff]
        %v765 = vld [vmem:[#allocation2 + $0x99] sm:$0xff]
        %v766 = vld [vmem:[#allocation2 + $0xa9] sm:$0xff]
        %v767 = vld [vmem:[#allocation2 + $0xb1] sm:$0xff]
        %v768 = vld [vmem:[#allocation2 + $0xc1] sm:$0xff]
        %v769 = vld [vmem:[#allocation2 + $0xc9] sm:$0xff]
        %v770 = vld [vmem:[#allocation2 + $0xd9] sm:$0xff]
        %v771 = vld [vmem:[#allocation2 + $0xe1] sm:$0xff]
        %v772 = vld [vmem:[#allocation2 + $0xf1] sm:$0xff]
        %v773 = vld [vmem:[#allocation2 + $0xf9] sm:$0xff]
        %v774 = vld [vmem:[#allocation2 + $0x109] sm:$0xff]
        %v775 = vld [vmem:[#allocation2 + $0x111] sm:$0xff]
        %v776 = vld [vmem:[#allocation2 + $0x121] sm:$0xff]
        %v777 = vld [vmem:[#allocation2 + $0x129] sm:$0xff]
        %v778 = vld [vmem:[#allocation2 + $0x139] sm:$0xff]
        %v779 = vld [vmem:[#allocation2 + $0x141] sm:$0xff]
        %v780 = vld [vmem:[#allocation2 + $0x151] sm:$0xff]
        %v781 = vld [vmem:[#allocation2 + $0x159] sm:$0xff]
        %v782 = vld [vmem:[#allocation2 + $0x169] sm:$0xff]
        %v783 = vld [vmem:[#allocation2 + $0x171] sm:$0xff]
        %v784 = vld [vmem:[%s1 + $0x1] sm:$0x1]
        %v785 = vlaneseq
        %v786 = vshrl.u32 %v785, 7
        %v787 = vsub.s32 0, %v786
        %v788 = vrot.slane %v784, %v787
        %v789 = vmul.f32 %v752, %v788
        %v790 = vmul.f32 %v753, %v788
        %v791 = vmul.f32 %v754, %v788
        %v792 = vmul.f32 %v755, %v788
        %v793 = vmul.f32 %v756, %v788
        %v794 = vmul.f32 %v757, %v788
        %v795 = vmul.f32 %v758, %v788
        %v796 = vmul.f32 %v759, %v788
        %v797 = vmul.f32 %v760, %v788
        %v798 = vmul.f32 %v761, %v788
        %v799 = vmul.f32 %v762, %v788
        %v800 = vmul.f32 %v763, %v788
        %v801 = vmul.f32 %v764, %v788
        %v802 = vmul.f32 %v765, %v788
        %v803 = vmul.f32 %v766, %v788
        %v804 = vmul.f32 %v767, %v788
        %v805 = vmul.f32 %v768, %v788
        %v806 = vmul.f32 %v769, %v788
        %v807 = vmul.f32 %v770, %v788
        %v808 = vmul.f32 %v771, %v788
        %v809 = vmul.f32 %v772, %v788
        %v810 = vmul.f32 %v773, %v788
        %v811 = vmul.f32 %v774, %v788
        %v812 = vmul.f32 %v775, %v788
        %v813 = vmul.f32 %v776, %v788
        %v814 = vmul.f32 %v777, %v788
        %v815 = vmul.f32 %v778, %v788
        %v816 = vmul.f32 %v779, %v788
        %v817 = vmul.f32 %v780, %v788
        %v818 = vmul.f32 %v781, %v788
        %v819 = vmul.f32 %v782, %v788
        %v820 = vmul.f32 %v783, %v788
        %v821 = vadd.f32 %v720, %v789
        %v822 = vadd.f32 %v721, %v790
        %v823 = vadd.f32 %v722, %v791
        %v824 = vadd.f32 %v723, %v792
        %v825 = vadd.f32 %v724, %v793
        %v826 = vadd.f32 %v725, %v794
        %v827 = vadd.f32 %v726, %v795
        %v828 = vadd.f32 %v727, %v796
        %v829 = vadd.f32 %v728, %v797
        %v830 = vadd.f32 %v729, %v798
        %v831 = vadd.f32 %v730, %v799
        %v832 = vadd.f32 %v731, %v800
        %v833 = vadd.f32 %v732, %v801
        %v834 = vadd.f32 %v733, %v802
        %v835 = vadd.f32 %v734, %v803
        %v836 = vadd.f32 %v735, %v804
        %v837 = vadd.f32 %v736, %v805
        %v838 = vadd.f32 %v737, %v806
        %v839 = vadd.f32 %v738, %v807
        %v840 = vadd.f32 %v739, %v808
        %v841 = vadd.f32 %v740, %v809
        %v842 = vadd.f32 %v741, %v810
        %v843 = vadd.f32 %v742, %v811
        %v844 = vadd.f32 %v743, %v812
        %v845 = vadd.f32 %v744, %v813
        %v846 = vadd.f32 %v745, %v814
        %v847 = vadd.f32 %v746, %v815
        %v848 = vadd.f32 %v747, %v816
        %v849 = vadd.f32 %v748, %v817
        %v850 = vadd.f32 %v749, %v818
        %v851 = vadd.f32 %v750, %v819
        %v852 = vadd.f32 %v751, %v820
        %v853 = vld [vmem:[#allocation2 + $0x2] sm:$0xff]
        %v854 = vld [vmem:[#allocation2 + $0xa] sm:$0xff]
        %v855 = vld [vmem:[#allocation2 + $0x1a] sm:$0xff]
        %v856 = vld [vmem:[#allocation2 + $0x22] sm:$0xff]
        %v857 = vld [vmem:[#allocation2 + $0x32] sm:$0xff]
        %v858 = vld [vmem:[#allocation2 + $0x3a] sm:$0xff]
        %v859 = vld [vmem:[#allocation2 + $0x4a] sm:$0xff]
        %v860 = vld [vmem:[#allocation2 + $0x52] sm:$0xff]
        %v861 = vld [vmem:[#allocation2 + $0x62] sm:$0xff]
        %v862 = vld [vmem:[#allocation2 + $0x6a] sm:$0xff]
        %v863 = vld [vmem:[#allocation2 + $0x7a] sm:$0xff]
        %v864 = vld [vmem:[#allocation2 + $0x82] sm:$0xff]
        %v865 = vld [vmem:[#allocation2 + $0x92] sm:$0xff]
        %v866 = vld [vmem:[#allocation2 + $0x9a] sm:$0xff]
        %v867 = vld [vmem:[#allocation2 + $0xaa] sm:$0xff]
        %v868 = vld [vmem:[#allocation2 + $0xb2] sm:$0xff]
        %v869 = vld [vmem:[#allocation2 + $0xc2] sm:$0xff]
        %v870 = vld [vmem:[#allocation2 + $0xca] sm:$0xff]
        %v871 = vld [vmem:[#allocation2 + $0xda] sm:$0xff]
        %v872 = vld [vmem:[#allocation2 + $0xe2] sm:$0xff]
        %v873 = vld [vmem:[#allocation2 + $0xf2] sm:$0xff]
        %v874 = vld [vmem:[#allocation2 + $0xfa] sm:$0xff]
        %v875 = vld [vmem:[#allocation2 + $0x10a] sm:$0xff]
        %v876 = vld [vmem:[#allocation2 + $0x112] sm:$0xff]
        %v877 = vld [vmem:[#allocation2 + $0x122] sm:$0xff]
        %v878 = vld [vmem:[#allocation2 + $0x12a] sm:$0xff]
        %v879 = vld [vmem:[#allocation2 + $0x13a] sm:$0xff]
        %v880 = vld [vmem:[#allocation2 + $0x142] sm:$0xff]
        %v881 = vld [vmem:[#allocation2 + $0x152] sm:$0xff]
        %v882 = vld [vmem:[#allocation2 + $0x15a] sm:$0xff]
        %v883 = vld [vmem:[#allocation2 + $0x16a] sm:$0xff]
        %v884 = vld [vmem:[#allocation2 + $0x172] sm:$0xff]
        %v885 = vld [vmem:[%s1 + $0x2] sm:$0x1]
        %v886 = vlaneseq
        %v887 = vshrl.u32 %v886, 7
        %v888 = vsub.s32 0, %v887
        %v889 = vrot.slane %v885, %v888
        %v890 = vmul.f32 %v853, %v889
        %v891 = vmul.f32 %v854, %v889
        %v892 = vmul.f32 %v855, %v889
        %v893 = vmul.f32 %v856, %v889
        %v894 = vmul.f32 %v857, %v889
        %v895 = vmul.f32 %v858, %v889
        %v896 = vmul.f32 %v859, %v889
        %v897 = vmul.f32 %v860, %v889
        %v898 = vmul.f32 %v861, %v889
        %v899 = vmul.f32 %v862, %v889
        %v900 = vmul.f32 %v863, %v889
        %v901 = vmul.f32 %v864, %v889
        %v902 = vmul.f32 %v865, %v889
        %v903 = vmul.f32 %v866, %v889
        %v904 = vmul.f32 %v867, %v889
        %v905 = vmul.f32 %v868, %v889
        %v906 = vmul.f32 %v869, %v889
        %v907 = vmul.f32 %v870, %v889
        %v908 = vmul.f32 %v871, %v889
        %v909 = vmul.f32 %v872, %v889
        %v910 = vmul.f32 %v873, %v889
        %v911 = vmul.f32 %v874, %v889
        %v912 = vmul.f32 %v875, %v889
        %v913 = vmul.f32 %v876, %v889
        %v914 = vmul.f32 %v877, %v889
        %v915 = vmul.f32 %v878, %v889
        %v916 = vmul.f32 %v879, %v889
        %v917 = vmul.f32 %v880, %v889
        %v918 = vmul.f32 %v881, %v889
        %v919 = vmul.f32 %v882, %v889
        %v920 = vmul.f32 %v883, %v889
        %v921 = vmul.f32 %v884, %v889
        %v922 = vadd.f32 %v821, %v890
        %v923 = vadd.f32 %v822, %v891
        %v924 = vadd.f32 %v823, %v892
        %v925 = vadd.f32 %v824, %v893
        %v926 = vadd.f32 %v825, %v894
        %v927 = vadd.f32 %v826, %v895
        %v928 = vadd.f32 %v827, %v896
        %v929 = vadd.f32 %v828, %v897
        %v930 = vadd.f32 %v829, %v898
        %v931 = vadd.f32 %v830, %v899
        %v932 = vadd.f32 %v831, %v900
        %v933 = vadd.f32 %v832, %v901
        %v934 = vadd.f32 %v833, %v902
        %v935 = vadd.f32 %v834, %v903
        %v936 = vadd.f32 %v835, %v904
        %v937 = vadd.f32 %v836, %v905
        %v938 = vadd.f32 %v837, %v906
        %v939 = vadd.f32 %v838, %v907
        %v940 = vadd.f32 %v839, %v908
        %v941 = vadd.f32 %v840, %v909
        %v942 = vadd.f32 %v841, %v910
        %v943 = vadd.f32 %v842, %v911
        %v944 = vadd.f32 %v843, %v912
        %v945 = vadd.f32 %v844, %v913
        %v946 = vadd.f32 %v845, %v914
        %v947 = vadd.f32 %v846, %v915
        %v948 = vadd.f32 %v847, %v916
        %v949 = vadd.f32 %v848, %v917
        %v950 = vadd.f32 %v849, %v918
        %v951 = vadd.f32 %v850, %v919
        %v952 = vadd.f32 %v851, %v920
        %v953 = vadd.f32 %v852, %v921
        %v954 = vld [vmem:[%s618] sm:$0xff]
        %v955 = vld [vmem:[%s618 + $0x8] sm:$0xff]
        %v956 = vld [vmem:[%s618 + $0x18] sm:$0xff]
        %v957 = vld [vmem:[%s618 + $0x20] sm:$0xff]
        %v958 = vld [vmem:[%s618 + $0x30] sm:$0xff]
        %v959 = vld [vmem:[%s618 + $0x38] sm:$0xff]
        %v960 = vld [vmem:[%s618 + $0x48] sm:$0xff]
        %v961 = vld [vmem:[%s618 + $0x50] sm:$0xff]
        %v962 = vld [vmem:[%s618 + $0x60] sm:$0xff]
        %v963 = vld [vmem:[%s618 + $0x68] sm:$0xff]
        %v964 = vld [vmem:[%s618 + $0x78] sm:$0xff]
        %v965 = vld [vmem:[%s618 + $0x80] sm:$0xff]
        %v966 = vld [vmem:[%s618 + $0x90] sm:$0xff]
        %v967 = vld [vmem:[%s618 + $0x98] sm:$0xff]
        %v968 = vld [vmem:[%s618 + $0xa8] sm:$0xff]
        %v969 = vld [vmem:[%s618 + $0xb0] sm:$0xff]
        %v970 = vld [vmem:[%s618 + $0xc0] sm:$0xff]
        %v971 = vld [vmem:[%s618 + $0xc8] sm:$0xff]
        %v972 = vld [vmem:[%s618 + $0xd8] sm:$0xff]
        %v973 = vld [vmem:[%s618 + $0xe0] sm:$0xff]
        %v974 = vld [vmem:[%s618 + $0xf0] sm:$0xff]
        %v975 = vld [vmem:[%s618 + $0xf8] sm:$0xff]
        %v976 = vld [vmem:[%s618 + $0x108] sm:$0xff]
        %v977 = vld [vmem:[%s618 + $0x110] sm:$0xff]
        %v978 = vld [vmem:[%s618 + $0x120] sm:$0xff]
        %v979 = vld [vmem:[%s618 + $0x128] sm:$0xff]
        %v980 = vld [vmem:[%s618 + $0x138] sm:$0xff]
        %v981 = vld [vmem:[%s618 + $0x140] sm:$0xff]
        %v982 = vld [vmem:[%s618 + $0x150] sm:$0xff]
        %v983 = vld [vmem:[%s618 + $0x158] sm:$0xff]
        %v984 = vld [vmem:[%s618 + $0x168] sm:$0xff]
        %v985 = vld [vmem:[%s618 + $0x170] sm:$0xff]
        %v986 = vld [vmem:[%s1 + $0x3] sm:$0x1]
        %v987 = vlaneseq
        %v988 = vshrl.u32 %v987, 7
        %v989 = vsub.s32 0, %v988
        %v990 = vrot.slane %v986, %v989
        %v991 = vmul.f32 %v954, %v990
        %v992 = vmul.f32 %v955, %v990
        %v993 = vmul.f32 %v956, %v990
        %v994 = vmul.f32 %v957, %v990
        %v995 = vmul.f32 %v958, %v990
        %v996 = vmul.f32 %v959, %v990
        %v997 = vmul.f32 %v960, %v990
        %v998 = vmul.f32 %v961, %v990
        %v999 = vmul.f32 %v962, %v990
        %v1000 = vmul.f32 %v963, %v990
        %v1001 = vmul.f32 %v964, %v990
        %v1002 = vmul.f32 %v965, %v990
        %v1003 = vmul.f32 %v966, %v990
        %v1004 = vmul.f32 %v967, %v990
        %v1005 = vmul.f32 %v968, %v990
        %v1006 = vmul.f32 %v969, %v990
        %v1007 = vmul.f32 %v970, %v990
        %v1008 = vmul.f32 %v971, %v990
        %v1009 = vmul.f32 %v972, %v990
        %v1010 = vmul.f32 %v973, %v990
        %v1011 = vmul.f32 %v974, %v990
        %v1012 = vmul.f32 %v975, %v990
        %v1013 = vmul.f32 %v976, %v990
        %v1014 = vmul.f32 %v977, %v990
        %v1015 = vmul.f32 %v978, %v990
        %v1016 = vmul.f32 %v979, %v990
        %v1017 = vmul.f32 %v980, %v990
        %v1018 = vmul.f32 %v981, %v990
        %v1019 = vmul.f32 %v982, %v990
        %v1020 = vmul.f32 %v983, %v990
        %v1021 = vmul.f32 %v984, %v990
        %v1022 = vmul.f32 %v985, %v990
        %v1023 = vadd.f32 %v922, %v991
        %v1024 = vadd.f32 %v923, %v992
        %v1025 = vadd.f32 %v924, %v993
        %v1026 = vadd.f32 %v925, %v994
        %v1027 = vadd.f32 %v926, %v995
        %v1028 = vadd.f32 %v927, %v996
        %v1029 = vadd.f32 %v928, %v997
        %v1030 = vadd.f32 %v929, %v998
        %v1031 = vadd.f32 %v930, %v999
        %v1032 = vadd.f32 %v931, %v1000
        %v1033 = vadd.f32 %v932, %v1001
        %v1034 = vadd.f32 %v933, %v1002
        %v1035 = vadd.f32 %v934, %v1003
        %v1036 = vadd.f32 %v935, %v1004
        %v1037 = vadd.f32 %v936, %v1005
        %v1038 = vadd.f32 %v937, %v1006
        %v1039 = vadd.f32 %v938, %v1007
        %v1040 = vadd.f32 %v939, %v1008
        %v1041 = vadd.f32 %v940, %v1009
        %v1042 = vadd.f32 %v941, %v1010
        %v1043 = vadd.f32 %v942, %v1011
        %v1044 = vadd.f32 %v943, %v1012
        %v1045 = vadd.f32 %v944, %v1013
        %v1046 = vadd.f32 %v945, %v1014
        %v1047 = vadd.f32 %v946, %v1015
        %v1048 = vadd.f32 %v947, %v1016
        %v1049 = vadd.f32 %v948, %v1017
        %v1050 = vadd.f32 %v949, %v1018
        %v1051 = vadd.f32 %v950, %v1019
        %v1052 = vadd.f32 %v951, %v1020
        %v1053 = vadd.f32 %v952, %v1021
        %v1054 = vadd.f32 %v953, %v1022
        %v1055 = vld [vmem:[%s618 + $0x1] sm:$0xff]
        %v1056 = vld [vmem:[%s618 + $0x9] sm:$0xff]
        %v1057 = vld [vmem:[%s618 + $0x19] sm:$0xff]
        %v1058 = vld [vmem:[%s618 + $0x21] sm:$0xff]
        %v1059 = vld [vmem:[%s618 + $0x31] sm:$0xff]
        %v1060 = vld [vmem:[%s618 + $0x39] sm:$0xff]
        %v1061 = vld [vmem:[%s618 + $0x49] sm:$0xff]
        %v1062 = vld [vmem:[%s618 + $0x51] sm:$0xff]
        %v1063 = vld [vmem:[%s618 + $0x61] sm:$0xff]
        %v1064 = vld [vmem:[%s618 + $0x69] sm:$0xff]
        %v1065 = vld [vmem:[%s618 + $0x79] sm:$0xff]
        %v1066 = vld [vmem:[%s618 + $0x81] sm:$0xff]
        %v1067 = vld [vmem:[%s618 + $0x91] sm:$0xff]
        %v1068 = vld [vmem:[%s618 + $0x99] sm:$0xff]
        %v1069 = vld [vmem:[%s618 + $0xa9] sm:$0xff]
        %v1070 = vld [vmem:[%s618 + $0xb1] sm:$0xff]
        %v1071 = vld [vmem:[%s618 + $0xc1] sm:$0xff]
        %v1072 = vld [vmem:[%s618 + $0xc9] sm:$0xff]
        %v1073 = vld [vmem:[%s618 + $0xd9] sm:$0xff]
        %v1074 = vld [vmem:[%s618 + $0xe1] sm:$0xff]
        %v1075 = vld [vmem:[%s618 + $0xf1] sm:$0xff]
        %v1076 = vld [vmem:[%s618 + $0xf9] sm:$0xff]
        %v1077 = vld [vmem:[%s618 + $0x109] sm:$0xff]
        %v1078 = vld [vmem:[%s618 + $0x111] sm:$0xff]
        %v1079 = vld [vmem:[%s618 + $0x121] sm:$0xff]
        %v1080 = vld [vmem:[%s618 + $0x129] sm:$0xff]
        %v1081 = vld [vmem:[%s618 + $0x139] sm:$0xff]
        %v1082 = vld [vmem:[%s618 + $0x141] sm:$0xff]
        %v1083 = vld [vmem:[%s618 + $0x151] sm:$0xff]
        %v1084 = vld [vmem:[%s618 + $0x159] sm:$0xff]
        %v1085 = vld [vmem:[%s618 + $0x169] sm:$0xff]
        %v1086 = vld [vmem:[%s618 + $0x171] sm:$0xff]
        %v1087 = vld [vmem:[%s1 + $0x4] sm:$0x1]
        %v1088 = vlaneseq
        %v1089 = vshrl.u32 %v1088, 7
        %v1090 = vsub.s32 0, %v1089
        %v1091 = vrot.slane %v1087, %v1090
        %v1092 = vmul.f32 %v1055, %v1091
        %v1093 = vmul.f32 %v1056, %v1091
        %v1094 = vmul.f32 %v1057, %v1091
        %v1095 = vmul.f32 %v1058, %v1091
        %v1096 = vmul.f32 %v1059, %v1091
        %v1097 = vmul.f32 %v1060, %v1091
        %v1098 = vmul.f32 %v1061, %v1091
        %v1099 = vmul.f32 %v1062, %v1091
        %v1100 = vmul.f32 %v1063, %v1091
        %v1101 = vmul.f32 %v1064, %v1091
        %v1102 = vmul.f32 %v1065, %v1091
        %v1103 = vmul.f32 %v1066, %v1091
        %v1104 = vmul.f32 %v1067, %v1091
        %v1105 = vmul.f32 %v1068, %v1091
        %v1106 = vmul.f32 %v1069, %v1091
        %v1107 = vmul.f32 %v1070, %v1091
        %v1108 = vmul.f32 %v1071, %v1091
        %v1109 = vmul.f32 %v1072, %v1091
        %v1110 = vmul.f32 %v1073, %v1091
        %v1111 = vmul.f32 %v1074, %v1091
        %v1112 = vmul.f32 %v1075, %v1091
        %v1113 = vmul.f32 %v1076, %v1091
        %v1114 = vmul.f32 %v1077, %v1091
        %v1115 = vmul.f32 %v1078, %v1091
        %v1116 = vmul.f32 %v1079, %v1091
        %v1117 = vmul.f32 %v1080, %v1091
        %v1118 = vmul.f32 %v1081, %v1091
        %v1119 = vmul.f32 %v1082, %v1091
        %v1120 = vmul.f32 %v1083, %v1091
        %v1121 = vmul.f32 %v1084, %v1091
        %v1122 = vmul.f32 %v1085, %v1091
        %v1123 = vmul.f32 %v1086, %v1091
        %v1124 = vadd.f32 %v1023, %v1092
        %v1125 = vadd.f32 %v1024, %v1093
        %v1126 = vadd.f32 %v1025, %v1094
        %v1127 = vadd.f32 %v1026, %v1095
        %v1128 = vadd.f32 %v1027, %v1096
        %v1129 = vadd.f32 %v1028, %v1097
        %v1130 = vadd.f32 %v1029, %v1098
        %v1131 = vadd.f32 %v1030, %v1099
        %v1132 = vadd.f32 %v1031, %v1100
        %v1133 = vadd.f32 %v1032, %v1101
        %v1134 = vadd.f32 %v1033, %v1102
        %v1135 = vadd.f32 %v1034, %v1103
        %v1136 = vadd.f32 %v1035, %v1104
        %v1137 = vadd.f32 %v1036, %v1105
        %v1138 = vadd.f32 %v1037, %v1106
        %v1139 = vadd.f32 %v1038, %v1107
        %v1140 = vadd.f32 %v1039, %v1108
        %v1141 = vadd.f32 %v1040, %v1109
        %v1142 = vadd.f32 %v1041, %v1110
        %v1143 = vadd.f32 %v1042, %v1111
        %v1144 = vadd.f32 %v1043, %v1112
        %v1145 = vadd.f32 %v1044, %v1113
        %v1146 = vadd.f32 %v1045, %v1114
        %v1147 = vadd.f32 %v1046, %v1115
        %v1148 = vadd.f32 %v1047, %v1116
        %v1149 = vadd.f32 %v1048, %v1117
        %v1150 = vadd.f32 %v1049, %v1118
        %v1151 = vadd.f32 %v1050, %v1119
        %v1152 = vadd.f32 %v1051, %v1120
        %v1153 = vadd.f32 %v1052, %v1121
        %v1154 = vadd.f32 %v1053, %v1122
        %v1155 = vadd.f32 %v1054, %v1123
        %v1156 = vld [vmem:[%s618 + $0x2] sm:$0xff]
        %v1157 = vld [vmem:[%s618 + $0xa] sm:$0xff]
        %v1158 = vld [vmem:[%s618 + $0x1a] sm:$0xff]
        %v1159 = vld [vmem:[%s618 + $0x22] sm:$0xff]
        %v1160 = vld [vmem:[%s618 + $0x32] sm:$0xff]
        %v1161 = vld [vmem:[%s618 + $0x3a] sm:$0xff]
        %v1162 = vld [vmem:[%s618 + $0x4a] sm:$0xff]
        %v1163 = vld [vmem:[%s618 + $0x52] sm:$0xff]
        %v1164 = vld [vmem:[%s618 + $0x62] sm:$0xff]
        %v1165 = vld [vmem:[%s618 + $0x6a] sm:$0xff]
        %v1166 = vld [vmem:[%s618 + $0x7a] sm:$0xff]
        %v1167 = vld [vmem:[%s618 + $0x82] sm:$0xff]
        %v1168 = vld [vmem:[%s618 + $0x92] sm:$0xff]
        %v1169 = vld [vmem:[%s618 + $0x9a] sm:$0xff]
        %v1170 = vld [vmem:[%s618 + $0xaa] sm:$0xff]
        %v1171 = vld [vmem:[%s618 + $0xb2] sm:$0xff]
        %v1172 = vld [vmem:[%s618 + $0xc2] sm:$0xff]
        %v1173 = vld [vmem:[%s618 + $0xca] sm:$0xff]
        %v1174 = vld [vmem:[%s618 + $0xda] sm:$0xff]
        %v1175 = vld [vmem:[%s618 + $0xe2] sm:$0xff]
        %v1176 = vld [vmem:[%s618 + $0xf2] sm:$0xff]
        %v1177 = vld [vmem:[%s618 + $0xfa] sm:$0xff]
        %v1178 = vld [vmem:[%s618 + $0x10a] sm:$0xff]
        %v1179 = vld [vmem:[%s618 + $0x112] sm:$0xff]
        %v1180 = vld [vmem:[%s618 + $0x122] sm:$0xff]
        %v1181 = vld [vmem:[%s618 + $0x12a] sm:$0xff]
        %v1182 = vld [vmem:[%s618 + $0x13a] sm:$0xff]
        %v1183 = vld [vmem:[%s618 + $0x142] sm:$0xff]
        %v1184 = vld [vmem:[%s618 + $0x152] sm:$0xff]
        %v1185 = vld [vmem:[%s618 + $0x15a] sm:$0xff]
        %v1186 = vld [vmem:[%s618 + $0x16a] sm:$0xff]
        %v1187 = vld [vmem:[%s618 + $0x172] sm:$0xff]
        %v1188 = vld [vmem:[%s1 + $0x5] sm:$0x1]
        %v1189 = vlaneseq
        %v1190 = vshrl.u32 %v1189, 7
        %v1191 = vsub.s32 0, %v1190
        %v1192 = vrot.slane %v1188, %v1191
        %v1193 = vmul.f32 %v1156, %v1192
        %v1194 = vmul.f32 %v1157, %v1192
        %v1195 = vmul.f32 %v1158, %v1192
        %v1196 = vmul.f32 %v1159, %v1192
        %v1197 = vmul.f32 %v1160, %v1192
        %v1198 = vmul.f32 %v1161, %v1192
        %v1199 = vmul.f32 %v1162, %v1192
        %v1200 = vmul.f32 %v1163, %v1192
        %v1201 = vmul.f32 %v1164, %v1192
        %v1202 = vmul.f32 %v1165, %v1192
        %v1203 = vmul.f32 %v1166, %v1192
        %v1204 = vmul.f32 %v1167, %v1192
        %v1205 = vmul.f32 %v1168, %v1192
        %v1206 = vmul.f32 %v1169, %v1192
        %v1207 = vmul.f32 %v1170, %v1192
        %v1208 = vmul.f32 %v1171, %v1192
        %v1209 = vmul.f32 %v1172, %v1192
        %v1210 = vmul.f32 %v1173, %v1192
        %v1211 = vmul.f32 %v1174, %v1192
        %v1212 = vmul.f32 %v1175, %v1192
        %v1213 = vmul.f32 %v1176, %v1192
        %v1214 = vmul.f32 %v1177, %v1192
        %v1215 = vmul.f32 %v1178, %v1192
        %v1216 = vmul.f32 %v1179, %v1192
        %v1217 = vmul.f32 %v1180, %v1192
        %v1218 = vmul.f32 %v1181, %v1192
        %v1219 = vmul.f32 %v1182, %v1192
        %v1220 = vmul.f32 %v1183, %v1192
        %v1221 = vmul.f32 %v1184, %v1192
        %v1222 = vmul.f32 %v1185, %v1192
        %v1223 = vmul.f32 %v1186, %v1192
        %v1224 = vmul.f32 %v1187, %v1192
        %v1225 = vadd.f32 %v1124, %v1193
        %v1226 = vadd.f32 %v1125, %v1194
        %v1227 = vadd.f32 %v1126, %v1195
        %v1228 = vadd.f32 %v1127, %v1196
        %v1229 = vadd.f32 %v1128, %v1197
        %v1230 = vadd.f32 %v1129, %v1198
        %v1231 = vadd.f32 %v1130, %v1199
        %v1232 = vadd.f32 %v1131, %v1200
        %v1233 = vadd.f32 %v1132, %v1201
        %v1234 = vadd.f32 %v1133, %v1202
        %v1235 = vadd.f32 %v1134, %v1203
        %v1236 = vadd.f32 %v1135, %v1204
        %v1237 = vadd.f32 %v1136, %v1205
        %v1238 = vadd.f32 %v1137, %v1206
        %v1239 = vadd.f32 %v1138, %v1207
        %v1240 = vadd.f32 %v1139, %v1208
        %v1241 = vadd.f32 %v1140, %v1209
        %v1242 = vadd.f32 %v1141, %v1210
        %v1243 = vadd.f32 %v1142, %v1211
        %v1244 = vadd.f32 %v1143, %v1212
        %v1245 = vadd.f32 %v1144, %v1213
        %v1246 = vadd.f32 %v1145, %v1214
        %v1247 = vadd.f32 %v1146, %v1215
        %v1248 = vadd.f32 %v1147, %v1216
        %v1249 = vadd.f32 %v1148, %v1217
        %v1250 = vadd.f32 %v1149, %v1218
        %v1251 = vadd.f32 %v1150, %v1219
        %v1252 = vadd.f32 %v1151, %v1220
        %v1253 = vadd.f32 %v1152, %v1221
        %v1254 = vadd.f32 %v1153, %v1222
        %v1255 = vadd.f32 %v1154, %v1223
        %v1256 = vadd.f32 %v1155, %v1224
        %s1257 = scalar_lea.vmem [#allocation2], 48
        %v1258 = vld [vmem:[%s1257] sm:$0xff]
        %v1259 = vld [vmem:[%s1257 + $0x8] sm:$0xff]
        %v1260 = vld [vmem:[%s1257 + $0x18] sm:$0xff]
        %v1261 = vld [vmem:[%s1257 + $0x20] sm:$0xff]
        %v1262 = vld [vmem:[%s1257 + $0x30] sm:$0xff]
        %v1263 = vld [vmem:[%s1257 + $0x38] sm:$0xff]
        %v1264 = vld [vmem:[%s1257 + $0x48] sm:$0xff]
        %v1265 = vld [vmem:[%s1257 + $0x50] sm:$0xff]
        %v1266 = vld [vmem:[%s1257 + $0x60] sm:$0xff]
        %v1267 = vld [vmem:[%s1257 + $0x68] sm:$0xff]
        %v1268 = vld [vmem:[%s1257 + $0x78] sm:$0xff]
        %v1269 = vld [vmem:[%s1257 + $0x80] sm:$0xff]
        %v1270 = vld [vmem:[%s1257 + $0x90] sm:$0xff]
        %v1271 = vld [vmem:[%s1257 + $0x98] sm:$0xff]
        %v1272 = vld [vmem:[%s1257 + $0xa8] sm:$0xff]
        %v1273 = vld [vmem:[%s1257 + $0xb0] sm:$0xff]
        %v1274 = vld [vmem:[%s1257 + $0xc0] sm:$0xff]
        %v1275 = vld [vmem:[%s1257 + $0xc8] sm:$0xff]
        %v1276 = vld [vmem:[%s1257 + $0xd8] sm:$0xff]
        %v1277 = vld [vmem:[%s1257 + $0xe0] sm:$0xff]
        %v1278 = vld [vmem:[%s1257 + $0xf0] sm:$0xff]
        %v1279 = vld [vmem:[%s1257 + $0xf8] sm:$0xff]
        %v1280 = vld [vmem:[%s1257 + $0x108] sm:$0xff]
        %v1281 = vld [vmem:[%s1257 + $0x110] sm:$0xff]
        %v1282 = vld [vmem:[%s1257 + $0x120] sm:$0xff]
        %v1283 = vld [vmem:[%s1257 + $0x128] sm:$0xff]
        %v1284 = vld [vmem:[%s1257 + $0x138] sm:$0xff]
        %v1285 = vld [vmem:[%s1257 + $0x140] sm:$0xff]
        %v1286 = vld [vmem:[%s1257 + $0x150] sm:$0xff]
        %v1287 = vld [vmem:[%s1257 + $0x158] sm:$0xff]
        %v1288 = vld [vmem:[%s1257 + $0x168] sm:$0xff]
        %v1289 = vld [vmem:[%s1257 + $0x170] sm:$0xff]
        %v1290 = vld [vmem:[%s1 + $0x6] sm:$0x1]
        %v1291 = vlaneseq
        %v1292 = vshrl.u32 %v1291, 7
        %v1293 = vsub.s32 0, %v1292
        %v1294 = vrot.slane %v1290, %v1293
        %v1295 = vmul.f32 %v1258, %v1294
        %v1296 = vmul.f32 %v1259, %v1294
        %v1297 = vmul.f32 %v1260, %v1294
        %v1298 = vmul.f32 %v1261, %v1294
        %v1299 = vmul.f32 %v1262, %v1294
        %v1300 = vmul.f32 %v1263, %v1294
        %v1301 = vmul.f32 %v1264, %v1294
        %v1302 = vmul.f32 %v1265, %v1294
        %v1303 = vmul.f32 %v1266, %v1294
        %v1304 = vmul.f32 %v1267, %v1294
        %v1305 = vmul.f32 %v1268, %v1294
        %v1306 = vmul.f32 %v1269, %v1294
        %v1307 = vmul.f32 %v1270, %v1294
        %v1308 = vmul.f32 %v1271, %v1294
        %v1309 = vmul.f32 %v1272, %v1294
        %v1310 = vmul.f32 %v1273, %v1294
        %v1311 = vmul.f32 %v1274, %v1294
        %v1312 = vmul.f32 %v1275, %v1294
        %v1313 = vmul.f32 %v1276, %v1294
        %v1314 = vmul.f32 %v1277, %v1294
        %v1315 = vmul.f32 %v1278, %v1294
        %v1316 = vmul.f32 %v1279, %v1294
        %v1317 = vmul.f32 %v1280, %v1294
        %v1318 = vmul.f32 %v1281, %v1294
        %v1319 = vmul.f32 %v1282, %v1294
        %v1320 = vmul.f32 %v1283, %v1294
        %v1321 = vmul.f32 %v1284, %v1294
        %v1322 = vmul.f32 %v1285, %v1294
        %v1323 = vmul.f32 %v1286, %v1294
        %v1324 = vmul.f32 %v1287, %v1294
        %v1325 = vmul.f32 %v1288, %v1294
        %v1326 = vmul.f32 %v1289, %v1294
        %v1327 = vadd.f32 %v1225, %v1295
        %v1328 = vadd.f32 %v1226, %v1296
        %v1329 = vadd.f32 %v1227, %v1297
        %v1330 = vadd.f32 %v1228, %v1298
        %v1331 = vadd.f32 %v1229, %v1299
        %v1332 = vadd.f32 %v1230, %v1300
        %v1333 = vadd.f32 %v1231, %v1301
        %v1334 = vadd.f32 %v1232, %v1302
        %v1335 = vadd.f32 %v1233, %v1303
        %v1336 = vadd.f32 %v1234, %v1304
        %v1337 = vadd.f32 %v1235, %v1305
        %v1338 = vadd.f32 %v1236, %v1306
        %v1339 = vadd.f32 %v1237, %v1307
        %v1340 = vadd.f32 %v1238, %v1308
        %v1341 = vadd.f32 %v1239, %v1309
        %v1342 = vadd.f32 %v1240, %v1310
        %v1343 = vadd.f32 %v1241, %v1311
        %v1344 = vadd.f32 %v1242, %v1312
        %v1345 = vadd.f32 %v1243, %v1313
        %v1346 = vadd.f32 %v1244, %v1314
        %v1347 = vadd.f32 %v1245, %v1315
        %v1348 = vadd.f32 %v1246, %v1316
        %v1349 = vadd.f32 %v1247, %v1317
        %v1350 = vadd.f32 %v1248, %v1318
        %v1351 = vadd.f32 %v1249, %v1319
        %v1352 = vadd.f32 %v1250, %v1320
        %v1353 = vadd.f32 %v1251, %v1321
        %v1354 = vadd.f32 %v1252, %v1322
        %v1355 = vadd.f32 %v1253, %v1323
        %v1356 = vadd.f32 %v1254, %v1324
        %v1357 = vadd.f32 %v1255, %v1325
        %v1358 = vadd.f32 %v1256, %v1326
        %v1359 = vld [vmem:[%s1257 + $0x1] sm:$0xff]
        %v1360 = vld [vmem:[%s1257 + $0x9] sm:$0xff]
        %v1361 = vld [vmem:[%s1257 + $0x19] sm:$0xff]
        %v1362 = vld [vmem:[%s1257 + $0x21] sm:$0xff]
        %v1363 = vld [vmem:[%s1257 + $0x31] sm:$0xff]
        %v1364 = vld [vmem:[%s1257 + $0x39] sm:$0xff]
        %v1365 = vld [vmem:[%s1257 + $0x49] sm:$0xff]
        %v1366 = vld [vmem:[%s1257 + $0x51] sm:$0xff]
        %v1367 = vld [vmem:[%s1257 + $0x61] sm:$0xff]
        %v1368 = vld [vmem:[%s1257 + $0x69] sm:$0xff]
        %v1369 = vld [vmem:[%s1257 + $0x79] sm:$0xff]
        %v1370 = vld [vmem:[%s1257 + $0x81] sm:$0xff]
        %v1371 = vld [vmem:[%s1257 + $0x91] sm:$0xff]
        %v1372 = vld [vmem:[%s1257 + $0x99] sm:$0xff]
        %v1373 = vld [vmem:[%s1257 + $0xa9] sm:$0xff]
        %v1374 = vld [vmem:[%s1257 + $0xb1] sm:$0xff]
        %v1375 = vld [vmem:[%s1257 + $0xc1] sm:$0xff]
        %v1376 = vld [vmem:[%s1257 + $0xc9] sm:$0xff]
        %v1377 = vld [vmem:[%s1257 + $0xd9] sm:$0xff]
        %v1378 = vld [vmem:[%s1257 + $0xe1] sm:$0xff]
        %v1379 = vld [vmem:[%s1257 + $0xf1] sm:$0xff]
        %v1380 = vld [vmem:[%s1257 + $0xf9] sm:$0xff]
        %v1381 = vld [vmem:[%s1257 + $0x109] sm:$0xff]
        %v1382 = vld [vmem:[%s1257 + $0x111] sm:$0xff]
        %v1383 = vld [vmem:[%s1257 + $0x121] sm:$0xff]
        %v1384 = vld [vmem:[%s1257 + $0x129] sm:$0xff]
        %v1385 = vld [vmem:[%s1257 + $0x139] sm:$0xff]
        %v1386 = vld [vmem:[%s1257 + $0x141] sm:$0xff]
        %v1387 = vld [vmem:[%s1257 + $0x151] sm:$0xff]
        %v1388 = vld [vmem:[%s1257 + $0x159] sm:$0xff]
        %v1389 = vld [vmem:[%s1257 + $0x169] sm:$0xff]
        %v1390 = vld [vmem:[%s1257 + $0x171] sm:$0xff]
        %v1391 = vld [vmem:[%s1 + $0x7] sm:$0x1]
        %v1392 = vlaneseq
        %v1393 = vshrl.u32 %v1392, 7
        %v1394 = vsub.s32 0, %v1393
        %v1395 = vrot.slane %v1391, %v1394
        %v1396 = vmul.f32 %v1359, %v1395
        %v1397 = vmul.f32 %v1360, %v1395
        %v1398 = vmul.f32 %v1361, %v1395
        %v1399 = vmul.f32 %v1362, %v1395
        %v1400 = vmul.f32 %v1363, %v1395
        %v1401 = vmul.f32 %v1364, %v1395
        %v1402 = vmul.f32 %v1365, %v1395
        %v1403 = vmul.f32 %v1366, %v1395
        %v1404 = vmul.f32 %v1367, %v1395
        %v1405 = vmul.f32 %v1368, %v1395
        %v1406 = vmul.f32 %v1369, %v1395
        %v1407 = vmul.f32 %v1370, %v1395
        %v1408 = vmul.f32 %v1371, %v1395
        %v1409 = vmul.f32 %v1372, %v1395
        %v1410 = vmul.f32 %v1373, %v1395
        %v1411 = vmul.f32 %v1374, %v1395
        %v1412 = vmul.f32 %v1375, %v1395
        %v1413 = vmul.f32 %v1376, %v1395
        %v1414 = vmul.f32 %v1377, %v1395
        %v1415 = vmul.f32 %v1378, %v1395
        %v1416 = vmul.f32 %v1379, %v1395
        %v1417 = vmul.f32 %v1380, %v1395
        %v1418 = vmul.f32 %v1381, %v1395
        %v1419 = vmul.f32 %v1382, %v1395
        %v1420 = vmul.f32 %v1383, %v1395
        %v1421 = vmul.f32 %v1384, %v1395
        %v1422 = vmul.f32 %v1385, %v1395
        %v1423 = vmul.f32 %v1386, %v1395
        %v1424 = vmul.f32 %v1387, %v1395
        %v1425 = vmul.f32 %v1388, %v1395
        %v1426 = vmul.f32 %v1389, %v1395
        %v1427 = vmul.f32 %v1390, %v1395
        %v1428 = vadd.f32 %v1327, %v1396
        %v1429 = vadd.f32 %v1328, %v1397
        %v1430 = vadd.f32 %v1329, %v1398
        %v1431 = vadd.f32 %v1330, %v1399
        %v1432 = vadd.f32 %v1331, %v1400
        %v1433 = vadd.f32 %v1332, %v1401
        %v1434 = vadd.f32 %v1333, %v1402
        %v1435 = vadd.f32 %v1334, %v1403
        %v1436 = vadd.f32 %v1335, %v1404
        %v1437 = vadd.f32 %v1336, %v1405
        %v1438 = vadd.f32 %v1337, %v1406
        %v1439 = vadd.f32 %v1338, %v1407
        %v1440 = vadd.f32 %v1339, %v1408
        %v1441 = vadd.f32 %v1340, %v1409
        %v1442 = vadd.f32 %v1341, %v1410
        %v1443 = vadd.f32 %v1342, %v1411
        %v1444 = vadd.f32 %v1343, %v1412
        %v1445 = vadd.f32 %v1344, %v1413
        %v1446 = vadd.f32 %v1345, %v1414
        %v1447 = vadd.f32 %v1346, %v1415
        %v1448 = vadd.f32 %v1347, %v1416
        %v1449 = vadd.f32 %v1348, %v1417
        %v1450 = vadd.f32 %v1349, %v1418
        %v1451 = vadd.f32 %v1350, %v1419
        %v1452 = vadd.f32 %v1351, %v1420
        %v1453 = vadd.f32 %v1352, %v1421
        %v1454 = vadd.f32 %v1353, %v1422
        %v1455 = vadd.f32 %v1354, %v1423
        %v1456 = vadd.f32 %v1355, %v1424
        %v1457 = vadd.f32 %v1356, %v1425
        %v1458 = vadd.f32 %v1357, %v1426
        %v1459 = vadd.f32 %v1358, %v1427
        %v1460 = vld [vmem:[%s1257 + $0x2] sm:$0xff]
        %v1461 = vld [vmem:[%s1257 + $0xa] sm:$0xff]
        %v1462 = vld [vmem:[%s1257 + $0x1a] sm:$0xff]
        %v1463 = vld [vmem:[%s1257 + $0x22] sm:$0xff]
        %v1464 = vld [vmem:[%s1257 + $0x32] sm:$0xff]
        %v1465 = vld [vmem:[%s1257 + $0x3a] sm:$0xff]
        %v1466 = vld [vmem:[%s1257 + $0x4a] sm:$0xff]
        %v1467 = vld [vmem:[%s1257 + $0x52] sm:$0xff]
        %v1468 = vld [vmem:[%s1257 + $0x62] sm:$0xff]
        %v1469 = vld [vmem:[%s1257 + $0x6a] sm:$0xff]
        %v1470 = vld [vmem:[%s1257 + $0x7a] sm:$0xff]
        %v1471 = vld [vmem:[%s1257 + $0x82] sm:$0xff]
        %v1472 = vld [vmem:[%s1257 + $0x92] sm:$0xff]
        %v1473 = vld [vmem:[%s1257 + $0x9a] sm:$0xff]
        %v1474 = vld [vmem:[%s1257 + $0xaa] sm:$0xff]
        %v1475 = vld [vmem:[%s1257 + $0xb2] sm:$0xff]
        %v1476 = vld [vmem:[%s1257 + $0xc2] sm:$0xff]
        %v1477 = vld [vmem:[%s1257 + $0xca] sm:$0xff]
        %v1478 = vld [vmem:[%s1257 + $0xda] sm:$0xff]
        %v1479 = vld [vmem:[%s1257 + $0xe2] sm:$0xff]
        %v1480 = vld [vmem:[%s1257 + $0xf2] sm:$0xff]
        %v1481 = vld [vmem:[%s1257 + $0xfa] sm:$0xff]
        %v1482 = vld [vmem:[%s1257 + $0x10a] sm:$0xff]
        %v1483 = vld [vmem:[%s1257 + $0x112] sm:$0xff]
        %v1484 = vld [vmem:[%s1257 + $0x122] sm:$0xff]
        %v1485 = vld [vmem:[%s1257 + $0x12a] sm:$0xff]
        %v1486 = vld [vmem:[%s1257 + $0x13a] sm:$0xff]
        %v1487 = vld [vmem:[%s1257 + $0x142] sm:$0xff]
        %v1488 = vld [vmem:[%s1257 + $0x152] sm:$0xff]
        %v1489 = vld [vmem:[%s1257 + $0x15a] sm:$0xff]
        %v1490 = vld [vmem:[%s1257 + $0x16a] sm:$0xff]
        %v1491 = vld [vmem:[%s1257 + $0x172] sm:$0xff]
        %v1492 = vld [vmem:[%s1 + $0x8] sm:$0x1]
        %v1493 = vlaneseq
        %v1494 = vshrl.u32 %v1493, 7
        %v1495 = vsub.s32 0, %v1494
        %v1496 = vrot.slane %v1492, %v1495
        %v1497 = vmul.f32 %v1460, %v1496
        %v1498 = vmul.f32 %v1461, %v1496
        %v1499 = vmul.f32 %v1462, %v1496
        %v1500 = vmul.f32 %v1463, %v1496
        %v1501 = vmul.f32 %v1464, %v1496
        %v1502 = vmul.f32 %v1465, %v1496
        %v1503 = vmul.f32 %v1466, %v1496
        %v1504 = vmul.f32 %v1467, %v1496
        %v1505 = vmul.f32 %v1468, %v1496
        %v1506 = vmul.f32 %v1469, %v1496
        %v1507 = vmul.f32 %v1470, %v1496
        %v1508 = vmul.f32 %v1471, %v1496
        %v1509 = vmul.f32 %v1472, %v1496
        %v1510 = vmul.f32 %v1473, %v1496
        %v1511 = vmul.f32 %v1474, %v1496
        %v1512 = vmul.f32 %v1475, %v1496
        %v1513 = vmul.f32 %v1476, %v1496
        %v1514 = vmul.f32 %v1477, %v1496
        %v1515 = vmul.f32 %v1478, %v1496
        %v1516 = vmul.f32 %v1479, %v1496
        %v1517 = vmul.f32 %v1480, %v1496
        %v1518 = vmul.f32 %v1481, %v1496
        %v1519 = vmul.f32 %v1482, %v1496
        %v1520 = vmul.f32 %v1483, %v1496
        %v1521 = vmul.f32 %v1484, %v1496
        %v1522 = vmul.f32 %v1485, %v1496
        %v1523 = vmul.f32 %v1486, %v1496
        %v1524 = vmul.f32 %v1487, %v1496
        %v1525 = vmul.f32 %v1488, %v1496
        %v1526 = vmul.f32 %v1489, %v1496
        %v1527 = vmul.f32 %v1490, %v1496
        %v1528 = vmul.f32 %v1491, %v1496
        %v1529 = vadd.f32 %v1428, %v1497
        %v1530 = vadd.f32 %v1429, %v1498
        %v1531 = vadd.f32 %v1430, %v1499
        %v1532 = vadd.f32 %v1431, %v1500
        %v1533 = vadd.f32 %v1432, %v1501
        %v1534 = vadd.f32 %v1433, %v1502
        %v1535 = vadd.f32 %v1434, %v1503
        %v1536 = vadd.f32 %v1435, %v1504
        %v1537 = vadd.f32 %v1436, %v1505
        %v1538 = vadd.f32 %v1437, %v1506
        %v1539 = vadd.f32 %v1438, %v1507
        %v1540 = vadd.f32 %v1439, %v1508
        %v1541 = vadd.f32 %v1440, %v1509
        %v1542 = vadd.f32 %v1441, %v1510
        %v1543 = vadd.f32 %v1442, %v1511
        %v1544 = vadd.f32 %v1443, %v1512
        %v1545 = vadd.f32 %v1444, %v1513
        %v1546 = vadd.f32 %v1445, %v1514
        %v1547 = vadd.f32 %v1446, %v1515
        %v1548 = vadd.f32 %v1447, %v1516
        %v1549 = vadd.f32 %v1448, %v1517
        %v1550 = vadd.f32 %v1449, %v1518
        %v1551 = vadd.f32 %v1450, %v1519
        %v1552 = vadd.f32 %v1451, %v1520
        %v1553 = vadd.f32 %v1452, %v1521
        %v1554 = vadd.f32 %v1453, %v1522
        %v1555 = vadd.f32 %v1454, %v1523
        %v1556 = vadd.f32 %v1455, %v1524
        %v1557 = vadd.f32 %v1456, %v1525
        %v1558 = vadd.f32 %v1457, %v1526
        %v1559 = vadd.f32 %v1458, %v1527
        %v1560 = vadd.f32 %v1459, %v1528
        %v1561 = vld [vmem:[%s2] sm:$0x1]
        %v1563 = vlaneseq
        %v1564 = vshrl.u32 %v1563, 7
        %v1565 = vsub.s32 0, %v1564
        %v1566 = vrot.slane %v1561, %v1565
        %v1568 = vadd.f32 %v1529, %v1566
        %v1569 = vadd.f32 %v1530, %v1566
        %v1570 = vadd.f32 %v1531, %v1566
        %v1571 = vadd.f32 %v1532, %v1566
        %v1572 = vadd.f32 %v1533, %v1566
        %v1573 = vadd.f32 %v1534, %v1566
        %v1574 = vadd.f32 %v1535, %v1566
        %v1575 = vadd.f32 %v1536, %v1566
        %v1576 = vadd.f32 %v1537, %v1566
        %v1577 = vadd.f32 %v1538, %v1566
        %v1578 = vadd.f32 %v1539, %v1566
        %v1579 = vadd.f32 %v1540, %v1566
        %v1580 = vadd.f32 %v1541, %v1566
        %v1581 = vadd.f32 %v1542, %v1566
        %v1582 = vadd.f32 %v1543, %v1566
        %v1583 = vadd.f32 %v1544, %v1566
        %v1584 = vadd.f32 %v1545, %v1566
        %v1585 = vadd.f32 %v1546, %v1566
        %v1586 = vadd.f32 %v1547, %v1566
        %v1587 = vadd.f32 %v1548, %v1566
        %v1588 = vadd.f32 %v1549, %v1566
        %v1589 = vadd.f32 %v1550, %v1566
        %v1590 = vadd.f32 %v1551, %v1566
        %v1591 = vadd.f32 %v1552, %v1566
        %v1592 = vadd.f32 %v1553, %v1566
        %v1593 = vadd.f32 %v1554, %v1566
        %v1594 = vadd.f32 %v1555, %v1566
        %v1595 = vadd.f32 %v1556, %v1566
        %v1596 = vadd.f32 %v1557, %v1566
        %v1597 = vadd.f32 %v1558, %v1566
        %v1598 = vadd.f32 %v1559, %v1566
        %v1599 = vadd.f32 %v1560, %v1566
        %v1600 = vmax.f32 %v1568, 0.0
        %v1601 = vmax.f32 %v1569, 0.0
        %v1602 = vmax.f32 %v1570, 0.0
        %v1603 = vmax.f32 %v1571, 0.0
        %v1604 = vmax.f32 %v1572, 0.0
        %v1605 = vmax.f32 %v1573, 0.0
        %v1606 = vmax.f32 %v1574, 0.0
        %v1607 = vmax.f32 %v1575, 0.0
        %v1608 = vmax.f32 %v1576, 0.0
        %v1609 = vmax.f32 %v1577, 0.0
        %v1610 = vmax.f32 %v1578, 0.0
        %v1611 = vmax.f32 %v1579, 0.0
        %v1612 = vmax.f32 %v1580, 0.0
        %v1613 = vmax.f32 %v1581, 0.0
        %v1614 = vmax.f32 %v1582, 0.0
        %v1615 = vmax.f32 %v1583, 0.0
        %v1616 = vmax.f32 %v1584, 0.0
        %v1617 = vmax.f32 %v1585, 0.0
        %v1618 = vmax.f32 %v1586, 0.0
        %v1619 = vmax.f32 %v1587, 0.0
        %v1620 = vmax.f32 %v1588, 0.0
        %v1621 = vmax.f32 %v1589, 0.0
        %v1622 = vmax.f32 %v1590, 0.0
        %v1623 = vmax.f32 %v1591, 0.0
        %v1624 = vmax.f32 %v1592, 0.0
        %v1625 = vmax.f32 %v1593, 0.0
        %v1626 = vmax.f32 %v1594, 0.0
        %v1627 = vmax.f32 %v1595, 0.0
        %v1628 = vmax.f32 %v1596, 0.0
        %v1629 = vmax.f32 %v1597, 0.0
        %v1630 = vmax.f32 %v1598, 0.0
        %v1631 = vmax.f32 %v1599, 0.0
        %v1664 = vcombine.high %v1600, %v1600
        %v1666 = vunpack.c.l.s4 1983009808
        %v1667 = vunpack.c.0.s8 %v1666
        %v1668 = vlaneseq
        %v1669 = vshrl.u32 %v1668, 7
        %v1670 = vsub.s32 %v1667, %v1669
        %v1671 = vrot.slane %v1600, %v1670
        %v1673 = vunpack.c.l.s4 1983009808
        %v1674 = vunpack.c.0.s8 %v1673
        %v1675 = vlaneseq
        %v1676 = vshrl.u32 %v1675, 7
        %v1677 = vsub.s32 %v1674, %v1676
        %v1678 = vrot.slane %v1664, %v1677
        %v1679 = vcombine.high %v1671, %v1671
        %v1680 = vcombine.high %v1678, %v1678
        %v1681 = vcombine.high %v1601, %v1601
        %v1683 = vunpack.c.l.s4 1983009808
        %v1684 = vunpack.c.0.s8 %v1683
        %v1685 = vlaneseq
        %v1686 = vshrl.u32 %v1685, 7
        %v1687 = vsub.s32 %v1684, %v1686
        %v1688 = vrot.slane %v1601, %v1687
        %v1690 = vunpack.c.l.s4 1983009808
        %v1691 = vunpack.c.0.s8 %v1690
        %v1692 = vlaneseq
        %v1693 = vshrl.u32 %v1692, 7
        %v1694 = vsub.s32 %v1691, %v1693
        %v1695 = vrot.slane %v1681, %v1694
        %v1696 = vcombine.high %v1688, %v1688
        %v1697 = vcombine.high %v1695, %v1695
        %v1698 = vcombine.high %v1602, %v1602
        %v1700 = vunpack.c.l.s4 1983009808
        %v1701 = vunpack.c.0.s8 %v1700
        %v1702 = vlaneseq
        %v1703 = vshrl.u32 %v1702, 7
        %v1704 = vsub.s32 %v1701, %v1703
        %v1705 = vrot.slane %v1602, %v1704
        %v1707 = vunpack.c.l.s4 1983009808
        %v1708 = vunpack.c.0.s8 %v1707
        %v1709 = vlaneseq
        %v1710 = vshrl.u32 %v1709, 7
        %v1711 = vsub.s32 %v1708, %v1710
        %v1712 = vrot.slane %v1698, %v1711
        %v1713 = vcombine.high %v1705, %v1705
        %v1714 = vcombine.high %v1712, %v1712
        %v1715 = vcombine.high %v1603, %v1603
        %v1717 = vunpack.c.l.s4 1983009808
        %v1718 = vunpack.c.0.s8 %v1717
        %v1719 = vlaneseq
        %v1720 = vshrl.u32 %v1719, 7
        %v1721 = vsub.s32 %v1718, %v1720
        %v1722 = vrot.slane %v1603, %v1721
        %v1724 = vunpack.c.l.s4 1983009808
        %v1725 = vunpack.c.0.s8 %v1724
        %v1726 = vlaneseq
        %v1727 = vshrl.u32 %v1726, 7
        %v1728 = vsub.s32 %v1725, %v1727
        %v1729 = vrot.slane %v1715, %v1728
        %v1730 = vcombine.high %v1722, %v1722
        %v1731 = vcombine.high %v1729, %v1729
        %v1732 = vcombine.high %v1604, %v1604
        %v1734 = vunpack.c.l.s4 1983009808
        %v1735 = vunpack.c.0.s8 %v1734
        %v1736 = vlaneseq
        %v1737 = vshrl.u32 %v1736, 7
        %v1738 = vsub.s32 %v1735, %v1737
        %v1739 = vrot.slane %v1604, %v1738
        %v1741 = vunpack.c.l.s4 1983009808
        %v1742 = vunpack.c.0.s8 %v1741
        %v1743 = vlaneseq
        %v1744 = vshrl.u32 %v1743, 7
        %v1745 = vsub.s32 %v1742, %v1744
        %v1746 = vrot.slane %v1732, %v1745
        %v1747 = vcombine.high %v1739, %v1739
        %v1748 = vcombine.high %v1746, %v1746
        %v1749 = vcombine.high %v1605, %v1605
        %v1751 = vunpack.c.l.s4 1983009808
        %v1752 = vunpack.c.0.s8 %v1751
        %v1753 = vlaneseq
        %v1754 = vshrl.u32 %v1753, 7
        %v1755 = vsub.s32 %v1752, %v1754
        %v1756 = vrot.slane %v1605, %v1755
        %v1758 = vunpack.c.l.s4 1983009808
        %v1759 = vunpack.c.0.s8 %v1758
        %v1760 = vlaneseq
        %v1761 = vshrl.u32 %v1760, 7
        %v1762 = vsub.s32 %v1759, %v1761
        %v1763 = vrot.slane %v1749, %v1762
        %v1764 = vcombine.high %v1756, %v1756
        %v1765 = vcombine.high %v1763, %v1763
        %v1766 = vcombine.high %v1606, %v1606
        %v1768 = vunpack.c.l.s4 1983009808
        %v1769 = vunpack.c.0.s8 %v1768
        %v1770 = vlaneseq
        %v1771 = vshrl.u32 %v1770, 7
        %v1772 = vsub.s32 %v1769, %v1771
        %v1773 = vrot.slane %v1606, %v1772
        %v1775 = vunpack.c.l.s4 1983009808
        %v1776 = vunpack.c.0.s8 %v1775
        %v1777 = vlaneseq
        %v1778 = vshrl.u32 %v1777, 7
        %v1779 = vsub.s32 %v1776, %v1778
        %v1780 = vrot.slane %v1766, %v1779
        %v1781 = vcombine.high %v1773, %v1773
        %v1782 = vcombine.high %v1780, %v1780
        %v1783 = vcombine.high %v1607, %v1607
        %v1785 = vunpack.c.l.s4 1983009808
        %v1786 = vunpack.c.0.s8 %v1785
        %v1787 = vlaneseq
        %v1788 = vshrl.u32 %v1787, 7
        %v1789 = vsub.s32 %v1786, %v1788
        %v1790 = vrot.slane %v1607, %v1789
        %v1792 = vunpack.c.l.s4 1983009808
        %v1793 = vunpack.c.0.s8 %v1792
        %v1794 = vlaneseq
        %v1795 = vshrl.u32 %v1794, 7
        %v1796 = vsub.s32 %v1793, %v1795
        %v1797 = vrot.slane %v1783, %v1796
        %v1798 = vcombine.high %v1790, %v1790
        %v1799 = vcombine.high %v1797, %v1797
        %v1800 = vcombine.high %v1608, %v1608
        %v1802 = vunpack.c.l.s4 1983009808
        %v1803 = vunpack.c.0.s8 %v1802
        %v1804 = vlaneseq
        %v1805 = vshrl.u32 %v1804, 7
        %v1806 = vsub.s32 %v1803, %v1805
        %v1807 = vrot.slane %v1608, %v1806
        %v1809 = vunpack.c.l.s4 1983009808
        %v1810 = vunpack.c.0.s8 %v1809
        %v1811 = vlaneseq
        %v1812 = vshrl.u32 %v1811, 7
        %v1813 = vsub.s32 %v1810, %v1812
        %v1814 = vrot.slane %v1800, %v1813
        %v1815 = vcombine.high %v1807, %v1807
        %v1816 = vcombine.high %v1814, %v1814
        %v1817 = vcombine.high %v1609, %v1609
        %v1819 = vunpack.c.l.s4 1983009808
        %v1820 = vunpack.c.0.s8 %v1819
        %v1821 = vlaneseq
        %v1822 = vshrl.u32 %v1821, 7
        %v1823 = vsub.s32 %v1820, %v1822
        %v1824 = vrot.slane %v1609, %v1823
        %v1826 = vunpack.c.l.s4 1983009808
        %v1827 = vunpack.c.0.s8 %v1826
        %v1828 = vlaneseq
        %v1829 = vshrl.u32 %v1828, 7
        %v1830 = vsub.s32 %v1827, %v1829
        %v1831 = vrot.slane %v1817, %v1830
        %v1832 = vcombine.high %v1824, %v1824
        %v1833 = vcombine.high %v1831, %v1831
        %v1834 = vcombine.high %v1610, %v1610
        %v1836 = vunpack.c.l.s4 1983009808
        %v1837 = vunpack.c.0.s8 %v1836
        %v1838 = vlaneseq
        %v1839 = vshrl.u32 %v1838, 7
        %v1840 = vsub.s32 %v1837, %v1839
        %v1841 = vrot.slane %v1610, %v1840
        %v1843 = vunpack.c.l.s4 1983009808
        %v1844 = vunpack.c.0.s8 %v1843
        %v1845 = vlaneseq
        %v1846 = vshrl.u32 %v1845, 7
        %v1847 = vsub.s32 %v1844, %v1846
        %v1848 = vrot.slane %v1834, %v1847
        %v1849 = vcombine.high %v1841, %v1841
        %v1850 = vcombine.high %v1848, %v1848
        %v1851 = vcombine.high %v1611, %v1611
        %v1853 = vunpack.c.l.s4 1983009808
        %v1854 = vunpack.c.0.s8 %v1853
        %v1855 = vlaneseq
        %v1856 = vshrl.u32 %v1855, 7
        %v1857 = vsub.s32 %v1854, %v1856
        %v1858 = vrot.slane %v1611, %v1857
        %v1860 = vunpack.c.l.s4 1983009808
        %v1861 = vunpack.c.0.s8 %v1860
        %v1862 = vlaneseq
        %v1863 = vshrl.u32 %v1862, 7
        %v1864 = vsub.s32 %v1861, %v1863
        %v1865 = vrot.slane %v1851, %v1864
        %v1866 = vcombine.high %v1858, %v1858
        %v1867 = vcombine.high %v1865, %v1865
        %v1868 = vcombine.high %v1612, %v1612
        %v1870 = vunpack.c.l.s4 1983009808
        %v1871 = vunpack.c.0.s8 %v1870
        %v1872 = vlaneseq
        %v1873 = vshrl.u32 %v1872, 7
        %v1874 = vsub.s32 %v1871, %v1873
        %v1875 = vrot.slane %v1612, %v1874
        %v1877 = vunpack.c.l.s4 1983009808
        %v1878 = vunpack.c.0.s8 %v1877
        %v1879 = vlaneseq
        %v1880 = vshrl.u32 %v1879, 7
        %v1881 = vsub.s32 %v1878, %v1880
        %v1882 = vrot.slane %v1868, %v1881
        %v1883 = vcombine.high %v1875, %v1875
        %v1884 = vcombine.high %v1882, %v1882
        %v1885 = vcombine.high %v1613, %v1613
        %v1887 = vunpack.c.l.s4 1983009808
        %v1888 = vunpack.c.0.s8 %v1887
        %v1889 = vlaneseq
        %v1890 = vshrl.u32 %v1889, 7
        %v1891 = vsub.s32 %v1888, %v1890
        %v1892 = vrot.slane %v1613, %v1891
        %v1894 = vunpack.c.l.s4 1983009808
        %v1895 = vunpack.c.0.s8 %v1894
        %v1896 = vlaneseq
        %v1897 = vshrl.u32 %v1896, 7
        %v1898 = vsub.s32 %v1895, %v1897
        %v1899 = vrot.slane %v1885, %v1898
        %v1900 = vcombine.high %v1892, %v1892
        %v1901 = vcombine.high %v1899, %v1899
        %v1902 = vcombine.high %v1614, %v1614
        %v1904 = vunpack.c.l.s4 1983009808
        %v1905 = vunpack.c.0.s8 %v1904
        %v1906 = vlaneseq
        %v1907 = vshrl.u32 %v1906, 7
        %v1908 = vsub.s32 %v1905, %v1907
        %v1909 = vrot.slane %v1614, %v1908
        %v1911 = vunpack.c.l.s4 1983009808
        %v1912 = vunpack.c.0.s8 %v1911
        %v1913 = vlaneseq
        %v1914 = vshrl.u32 %v1913, 7
        %v1915 = vsub.s32 %v1912, %v1914
        %v1916 = vrot.slane %v1902, %v1915
        %v1917 = vcombine.high %v1909, %v1909
        %v1918 = vcombine.high %v1916, %v1916
        %v1919 = vcombine.high %v1615, %v1615
        %v1921 = vunpack.c.l.s4 1983009808
        %v1922 = vunpack.c.0.s8 %v1921
        %v1923 = vlaneseq
        %v1924 = vshrl.u32 %v1923, 7
        %v1925 = vsub.s32 %v1922, %v1924
        %v1926 = vrot.slane %v1615, %v1925
        %v1928 = vunpack.c.l.s4 1983009808
        %v1929 = vunpack.c.0.s8 %v1928
        %v1930 = vlaneseq
        %v1931 = vshrl.u32 %v1930, 7
        %v1932 = vsub.s32 %v1929, %v1931
        %v1933 = vrot.slane %v1919, %v1932
        %v1934 = vcombine.high %v1926, %v1926
        %v1935 = vcombine.high %v1933, %v1933
        %v1936 = vcombine.high %v1616, %v1616
        %v1938 = vunpack.c.l.s4 1983009808
        %v1939 = vunpack.c.0.s8 %v1938
        %v1940 = vlaneseq
        %v1941 = vshrl.u32 %v1940, 7
        %v1942 = vsub.s32 %v1939, %v1941
        %v1943 = vrot.slane %v1616, %v1942
        %v1945 = vunpack.c.l.s4 1983009808
        %v1946 = vunpack.c.0.s8 %v1945
        %v1947 = vlaneseq
        %v1948 = vshrl.u32 %v1947, 7
        %v1949 = vsub.s32 %v1946, %v1948
        %v1950 = vrot.slane %v1936, %v1949
        %v1951 = vcombine.high %v1943, %v1943
        %v1952 = vcombine.high %v1950, %v1950
        %v1953 = vcombine.high %v1617, %v1617
        %v1955 = vunpack.c.l.s4 1983009808
        %v1956 = vunpack.c.0.s8 %v1955
        %v1957 = vlaneseq
        %v1958 = vshrl.u32 %v1957, 7
        %v1959 = vsub.s32 %v1956, %v1958
        %v1960 = vrot.slane %v1617, %v1959
        %v1962 = vunpack.c.l.s4 1983009808
        %v1963 = vunpack.c.0.s8 %v1962
        %v1964 = vlaneseq
        %v1965 = vshrl.u32 %v1964, 7
        %v1966 = vsub.s32 %v1963, %v1965
        %v1967 = vrot.slane %v1953, %v1966
        %v1968 = vcombine.high %v1960, %v1960
        %v1969 = vcombine.high %v1967, %v1967
        %v1970 = vcombine.high %v1618, %v1618
        %v1972 = vunpack.c.l.s4 1983009808
        %v1973 = vunpack.c.0.s8 %v1972
        %v1974 = vlaneseq
        %v1975 = vshrl.u32 %v1974, 7
        %v1976 = vsub.s32 %v1973, %v1975
        %v1977 = vrot.slane %v1618, %v1976
        %v1979 = vunpack.c.l.s4 1983009808
        %v1980 = vunpack.c.0.s8 %v1979
        %v1981 = vlaneseq
        %v1982 = vshrl.u32 %v1981, 7
        %v1983 = vsub.s32 %v1980, %v1982
        %v1984 = vrot.slane %v1970, %v1983
        %v1985 = vcombine.high %v1977, %v1977
        %v1986 = vcombine.high %v1984, %v1984
        %v1987 = vcombine.high %v1619, %v1619
        %v1989 = vunpack.c.l.s4 1983009808
        %v1990 = vunpack.c.0.s8 %v1989
        %v1991 = vlaneseq
        %v1992 = vshrl.u32 %v1991, 7
        %v1993 = vsub.s32 %v1990, %v1992
        %v1994 = vrot.slane %v1619, %v1993
        %v1996 = vunpack.c.l.s4 1983009808
        %v1997 = vunpack.c.0.s8 %v1996
        %v1998 = vlaneseq
        %v1999 = vshrl.u32 %v1998, 7
        %v2000 = vsub.s32 %v1997, %v1999
        %v2001 = vrot.slane %v1987, %v2000
        %v2002 = vcombine.high %v1994, %v1994
        %v2003 = vcombine.high %v2001, %v2001
        %v2004 = vcombine.high %v1620, %v1620
        %v2006 = vunpack.c.l.s4 1983009808
        %v2007 = vunpack.c.0.s8 %v2006
        %v2008 = vlaneseq
        %v2009 = vshrl.u32 %v2008, 7
        %v2010 = vsub.s32 %v2007, %v2009
        %v2011 = vrot.slane %v1620, %v2010
        %v2013 = vunpack.c.l.s4 1983009808
        %v2014 = vunpack.c.0.s8 %v2013
        %v2015 = vlaneseq
        %v2016 = vshrl.u32 %v2015, 7
        %v2017 = vsub.s32 %v2014, %v2016
        %v2018 = vrot.slane %v2004, %v2017
        %v2019 = vcombine.high %v2011, %v2011
        %v2020 = vcombine.high %v2018, %v2018
        %v2021 = vcombine.high %v1621, %v1621
        %v2023 = vunpack.c.l.s4 1983009808
        %v2024 = vunpack.c.0.s8 %v2023
        %v2025 = vlaneseq
        %v2026 = vshrl.u32 %v2025, 7
        %v2027 = vsub.s32 %v2024, %v2026
        %v2028 = vrot.slane %v1621, %v2027
        %v2030 = vunpack.c.l.s4 1983009808
        %v2031 = vunpack.c.0.s8 %v2030
        %v2032 = vlaneseq
        %v2033 = vshrl.u32 %v2032, 7
        %v2034 = vsub.s32 %v2031, %v2033
        %v2035 = vrot.slane %v2021, %v2034
        %v2036 = vcombine.high %v2028, %v2028
        %v2037 = vcombine.high %v2035, %v2035
        %v2038 = vcombine.high %v1622, %v1622
        %v2040 = vunpack.c.l.s4 1983009808
        %v2041 = vunpack.c.0.s8 %v2040
        %v2042 = vlaneseq
        %v2043 = vshrl.u32 %v2042, 7
        %v2044 = vsub.s32 %v2041, %v2043
        %v2045 = vrot.slane %v1622, %v2044
        %v2047 = vunpack.c.l.s4 1983009808
        %v2048 = vunpack.c.0.s8 %v2047
        %v2049 = vlaneseq
        %v2050 = vshrl.u32 %v2049, 7
        %v2051 = vsub.s32 %v2048, %v2050
        %v2052 = vrot.slane %v2038, %v2051
        %v2053 = vcombine.high %v2045, %v2045
        %v2054 = vcombine.high %v2052, %v2052
        %v2055 = vcombine.high %v1623, %v1623
        %v2057 = vunpack.c.l.s4 1983009808
        %v2058 = vunpack.c.0.s8 %v2057
        %v2059 = vlaneseq
        %v2060 = vshrl.u32 %v2059, 7
        %v2061 = vsub.s32 %v2058, %v2060
        %v2062 = vrot.slane %v1623, %v2061
        %v2064 = vunpack.c.l.s4 1983009808
        %v2065 = vunpack.c.0.s8 %v2064
        %v2066 = vlaneseq
        %v2067 = vshrl.u32 %v2066, 7
        %v2068 = vsub.s32 %v2065, %v2067
        %v2069 = vrot.slane %v2055, %v2068
        %v2070 = vcombine.high %v2062, %v2062
        %v2071 = vcombine.high %v2069, %v2069
        %v2072 = vcombine.high %v1624, %v1624
        %v2074 = vunpack.c.l.s4 1983009808
        %v2075 = vunpack.c.0.s8 %v2074
        %v2076 = vlaneseq
        %v2077 = vshrl.u32 %v2076, 7
        %v2078 = vsub.s32 %v2075, %v2077
        %v2079 = vrot.slane %v1624, %v2078
        %v2081 = vunpack.c.l.s4 1983009808
        %v2082 = vunpack.c.0.s8 %v2081
        %v2083 = vlaneseq
        %v2084 = vshrl.u32 %v2083, 7
        %v2085 = vsub.s32 %v2082, %v2084
        %v2086 = vrot.slane %v2072, %v2085
        %v2087 = vcombine.high %v2079, %v2079
        %v2088 = vcombine.high %v2086, %v2086
        %v2089 = vcombine.high %v1625, %v1625
        %v2091 = vunpack.c.l.s4 1983009808
        %v2092 = vunpack.c.0.s8 %v2091
        %v2093 = vlaneseq
        %v2094 = vshrl.u32 %v2093, 7
        %v2095 = vsub.s32 %v2092, %v2094
        %v2096 = vrot.slane %v1625, %v2095
        %v2098 = vunpack.c.l.s4 1983009808
        %v2099 = vunpack.c.0.s8 %v2098
        %v2100 = vlaneseq
        %v2101 = vshrl.u32 %v2100, 7
        %v2102 = vsub.s32 %v2099, %v2101
        %v2103 = vrot.slane %v2089, %v2102
        %v2104 = vcombine.high %v2096, %v2096
        %v2105 = vcombine.high %v2103, %v2103
        %v2106 = vcombine.high %v1626, %v1626
        %v2108 = vunpack.c.l.s4 1983009808
        %v2109 = vunpack.c.0.s8 %v2108
        %v2110 = vlaneseq
        %v2111 = vshrl.u32 %v2110, 7
        %v2112 = vsub.s32 %v2109, %v2111
        %v2113 = vrot.slane %v1626, %v2112
        %v2115 = vunpack.c.l.s4 1983009808
        %v2116 = vunpack.c.0.s8 %v2115
        %v2117 = vlaneseq
        %v2118 = vshrl.u32 %v2117, 7
        %v2119 = vsub.s32 %v2116, %v2118
        %v2120 = vrot.slane %v2106, %v2119
        %v2121 = vcombine.high %v2113, %v2113
        %v2122 = vcombine.high %v2120, %v2120
        %v2123 = vcombine.high %v1627, %v1627
        %v2125 = vunpack.c.l.s4 1983009808
        %v2126 = vunpack.c.0.s8 %v2125
        %v2127 = vlaneseq
        %v2128 = vshrl.u32 %v2127, 7
        %v2129 = vsub.s32 %v2126, %v2128
        %v2130 = vrot.slane %v1627, %v2129
        %v2132 = vunpack.c.l.s4 1983009808
        %v2133 = vunpack.c.0.s8 %v2132
        %v2134 = vlaneseq
        %v2135 = vshrl.u32 %v2134, 7
        %v2136 = vsub.s32 %v2133, %v2135
        %v2137 = vrot.slane %v2123, %v2136
        %v2138 = vcombine.high %v2130, %v2130
        %v2139 = vcombine.high %v2137, %v2137
        %v2140 = vcombine.high %v1628, %v1628
        %v2142 = vunpack.c.l.s4 1983009808
        %v2143 = vunpack.c.0.s8 %v2142
        %v2144 = vlaneseq
        %v2145 = vshrl.u32 %v2144, 7
        %v2146 = vsub.s32 %v2143, %v2145
        %v2147 = vrot.slane %v1628, %v2146
        %v2149 = vunpack.c.l.s4 1983009808
        %v2150 = vunpack.c.0.s8 %v2149
        %v2151 = vlaneseq
        %v2152 = vshrl.u32 %v2151, 7
        %v2153 = vsub.s32 %v2150, %v2152
        %v2154 = vrot.slane %v2140, %v2153
        %v2155 = vcombine.high %v2147, %v2147
        %v2156 = vcombine.high %v2154, %v2154
        %v2157 = vcombine.high %v1629, %v1629
        %v2159 = vunpack.c.l.s4 1983009808
        %v2160 = vunpack.c.0.s8 %v2159
        %v2161 = vlaneseq
        %v2162 = vshrl.u32 %v2161, 7
        %v2163 = vsub.s32 %v2160, %v2162
        %v2164 = vrot.slane %v1629, %v2163
        %v2166 = vunpack.c.l.s4 1983009808
        %v2167 = vunpack.c.0.s8 %v2166
        %v2168 = vlaneseq
        %v2169 = vshrl.u32 %v2168, 7
        %v2170 = vsub.s32 %v2167, %v2169
        %v2171 = vrot.slane %v2157, %v2170
        %v2172 = vcombine.high %v2164, %v2164
        %v2173 = vcombine.high %v2171, %v2171
        %v2174 = vcombine.high %v1630, %v1630
        %v2176 = vunpack.c.l.s4 1983009808
        %v2177 = vunpack.c.0.s8 %v2176
        %v2178 = vlaneseq
        %v2179 = vshrl.u32 %v2178, 7
        %v2180 = vsub.s32 %v2177, %v2179
        %v2181 = vrot.slane %v1630, %v2180
        %v2183 = vunpack.c.l.s4 1983009808
        %v2184 = vunpack.c.0.s8 %v2183
        %v2185 = vlaneseq
        %v2186 = vshrl.u32 %v2185, 7
        %v2187 = vsub.s32 %v2184, %v2186
        %v2188 = vrot.slane %v2174, %v2187
        %v2189 = vcombine.high %v2181, %v2181
        %v2190 = vcombine.high %v2188, %v2188
        %v2191 = vcombine.high %v1631, %v1631
        %v2193 = vunpack.c.l.s4 1983009808
        %v2194 = vunpack.c.0.s8 %v2193
        %v2195 = vlaneseq
        %v2196 = vshrl.u32 %v2195, 7
        %v2197 = vsub.s32 %v2194, %v2196
        %v2198 = vrot.slane %v1631, %v2197
        %v2200 = vunpack.c.l.s4 1983009808
        %v2201 = vunpack.c.0.s8 %v2200
        %v2202 = vlaneseq
        %v2203 = vshrl.u32 %v2202, 7
        %v2204 = vsub.s32 %v2201, %v2203
        %v2205 = vrot.slane %v2191, %v2204
        %v2206 = vcombine.high %v2198, %v2198
        %v2207 = vcombine.high %v2205, %v2205
        %v2336 = vsel %vm281, %v1671, -inf
        %v2337 = vrot.slane %v2336, 4
        %v2338 = vmax.f32 %v2336, %v2337
        %v2339 = vrot.slane %v2338, 2
        %v2340 = vmax.f32 %v2338, %v2339
        %v2341 = vrot.slane %v2340, 1
        %v2342 = vmax.f32 %v2340, %v2341
        %v2343 = vsel %vm281, %v1679, -inf
        %v2344 = vrot.slane %v2343, 4
        %v2345 = vmax.f32 %v2343, %v2344
        %v2346 = vrot.slane %v2345, 2
        %v2347 = vmax.f32 %v2345, %v2346
        %v2348 = vrot.slane %v2347, 1
        %v2349 = vmax.f32 %v2347, %v2348
        %v2350 = vsel %vm281, %v1678, -inf
        %v2351 = vrot.slane %v2350, 4
        %v2352 = vmax.f32 %v2350, %v2351
        %v2353 = vrot.slane %v2352, 2
        %v2354 = vmax.f32 %v2352, %v2353
        %v2355 = vrot.slane %v2354, 1
        %v2356 = vmax.f32 %v2354, %v2355
        %v2357 = vsel %vm281, %v1680, -inf
        %v2358 = vrot.slane %v2357, 4
        %v2359 = vmax.f32 %v2357, %v2358
        %v2360 = vrot.slane %v2359, 2
        %v2361 = vmax.f32 %v2359, %v2360
        %v2362 = vrot.slane %v2361, 1
        %v2363 = vmax.f32 %v2361, %v2362
        %v2364 = vsel %vm281, %v1688, -inf
        %v2365 = vrot.slane %v2364, 4
        %v2366 = vmax.f32 %v2364, %v2365
        %v2367 = vrot.slane %v2366, 2
        %v2368 = vmax.f32 %v2366, %v2367
        %v2369 = vrot.slane %v2368, 1
        %v2370 = vmax.f32 %v2368, %v2369
        %v2371 = vsel %vm281, %v1696, -inf
        %v2372 = vrot.slane %v2371, 4
        %v2373 = vmax.f32 %v2371, %v2372
        %v2374 = vrot.slane %v2373, 2
        %v2375 = vmax.f32 %v2373, %v2374
        %v2376 = vrot.slane %v2375, 1
        %v2377 = vmax.f32 %v2375, %v2376
        %v2378 = vsel %vm281, %v1695, -inf
        %v2379 = vrot.slane %v2378, 4
        %v2380 = vmax.f32 %v2378, %v2379
        %v2381 = vrot.slane %v2380, 2
        %v2382 = vmax.f32 %v2380, %v2381
        %v2383 = vrot.slane %v2382, 1
        %v2384 = vmax.f32 %v2382, %v2383
        %v2385 = vsel %vm281, %v1697, -inf
        %v2386 = vrot.slane %v2385, 4
        %v2387 = vmax.f32 %v2385, %v2386
        %v2388 = vrot.slane %v2387, 2
        %v2389 = vmax.f32 %v2387, %v2388
        %v2390 = vrot.slane %v2389, 1
        %v2391 = vmax.f32 %v2389, %v2390
        %v2392 = vsel %vm281, %v1705, -inf
        %v2393 = vrot.slane %v2392, 4
        %v2394 = vmax.f32 %v2392, %v2393
        %v2395 = vrot.slane %v2394, 2
        %v2396 = vmax.f32 %v2394, %v2395
        %v2397 = vrot.slane %v2396, 1
        %v2398 = vmax.f32 %v2396, %v2397
        %v2399 = vsel %vm281, %v1713, -inf
        %v2400 = vrot.slane %v2399, 4
        %v2401 = vmax.f32 %v2399, %v2400
        %v2402 = vrot.slane %v2401, 2
        %v2403 = vmax.f32 %v2401, %v2402
        %v2404 = vrot.slane %v2403, 1
        %v2405 = vmax.f32 %v2403, %v2404
        %v2406 = vsel %vm281, %v1712, -inf
        %v2407 = vrot.slane %v2406, 4
        %v2408 = vmax.f32 %v2406, %v2407
        %v2409 = vrot.slane %v2408, 2
        %v2410 = vmax.f32 %v2408, %v2409
        %v2411 = vrot.slane %v2410, 1
        %v2412 = vmax.f32 %v2410, %v2411
        %v2413 = vsel %vm281, %v1714, -inf
        %v2414 = vrot.slane %v2413, 4
        %v2415 = vmax.f32 %v2413, %v2414
        %v2416 = vrot.slane %v2415, 2
        %v2417 = vmax.f32 %v2415, %v2416
        %v2418 = vrot.slane %v2417, 1
        %v2419 = vmax.f32 %v2417, %v2418
        %v2420 = vsel %vm281, %v1722, -inf
        %v2421 = vrot.slane %v2420, 4
        %v2422 = vmax.f32 %v2420, %v2421
        %v2423 = vrot.slane %v2422, 2
        %v2424 = vmax.f32 %v2422, %v2423
        %v2425 = vrot.slane %v2424, 1
        %v2426 = vmax.f32 %v2424, %v2425
        %v2427 = vsel %vm281, %v1730, -inf
        %v2428 = vrot.slane %v2427, 4
        %v2429 = vmax.f32 %v2427, %v2428
        %v2430 = vrot.slane %v2429, 2
        %v2431 = vmax.f32 %v2429, %v2430
        %v2432 = vrot.slane %v2431, 1
        %v2433 = vmax.f32 %v2431, %v2432
        %v2434 = vsel %vm281, %v1729, -inf
        %v2435 = vrot.slane %v2434, 4
        %v2436 = vmax.f32 %v2434, %v2435
        %v2437 = vrot.slane %v2436, 2
        %v2438 = vmax.f32 %v2436, %v2437
        %v2439 = vrot.slane %v2438, 1
        %v2440 = vmax.f32 %v2438, %v2439
        %v2441 = vsel %vm281, %v1731, -inf
        %v2442 = vrot.slane %v2441, 4
        %v2443 = vmax.f32 %v2441, %v2442
        %v2444 = vrot.slane %v2443, 2
        %v2445 = vmax.f32 %v2443, %v2444
        %v2446 = vrot.slane %v2445, 1
        %v2447 = vmax.f32 %v2445, %v2446
        %v2448 = vsel %vm281, %v1739, -inf
        %v2449 = vrot.slane %v2448, 4
        %v2450 = vmax.f32 %v2448, %v2449
        %v2451 = vrot.slane %v2450, 2
        %v2452 = vmax.f32 %v2450, %v2451
        %v2453 = vrot.slane %v2452, 1
        %v2454 = vmax.f32 %v2452, %v2453
        %v2455 = vsel %vm281, %v1747, -inf
        %v2456 = vrot.slane %v2455, 4
        %v2457 = vmax.f32 %v2455, %v2456
        %v2458 = vrot.slane %v2457, 2
        %v2459 = vmax.f32 %v2457, %v2458
        %v2460 = vrot.slane %v2459, 1
        %v2461 = vmax.f32 %v2459, %v2460
        %v2462 = vsel %vm281, %v1746, -inf
        %v2463 = vrot.slane %v2462, 4
        %v2464 = vmax.f32 %v2462, %v2463
        %v2465 = vrot.slane %v2464, 2
        %v2466 = vmax.f32 %v2464, %v2465
        %v2467 = vrot.slane %v2466, 1
        %v2468 = vmax.f32 %v2466, %v2467
        %v2469 = vsel %vm281, %v1748, -inf
        %v2470 = vrot.slane %v2469, 4
        %v2471 = vmax.f32 %v2469, %v2470
        %v2472 = vrot.slane %v2471, 2
        %v2473 = vmax.f32 %v2471, %v2472
        %v2474 = vrot.slane %v2473, 1
        %v2475 = vmax.f32 %v2473, %v2474
        %v2476 = vsel %vm281, %v1756, -inf
        %v2477 = vrot.slane %v2476, 4
        %v2478 = vmax.f32 %v2476, %v2477
        %v2479 = vrot.slane %v2478, 2
        %v2480 = vmax.f32 %v2478, %v2479
        %v2481 = vrot.slane %v2480, 1
        %v2482 = vmax.f32 %v2480, %v2481
        %v2483 = vsel %vm281, %v1764, -inf
        %v2484 = vrot.slane %v2483, 4
        %v2485 = vmax.f32 %v2483, %v2484
        %v2486 = vrot.slane %v2485, 2
        %v2487 = vmax.f32 %v2485, %v2486
        %v2488 = vrot.slane %v2487, 1
        %v2489 = vmax.f32 %v2487, %v2488
        %v2490 = vsel %vm281, %v1763, -inf
        %v2491 = vrot.slane %v2490, 4
        %v2492 = vmax.f32 %v2490, %v2491
        %v2493 = vrot.slane %v2492, 2
        %v2494 = vmax.f32 %v2492, %v2493
        %v2495 = vrot.slane %v2494, 1
        %v2496 = vmax.f32 %v2494, %v2495
        %v2497 = vsel %vm281, %v1765, -inf
        %v2498 = vrot.slane %v2497, 4
        %v2499 = vmax.f32 %v2497, %v2498
        %v2500 = vrot.slane %v2499, 2
        %v2501 = vmax.f32 %v2499, %v2500
        %v2502 = vrot.slane %v2501, 1
        %v2503 = vmax.f32 %v2501, %v2502
        %v2504 = vsel %vm281, %v1773, -inf
        %v2505 = vrot.slane %v2504, 4
        %v2506 = vmax.f32 %v2504, %v2505
        %v2507 = vrot.slane %v2506, 2
        %v2508 = vmax.f32 %v2506, %v2507
        %v2509 = vrot.slane %v2508, 1
        %v2510 = vmax.f32 %v2508, %v2509
        %v2511 = vsel %vm281, %v1781, -inf
        %v2512 = vrot.slane %v2511, 4
        %v2513 = vmax.f32 %v2511, %v2512
        %v2514 = vrot.slane %v2513, 2
        %v2515 = vmax.f32 %v2513, %v2514
        %v2516 = vrot.slane %v2515, 1
        %v2517 = vmax.f32 %v2515, %v2516
        %v2518 = vsel %vm281, %v1780, -inf
        %v2519 = vrot.slane %v2518, 4
        %v2520 = vmax.f32 %v2518, %v2519
        %v2521 = vrot.slane %v2520, 2
        %v2522 = vmax.f32 %v2520, %v2521
        %v2523 = vrot.slane %v2522, 1
        %v2524 = vmax.f32 %v2522, %v2523
        %v2525 = vsel %vm281, %v1782, -inf
        %v2526 = vrot.slane %v2525, 4
        %v2527 = vmax.f32 %v2525, %v2526
        %v2528 = vrot.slane %v2527, 2
        %v2529 = vmax.f32 %v2527, %v2528
        %v2530 = vrot.slane %v2529, 1
        %v2531 = vmax.f32 %v2529, %v2530
        %v2532 = vsel %vm281, %v1790, -inf
        %v2533 = vrot.slane %v2532, 4
        %v2534 = vmax.f32 %v2532, %v2533
        %v2535 = vrot.slane %v2534, 2
        %v2536 = vmax.f32 %v2534, %v2535
        %v2537 = vrot.slane %v2536, 1
        %v2538 = vmax.f32 %v2536, %v2537
        %v2539 = vsel %vm281, %v1798, -inf
        %v2540 = vrot.slane %v2539, 4
        %v2541 = vmax.f32 %v2539, %v2540
        %v2542 = vrot.slane %v2541, 2
        %v2543 = vmax.f32 %v2541, %v2542
        %v2544 = vrot.slane %v2543, 1
        %v2545 = vmax.f32 %v2543, %v2544
        %v2546 = vsel %vm281, %v1797, -inf
        %v2547 = vrot.slane %v2546, 4
        %v2548 = vmax.f32 %v2546, %v2547
        %v2549 = vrot.slane %v2548, 2
        %v2550 = vmax.f32 %v2548, %v2549
        %v2551 = vrot.slane %v2550, 1
        %v2552 = vmax.f32 %v2550, %v2551
        %v2553 = vsel %vm281, %v1799, -inf
        %v2554 = vrot.slane %v2553, 4
        %v2555 = vmax.f32 %v2553, %v2554
        %v2556 = vrot.slane %v2555, 2
        %v2557 = vmax.f32 %v2555, %v2556
        %v2558 = vrot.slane %v2557, 1
        %v2559 = vmax.f32 %v2557, %v2558
        %v2560 = vsel %vm281, %v1807, -inf
        %v2561 = vrot.slane %v2560, 4
        %v2562 = vmax.f32 %v2560, %v2561
        %v2563 = vrot.slane %v2562, 2
        %v2564 = vmax.f32 %v2562, %v2563
        %v2565 = vrot.slane %v2564, 1
        %v2566 = vmax.f32 %v2564, %v2565
        %v2567 = vsel %vm281, %v1815, -inf
        %v2568 = vrot.slane %v2567, 4
        %v2569 = vmax.f32 %v2567, %v2568
        %v2570 = vrot.slane %v2569, 2
        %v2571 = vmax.f32 %v2569, %v2570
        %v2572 = vrot.slane %v2571, 1
        %v2573 = vmax.f32 %v2571, %v2572
        %v2574 = vsel %vm281, %v1814, -inf
        %v2575 = vrot.slane %v2574, 4
        %v2576 = vmax.f32 %v2574, %v2575
        %v2577 = vrot.slane %v2576, 2
        %v2578 = vmax.f32 %v2576, %v2577
        %v2579 = vrot.slane %v2578, 1
        %v2580 = vmax.f32 %v2578, %v2579
        %v2581 = vsel %vm281, %v1816, -inf
        %v2582 = vrot.slane %v2581, 4
        %v2583 = vmax.f32 %v2581, %v2582
        %v2584 = vrot.slane %v2583, 2
        %v2585 = vmax.f32 %v2583, %v2584
        %v2586 = vrot.slane %v2585, 1
        %v2587 = vmax.f32 %v2585, %v2586
        %v2588 = vsel %vm281, %v1824, -inf
        %v2589 = vrot.slane %v2588, 4
        %v2590 = vmax.f32 %v2588, %v2589
        %v2591 = vrot.slane %v2590, 2
        %v2592 = vmax.f32 %v2590, %v2591
        %v2593 = vrot.slane %v2592, 1
        %v2594 = vmax.f32 %v2592, %v2593
        %v2595 = vsel %vm281, %v1832, -inf
        %v2596 = vrot.slane %v2595, 4
        %v2597 = vmax.f32 %v2595, %v2596
        %v2598 = vrot.slane %v2597, 2
        %v2599 = vmax.f32 %v2597, %v2598
        %v2600 = vrot.slane %v2599, 1
        %v2601 = vmax.f32 %v2599, %v2600
        %v2602 = vsel %vm281, %v1831, -inf
        %v2603 = vrot.slane %v2602, 4
        %v2604 = vmax.f32 %v2602, %v2603
        %v2605 = vrot.slane %v2604, 2
        %v2606 = vmax.f32 %v2604, %v2605
        %v2607 = vrot.slane %v2606, 1
        %v2608 = vmax.f32 %v2606, %v2607
        %v2609 = vsel %vm281, %v1833, -inf
        %v2610 = vrot.slane %v2609, 4
        %v2611 = vmax.f32 %v2609, %v2610
        %v2612 = vrot.slane %v2611, 2
        %v2613 = vmax.f32 %v2611, %v2612
        %v2614 = vrot.slane %v2613, 1
        %v2615 = vmax.f32 %v2613, %v2614
        %v2616 = vsel %vm281, %v1841, -inf
        %v2617 = vrot.slane %v2616, 4
        %v2618 = vmax.f32 %v2616, %v2617
        %v2619 = vrot.slane %v2618, 2
        %v2620 = vmax.f32 %v2618, %v2619
        %v2621 = vrot.slane %v2620, 1
        %v2622 = vmax.f32 %v2620, %v2621
        %v2623 = vsel %vm281, %v1849, -inf
        %v2624 = vrot.slane %v2623, 4
        %v2625 = vmax.f32 %v2623, %v2624
        %v2626 = vrot.slane %v2625, 2
        %v2627 = vmax.f32 %v2625, %v2626
        %v2628 = vrot.slane %v2627, 1
        %v2629 = vmax.f32 %v2627, %v2628
        %v2630 = vsel %vm281, %v1848, -inf
        %v2631 = vrot.slane %v2630, 4
        %v2632 = vmax.f32 %v2630, %v2631
        %v2633 = vrot.slane %v2632, 2
        %v2634 = vmax.f32 %v2632, %v2633
        %v2635 = vrot.slane %v2634, 1
        %v2636 = vmax.f32 %v2634, %v2635
        %v2637 = vsel %vm281, %v1850, -inf
        %v2638 = vrot.slane %v2637, 4
        %v2639 = vmax.f32 %v2637, %v2638
        %v2640 = vrot.slane %v2639, 2
        %v2641 = vmax.f32 %v2639, %v2640
        %v2642 = vrot.slane %v2641, 1
        %v2643 = vmax.f32 %v2641, %v2642
        %v2644 = vsel %vm281, %v1858, -inf
        %v2645 = vrot.slane %v2644, 4
        %v2646 = vmax.f32 %v2644, %v2645
        %v2647 = vrot.slane %v2646, 2
        %v2648 = vmax.f32 %v2646, %v2647
        %v2649 = vrot.slane %v2648, 1
        %v2650 = vmax.f32 %v2648, %v2649
        %v2651 = vsel %vm281, %v1866, -inf
        %v2652 = vrot.slane %v2651, 4
        %v2653 = vmax.f32 %v2651, %v2652
        %v2654 = vrot.slane %v2653, 2
        %v2655 = vmax.f32 %v2653, %v2654
        %v2656 = vrot.slane %v2655, 1
        %v2657 = vmax.f32 %v2655, %v2656
        %v2658 = vsel %vm281, %v1865, -inf
        %v2659 = vrot.slane %v2658, 4
        %v2660 = vmax.f32 %v2658, %v2659
        %v2661 = vrot.slane %v2660, 2
        %v2662 = vmax.f32 %v2660, %v2661
        %v2663 = vrot.slane %v2662, 1
        %v2664 = vmax.f32 %v2662, %v2663
        %v2665 = vsel %vm281, %v1867, -inf
        %v2666 = vrot.slane %v2665, 4
        %v2667 = vmax.f32 %v2665, %v2666
        %v2668 = vrot.slane %v2667, 2
        %v2669 = vmax.f32 %v2667, %v2668
        %v2670 = vrot.slane %v2669, 1
        %v2671 = vmax.f32 %v2669, %v2670
        %v2672 = vsel %vm281, %v1875, -inf
        %v2673 = vrot.slane %v2672, 4
        %v2674 = vmax.f32 %v2672, %v2673
        %v2675 = vrot.slane %v2674, 2
        %v2676 = vmax.f32 %v2674, %v2675
        %v2677 = vrot.slane %v2676, 1
        %v2678 = vmax.f32 %v2676, %v2677
        %v2679 = vsel %vm281, %v1883, -inf
        %v2680 = vrot.slane %v2679, 4
        %v2681 = vmax.f32 %v2679, %v2680
        %v2682 = vrot.slane %v2681, 2
        %v2683 = vmax.f32 %v2681, %v2682
        %v2684 = vrot.slane %v2683, 1
        %v2685 = vmax.f32 %v2683, %v2684
        %v2686 = vsel %vm281, %v1882, -inf
        %v2687 = vrot.slane %v2686, 4
        %v2688 = vmax.f32 %v2686, %v2687
        %v2689 = vrot.slane %v2688, 2
        %v2690 = vmax.f32 %v2688, %v2689
        %v2691 = vrot.slane %v2690, 1
        %v2692 = vmax.f32 %v2690, %v2691
        %v2693 = vsel %vm281, %v1884, -inf
        %v2694 = vrot.slane %v2693, 4
        %v2695 = vmax.f32 %v2693, %v2694
        %v2696 = vrot.slane %v2695, 2
        %v2697 = vmax.f32 %v2695, %v2696
        %v2698 = vrot.slane %v2697, 1
        %v2699 = vmax.f32 %v2697, %v2698
        %v2700 = vsel %vm281, %v1892, -inf
        %v2701 = vrot.slane %v2700, 4
        %v2702 = vmax.f32 %v2700, %v2701
        %v2703 = vrot.slane %v2702, 2
        %v2704 = vmax.f32 %v2702, %v2703
        %v2705 = vrot.slane %v2704, 1
        %v2706 = vmax.f32 %v2704, %v2705
        %v2707 = vsel %vm281, %v1900, -inf
        %v2708 = vrot.slane %v2707, 4
        %v2709 = vmax.f32 %v2707, %v2708
        %v2710 = vrot.slane %v2709, 2
        %v2711 = vmax.f32 %v2709, %v2710
        %v2712 = vrot.slane %v2711, 1
        %v2713 = vmax.f32 %v2711, %v2712
        %v2714 = vsel %vm281, %v1899, -inf
        %v2715 = vrot.slane %v2714, 4
        %v2716 = vmax.f32 %v2714, %v2715
        %v2717 = vrot.slane %v2716, 2
        %v2718 = vmax.f32 %v2716, %v2717
        %v2719 = vrot.slane %v2718, 1
        %v2720 = vmax.f32 %v2718, %v2719
        %v2721 = vsel %vm281, %v1901, -inf
        %v2722 = vrot.slane %v2721, 4
        %v2723 = vmax.f32 %v2721, %v2722
        %v2724 = vrot.slane %v2723, 2
        %v2725 = vmax.f32 %v2723, %v2724
        %v2726 = vrot.slane %v2725, 1
        %v2727 = vmax.f32 %v2725, %v2726
        %v2728 = vsel %vm281, %v1909, -inf
        %v2729 = vrot.slane %v2728, 4
        %v2730 = vmax.f32 %v2728, %v2729
        %v2731 = vrot.slane %v2730, 2
        %v2732 = vmax.f32 %v2730, %v2731
        %v2733 = vrot.slane %v2732, 1
        %v2734 = vmax.f32 %v2732, %v2733
        %v2735 = vsel %vm281, %v1917, -inf
        %v2736 = vrot.slane %v2735, 4
        %v2737 = vmax.f32 %v2735, %v2736
        %v2738 = vrot.slane %v2737, 2
        %v2739 = vmax.f32 %v2737, %v2738
        %v2740 = vrot.slane %v2739, 1
        %v2741 = vmax.f32 %v2739, %v2740
        %v2742 = vsel %vm281, %v1916, -inf
        %v2743 = vrot.slane %v2742, 4
        %v2744 = vmax.f32 %v2742, %v2743
        %v2745 = vrot.slane %v2744, 2
        %v2746 = vmax.f32 %v2744, %v2745
        %v2747 = vrot.slane %v2746, 1
        %v2748 = vmax.f32 %v2746, %v2747
        %v2749 = vsel %vm281, %v1918, -inf
        %v2750 = vrot.slane %v2749, 4
        %v2751 = vmax.f32 %v2749, %v2750
        %v2752 = vrot.slane %v2751, 2
        %v2753 = vmax.f32 %v2751, %v2752
        %v2754 = vrot.slane %v2753, 1
        %v2755 = vmax.f32 %v2753, %v2754
        %v2756 = vsel %vm281, %v1926, -inf
        %v2757 = vrot.slane %v2756, 4
        %v2758 = vmax.f32 %v2756, %v2757
        %v2759 = vrot.slane %v2758, 2
        %v2760 = vmax.f32 %v2758, %v2759
        %v2761 = vrot.slane %v2760, 1
        %v2762 = vmax.f32 %v2760, %v2761
        %v2763 = vsel %vm281, %v1934, -inf
        %v2764 = vrot.slane %v2763, 4
        %v2765 = vmax.f32 %v2763, %v2764
        %v2766 = vrot.slane %v2765, 2
        %v2767 = vmax.f32 %v2765, %v2766
        %v2768 = vrot.slane %v2767, 1
        %v2769 = vmax.f32 %v2767, %v2768
        %v2770 = vsel %vm281, %v1933, -inf
        %v2771 = vrot.slane %v2770, 4
        %v2772 = vmax.f32 %v2770, %v2771
        %v2773 = vrot.slane %v2772, 2
        %v2774 = vmax.f32 %v2772, %v2773
        %v2775 = vrot.slane %v2774, 1
        %v2776 = vmax.f32 %v2774, %v2775
        %v2777 = vsel %vm281, %v1935, -inf
        %v2778 = vrot.slane %v2777, 4
        %v2779 = vmax.f32 %v2777, %v2778
        %v2780 = vrot.slane %v2779, 2
        %v2781 = vmax.f32 %v2779, %v2780
        %v2782 = vrot.slane %v2781, 1
        %v2783 = vmax.f32 %v2781, %v2782
        %v2784 = vsel %vm281, %v1943, -inf
        %v2785 = vrot.slane %v2784, 4
        %v2786 = vmax.f32 %v2784, %v2785
        %v2787 = vrot.slane %v2786, 2
        %v2788 = vmax.f32 %v2786, %v2787
        %v2789 = vrot.slane %v2788, 1
        %v2790 = vmax.f32 %v2788, %v2789
        %v2791 = vsel %vm281, %v1951, -inf
        %v2792 = vrot.slane %v2791, 4
        %v2793 = vmax.f32 %v2791, %v2792
        %v2794 = vrot.slane %v2793, 2
        %v2795 = vmax.f32 %v2793, %v2794
        %v2796 = vrot.slane %v2795, 1
        %v2797 = vmax.f32 %v2795, %v2796
        %v2798 = vsel %vm281, %v1950, -inf
        %v2799 = vrot.slane %v2798, 4
        %v2800 = vmax.f32 %v2798, %v2799
        %v2801 = vrot.slane %v2800, 2
        %v2802 = vmax.f32 %v2800, %v2801
        %v2803 = vrot.slane %v2802, 1
        %v2804 = vmax.f32 %v2802, %v2803
        %v2805 = vsel %vm281, %v1952, -inf
        %v2806 = vrot.slane %v2805, 4
        %v2807 = vmax.f32 %v2805, %v2806
        %v2808 = vrot.slane %v2807, 2
        %v2809 = vmax.f32 %v2807, %v2808
        %v2810 = vrot.slane %v2809, 1
        %v2811 = vmax.f32 %v2809, %v2810
        %v2812 = vsel %vm281, %v1960, -inf
        %v2813 = vrot.slane %v2812, 4
        %v2814 = vmax.f32 %v2812, %v2813
        %v2815 = vrot.slane %v2814, 2
        %v2816 = vmax.f32 %v2814, %v2815
        %v2817 = vrot.slane %v2816, 1
        %v2818 = vmax.f32 %v2816, %v2817
        %v2819 = vsel %vm281, %v1968, -inf
        %v2820 = vrot.slane %v2819, 4
        %v2821 = vmax.f32 %v2819, %v2820
        %v2822 = vrot.slane %v2821, 2
        %v2823 = vmax.f32 %v2821, %v2822
        %v2824 = vrot.slane %v2823, 1
        %v2825 = vmax.f32 %v2823, %v2824
        %v2826 = vsel %vm281, %v1967, -inf
        %v2827 = vrot.slane %v2826, 4
        %v2828 = vmax.f32 %v2826, %v2827
        %v2829 = vrot.slane %v2828, 2
        %v2830 = vmax.f32 %v2828, %v2829
        %v2831 = vrot.slane %v2830, 1
        %v2832 = vmax.f32 %v2830, %v2831
        %v2833 = vsel %vm281, %v1969, -inf
        %v2834 = vrot.slane %v2833, 4
        %v2835 = vmax.f32 %v2833, %v2834
        %v2836 = vrot.slane %v2835, 2
        %v2837 = vmax.f32 %v2835, %v2836
        %v2838 = vrot.slane %v2837, 1
        %v2839 = vmax.f32 %v2837, %v2838
        %v2840 = vsel %vm281, %v1977, -inf
        %v2841 = vrot.slane %v2840, 4
        %v2842 = vmax.f32 %v2840, %v2841
        %v2843 = vrot.slane %v2842, 2
        %v2844 = vmax.f32 %v2842, %v2843
        %v2845 = vrot.slane %v2844, 1
        %v2846 = vmax.f32 %v2844, %v2845
        %v2847 = vsel %vm281, %v1985, -inf
        %v2848 = vrot.slane %v2847, 4
        %v2849 = vmax.f32 %v2847, %v2848
        %v2850 = vrot.slane %v2849, 2
        %v2851 = vmax.f32 %v2849, %v2850
        %v2852 = vrot.slane %v2851, 1
        %v2853 = vmax.f32 %v2851, %v2852
        %v2854 = vsel %vm281, %v1984, -inf
        %v2855 = vrot.slane %v2854, 4
        %v2856 = vmax.f32 %v2854, %v2855
        %v2857 = vrot.slane %v2856, 2
        %v2858 = vmax.f32 %v2856, %v2857
        %v2859 = vrot.slane %v2858, 1
        %v2860 = vmax.f32 %v2858, %v2859
        %v2861 = vsel %vm281, %v1986, -inf
        %v2862 = vrot.slane %v2861, 4
        %v2863 = vmax.f32 %v2861, %v2862
        %v2864 = vrot.slane %v2863, 2
        %v2865 = vmax.f32 %v2863, %v2864
        %v2866 = vrot.slane %v2865, 1
        %v2867 = vmax.f32 %v2865, %v2866
        %v2868 = vsel %vm281, %v1994, -inf
        %v2869 = vrot.slane %v2868, 4
        %v2870 = vmax.f32 %v2868, %v2869
        %v2871 = vrot.slane %v2870, 2
        %v2872 = vmax.f32 %v2870, %v2871
        %v2873 = vrot.slane %v2872, 1
        %v2874 = vmax.f32 %v2872, %v2873
        %v2875 = vsel %vm281, %v2002, -inf
        %v2876 = vrot.slane %v2875, 4
        %v2877 = vmax.f32 %v2875, %v2876
        %v2878 = vrot.slane %v2877, 2
        %v2879 = vmax.f32 %v2877, %v2878
        %v2880 = vrot.slane %v2879, 1
        %v2881 = vmax.f32 %v2879, %v2880
        %v2882 = vsel %vm281, %v2001, -inf
        %v2883 = vrot.slane %v2882, 4
        %v2884 = vmax.f32 %v2882, %v2883
        %v2885 = vrot.slane %v2884, 2
        %v2886 = vmax.f32 %v2884, %v2885
        %v2887 = vrot.slane %v2886, 1
        %v2888 = vmax.f32 %v2886, %v2887
        %v2889 = vsel %vm281, %v2003, -inf
        %v2890 = vrot.slane %v2889, 4
        %v2891 = vmax.f32 %v2889, %v2890
        %v2892 = vrot.slane %v2891, 2
        %v2893 = vmax.f32 %v2891, %v2892
        %v2894 = vrot.slane %v2893, 1
        %v2895 = vmax.f32 %v2893, %v2894
        %v2896 = vsel %vm281, %v2011, -inf
        %v2897 = vrot.slane %v2896, 4
        %v2898 = vmax.f32 %v2896, %v2897
        %v2899 = vrot.slane %v2898, 2
        %v2900 = vmax.f32 %v2898, %v2899
        %v2901 = vrot.slane %v2900, 1
        %v2902 = vmax.f32 %v2900, %v2901
        %v2903 = vsel %vm281, %v2019, -inf
        %v2904 = vrot.slane %v2903, 4
        %v2905 = vmax.f32 %v2903, %v2904
        %v2906 = vrot.slane %v2905, 2
        %v2907 = vmax.f32 %v2905, %v2906
        %v2908 = vrot.slane %v2907, 1
        %v2909 = vmax.f32 %v2907, %v2908
        %v2910 = vsel %vm281, %v2018, -inf
        %v2911 = vrot.slane %v2910, 4
        %v2912 = vmax.f32 %v2910, %v2911
        %v2913 = vrot.slane %v2912, 2
        %v2914 = vmax.f32 %v2912, %v2913
        %v2915 = vrot.slane %v2914, 1
        %v2916 = vmax.f32 %v2914, %v2915
        %v2917 = vsel %vm281, %v2020, -inf
        %v2918 = vrot.slane %v2917, 4
        %v2919 = vmax.f32 %v2917, %v2918
        %v2920 = vrot.slane %v2919, 2
        %v2921 = vmax.f32 %v2919, %v2920
        %v2922 = vrot.slane %v2921, 1
        %v2923 = vmax.f32 %v2921, %v2922
        %v2924 = vsel %vm281, %v2028, -inf
        %v2925 = vrot.slane %v2924, 4
        %v2926 = vmax.f32 %v2924, %v2925
        %v2927 = vrot.slane %v2926, 2
        %v2928 = vmax.f32 %v2926, %v2927
        %v2929 = vrot.slane %v2928, 1
        %v2930 = vmax.f32 %v2928, %v2929
        %v2931 = vsel %vm281, %v2036, -inf
        %v2932 = vrot.slane %v2931, 4
        %v2933 = vmax.f32 %v2931, %v2932
        %v2934 = vrot.slane %v2933, 2
        %v2935 = vmax.f32 %v2933, %v2934
        %v2936 = vrot.slane %v2935, 1
        %v2937 = vmax.f32 %v2935, %v2936
        %v2938 = vsel %vm281, %v2035, -inf
        %v2939 = vrot.slane %v2938, 4
        %v2940 = vmax.f32 %v2938, %v2939
        %v2941 = vrot.slane %v2940, 2
        %v2942 = vmax.f32 %v2940, %v2941
        %v2943 = vrot.slane %v2942, 1
        %v2944 = vmax.f32 %v2942, %v2943
        %v2945 = vsel %vm281, %v2037, -inf
        %v2946 = vrot.slane %v2945, 4
        %v2947 = vmax.f32 %v2945, %v2946
        %v2948 = vrot.slane %v2947, 2
        %v2949 = vmax.f32 %v2947, %v2948
        %v2950 = vrot.slane %v2949, 1
        %v2951 = vmax.f32 %v2949, %v2950
        %v2952 = vsel %vm281, %v2045, -inf
        %v2953 = vrot.slane %v2952, 4
        %v2954 = vmax.f32 %v2952, %v2953
        %v2955 = vrot.slane %v2954, 2
        %v2956 = vmax.f32 %v2954, %v2955
        %v2957 = vrot.slane %v2956, 1
        %v2958 = vmax.f32 %v2956, %v2957
        %v2959 = vsel %vm281, %v2053, -inf
        %v2960 = vrot.slane %v2959, 4
        %v2961 = vmax.f32 %v2959, %v2960
        %v2962 = vrot.slane %v2961, 2
        %v2963 = vmax.f32 %v2961, %v2962
        %v2964 = vrot.slane %v2963, 1
        %v2965 = vmax.f32 %v2963, %v2964
        %v2966 = vsel %vm281, %v2052, -inf
        %v2967 = vrot.slane %v2966, 4
        %v2968 = vmax.f32 %v2966, %v2967
        %v2969 = vrot.slane %v2968, 2
        %v2970 = vmax.f32 %v2968, %v2969
        %v2971 = vrot.slane %v2970, 1
        %v2972 = vmax.f32 %v2970, %v2971
        %v2973 = vsel %vm281, %v2054, -inf
        %v2974 = vrot.slane %v2973, 4
        %v2975 = vmax.f32 %v2973, %v2974
        %v2976 = vrot.slane %v2975, 2
        %v2977 = vmax.f32 %v2975, %v2976
        %v2978 = vrot.slane %v2977, 1
        %v2979 = vmax.f32 %v2977, %v2978
        %v2980 = vsel %vm281, %v2062, -inf
        %v2981 = vrot.slane %v2980, 4
        %v2982 = vmax.f32 %v2980, %v2981
        %v2983 = vrot.slane %v2982, 2
        %v2984 = vmax.f32 %v2982, %v2983
        %v2985 = vrot.slane %v2984, 1
        %v2986 = vmax.f32 %v2984, %v2985
        %v2987 = vsel %vm281, %v2070, -inf
        %v2988 = vrot.slane %v2987, 4
        %v2989 = vmax.f32 %v2987, %v2988
        %v2990 = vrot.slane %v2989, 2
        %v2991 = vmax.f32 %v2989, %v2990
        %v2992 = vrot.slane %v2991, 1
        %v2993 = vmax.f32 %v2991, %v2992
        %v2994 = vsel %vm281, %v2069, -inf
        %v2995 = vrot.slane %v2994, 4
        %v2996 = vmax.f32 %v2994, %v2995
        %v2997 = vrot.slane %v2996, 2
        %v2998 = vmax.f32 %v2996, %v2997
        %v2999 = vrot.slane %v2998, 1
        %v3000 = vmax.f32 %v2998, %v2999
        %v3001 = vsel %vm281, %v2071, -inf
        %v3002 = vrot.slane %v3001, 4
        %v3003 = vmax.f32 %v3001, %v3002
        %v3004 = vrot.slane %v3003, 2
        %v3005 = vmax.f32 %v3003, %v3004
        %v3006 = vrot.slane %v3005, 1
        %v3007 = vmax.f32 %v3005, %v3006
        %v3008 = vsel %vm281, %v2079, -inf
        %v3009 = vrot.slane %v3008, 4
        %v3010 = vmax.f32 %v3008, %v3009
        %v3011 = vrot.slane %v3010, 2
        %v3012 = vmax.f32 %v3010, %v3011
        %v3013 = vrot.slane %v3012, 1
        %v3014 = vmax.f32 %v3012, %v3013
        %v3015 = vsel %vm281, %v2087, -inf
        %v3016 = vrot.slane %v3015, 4
        %v3017 = vmax.f32 %v3015, %v3016
        %v3018 = vrot.slane %v3017, 2
        %v3019 = vmax.f32 %v3017, %v3018
        %v3020 = vrot.slane %v3019, 1
        %v3021 = vmax.f32 %v3019, %v3020
        %v3022 = vsel %vm281, %v2086, -inf
        %v3023 = vrot.slane %v3022, 4
        %v3024 = vmax.f32 %v3022, %v3023
        %v3025 = vrot.slane %v3024, 2
        %v3026 = vmax.f32 %v3024, %v3025
        %v3027 = vrot.slane %v3026, 1
        %v3028 = vmax.f32 %v3026, %v3027
        %v3029 = vsel %vm281, %v2088, -inf
        %v3030 = vrot.slane %v3029, 4
        %v3031 = vmax.f32 %v3029, %v3030
        %v3032 = vrot.slane %v3031, 2
        %v3033 = vmax.f32 %v3031, %v3032
        %v3034 = vrot.slane %v3033, 1
        %v3035 = vmax.f32 %v3033, %v3034
        %v3036 = vsel %vm281, %v2096, -inf
        %v3037 = vrot.slane %v3036, 4
        %v3038 = vmax.f32 %v3036, %v3037
        %v3039 = vrot.slane %v3038, 2
        %v3040 = vmax.f32 %v3038, %v3039
        %v3041 = vrot.slane %v3040, 1
        %v3042 = vmax.f32 %v3040, %v3041
        %v3043 = vsel %vm281, %v2104, -inf
        %v3044 = vrot.slane %v3043, 4
        %v3045 = vmax.f32 %v3043, %v3044
        %v3046 = vrot.slane %v3045, 2
        %v3047 = vmax.f32 %v3045, %v3046
        %v3048 = vrot.slane %v3047, 1
        %v3049 = vmax.f32 %v3047, %v3048
        %v3050 = vsel %vm281, %v2103, -inf
        %v3051 = vrot.slane %v3050, 4
        %v3052 = vmax.f32 %v3050, %v3051
        %v3053 = vrot.slane %v3052, 2
        %v3054 = vmax.f32 %v3052, %v3053
        %v3055 = vrot.slane %v3054, 1
        %v3056 = vmax.f32 %v3054, %v3055
        %v3057 = vsel %vm281, %v2105, -inf
        %v3058 = vrot.slane %v3057, 4
        %v3059 = vmax.f32 %v3057, %v3058
        %v3060 = vrot.slane %v3059, 2
        %v3061 = vmax.f32 %v3059, %v3060
        %v3062 = vrot.slane %v3061, 1
        %v3063 = vmax.f32 %v3061, %v3062
        %v3064 = vsel %vm281, %v2113, -inf
        %v3065 = vrot.slane %v3064, 4
        %v3066 = vmax.f32 %v3064, %v3065
        %v3067 = vrot.slane %v3066, 2
        %v3068 = vmax.f32 %v3066, %v3067
        %v3069 = vrot.slane %v3068, 1
        %v3070 = vmax.f32 %v3068, %v3069
        %v3071 = vsel %vm281, %v2121, -inf
        %v3072 = vrot.slane %v3071, 4
        %v3073 = vmax.f32 %v3071, %v3072
        %v3074 = vrot.slane %v3073, 2
        %v3075 = vmax.f32 %v3073, %v3074
        %v3076 = vrot.slane %v3075, 1
        %v3077 = vmax.f32 %v3075, %v3076
        %v3078 = vsel %vm281, %v2120, -inf
        %v3079 = vrot.slane %v3078, 4
        %v3080 = vmax.f32 %v3078, %v3079
        %v3081 = vrot.slane %v3080, 2
        %v3082 = vmax.f32 %v3080, %v3081
        %v3083 = vrot.slane %v3082, 1
        %v3084 = vmax.f32 %v3082, %v3083
        %v3085 = vsel %vm281, %v2122, -inf
        %v3086 = vrot.slane %v3085, 4
        %v3087 = vmax.f32 %v3085, %v3086
        %v3088 = vrot.slane %v3087, 2
        %v3089 = vmax.f32 %v3087, %v3088
        %v3090 = vrot.slane %v3089, 1
        %v3091 = vmax.f32 %v3089, %v3090
        %v3092 = vsel %vm281, %v2130, -inf
        %v3093 = vrot.slane %v3092, 4
        %v3094 = vmax.f32 %v3092, %v3093
        %v3095 = vrot.slane %v3094, 2
        %v3096 = vmax.f32 %v3094, %v3095
        %v3097 = vrot.slane %v3096, 1
        %v3098 = vmax.f32 %v3096, %v3097
        %v3099 = vsel %vm281, %v2138, -inf
        %v3100 = vrot.slane %v3099, 4
        %v3101 = vmax.f32 %v3099, %v3100
        %v3102 = vrot.slane %v3101, 2
        %v3103 = vmax.f32 %v3101, %v3102
        %v3104 = vrot.slane %v3103, 1
        %v3105 = vmax.f32 %v3103, %v3104
        %v3106 = vsel %vm281, %v2137, -inf
        %v3107 = vrot.slane %v3106, 4
        %v3108 = vmax.f32 %v3106, %v3107
        %v3109 = vrot.slane %v3108, 2
        %v3110 = vmax.f32 %v3108, %v3109
        %v3111 = vrot.slane %v3110, 1
        %v3112 = vmax.f32 %v3110, %v3111
        %v3113 = vsel %vm281, %v2139, -inf
        %v3114 = vrot.slane %v3113, 4
        %v3115 = vmax.f32 %v3113, %v3114
        %v3116 = vrot.slane %v3115, 2
        %v3117 = vmax.f32 %v3115, %v3116
        %v3118 = vrot.slane %v3117, 1
        %v3119 = vmax.f32 %v3117, %v3118
        %v3120 = vsel %vm281, %v2147, -inf
        %v3121 = vrot.slane %v3120, 4
        %v3122 = vmax.f32 %v3120, %v3121
        %v3123 = vrot.slane %v3122, 2
        %v3124 = vmax.f32 %v3122, %v3123
        %v3125 = vrot.slane %v3124, 1
        %v3126 = vmax.f32 %v3124, %v3125
        %v3127 = vsel %vm281, %v2155, -inf
        %v3128 = vrot.slane %v3127, 4
        %v3129 = vmax.f32 %v3127, %v3128
        %v3130 = vrot.slane %v3129, 2
        %v3131 = vmax.f32 %v3129, %v3130
        %v3132 = vrot.slane %v3131, 1
        %v3133 = vmax.f32 %v3131, %v3132
        %v3134 = vsel %vm281, %v2154, -inf
        %v3135 = vrot.slane %v3134, 4
        %v3136 = vmax.f32 %v3134, %v3135
        %v3137 = vrot.slane %v3136, 2
        %v3138 = vmax.f32 %v3136, %v3137
        %v3139 = vrot.slane %v3138, 1
        %v3140 = vmax.f32 %v3138, %v3139
        %v3141 = vsel %vm281, %v2156, -inf
        %v3142 = vrot.slane %v3141, 4
        %v3143 = vmax.f32 %v3141, %v3142
        %v3144 = vrot.slane %v3143, 2
        %v3145 = vmax.f32 %v3143, %v3144
        %v3146 = vrot.slane %v3145, 1
        %v3147 = vmax.f32 %v3145, %v3146
        %v3148 = vsel %vm281, %v2164, -inf
        %v3149 = vrot.slane %v3148, 4
        %v3150 = vmax.f32 %v3148, %v3149
        %v3151 = vrot.slane %v3150, 2
        %v3152 = vmax.f32 %v3150, %v3151
        %v3153 = vrot.slane %v3152, 1
        %v3154 = vmax.f32 %v3152, %v3153
        %v3155 = vsel %vm281, %v2172, -inf
        %v3156 = vrot.slane %v3155, 4
        %v3157 = vmax.f32 %v3155, %v3156
        %v3158 = vrot.slane %v3157, 2
        %v3159 = vmax.f32 %v3157, %v3158
        %v3160 = vrot.slane %v3159, 1
        %v3161 = vmax.f32 %v3159, %v3160
        %v3162 = vsel %vm281, %v2171, -inf
        %v3163 = vrot.slane %v3162, 4
        %v3164 = vmax.f32 %v3162, %v3163
        %v3165 = vrot.slane %v3164, 2
        %v3166 = vmax.f32 %v3164, %v3165
        %v3167 = vrot.slane %v3166, 1
        %v3168 = vmax.f32 %v3166, %v3167
        %v3169 = vsel %vm281, %v2173, -inf
        %v3170 = vrot.slane %v3169, 4
        %v3171 = vmax.f32 %v3169, %v3170
        %v3172 = vrot.slane %v3171, 2
        %v3173 = vmax.f32 %v3171, %v3172
        %v3174 = vrot.slane %v3173, 1
        %v3175 = vmax.f32 %v3173, %v3174
        %v3176 = vsel %vm281, %v2181, -inf
        %v3177 = vrot.slane %v3176, 4
        %v3178 = vmax.f32 %v3176, %v3177
        %v3179 = vrot.slane %v3178, 2
        %v3180 = vmax.f32 %v3178, %v3179
        %v3181 = vrot.slane %v3180, 1
        %v3182 = vmax.f32 %v3180, %v3181
        %v3183 = vsel %vm281, %v2189, -inf
        %v3184 = vrot.slane %v3183, 4
        %v3185 = vmax.f32 %v3183, %v3184
        %v3186 = vrot.slane %v3185, 2
        %v3187 = vmax.f32 %v3185, %v3186
        %v3188 = vrot.slane %v3187, 1
        %v3189 = vmax.f32 %v3187, %v3188
        %v3190 = vsel %vm281, %v2188, -inf
        %v3191 = vrot.slane %v3190, 4
        %v3192 = vmax.f32 %v3190, %v3191
        %v3193 = vrot.slane %v3192, 2
        %v3194 = vmax.f32 %v3192, %v3193
        %v3195 = vrot.slane %v3194, 1
        %v3196 = vmax.f32 %v3194, %v3195
        %v3197 = vsel %vm281, %v2190, -inf
        %v3198 = vrot.slane %v3197, 4
        %v3199 = vmax.f32 %v3197, %v3198
        %v3200 = vrot.slane %v3199, 2
        %v3201 = vmax.f32 %v3199, %v3200
        %v3202 = vrot.slane %v3201, 1
        %v3203 = vmax.f32 %v3201, %v3202
        %v3204 = vsel %vm281, %v2198, -inf
        %v3205 = vrot.slane %v3204, 4
        %v3206 = vmax.f32 %v3204, %v3205
        %v3207 = vrot.slane %v3206, 2
        %v3208 = vmax.f32 %v3206, %v3207
        %v3209 = vrot.slane %v3208, 1
        %v3210 = vmax.f32 %v3208, %v3209
        %v3211 = vsel %vm281, %v2206, -inf
        %v3212 = vrot.slane %v3211, 4
        %v3213 = vmax.f32 %v3211, %v3212
        %v3214 = vrot.slane %v3213, 2
        %v3215 = vmax.f32 %v3213, %v3214
        %v3216 = vrot.slane %v3215, 1
        %v3217 = vmax.f32 %v3215, %v3216
        %v3218 = vsel %vm281, %v2205, -inf
        %v3219 = vrot.slane %v3218, 4
        %v3220 = vmax.f32 %v3218, %v3219
        %v3221 = vrot.slane %v3220, 2
        %v3222 = vmax.f32 %v3220, %v3221
        %v3223 = vrot.slane %v3222, 1
        %v3224 = vmax.f32 %v3222, %v3223
        %v3225 = vsel %vm281, %v2207, -inf
        %v3226 = vrot.slane %v3225, 4
        %v3227 = vmax.f32 %v3225, %v3226
        %v3228 = vrot.slane %v3227, 2
        %v3229 = vmax.f32 %v3227, %v3228
        %v3230 = vrot.slane %v3229, 1
        %v3231 = vmax.f32 %v3229, %v3230
        %v3232 = vsel %vm278, %v2342, -inf
        %v3233 = vsel %vm278, %v2398, -inf
        %v3234 = vmax.f32 %v3232, %v3233
        %v3235 = vsel %vm278, %v2349, -inf
        %v3236 = vsel %vm278, %v2405, -inf
        %v3237 = vmax.f32 %v3235, %v3236
        %v3238 = vsel %vm278, %v2356, -inf
        %v3239 = vsel %vm278, %v2412, -inf
        %v3240 = vmax.f32 %v3238, %v3239
        %v3241 = vsel %vm278, %v2363, -inf
        %v3242 = vsel %vm278, %v2419, -inf
        %v3243 = vmax.f32 %v3241, %v3242
        %v3244 = vsel %vm278, %v2370, -inf
        %v3245 = vsel %vm278, %v2426, -inf
        %v3246 = vmax.f32 %v3244, %v3245
        %v3247 = vsel %vm278, %v2377, -inf
        %v3248 = vsel %vm278, %v2433, -inf
        %v3249 = vmax.f32 %v3247, %v3248
        %v3250 = vsel %vm278, %v2384, -inf
        %v3251 = vsel %vm278, %v2440, -inf
        %v3252 = vmax.f32 %v3250, %v3251
        %v3253 = vsel %vm278, %v2391, -inf
        %v3254 = vsel %vm278, %v2447, -inf
        %v3255 = vmax.f32 %v3253, %v3254
        %v3256 = vsel %vm278, %v2454, -inf
        %v3257 = vsel %vm278, %v2510, -inf
        %v3258 = vmax.f32 %v3256, %v3257
        %v3259 = vsel %vm278, %v2461, -inf
        %v3260 = vsel %vm278, %v2517, -inf
        %v3261 = vmax.f32 %v3259, %v3260
        %v3262 = vsel %vm278, %v2468, -inf
        %v3263 = vsel %vm278, %v2524, -inf
        %v3264 = vmax.f32 %v3262, %v3263
        %v3265 = vsel %vm278, %v2475, -inf
        %v3266 = vsel %vm278, %v2531, -inf
        %v3267 = vmax.f32 %v3265, %v3266
        %v3268 = vsel %vm278, %v2482, -inf
        %v3269 = vsel %vm278, %v2538, -inf
        %v3270 = vmax.f32 %v3268, %v3269
        %v3271 = vsel %vm278, %v2489, -inf
        %v3272 = vsel %vm278, %v2545, -inf
        %v3273 = vmax.f32 %v3271, %v3272
        %v3274 = vsel %vm278, %v2496, -inf
        %v3275 = vsel %vm278, %v2552, -inf
        %v3276 = vmax.f32 %v3274, %v3275
        %v3277 = vsel %vm278, %v2503, -inf
        %v3278 = vsel %vm278, %v2559, -inf
        %v3279 = vmax.f32 %v3277, %v3278
        %v3280 = vsel %vm278, %v2566, -inf
        %v3281 = vsel %vm278, %v2622, -inf
        %v3282 = vmax.f32 %v3280, %v3281
        %v3283 = vsel %vm278, %v2573, -inf
        %v3284 = vsel %vm278, %v2629, -inf
        %v3285 = vmax.f32 %v3283, %v3284
        %v3286 = vsel %vm278, %v2580, -inf
        %v3287 = vsel %vm278, %v2636, -inf
        %v3288 = vmax.f32 %v3286, %v3287
        %v3289 = vsel %vm278, %v2587, -inf
        %v3290 = vsel %vm278, %v2643, -inf
        %v3291 = vmax.f32 %v3289, %v3290
        %v3292 = vsel %vm278, %v2594, -inf
        %v3293 = vsel %vm278, %v2650, -inf
        %v3294 = vmax.f32 %v3292, %v3293
        %v3295 = vsel %vm278, %v2601, -inf
        %v3296 = vsel %vm278, %v2657, -inf
        %v3297 = vmax.f32 %v3295, %v3296
        %v3298 = vsel %vm278, %v2608, -inf
        %v3299 = vsel %vm278, %v2664, -inf
        %v3300 = vmax.f32 %v3298, %v3299
        %v3301 = vsel %vm278, %v2615, -inf
        %v3302 = vsel %vm278, %v2671, -inf
        %v3303 = vmax.f32 %v3301, %v3302
        %v3304 = vsel %vm278, %v2678, -inf
        %v3305 = vsel %vm278, %v2734, -inf
        %v3306 = vmax.f32 %v3304, %v3305
        %v3307 = vsel %vm278, %v2685, -inf
        %v3308 = vsel %vm278, %v2741, -inf
        %v3309 = vmax.f32 %v3307, %v3308
        %v3310 = vsel %vm278, %v2692, -inf
        %v3311 = vsel %vm278, %v2748, -inf
        %v3312 = vmax.f32 %v3310, %v3311
        %v3313 = vsel %vm278, %v2699, -inf
        %v3314 = vsel %vm278, %v2755, -inf
        %v3315 = vmax.f32 %v3313, %v3314
        %v3316 = vsel %vm278, %v2706, -inf
        %v3317 = vsel %vm278, %v2762, -inf
        %v3318 = vmax.f32 %v3316, %v3317
        %v3319 = vsel %vm278, %v2713, -inf
        %v3320 = vsel %vm278, %v2769, -inf
        %v3321 = vmax.f32 %v3319, %v3320
        %v3322 = vsel %vm278, %v2720, -inf
        %v3323 = vsel %vm278, %v2776, -inf
        %v3324 = vmax.f32 %v3322, %v3323
        %v3325 = vsel %vm278, %v2727, -inf
        %v3326 = vsel %vm278, %v2783, -inf
        %v3327 = vmax.f32 %v3325, %v3326
        %v3328 = vsel %vm278, %v2790, -inf
        %v3329 = vsel %vm278, %v2846, -inf
        %v3330 = vmax.f32 %v3328, %v3329
        %v3331 = vsel %vm278, %v2797, -inf
        %v3332 = vsel %vm278, %v2853, -inf
        %v3333 = vmax.f32 %v3331, %v3332
        %v3334 = vsel %vm278, %v2804, -inf
        %v3335 = vsel %vm278, %v2860, -inf
        %v3336 = vmax.f32 %v3334, %v3335
        %v3337 = vsel %vm278, %v2811, -inf
        %v3338 = vsel %vm278, %v2867, -inf
        %v3339 = vmax.f32 %v3337, %v3338
        %v3340 = vsel %vm278, %v2818, -inf
        %v3341 = vsel %vm278, %v2874, -inf
        %v3342 = vmax.f32 %v3340, %v3341
        %v3343 = vsel %vm278, %v2825, -inf
        %v3344 = vsel %vm278, %v2881, -inf
        %v3345 = vmax.f32 %v3343, %v3344
        %v3346 = vsel %vm278, %v2832, -inf
        %v3347 = vsel %vm278, %v2888, -inf
        %v3348 = vmax.f32 %v3346, %v3347
        %v3349 = vsel %vm278, %v2839, -inf
        %v3350 = vsel %vm278, %v2895, -inf
        %v3351 = vmax.f32 %v3349, %v3350
        %v3352 = vsel %vm278, %v2902, -inf
        %v3353 = vsel %vm278, %v2958, -inf
        %v3354 = vmax.f32 %v3352, %v3353
        %v3355 = vsel %vm278, %v2909, -inf
        %v3356 = vsel %vm278, %v2965, -inf
        %v3357 = vmax.f32 %v3355, %v3356
        %v3358 = vsel %vm278, %v2916, -inf
        %v3359 = vsel %vm278, %v2972, -inf
        %v3360 = vmax.f32 %v3358, %v3359
        %v3361 = vsel %vm278, %v2923, -inf
        %v3362 = vsel %vm278, %v2979, -inf
        %v3363 = vmax.f32 %v3361, %v3362
        %v3364 = vsel %vm278, %v2930, -inf
        %v3365 = vsel %vm278, %v2986, -inf
        %v3366 = vmax.f32 %v3364, %v3365
        %v3367 = vsel %vm278, %v2937, -inf
        %v3368 = vsel %vm278, %v2993, -inf
        %v3369 = vmax.f32 %v3367, %v3368
        %v3370 = vsel %vm278, %v2944, -inf
        %v3371 = vsel %vm278, %v3000, -inf
        %v3372 = vmax.f32 %v3370, %v3371
        %v3373 = vsel %vm278, %v2951, -inf
        %v3374 = vsel %vm278, %v3007, -inf
        %v3375 = vmax.f32 %v3373, %v3374
        %v3376 = vsel %vm278, %v3014, -inf
        %v3377 = vsel %vm278, %v3070, -inf
        %v3378 = vmax.f32 %v3376, %v3377
        %v3379 = vsel %vm278, %v3021, -inf
        %v3380 = vsel %vm278, %v3077, -inf
        %v3381 = vmax.f32 %v3379, %v3380
        %v3382 = vsel %vm278, %v3028, -inf
        %v3383 = vsel %vm278, %v3084, -inf
        %v3384 = vmax.f32 %v3382, %v3383
        %v3385 = vsel %vm278, %v3035, -inf
        %v3386 = vsel %vm278, %v3091, -inf
        %v3387 = vmax.f32 %v3385, %v3386
        %v3388 = vsel %vm278, %v3042, -inf
        %v3389 = vsel %vm278, %v3098, -inf
        %v3390 = vmax.f32 %v3388, %v3389
        %v3391 = vsel %vm278, %v3049, -inf
        %v3392 = vsel %vm278, %v3105, -inf
        %v3393 = vmax.f32 %v3391, %v3392
        %v3394 = vsel %vm278, %v3056, -inf
        %v3395 = vsel %vm278, %v3112, -inf
        %v3396 = vmax.f32 %v3394, %v3395
        %v3397 = vsel %vm278, %v3063, -inf
        %v3398 = vsel %vm278, %v3119, -inf
        %v3399 = vmax.f32 %v3397, %v3398
        %v3400 = vsel %vm278, %v3126, -inf
        %v3401 = vsel %vm278, %v3182, -inf
        %v3402 = vmax.f32 %v3400, %v3401
        %v3403 = vsel %vm278, %v3133, -inf
        %v3404 = vsel %vm278, %v3189, -inf
        %v3405 = vmax.f32 %v3403, %v3404
        %v3406 = vsel %vm278, %v3140, -inf
        %v3407 = vsel %vm278, %v3196, -inf
        %v3408 = vmax.f32 %v3406, %v3407
        %v3409 = vsel %vm278, %v3147, -inf
        %v3410 = vsel %vm278, %v3203, -inf
        %v3411 = vmax.f32 %v3409, %v3410
        %v3412 = vsel %vm278, %v3154, -inf
        %v3413 = vsel %vm278, %v3210, -inf
        %v3414 = vmax.f32 %v3412, %v3413
        %v3415 = vsel %vm278, %v3161, -inf
        %v3416 = vsel %vm278, %v3217, -inf
        %v3417 = vmax.f32 %v3415, %v3416
        %v3418 = vsel %vm278, %v3168, -inf
        %v3419 = vsel %vm278, %v3224, -inf
        %v3420 = vmax.f32 %v3418, %v3419
        %v3421 = vsel %vm278, %v3175, -inf
        %v3422 = vsel %vm278, %v3231, -inf
        %v3423 = vmax.f32 %v3421, %v3422
        %v3424 = vpack.c.bf16 %v3234, %v3234
        %v3425 = vpack.c.bf16 %v3237, %v3237
        %v3426 = vpack.c.bf16 %v3240, %v3240
        %v3427 = vpack.c.bf16 %v3243, %v3243
        %v3428 = vpack.c.bf16 %v3246, %v3246
        %v3429 = vpack.c.bf16 %v3249, %v3249
        %v3430 = vpack.c.bf16 %v3252, %v3252
        %v3431 = vpack.c.bf16 %v3255, %v3255
        %v3432 = vpack.c.bf16 %v3258, %v3258
        %v3433 = vpack.c.bf16 %v3261, %v3261
        %v3434 = vpack.c.bf16 %v3264, %v3264
        %v3435 = vpack.c.bf16 %v3267, %v3267
        %v3436 = vpack.c.bf16 %v3270, %v3270
        %v3437 = vpack.c.bf16 %v3273, %v3273
        %v3438 = vpack.c.bf16 %v3276, %v3276
        %v3439 = vpack.c.bf16 %v3279, %v3279
        %v3440 = vpack.c.bf16 %v3282, %v3282
        %v3441 = vpack.c.bf16 %v3285, %v3285
        %v3442 = vpack.c.bf16 %v3288, %v3288
        %v3443 = vpack.c.bf16 %v3291, %v3291
        %v3444 = vpack.c.bf16 %v3294, %v3294
        %v3445 = vpack.c.bf16 %v3297, %v3297
        %v3446 = vpack.c.bf16 %v3300, %v3300
        %v3447 = vpack.c.bf16 %v3303, %v3303
        %v3448 = vpack.c.bf16 %v3306, %v3306
        %v3449 = vpack.c.bf16 %v3309, %v3309
        %v3450 = vpack.c.bf16 %v3312, %v3312
        %v3451 = vpack.c.bf16 %v3315, %v3315
        %v3452 = vpack.c.bf16 %v3318, %v3318
        %v3453 = vpack.c.bf16 %v3321, %v3321
        %v3454 = vpack.c.bf16 %v3324, %v3324
        %v3455 = vpack.c.bf16 %v3327, %v3327
        %v3456 = vpack.c.bf16 %v3330, %v3330
        %v3457 = vpack.c.bf16 %v3333, %v3333
        %v3458 = vpack.c.bf16 %v3336, %v3336
        %v3459 = vpack.c.bf16 %v3339, %v3339
        %v3460 = vpack.c.bf16 %v3342, %v3342
        %v3461 = vpack.c.bf16 %v3345, %v3345
        %v3462 = vpack.c.bf16 %v3348, %v3348
        %v3463 = vpack.c.bf16 %v3351, %v3351
        %v3464 = vpack.c.bf16 %v3354, %v3354
        %v3465 = vpack.c.bf16 %v3357, %v3357
        %v3466 = vpack.c.bf16 %v3360, %v3360
        %v3467 = vpack.c.bf16 %v3363, %v3363
        %v3468 = vpack.c.bf16 %v3366, %v3366
        %v3469 = vpack.c.bf16 %v3369, %v3369
        %v3470 = vpack.c.bf16 %v3372, %v3372
        %v3471 = vpack.c.bf16 %v3375, %v3375
        %v3472 = vpack.c.bf16 %v3378, %v3378
        %v3473 = vpack.c.bf16 %v3381, %v3381
        %v3474 = vpack.c.bf16 %v3384, %v3384
        %v3475 = vpack.c.bf16 %v3387, %v3387
        %v3476 = vpack.c.bf16 %v3390, %v3390
        %v3477 = vpack.c.bf16 %v3393, %v3393
        %v3478 = vpack.c.bf16 %v3396, %v3396
        %v3479 = vpack.c.bf16 %v3399, %v3399
        %v3480 = vpack.c.bf16 %v3402, %v3402
        %v3481 = vpack.c.bf16 %v3405, %v3405
        %v3482 = vpack.c.bf16 %v3408, %v3408
        %v3483 = vpack.c.bf16 %v3411, %v3411
        %v3484 = vpack.c.bf16 %v3414, %v3414
        %v3485 = vpack.c.bf16 %v3417, %v3417
        %v3486 = vpack.c.bf16 %v3420, %v3420
        %v3487 = vpack.c.bf16 %v3423, %v3423
        %v3552 = vunpack.c.l.b16 %v3424
        %v3553 = vunpack.c.l.b16 %v3425
        %v3554 = vunpack.c.l.b16 %v3426
        %v3555 = vunpack.c.l.b16 %v3427
        %v3556 = vunpack.c.l.b16 %v3428
        %v3557 = vunpack.c.l.b16 %v3429
        %v3558 = vunpack.c.l.b16 %v3430
        %v3559 = vunpack.c.l.b16 %v3431
        %v3560 = vunpack.c.l.b16 %v3432
        %v3561 = vunpack.c.l.b16 %v3433
        %v3562 = vunpack.c.l.b16 %v3434
        %v3563 = vunpack.c.l.b16 %v3435
        %v3564 = vunpack.c.l.b16 %v3436
        %v3565 = vunpack.c.l.b16 %v3437
        %v3566 = vunpack.c.l.b16 %v3438
        %v3567 = vunpack.c.l.b16 %v3439
        %v3568 = vunpack.c.l.b16 %v3440
        %v3569 = vunpack.c.l.b16 %v3441
        %v3570 = vunpack.c.l.b16 %v3442
        %v3571 = vunpack.c.l.b16 %v3443
        %v3572 = vunpack.c.l.b16 %v3444
        %v3573 = vunpack.c.l.b16 %v3445
        %v3574 = vunpack.c.l.b16 %v3446
        %v3575 = vunpack.c.l.b16 %v3447
        %v3576 = vunpack.c.l.b16 %v3448
        %v3577 = vunpack.c.l.b16 %v3449
        %v3578 = vunpack.c.l.b16 %v3450
        %v3579 = vunpack.c.l.b16 %v3451
        %v3580 = vunpack.c.l.b16 %v3452
        %v3581 = vunpack.c.l.b16 %v3453
        %v3582 = vunpack.c.l.b16 %v3454
        %v3583 = vunpack.c.l.b16 %v3455
        %v3584 = vunpack.c.l.b16 %v3456
        %v3585 = vunpack.c.l.b16 %v3457
        %v3586 = vunpack.c.l.b16 %v3458
        %v3587 = vunpack.c.l.b16 %v3459
        %v3588 = vunpack.c.l.b16 %v3460
        %v3589 = vunpack.c.l.b16 %v3461
        %v3590 = vunpack.c.l.b16 %v3462
        %v3591 = vunpack.c.l.b16 %v3463
        %v3592 = vunpack.c.l.b16 %v3464
        %v3593 = vunpack.c.l.b16 %v3465
        %v3594 = vunpack.c.l.b16 %v3466
        %v3595 = vunpack.c.l.b16 %v3467
        %v3596 = vunpack.c.l.b16 %v3468
        %v3597 = vunpack.c.l.b16 %v3469
        %v3598 = vunpack.c.l.b16 %v3470
        %v3599 = vunpack.c.l.b16 %v3471
        %v3600 = vunpack.c.l.b16 %v3472
        %v3601 = vunpack.c.l.b16 %v3473
        %v3602 = vunpack.c.l.b16 %v3474
        %v3603 = vunpack.c.l.b16 %v3475
        %v3604 = vunpack.c.l.b16 %v3476
        %v3605 = vunpack.c.l.b16 %v3477
        %v3606 = vunpack.c.l.b16 %v3478
        %v3607 = vunpack.c.l.b16 %v3479
        %v3608 = vunpack.c.l.b16 %v3480
        %v3609 = vunpack.c.l.b16 %v3481
        %v3610 = vunpack.c.l.b16 %v3482
        %v3611 = vunpack.c.l.b16 %v3483
        %v3612 = vunpack.c.l.b16 %v3484
        %v3613 = vunpack.c.l.b16 %v3485
        %v3614 = vunpack.c.l.b16 %v3486
        %v3615 = vunpack.c.l.b16 %v3487
        %v3616 = vpack.c.b16 %v3552, %v3552
        %v3617 = vpack.c.b16 %v3553, %v3553
        %v3618 = vpack.c.b16 %v3554, %v3554
        %v3619 = vpack.c.b16 %v3555, %v3555
        %v3620 = vpack.c.b16 %v3556, %v3556
        %v3621 = vpack.c.b16 %v3557, %v3557
        %v3622 = vpack.c.b16 %v3558, %v3558
        %v3623 = vpack.c.b16 %v3559, %v3559
        %v3624 = vpack.c.b16 %v3560, %v3560
        %v3625 = vpack.c.b16 %v3561, %v3561
        %v3626 = vpack.c.b16 %v3562, %v3562
        %v3627 = vpack.c.b16 %v3563, %v3563
        %v3628 = vpack.c.b16 %v3564, %v3564
        %v3629 = vpack.c.b16 %v3565, %v3565
        %v3630 = vpack.c.b16 %v3566, %v3566
        %v3631 = vpack.c.b16 %v3567, %v3567
        %v3632 = vpack.c.b16 %v3568, %v3568
        %v3633 = vpack.c.b16 %v3569, %v3569
        %v3634 = vpack.c.b16 %v3570, %v3570
        %v3635 = vpack.c.b16 %v3571, %v3571
        %v3636 = vpack.c.b16 %v3572, %v3572
        %v3637 = vpack.c.b16 %v3573, %v3573
        %v3638 = vpack.c.b16 %v3574, %v3574
        %v3639 = vpack.c.b16 %v3575, %v3575
        %v3640 = vpack.c.b16 %v3576, %v3576
        %v3641 = vpack.c.b16 %v3577, %v3577
        %v3642 = vpack.c.b16 %v3578, %v3578
        %v3643 = vpack.c.b16 %v3579, %v3579
        %v3644 = vpack.c.b16 %v3580, %v3580
        %v3645 = vpack.c.b16 %v3581, %v3581
        %v3646 = vpack.c.b16 %v3582, %v3582
        %v3647 = vpack.c.b16 %v3583, %v3583
        %v3648 = vpack.c.b16 %v3584, %v3584
        %v3649 = vpack.c.b16 %v3585, %v3585
        %v3650 = vpack.c.b16 %v3586, %v3586
        %v3651 = vpack.c.b16 %v3587, %v3587
        %v3652 = vpack.c.b16 %v3588, %v3588
        %v3653 = vpack.c.b16 %v3589, %v3589
        %v3654 = vpack.c.b16 %v3590, %v3590
        %v3655 = vpack.c.b16 %v3591, %v3591
        %v3656 = vpack.c.b16 %v3592, %v3592
        %v3657 = vpack.c.b16 %v3593, %v3593
        %v3658 = vpack.c.b16 %v3594, %v3594
        %v3659 = vpack.c.b16 %v3595, %v3595
        %v3660 = vpack.c.b16 %v3596, %v3596
        %v3661 = vpack.c.b16 %v3597, %v3597
        %v3662 = vpack.c.b16 %v3598, %v3598
        %v3663 = vpack.c.b16 %v3599, %v3599
        %v3664 = vpack.c.b16 %v3600, %v3600
        %v3665 = vpack.c.b16 %v3601, %v3601
        %v3666 = vpack.c.b16 %v3602, %v3602
        %v3667 = vpack.c.b16 %v3603, %v3603
        %v3668 = vpack.c.b16 %v3604, %v3604
        %v3669 = vpack.c.b16 %v3605, %v3605
        %v3670 = vpack.c.b16 %v3606, %v3606
        %v3671 = vpack.c.b16 %v3607, %v3607
        %v3672 = vpack.c.b16 %v3608, %v3608
        %v3673 = vpack.c.b16 %v3609, %v3609
        %v3674 = vpack.c.b16 %v3610, %v3610
        %v3675 = vpack.c.b16 %v3611, %v3611
        %v3676 = vpack.c.b16 %v3612, %v3612
        %v3677 = vpack.c.b16 %v3613, %v3613
        %v3678 = vpack.c.b16 %v3614, %v3614
        %v3679 = vpack.c.b16 %v3615, %v3615
        %v3680 = vunpack.c.l.b16 %v3616
        %v3681 = vunpack.c.l.b16 %v3617
        %v3682 = vunpack.c.l.b16 %v3618
        %v3683 = vunpack.c.l.b16 %v3619
        %v3684 = vunpack.c.l.b16 %v3620
        %v3685 = vunpack.c.l.b16 %v3621
        %v3686 = vunpack.c.l.b16 %v3622
        %v3687 = vunpack.c.l.b16 %v3623
        %v3688 = vunpack.c.l.b16 %v3624
        %v3689 = vunpack.c.l.b16 %v3625
        %v3690 = vunpack.c.l.b16 %v3626
        %v3691 = vunpack.c.l.b16 %v3627
        %v3692 = vunpack.c.l.b16 %v3628
        %v3693 = vunpack.c.l.b16 %v3629
        %v3694 = vunpack.c.l.b16 %v3630
        %v3695 = vunpack.c.l.b16 %v3631
        %v3696 = vunpack.c.l.b16 %v3632
        %v3697 = vunpack.c.l.b16 %v3633
        %v3698 = vunpack.c.l.b16 %v3634
        %v3699 = vunpack.c.l.b16 %v3635
        %v3700 = vunpack.c.l.b16 %v3636
        %v3701 = vunpack.c.l.b16 %v3637
        %v3702 = vunpack.c.l.b16 %v3638
        %v3703 = vunpack.c.l.b16 %v3639
        %v3704 = vunpack.c.l.b16 %v3640
        %v3705 = vunpack.c.l.b16 %v3641
        %v3706 = vunpack.c.l.b16 %v3642
        %v3707 = vunpack.c.l.b16 %v3643
        %v3708 = vunpack.c.l.b16 %v3644
        %v3709 = vunpack.c.l.b16 %v3645
        %v3710 = vunpack.c.l.b16 %v3646
        %v3711 = vunpack.c.l.b16 %v3647
        %v3712 = vunpack.c.l.b16 %v3648
        %v3713 = vunpack.c.l.b16 %v3649
        %v3714 = vunpack.c.l.b16 %v3650
        %v3715 = vunpack.c.l.b16 %v3651
        %v3716 = vunpack.c.l.b16 %v3652
        %v3717 = vunpack.c.l.b16 %v3653
        %v3718 = vunpack.c.l.b16 %v3654
        %v3719 = vunpack.c.l.b16 %v3655
        %v3720 = vunpack.c.l.b16 %v3656
        %v3721 = vunpack.c.l.b16 %v3657
        %v3722 = vunpack.c.l.b16 %v3658
        %v3723 = vunpack.c.l.b16 %v3659
        %v3724 = vunpack.c.l.b16 %v3660
        %v3725 = vunpack.c.l.b16 %v3661
        %v3726 = vunpack.c.l.b16 %v3662
        %v3727 = vunpack.c.l.b16 %v3663
        %v3728 = vunpack.c.l.b16 %v3664
        %v3729 = vunpack.c.l.b16 %v3665
        %v3730 = vunpack.c.l.b16 %v3666
        %v3731 = vunpack.c.l.b16 %v3667
        %v3732 = vunpack.c.l.b16 %v3668
        %v3733 = vunpack.c.l.b16 %v3669
        %v3734 = vunpack.c.l.b16 %v3670
        %v3735 = vunpack.c.l.b16 %v3671
        %v3736 = vunpack.c.l.b16 %v3672
        %v3737 = vunpack.c.l.b16 %v3673
        %v3738 = vunpack.c.l.b16 %v3674
        %v3739 = vunpack.c.l.b16 %v3675
        %v3740 = vunpack.c.l.b16 %v3676
        %v3741 = vunpack.c.l.b16 %v3677
        %v3742 = vunpack.c.l.b16 %v3678
        %v3743 = vunpack.c.l.b16 %v3679
        %vm3744 = vcmask 1042434
        %v3745 = vsel %vm3744, %v3681, %v3680
        %vm3746 = vcmask 1043459
        %v3747 = vsel %vm3746, %v3682, %v3745
        %vm3748 = vcmask 1044484
        %v3749 = vsel %vm3748, %v3683, %v3747
        %vm3750 = vcmask 1045509
        %v3751 = vsel %vm3750, %v3684, %v3749
        %vm3752 = vcmask 1046534
        %v3753 = vsel %vm3752, %v3685, %v3751
        %vm3754 = vcmask 1047559
        %v3755 = vsel %vm3754, %v3686, %v3753
        %v3756 = vsel %vm3744, %v3689, %v3688
        %v3757 = vsel %vm3746, %v3690, %v3756
        %v3758 = vsel %vm3748, %v3691, %v3757
        %v3759 = vsel %vm3750, %v3692, %v3758
        %v3760 = vsel %vm3752, %v3693, %v3759
        %v3761 = vsel %vm3754, %v3694, %v3760
        %v3762 = vsel %vm3744, %v3697, %v3696
        %v3763 = vsel %vm3746, %v3698, %v3762
        %v3764 = vsel %vm3748, %v3699, %v3763
        %v3765 = vsel %vm3750, %v3700, %v3764
        %v3766 = vsel %vm3752, %v3701, %v3765
        %v3767 = vsel %vm3754, %v3702, %v3766
        %v3768 = vsel %vm3744, %v3705, %v3704
        %v3769 = vsel %vm3746, %v3706, %v3768
        %v3770 = vsel %vm3748, %v3707, %v3769
        %v3771 = vsel %vm3750, %v3708, %v3770
        %v3772 = vsel %vm3752, %v3709, %v3771
        %v3773 = vsel %vm3754, %v3710, %v3772
        %v3774 = vsel %vm3744, %v3713, %v3712
        %v3775 = vsel %vm3746, %v3714, %v3774
        %v3776 = vsel %vm3748, %v3715, %v3775
        %v3777 = vsel %vm3750, %v3716, %v3776
        %v3778 = vsel %vm3752, %v3717, %v3777
        %v3779 = vsel %vm3754, %v3718, %v3778
        %v3780 = vsel %vm3744, %v3721, %v3720
        %v3781 = vsel %vm3746, %v3722, %v3780
        %v3782 = vsel %vm3748, %v3723, %v3781
        %v3783 = vsel %vm3750, %v3724, %v3782
        %v3784 = vsel %vm3752, %v3725, %v3783
        %v3785 = vsel %vm3754, %v3726, %v3784
        %v3786 = vsel %vm3744, %v3729, %v3728
        %v3787 = vsel %vm3746, %v3730, %v3786
        %v3788 = vsel %vm3748, %v3731, %v3787
        %v3789 = vsel %vm3750, %v3732, %v3788
        %v3790 = vsel %vm3752, %v3733, %v3789
        %v3791 = vsel %vm3754, %v3734, %v3790
        %v3792 = vsel %vm3744, %v3737, %v3736
        %v3793 = vsel %vm3746, %v3738, %v3792
        %v3794 = vsel %vm3748, %v3739, %v3793
        %v3795 = vsel %vm3750, %v3740, %v3794
        %v3796 = vsel %vm3752, %v3741, %v3795
        %v3797 = vsel %vm3754, %v3742, %v3796
        %v3798 = vpack.c.b16 %v3755, %v3755
        %v3799 = vpack.c.b16 %v3687, %v3687
        %v3800 = vpack.c.b16 %v3761, %v3761
        %v3801 = vpack.c.b16 %v3695, %v3695
        %v3802 = vpack.c.b16 %v3767, %v3767
        %v3803 = vpack.c.b16 %v3703, %v3703
        %v3804 = vpack.c.b16 %v3773, %v3773
        %v3805 = vpack.c.b16 %v3711, %v3711
        %v3806 = vpack.c.b16 %v3779, %v3779
        %v3807 = vpack.c.b16 %v3719, %v3719
        %v3808 = vpack.c.b16 %v3785, %v3785
        %v3809 = vpack.c.b16 %v3727, %v3727
        %v3810 = vpack.c.b16 %v3791, %v3791
        %v3811 = vpack.c.b16 %v3735, %v3735
        %v3812 = vpack.c.b16 %v3797, %v3797
        %v3813 = vpack.c.b16 %v3743, %v3743
        %s3830 = scalar_lea.vmem [#allocation3], 8
        %vm3831 = vcmask 257024
        %vm3832 = vmand %vm3831, %vm363
        %v3833 = vld [vmem:[%s3830] sm:$0xf]
        %v3834 = vsel %vm3832, %v3798, %v3833
        %3835 = vst [vmem:[%s3830] sm:$0xf] %v3834
        %v3836 = vld [vmem:[%s3830 + $0x4] sm:$0x1]
        %v3837 = vsel %vm332, %v3799, %v3836
        %3838 = vst [vmem:[%s3830 + $0x4] sm:$0x1] %v3837
        %v3839 = vld [vmem:[%s3830 + $0x8] sm:$0xf]
        %v3840 = vsel %vm3832, %v3800, %v3839
        %3841 = vst [vmem:[%s3830 + $0x8] sm:$0xf] %v3840
        %v3842 = vld [vmem:[%s3830 + $0xc] sm:$0x1]
        %v3843 = vsel %vm332, %v3801, %v3842
        %3844 = vst [vmem:[%s3830 + $0xc] sm:$0x1] %v3843
        %v3845 = vld [vmem:[%s3830 + $0x10] sm:$0xf]
        %v3846 = vsel %vm3832, %v3802, %v3845
        %3847 = vst [vmem:[%s3830 + $0x10] sm:$0xf] %v3846
        %v3848 = vld [vmem:[%s3830 + $0x14] sm:$0x1]
        %v3849 = vsel %vm332, %v3803, %v3848
        %3850 = vst [vmem:[%s3830 + $0x14] sm:$0x1] %v3849
        %v3851 = vld [vmem:[%s3830 + $0x18] sm:$0xf]
        %v3852 = vsel %vm3832, %v3804, %v3851
        %3853 = vst [vmem:[%s3830 + $0x18] sm:$0xf] %v3852
        %v3854 = vld [vmem:[%s3830 + $0x1c] sm:$0x1]
        %v3855 = vsel %vm332, %v3805, %v3854
        %3856 = vst [vmem:[%s3830 + $0x1c] sm:$0x1] %v3855
        %v3857 = vld [vmem:[%s3830 + $0x20] sm:$0xf]
        %v3858 = vsel %vm3832, %v3806, %v3857
        %3859 = vst [vmem:[%s3830 + $0x20] sm:$0xf] %v3858
        %v3860 = vld [vmem:[%s3830 + $0x24] sm:$0x1]
        %v3861 = vsel %vm332, %v3807, %v3860
        %3862 = vst [vmem:[%s3830 + $0x24] sm:$0x1] %v3861
        %v3863 = vld [vmem:[%s3830 + $0x28] sm:$0xf]
        %v3864 = vsel %vm3832, %v3808, %v3863
        %3865 = vst [vmem:[%s3830 + $0x28] sm:$0xf] %v3864
        %v3866 = vld [vmem:[%s3830 + $0x2c] sm:$0x1]
        %v3867 = vsel %vm332, %v3809, %v3866
        %3868 = vst [vmem:[%s3830 + $0x2c] sm:$0x1] %v3867
        %v3869 = vld [vmem:[%s3830 + $0x30] sm:$0xf]
        %v3870 = vsel %vm3832, %v3810, %v3869
        %3871 = vst [vmem:[%s3830 + $0x30] sm:$0xf] %v3870
        %v3872 = vld [vmem:[%s3830 + $0x34] sm:$0x1]
        %v3873 = vsel %vm332, %v3811, %v3872
        %3874 = vst [vmem:[%s3830 + $0x34] sm:$0x1] %v3873
        %v3875 = vld [vmem:[%s3830 + $0x38] sm:$0xf]
        %v3876 = vsel %vm3832, %v3812, %v3875
        %3877 = vst [vmem:[%s3830 + $0x38] sm:$0xf] %v3876
        %v3878 = vld [vmem:[%s3830 + $0x3c] sm:$0x1]
        %v3879 = vsel %vm332, %v3813, %v3878
        %3880 = vst [vmem:[%s3830 + $0x3c] sm:$0x1] %v3879
        %v3881 = vld [vmem:[#allocation3] sm:$0xf]
        %v3882 = vld [vmem:[#allocation3 + $0x8] sm:$0xf]
        %v3883 = vld [vmem:[#allocation3 + $0x10] sm:$0xf]
        %v3884 = vld [vmem:[#allocation3 + $0x18] sm:$0xf]
        %v3885 = vld [vmem:[#allocation3 + $0x20] sm:$0xf]
        %v3886 = vld [vmem:[#allocation3 + $0x28] sm:$0xf]
        %v3887 = vld [vmem:[#allocation3 + $0x30] sm:$0xf]
        %v3888 = vld [vmem:[#allocation3 + $0x38] sm:$0xf]
        %v3897 = vunpack.c.l.b16 %v3881
        %v3898 = vunpack.c.l.b16 %v3882
        %v3899 = vunpack.c.l.b16 %v3883
        %v3900 = vunpack.c.l.b16 %v3884
        %v3901 = vunpack.c.l.b16 %v3885
        %v3902 = vunpack.c.l.b16 %v3886
        %v3903 = vunpack.c.l.b16 %v3887
        %v3904 = vunpack.c.l.b16 %v3888
        %v3905 = vpack.c.b16 %v3898, %v3897
        %v3906 = vpack.c.b16 %v3900, %v3899
        %v3907 = vpack.c.b16 %v3902, %v3901
        %v3908 = vpack.c.b16 %v3904, %v3903
        %3913 = vst.msk [vmem:[#allocation5] sm:$0xff] %vm278, %v3905
        %3914 = vst.msk [vmem:[#allocation5 + $0x18] sm:$0xff] %vm278, %v3906
        %3915 = vst.msk [vmem:[#allocation5 + $0x30] sm:$0xff] %vm278, %v3907
        %3916 = vst.msk [vmem:[#allocation5 + $0x48] sm:$0xff] %vm278, %v3908
        %v3917 = vld [vmem:[#allocation3] sm:$0xf]
        %v3918 = vld [vmem:[#allocation3 + $0x4] sm:$0x1]
        %v3919 = vld [vmem:[#allocation3 + $0x8] sm:$0xf]
        %v3920 = vld [vmem:[#allocation3 + $0xc] sm:$0x1]
        %v3921 = vld [vmem:[#allocation3 + $0x10] sm:$0xf]
        %v3922 = vld [vmem:[#allocation3 + $0x14] sm:$0x1]
        %v3923 = vld [vmem:[#allocation3 + $0x18] sm:$0xf]
        %v3924 = vld [vmem:[#allocation3 + $0x1c] sm:$0x1]
        %v3925 = vld [vmem:[#allocation3 + $0x20] sm:$0xf]
        %v3926 = vld [vmem:[#allocation3 + $0x24] sm:$0x1]
        %v3927 = vld [vmem:[#allocation3 + $0x28] sm:$0xf]
        %v3928 = vld [vmem:[#allocation3 + $0x2c] sm:$0x1]
        %v3929 = vld [vmem:[#allocation3 + $0x30] sm:$0xf]
        %v3930 = vld [vmem:[#allocation3 + $0x34] sm:$0x1]
        %v3931 = vld [vmem:[#allocation3 + $0x38] sm:$0xf]
        %v3932 = vld [vmem:[#allocation3 + $0x3c] sm:$0x1]
        %vm3933 = vsmask.f32 3328
        %vm3934 = vsmask.f32 7440
        %vm3935 = vmor %vm3933, %vm3934
        %v3937 = vshrl.u32 %v3917, 16
        %v3939 = vrot.slane %v3937, 4
        %v3940 = vshll.u32 %v3917, 16
        %v3942 = vrot.slane %v3940, 5
        %v3943 = vor.u32 %v3939, %v3942
        %v3944 = vrot.slane %v3943, 4
        %v3946 = vshll.u32 %v3918, 16
        %v3948 = vrot.slane %v3946, 5
        %v3949 = vsel %vm3935, %v3944, %v3948
        %v3951 = vshrl.u32 %v3919, 16
        %v3953 = vrot.slane %v3951, 4
        %v3954 = vshll.u32 %v3919, 16
        %v3956 = vrot.slane %v3954, 5
        %v3957 = vor.u32 %v3953, %v3956
        %v3958 = vrot.slane %v3957, 4
        %v3960 = vshll.u32 %v3920, 16
        %v3962 = vrot.slane %v3960, 5
        %v3963 = vsel %vm3935, %v3958, %v3962
        %v3965 = vshrl.u32 %v3921, 16
        %v3967 = vrot.slane %v3965, 4
        %v3968 = vshll.u32 %v3921, 16
        %v3970 = vrot.slane %v3968, 5
        %v3971 = vor.u32 %v3967, %v3970
        %v3972 = vrot.slane %v3971, 4
        %v3974 = vshll.u32 %v3922, 16
        %v3976 = vrot.slane %v3974, 5
        %v3977 = vsel %vm3935, %v3972, %v3976
        %v3979 = vshrl.u32 %v3923, 16
        %v3981 = vrot.slane %v3979, 4
        %v3982 = vshll.u32 %v3923, 16
        %v3984 = vrot.slane %v3982, 5
        %v3985 = vor.u32 %v3981, %v3984
        %v3986 = vrot.slane %v3985, 4
        %v3988 = vshll.u32 %v3924, 16
        %v3990 = vrot.slane %v3988, 5
        %v3991 = vsel %vm3935, %v3986, %v3990
        %v3993 = vshrl.u32 %v3925, 16
        %v3995 = vrot.slane %v3993, 4
        %v3996 = vshll.u32 %v3925, 16
        %v3998 = vrot.slane %v3996, 5
        %v3999 = vor.u32 %v3995, %v3998
        %v4000 = vrot.slane %v3999, 4
        %v4002 = vshll.u32 %v3926, 16
        %v4004 = vrot.slane %v4002, 5
        %v4005 = vsel %vm3935, %v4000, %v4004
        %v4007 = vshrl.u32 %v3927, 16
        %v4009 = vrot.slane %v4007, 4
        %v4010 = vshll.u32 %v3927, 16
        %v4012 = vrot.slane %v4010, 5
        %v4013 = vor.u32 %v4009, %v4012
        %v4014 = vrot.slane %v4013, 4
        %v4016 = vshll.u32 %v3928, 16
        %v4018 = vrot.slane %v4016, 5
        %v4019 = vsel %vm3935, %v4014, %v4018
        %v4021 = vshrl.u32 %v3929, 16
        %v4023 = vrot.slane %v4021, 4
        %v4024 = vshll.u32 %v3929, 16
        %v4026 = vrot.slane %v4024, 5
        %v4027 = vor.u32 %v4023, %v4026
        %v4028 = vrot.slane %v4027, 4
        %v4030 = vshll.u32 %v3930, 16
        %v4032 = vrot.slane %v4030, 5
        %v4033 = vsel %vm3935, %v4028, %v4032
        %v4035 = vshrl.u32 %v3931, 16
        %v4037 = vrot.slane %v4035, 4
        %v4038 = vshll.u32 %v3931, 16
        %v4040 = vrot.slane %v4038, 5
        %v4041 = vor.u32 %v4037, %v4040
        %v4042 = vrot.slane %v4041, 4
        %v4044 = vshll.u32 %v3932, 16
        %v4046 = vrot.slane %v4044, 5
        %v4047 = vsel %vm3935, %v4042, %v4046
        %v4048 = vunpack.c.l.b16 %v3949
        %v4049 = vunpack.c.l.b16 %v3963
        %v4050 = vunpack.c.l.b16 %v3977
        %v4051 = vunpack.c.l.b16 %v3991
        %v4052 = vunpack.c.l.b16 %v4005
        %v4053 = vunpack.c.l.b16 %v4019
        %v4054 = vunpack.c.l.b16 %v4033
        %v4055 = vunpack.c.l.b16 %v4047
        %v4056 = vpack.c.b16 %v4049, %v4048
        %v4057 = vpack.c.b16 %v4051, %v4050
        %v4058 = vpack.c.b16 %v4053, %v4052
        %v4059 = vpack.c.b16 %v4055, %v4054
        %4060 = vrot.lane.b32.xlu0 %v4056, 32
        %v4061 = vpop.permute.xlu0 %4060
        %4062 = vrot.lane.b32.xlu0 %v4057, 32
        %v4063 = vpop.permute.xlu0 %4062
        %4064 = vrot.lane.b32.xlu0 %v4058, 32
        %v4065 = vpop.permute.xlu0 %4064
        %4066 = vrot.lane.b32.xlu0 %v4059, 32
        %v4067 = vpop.permute.xlu0 %4066
        %vm4072 = vcmask 523520
        %4073 = vst.msk [vmem:[#allocation5] sm:$0xff] %vm4072, %v4061
        %4074 = vst.msk [vmem:[#allocation5 + $0x18] sm:$0xff] %vm4072, %v4063
        %4075 = vst.msk [vmem:[#allocation5 + $0x30] sm:$0xff] %vm4072, %v4065
        %4076 = vst.msk [vmem:[#allocation5 + $0x48] sm:$0xff] %vm4072, %v4067
        %v4077 = vld [vmem:[#allocation3] sm:$0xe]
        %v4078 = vld [vmem:[#allocation3 + $0x4] sm:$0x1]
        %v4079 = vld [vmem:[#allocation3 + $0x8] sm:$0xe]
        %v4080 = vld [vmem:[#allocation3 + $0xc] sm:$0x1]
        %v4081 = vld [vmem:[#allocation3 + $0x10] sm:$0xe]
        %v4082 = vld [vmem:[#allocation3 + $0x14] sm:$0x1]
        %v4083 = vld [vmem:[#allocation3 + $0x18] sm:$0xe]
        %v4084 = vld [vmem:[#allocation3 + $0x1c] sm:$0x1]
        %v4085 = vld [vmem:[#allocation3 + $0x20] sm:$0xe]
        %v4086 = vld [vmem:[#allocation3 + $0x24] sm:$0x1]
        %v4087 = vld [vmem:[#allocation3 + $0x28] sm:$0xe]
        %v4088 = vld [vmem:[#allocation3 + $0x2c] sm:$0x1]
        %v4089 = vld [vmem:[#allocation3 + $0x30] sm:$0xe]
        %v4090 = vld [vmem:[#allocation3 + $0x34] sm:$0x1]
        %v4091 = vld [vmem:[#allocation3 + $0x38] sm:$0xe]
        %v4092 = vld [vmem:[#allocation3 + $0x3c] sm:$0x1]
        %vm4109 = vcmask 1042432
        %vm4110 = vcmask 1046532
        %vm4111 = vmor %vm4109, %vm4110
        %v4112 = vrot.slane %v4077, 5
        %v4113 = vrot.slane %v4112, 4
        %v4114 = vrot.slane %v4078, 5
        %v4115 = vsel %vm4111, %v4113, %v4114
        %v4116 = vrot.slane %v4079, 5
        %v4117 = vrot.slane %v4116, 4
        %v4118 = vrot.slane %v4080, 5
        %v4119 = vsel %vm4111, %v4117, %v4118
        %v4120 = vrot.slane %v4081, 5
        %v4121 = vrot.slane %v4120, 4
        %v4122 = vrot.slane %v4082, 5
        %v4123 = vsel %vm4111, %v4121, %v4122
        %v4124 = vrot.slane %v4083, 5
        %v4125 = vrot.slane %v4124, 4
        %v4126 = vrot.slane %v4084, 5
        %v4127 = vsel %vm4111, %v4125, %v4126
        %v4128 = vrot.slane %v4085, 5
        %v4129 = vrot.slane %v4128, 4
        %v4130 = vrot.slane %v4086, 5
        %v4131 = vsel %vm4111, %v4129, %v4130
        %v4132 = vrot.slane %v4087, 5
        %v4133 = vrot.slane %v4132, 4
        %v4134 = vrot.slane %v4088, 5
        %v4135 = vsel %vm4111, %v4133, %v4134
        %v4136 = vrot.slane %v4089, 5
        %v4137 = vrot.slane %v4136, 4
        %v4138 = vrot.slane %v4090, 5
        %v4139 = vsel %vm4111, %v4137, %v4138
        %v4140 = vrot.slane %v4091, 5
        %v4141 = vrot.slane %v4140, 4
        %v4142 = vrot.slane %v4092, 5
        %v4143 = vsel %vm4111, %v4141, %v4142
        %v4144 = vunpack.c.l.b16 %v4115
        %v4145 = vunpack.c.l.b16 %v4119
        %v4146 = vunpack.c.l.b16 %v4123
        %v4147 = vunpack.c.l.b16 %v4127
        %v4148 = vunpack.c.l.b16 %v4131
        %v4149 = vunpack.c.l.b16 %v4135
        %v4150 = vunpack.c.l.b16 %v4139
        %v4151 = vunpack.c.l.b16 %v4143
        %v4152 = vpack.c.b16 %v4145, %v4144
        %v4153 = vpack.c.b16 %v4147, %v4146
        %v4154 = vpack.c.b16 %v4149, %v4148
        %v4155 = vpack.c.b16 %v4151, %v4150
        %4156 = vrot.lane.b32.xlu0 %v4152, 64
        %v4157 = vpop.permute.xlu0 %4156
        %4158 = vrot.lane.b32.xlu0 %v4153, 64
        %v4159 = vpop.permute.xlu0 %4158
        %4160 = vrot.lane.b32.xlu0 %v4154, 64
        %v4161 = vpop.permute.xlu0 %4160
        %4162 = vrot.lane.b32.xlu0 %v4155, 64
        %v4163 = vpop.permute.xlu0 %4162
        %vm4168 = vcmask 785920
        %4169 = vst.msk [vmem:[#allocation5] sm:$0xff] %vm4168, %v4157
        %4170 = vst.msk [vmem:[#allocation5 + $0x18] sm:$0xff] %vm4168, %v4159
        %4171 = vst.msk [vmem:[#allocation5 + $0x30] sm:$0xff] %vm4168, %v4161
        %4172 = vst.msk [vmem:[#allocation5 + $0x48] sm:$0xff] %vm4168, %v4163
        %v4173 = vld [vmem:[%s3830] sm:$0xf]
        %v4174 = vld [vmem:[%s3830 + $0x8] sm:$0xf]
        %v4175 = vld [vmem:[%s3830 + $0x10] sm:$0xf]
        %v4176 = vld [vmem:[%s3830 + $0x18] sm:$0xf]
        %v4177 = vld [vmem:[%s3830 + $0x20] sm:$0xf]
        %v4178 = vld [vmem:[%s3830 + $0x28] sm:$0xf]
        %v4179 = vld [vmem:[%s3830 + $0x30] sm:$0xf]
        %v4180 = vld [vmem:[%s3830 + $0x38] sm:$0xf]
        %v4189 = vunpack.c.l.b16 %v4173
        %v4190 = vunpack.c.l.b16 %v4174
        %v4191 = vunpack.c.l.b16 %v4175
        %v4192 = vunpack.c.l.b16 %v4176
        %v4193 = vunpack.c.l.b16 %v4177
        %v4194 = vunpack.c.l.b16 %v4178
        %v4195 = vunpack.c.l.b16 %v4179
        %v4196 = vunpack.c.l.b16 %v4180
        %v4197 = vpack.c.b16 %v4190, %v4189
        %v4198 = vpack.c.b16 %v4192, %v4191
        %v4199 = vpack.c.b16 %v4194, %v4193
        %v4200 = vpack.c.b16 %v4196, %v4195
        %4201 = vrot.lane.b32.xlu0 %v4197, 96
        %v4202 = vpop.permute.xlu0 %4201
        %4203 = vrot.lane.b32.xlu0 %v4198, 96
        %v4204 = vpop.permute.xlu0 %4203
        %4205 = vrot.lane.b32.xlu0 %v4199, 96
        %v4206 = vpop.permute.xlu0 %4205
        %4207 = vrot.lane.b32.xlu0 %v4200, 96
        %v4208 = vpop.permute.xlu0 %4207
        %vm4213 = vcmask 1048320
        %4214 = vst.msk [vmem:[#allocation5] sm:$0xff] %vm4213, %v4202
        %4215 = vst.msk [vmem:[#allocation5 + $0x18] sm:$0xff] %vm4213, %v4204
        %4216 = vst.msk [vmem:[#allocation5 + $0x30] sm:$0xff] %vm4213, %v4206
        %4217 = vst.msk [vmem:[#allocation5 + $0x48] sm:$0xff] %vm4213, %v4208
        %v4218 = vld [vmem:[%s3830] sm:$0xf]
        %v4219 = vld [vmem:[%s3830 + $0x4] sm:$0x1]
        %v4220 = vld [vmem:[%s3830 + $0x8] sm:$0xf]
        %v4221 = vld [vmem:[%s3830 + $0xc] sm:$0x1]
        %v4222 = vld [vmem:[%s3830 + $0x10] sm:$0xf]
        %v4223 = vld [vmem:[%s3830 + $0x14] sm:$0x1]
        %v4224 = vld [vmem:[%s3830 + $0x18] sm:$0xf]
        %v4225 = vld [vmem:[%s3830 + $0x1c] sm:$0x1]
        %v4226 = vld [vmem:[%s3830 + $0x20] sm:$0xf]
        %v4227 = vld [vmem:[%s3830 + $0x24] sm:$0x1]
        %v4228 = vld [vmem:[%s3830 + $0x28] sm:$0xf]
        %v4229 = vld [vmem:[%s3830 + $0x2c] sm:$0x1]
        %v4230 = vld [vmem:[%s3830 + $0x30] sm:$0xf]
        %v4231 = vld [vmem:[%s3830 + $0x34] sm:$0x1]
        %v4232 = vld [vmem:[%s3830 + $0x38] sm:$0xf]
        %v4233 = vld [vmem:[%s3830 + $0x3c] sm:$0x1]
        %v4235 = vshrl.u32 %v4218, 16
        %v4237 = vrot.slane %v4235, 4
        %v4238 = vshll.u32 %v4218, 16
        %v4240 = vrot.slane %v4238, 5
        %v4241 = vor.u32 %v4237, %v4240
        %v4242 = vrot.slane %v4241, 4
        %v4244 = vshll.u32 %v4219, 16
        %v4246 = vrot.slane %v4244, 5
        %v4247 = vsel %vm3935, %v4242, %v4246
        %v4249 = vshrl.u32 %v4220, 16
        %v4251 = vrot.slane %v4249, 4
        %v4252 = vshll.u32 %v4220, 16
        %v4254 = vrot.slane %v4252, 5
        %v4255 = vor.u32 %v4251, %v4254
        %v4256 = vrot.slane %v4255, 4
        %v4258 = vshll.u32 %v4221, 16
        %v4260 = vrot.slane %v4258, 5
        %v4261 = vsel %vm3935, %v4256, %v4260
        %v4263 = vshrl.u32 %v4222, 16
        %v4265 = vrot.slane %v4263, 4
        %v4266 = vshll.u32 %v4222, 16
        %v4268 = vrot.slane %v4266, 5
        %v4269 = vor.u32 %v4265, %v4268
        %v4270 = vrot.slane %v4269, 4
        %v4272 = vshll.u32 %v4223, 16
        %v4274 = vrot.slane %v4272, 5
        %v4275 = vsel %vm3935, %v4270, %v4274
        %v4277 = vshrl.u32 %v4224, 16
        %v4279 = vrot.slane %v4277, 4
        %v4280 = vshll.u32 %v4224, 16
        %v4282 = vrot.slane %v4280, 5
        %v4283 = vor.u32 %v4279, %v4282
        %v4284 = vrot.slane %v4283, 4
        %v4286 = vshll.u32 %v4225, 16
        %v4288 = vrot.slane %v4286, 5
        %v4289 = vsel %vm3935, %v4284, %v4288
        %v4291 = vshrl.u32 %v4226, 16
        %v4293 = vrot.slane %v4291, 4
        %v4294 = vshll.u32 %v4226, 16
        %v4296 = vrot.slane %v4294, 5
        %v4297 = vor.u32 %v4293, %v4296
        %v4298 = vrot.slane %v4297, 4
        %v4300 = vshll.u32 %v4227, 16
        %v4302 = vrot.slane %v4300, 5
        %v4303 = vsel %vm3935, %v4298, %v4302
        %v4305 = vshrl.u32 %v4228, 16
        %v4307 = vrot.slane %v4305, 4
        %v4308 = vshll.u32 %v4228, 16
        %v4310 = vrot.slane %v4308, 5
        %v4311 = vor.u32 %v4307, %v4310
        %v4312 = vrot.slane %v4311, 4
        %v4314 = vshll.u32 %v4229, 16
        %v4316 = vrot.slane %v4314, 5
        %v4317 = vsel %vm3935, %v4312, %v4316
        %v4319 = vshrl.u32 %v4230, 16
        %v4321 = vrot.slane %v4319, 4
        %v4322 = vshll.u32 %v4230, 16
        %v4324 = vrot.slane %v4322, 5
        %v4325 = vor.u32 %v4321, %v4324
        %v4326 = vrot.slane %v4325, 4
        %v4328 = vshll.u32 %v4231, 16
        %v4330 = vrot.slane %v4328, 5
        %v4331 = vsel %vm3935, %v4326, %v4330
        %v4333 = vshrl.u32 %v4232, 16
        %v4335 = vrot.slane %v4333, 4
        %v4336 = vshll.u32 %v4232, 16
        %v4338 = vrot.slane %v4336, 5
        %v4339 = vor.u32 %v4335, %v4338
        %v4340 = vrot.slane %v4339, 4
        %v4342 = vshll.u32 %v4233, 16
        %v4344 = vrot.slane %v4342, 5
        %v4345 = vsel %vm3935, %v4340, %v4344
        %v4346 = vunpack.c.l.b16 %v4247
        %v4347 = vunpack.c.l.b16 %v4261
        %v4348 = vunpack.c.l.b16 %v4275
        %v4349 = vunpack.c.l.b16 %v4289
        %v4350 = vunpack.c.l.b16 %v4303
        %v4351 = vunpack.c.l.b16 %v4317
        %v4352 = vunpack.c.l.b16 %v4331
        %v4353 = vunpack.c.l.b16 %v4345
        %v4354 = vpack.c.b16 %v4347, %v4346
        %v4355 = vpack.c.b16 %v4349, %v4348
        %v4356 = vpack.c.b16 %v4351, %v4350
        %v4357 = vpack.c.b16 %v4353, %v4352
        %4362 = vst.msk [vmem:[#allocation5 + $0x8] sm:$0xff] %vm278, %v4354
        %4363 = vst.msk [vmem:[#allocation5 + $0x20] sm:$0xff] %vm278, %v4355
        %4364 = vst.msk [vmem:[#allocation5 + $0x38] sm:$0xff] %vm278, %v4356
        %4365 = vst.msk [vmem:[#allocation5 + $0x50] sm:$0xff] %vm278, %v4357
        %v4366 = vld [vmem:[%s3830] sm:$0xe]
        %v4367 = vld [vmem:[%s3830 + $0x4] sm:$0x1]
        %v4368 = vld [vmem:[%s3830 + $0x8] sm:$0xe]
        %v4369 = vld [vmem:[%s3830 + $0xc] sm:$0x1]
        %v4370 = vld [vmem:[%s3830 + $0x10] sm:$0xe]
        %v4371 = vld [vmem:[%s3830 + $0x14] sm:$0x1]
        %v4372 = vld [vmem:[%s3830 + $0x18] sm:$0xe]
        %v4373 = vld [vmem:[%s3830 + $0x1c] sm:$0x1]
        %v4374 = vld [vmem:[%s3830 + $0x20] sm:$0xe]
        %v4375 = vld [vmem:[%s3830 + $0x24] sm:$0x1]
        %v4376 = vld [vmem:[%s3830 + $0x28] sm:$0xe]
        %v4377 = vld [vmem:[%s3830 + $0x2c] sm:$0x1]
        %v4378 = vld [vmem:[%s3830 + $0x30] sm:$0xe]
        %v4379 = vld [vmem:[%s3830 + $0x34] sm:$0x1]
        %v4380 = vld [vmem:[%s3830 + $0x38] sm:$0xe]
        %v4381 = vld [vmem:[%s3830 + $0x3c] sm:$0x1]
        %v4398 = vrot.slane %v4366, 5
        %v4399 = vrot.slane %v4398, 4
        %v4400 = vrot.slane %v4367, 5
        %v4401 = vsel %vm4111, %v4399, %v4400
        %v4402 = vrot.slane %v4368, 5
        %v4403 = vrot.slane %v4402, 4
        %v4404 = vrot.slane %v4369, 5
        %v4405 = vsel %vm4111, %v4403, %v4404
        %v4406 = vrot.slane %v4370, 5
        %v4407 = vrot.slane %v4406, 4
        %v4408 = vrot.slane %v4371, 5
        %v4409 = vsel %vm4111, %v4407, %v4408
        %v4410 = vrot.slane %v4372, 5
        %v4411 = vrot.slane %v4410, 4
        %v4412 = vrot.slane %v4373, 5
        %v4413 = vsel %vm4111, %v4411, %v4412
        %v4414 = vrot.slane %v4374, 5
        %v4415 = vrot.slane %v4414, 4
        %v4416 = vrot.slane %v4375, 5
        %v4417 = vsel %vm4111, %v4415, %v4416
        %v4418 = vrot.slane %v4376, 5
        %v4419 = vrot.slane %v4418, 4
        %v4420 = vrot.slane %v4377, 5
        %v4421 = vsel %vm4111, %v4419, %v4420
        %v4422 = vrot.slane %v4378, 5
        %v4423 = vrot.slane %v4422, 4
        %v4424 = vrot.slane %v4379, 5
        %v4425 = vsel %vm4111, %v4423, %v4424
        %v4426 = vrot.slane %v4380, 5
        %v4427 = vrot.slane %v4426, 4
        %v4428 = vrot.slane %v4381, 5
        %v4429 = vsel %vm4111, %v4427, %v4428
        %v4430 = vunpack.c.l.b16 %v4401
        %v4431 = vunpack.c.l.b16 %v4405
        %v4432 = vunpack.c.l.b16 %v4409
        %v4433 = vunpack.c.l.b16 %v4413
        %v4434 = vunpack.c.l.b16 %v4417
        %v4435 = vunpack.c.l.b16 %v4421
        %v4436 = vunpack.c.l.b16 %v4425
        %v4437 = vunpack.c.l.b16 %v4429
        %v4438 = vpack.c.b16 %v4431, %v4430
        %v4439 = vpack.c.b16 %v4433, %v4432
        %v4440 = vpack.c.b16 %v4435, %v4434
        %v4441 = vpack.c.b16 %v4437, %v4436
        %4442 = vrot.lane.b32.xlu0 %v4438, 32
        %v4443 = vpop.permute.xlu0 %4442
        %4444 = vrot.lane.b32.xlu0 %v4439, 32
        %v4445 = vpop.permute.xlu0 %4444
        %4446 = vrot.lane.b32.xlu0 %v4440, 32
        %v4447 = vpop.permute.xlu0 %4446
        %4448 = vrot.lane.b32.xlu0 %v4441, 32
        %v4449 = vpop.permute.xlu0 %4448
        %4454 = vst.msk [vmem:[#allocation5 + $0x8] sm:$0xff] %vm4072, %v4443
        %4455 = vst.msk [vmem:[#allocation5 + $0x20] sm:$0xff] %vm4072, %v4445
        %4456 = vst.msk [vmem:[#allocation5 + $0x38] sm:$0xff] %vm4072, %v4447
        %4457 = vst.msk [vmem:[#allocation5 + $0x50] sm:$0xff] %vm4072, %v4449
        %s4458 = scalar_lea.vmem [#allocation3], 16
        %v4459 = vld [vmem:[%s4458] sm:$0xf]
        %v4460 = vld [vmem:[%s4458 + $0x8] sm:$0xf]
        %v4461 = vld [vmem:[%s4458 + $0x10] sm:$0xf]
        %v4462 = vld [vmem:[%s4458 + $0x18] sm:$0xf]
        %v4463 = vld [vmem:[%s4458 + $0x20] sm:$0xf]
        %v4464 = vld [vmem:[%s4458 + $0x28] sm:$0xf]
        %v4465 = vld [vmem:[%s4458 + $0x30] sm:$0xf]
        %v4466 = vld [vmem:[%s4458 + $0x38] sm:$0xf]
        %v4475 = vunpack.c.l.b16 %v4459
        %v4476 = vunpack.c.l.b16 %v4460
        %v4477 = vunpack.c.l.b16 %v4461
        %v4478 = vunpack.c.l.b16 %v4462
        %v4479 = vunpack.c.l.b16 %v4463
        %v4480 = vunpack.c.l.b16 %v4464
        %v4481 = vunpack.c.l.b16 %v4465
        %v4482 = vunpack.c.l.b16 %v4466
        %v4483 = vpack.c.b16 %v4476, %v4475
        %v4484 = vpack.c.b16 %v4478, %v4477
        %v4485 = vpack.c.b16 %v4480, %v4479
        %v4486 = vpack.c.b16 %v4482, %v4481
        %4487 = vrot.lane.b32.xlu0 %v4483, 64
        %v4488 = vpop.permute.xlu0 %4487
        %4489 = vrot.lane.b32.xlu0 %v4484, 64
        %v4490 = vpop.permute.xlu0 %4489
        %4491 = vrot.lane.b32.xlu0 %v4485, 64
        %v4492 = vpop.permute.xlu0 %4491
        %4493 = vrot.lane.b32.xlu0 %v4486, 64
        %v4494 = vpop.permute.xlu0 %4493
        %4499 = vst.msk [vmem:[#allocation5 + $0x8] sm:$0xff] %vm4168, %v4488
        %4500 = vst.msk [vmem:[#allocation5 + $0x20] sm:$0xff] %vm4168, %v4490
        %4501 = vst.msk [vmem:[#allocation5 + $0x38] sm:$0xff] %vm4168, %v4492
        %4502 = vst.msk [vmem:[#allocation5 + $0x50] sm:$0xff] %vm4168, %v4494
        %v4503 = vld [vmem:[%s4458] sm:$0xf]
        %v4504 = vld [vmem:[%s4458 + $0x4] sm:$0x1]
        %v4505 = vld [vmem:[%s4458 + $0x8] sm:$0xf]
        %v4506 = vld [vmem:[%s4458 + $0xc] sm:$0x1]
        %v4507 = vld [vmem:[%s4458 + $0x10] sm:$0xf]
        %v4508 = vld [vmem:[%s4458 + $0x14] sm:$0x1]
        %v4509 = vld [vmem:[%s4458 + $0x18] sm:$0xf]
        %v4510 = vld [vmem:[%s4458 + $0x1c] sm:$0x1]
        %v4511 = vld [vmem:[%s4458 + $0x20] sm:$0xf]
        %v4512 = vld [vmem:[%s4458 + $0x24] sm:$0x1]
        %v4513 = vld [vmem:[%s4458 + $0x28] sm:$0xf]
        %v4514 = vld [vmem:[%s4458 + $0x2c] sm:$0x1]
        %v4515 = vld [vmem:[%s4458 + $0x30] sm:$0xf]
        %v4516 = vld [vmem:[%s4458 + $0x34] sm:$0x1]
        %v4517 = vld [vmem:[%s4458 + $0x38] sm:$0xf]
        %v4518 = vld [vmem:[%s4458 + $0x3c] sm:$0x1]
        %v4520 = vshrl.u32 %v4503, 16
        %v4522 = vrot.slane %v4520, 4
        %v4523 = vshll.u32 %v4503, 16
        %v4525 = vrot.slane %v4523, 5
        %v4526 = vor.u32 %v4522, %v4525
        %v4527 = vrot.slane %v4526, 4
        %v4529 = vshll.u32 %v4504, 16
        %v4531 = vrot.slane %v4529, 5
        %v4532 = vsel %vm3935, %v4527, %v4531
        %v4534 = vshrl.u32 %v4505, 16
        %v4536 = vrot.slane %v4534, 4
        %v4537 = vshll.u32 %v4505, 16
        %v4539 = vrot.slane %v4537, 5
        %v4540 = vor.u32 %v4536, %v4539
        %v4541 = vrot.slane %v4540, 4
        %v4543 = vshll.u32 %v4506, 16
        %v4545 = vrot.slane %v4543, 5
        %v4546 = vsel %vm3935, %v4541, %v4545
        %v4548 = vshrl.u32 %v4507, 16
        %v4550 = vrot.slane %v4548, 4
        %v4551 = vshll.u32 %v4507, 16
        %v4553 = vrot.slane %v4551, 5
        %v4554 = vor.u32 %v4550, %v4553
        %v4555 = vrot.slane %v4554, 4
        %v4557 = vshll.u32 %v4508, 16
        %v4559 = vrot.slane %v4557, 5
        %v4560 = vsel %vm3935, %v4555, %v4559
        %v4562 = vshrl.u32 %v4509, 16
        %v4564 = vrot.slane %v4562, 4
        %v4565 = vshll.u32 %v4509, 16
        %v4567 = vrot.slane %v4565, 5
        %v4568 = vor.u32 %v4564, %v4567
        %v4569 = vrot.slane %v4568, 4
        %v4571 = vshll.u32 %v4510, 16
        %v4573 = vrot.slane %v4571, 5
        %v4574 = vsel %vm3935, %v4569, %v4573
        %v4576 = vshrl.u32 %v4511, 16
        %v4578 = vrot.slane %v4576, 4
        %v4579 = vshll.u32 %v4511, 16
        %v4581 = vrot.slane %v4579, 5
        %v4582 = vor.u32 %v4578, %v4581
        %v4583 = vrot.slane %v4582, 4
        %v4585 = vshll.u32 %v4512, 16
        %v4587 = vrot.slane %v4585, 5
        %v4588 = vsel %vm3935, %v4583, %v4587
        %v4590 = vshrl.u32 %v4513, 16
        %v4592 = vrot.slane %v4590, 4
        %v4593 = vshll.u32 %v4513, 16
        %v4595 = vrot.slane %v4593, 5
        %v4596 = vor.u32 %v4592, %v4595
        %v4597 = vrot.slane %v4596, 4
        %v4599 = vshll.u32 %v4514, 16
        %v4601 = vrot.slane %v4599, 5
        %v4602 = vsel %vm3935, %v4597, %v4601
        %v4604 = vshrl.u32 %v4515, 16
        %v4606 = vrot.slane %v4604, 4
        %v4607 = vshll.u32 %v4515, 16
        %v4609 = vrot.slane %v4607, 5
        %v4610 = vor.u32 %v4606, %v4609
        %v4611 = vrot.slane %v4610, 4
        %v4613 = vshll.u32 %v4516, 16
        %v4615 = vrot.slane %v4613, 5
        %v4616 = vsel %vm3935, %v4611, %v4615
        %v4618 = vshrl.u32 %v4517, 16
        %v4620 = vrot.slane %v4618, 4
        %v4621 = vshll.u32 %v4517, 16
        %v4623 = vrot.slane %v4621, 5
        %v4624 = vor.u32 %v4620, %v4623
        %v4625 = vrot.slane %v4624, 4
        %v4627 = vshll.u32 %v4518, 16
        %v4629 = vrot.slane %v4627, 5
        %v4630 = vsel %vm3935, %v4625, %v4629
        %v4631 = vunpack.c.l.b16 %v4532
        %v4632 = vunpack.c.l.b16 %v4546
        %v4633 = vunpack.c.l.b16 %v4560
        %v4634 = vunpack.c.l.b16 %v4574
        %v4635 = vunpack.c.l.b16 %v4588
        %v4636 = vunpack.c.l.b16 %v4602
        %v4637 = vunpack.c.l.b16 %v4616
        %v4638 = vunpack.c.l.b16 %v4630
        %v4639 = vpack.c.b16 %v4632, %v4631
        %v4640 = vpack.c.b16 %v4634, %v4633
        %v4641 = vpack.c.b16 %v4636, %v4635
        %v4642 = vpack.c.b16 %v4638, %v4637
        %4643 = vrot.lane.b32.xlu0 %v4639, 96
        %v4644 = vpop.permute.xlu0 %4643
        %4645 = vrot.lane.b32.xlu0 %v4640, 96
        %v4646 = vpop.permute.xlu0 %4645
        %4647 = vrot.lane.b32.xlu0 %v4641, 96
        %v4648 = vpop.permute.xlu0 %4647
        %4649 = vrot.lane.b32.xlu0 %v4642, 96
        %v4650 = vpop.permute.xlu0 %4649
        %4655 = vst.msk [vmem:[#allocation5 + $0x8] sm:$0xff] %vm4213, %v4644
        %4656 = vst.msk [vmem:[#allocation5 + $0x20] sm:$0xff] %vm4213, %v4646
        %4657 = vst.msk [vmem:[#allocation5 + $0x38] sm:$0xff] %vm4213, %v4648
        %4658 = vst.msk [vmem:[#allocation5 + $0x50] sm:$0xff] %vm4213, %v4650
        %v4659 = vld [vmem:[%s4458] sm:$0xe]
        %v4660 = vld [vmem:[%s4458 + $0x4] sm:$0x1]
        %v4661 = vld [vmem:[%s4458 + $0x8] sm:$0xe]
        %v4662 = vld [vmem:[%s4458 + $0xc] sm:$0x1]
        %v4663 = vld [vmem:[%s4458 + $0x10] sm:$0xe]
        %v4664 = vld [vmem:[%s4458 + $0x14] sm:$0x1]
        %v4665 = vld [vmem:[%s4458 + $0x18] sm:$0xe]
        %v4666 = vld [vmem:[%s4458 + $0x1c] sm:$0x1]
        %v4667 = vld [vmem:[%s4458 + $0x20] sm:$0xe]
        %v4668 = vld [vmem:[%s4458 + $0x24] sm:$0x1]
        %v4669 = vld [vmem:[%s4458 + $0x28] sm:$0xe]
        %v4670 = vld [vmem:[%s4458 + $0x2c] sm:$0x1]
        %v4671 = vld [vmem:[%s4458 + $0x30] sm:$0xe]
        %v4672 = vld [vmem:[%s4458 + $0x34] sm:$0x1]
        %v4673 = vld [vmem:[%s4458 + $0x38] sm:$0xe]
        %v4674 = vld [vmem:[%s4458 + $0x3c] sm:$0x1]
        %v4691 = vrot.slane %v4659, 5
        %v4692 = vrot.slane %v4691, 4
        %v4693 = vrot.slane %v4660, 5
        %v4694 = vsel %vm4111, %v4692, %v4693
        %v4695 = vrot.slane %v4661, 5
        %v4696 = vrot.slane %v4695, 4
        %v4697 = vrot.slane %v4662, 5
        %v4698 = vsel %vm4111, %v4696, %v4697
        %v4699 = vrot.slane %v4663, 5
        %v4700 = vrot.slane %v4699, 4
        %v4701 = vrot.slane %v4664, 5
        %v4702 = vsel %vm4111, %v4700, %v4701
        %v4703 = vrot.slane %v4665, 5
        %v4704 = vrot.slane %v4703, 4
        %v4705 = vrot.slane %v4666, 5
        %v4706 = vsel %vm4111, %v4704, %v4705
        %v4707 = vrot.slane %v4667, 5
        %v4708 = vrot.slane %v4707, 4
        %v4709 = vrot.slane %v4668, 5
        %v4710 = vsel %vm4111, %v4708, %v4709
        %v4711 = vrot.slane %v4669, 5
        %v4712 = vrot.slane %v4711, 4
        %v4713 = vrot.slane %v4670, 5
        %v4714 = vsel %vm4111, %v4712, %v4713
        %v4715 = vrot.slane %v4671, 5
        %v4716 = vrot.slane %v4715, 4
        %v4717 = vrot.slane %v4672, 5
        %v4718 = vsel %vm4111, %v4716, %v4717
        %v4719 = vrot.slane %v4673, 5
        %v4720 = vrot.slane %v4719, 4
        %v4721 = vrot.slane %v4674, 5
        %v4722 = vsel %vm4111, %v4720, %v4721
        %v4723 = vunpack.c.l.b16 %v4694
        %v4724 = vunpack.c.l.b16 %v4698
        %v4725 = vunpack.c.l.b16 %v4702
        %v4726 = vunpack.c.l.b16 %v4706
        %v4727 = vunpack.c.l.b16 %v4710
        %v4728 = vunpack.c.l.b16 %v4714
        %v4729 = vunpack.c.l.b16 %v4718
        %v4730 = vunpack.c.l.b16 %v4722
        %v4731 = vpack.c.b16 %v4724, %v4723
        %v4732 = vpack.c.b16 %v4726, %v4725
        %v4733 = vpack.c.b16 %v4728, %v4727
        %v4734 = vpack.c.b16 %v4730, %v4729
        %4739 = vst.msk [vmem:[#allocation5 + $0x10] sm:$0xff] %vm278, %v4731
        %4740 = vst.msk [vmem:[#allocation5 + $0x28] sm:$0xff] %vm278, %v4732
        %4741 = vst.msk [vmem:[#allocation5 + $0x40] sm:$0xff] %vm278, %v4733
        %4742 = vst.msk [vmem:[#allocation5 + $0x58] sm:$0xff] %vm278, %v4734
        %v4743 = vld [vmem:[#allocation5] sm:$0xff]
        %v4744 = vld [vmem:[#allocation5 + $0x8] sm:$0xff]
        %v4745 = vld [vmem:[#allocation5 + $0x10] sm:$0xff]
        %v4746 = vld [vmem:[#allocation5 + $0x18] sm:$0xff]
        %v4747 = vld [vmem:[#allocation5 + $0x20] sm:$0xff]
        %v4748 = vld [vmem:[#allocation5 + $0x28] sm:$0xff]
        %v4749 = vld [vmem:[#allocation5 + $0x30] sm:$0xff]
        %v4750 = vld [vmem:[#allocation5 + $0x38] sm:$0xff]
        %v4751 = vld [vmem:[#allocation5 + $0x40] sm:$0xff]
        %v4752 = vld [vmem:[#allocation5 + $0x48] sm:$0xff]
        %v4753 = vld [vmem:[#allocation5 + $0x50] sm:$0xff]
        %v4754 = vld [vmem:[#allocation5 + $0x58] sm:$0xff]
        %v4755 = vld [vmem:[%s3] sm:$0xf]
        %v4756 = vld [vmem:[%s3 + $0x4] sm:$0xf]
        %v4757 = vld [vmem:[%s3 + $0x8] sm:$0xf]
        %v4758 = vld [vmem:[%s3 + $0xc] sm:$0xf]
        %v4759 = vld [vmem:[%s3 + $0x10] sm:$0xf]
        %v4760 = vld [vmem:[%s3 + $0x14] sm:$0xf]
        %v4761 = vld [vmem:[%s3 + $0x18] sm:$0xf]
        %v4762 = vld [vmem:[%s3 + $0x1c] sm:$0xf]
        %v4763 = vld [vmem:[%s3 + $0x20] sm:$0xf]
        %v4764 = vld [vmem:[%s3 + $0x24] sm:$0xf]
        %v4765 = vld [vmem:[%s3 + $0x28] sm:$0xf]
        %v4766 = vld [vmem:[%s3 + $0x2c] sm:$0xf]
        %v4767 = vld [vmem:[%s3 + $0x30] sm:$0xf]
        %v4768 = vld [vmem:[%s3 + $0x34] sm:$0xf]
        %v4769 = vld [vmem:[%s3 + $0x38] sm:$0xf]
        %v4770 = vld [vmem:[%s3 + $0x3c] sm:$0xf]
        %v4771 = vld [vmem:[%s3 + $0x40] sm:$0xf]
        %v4772 = vld [vmem:[%s3 + $0x44] sm:$0xf]
        %v4773 = vld [vmem:[%s3 + $0x48] sm:$0xf]
        %v4774 = vld [vmem:[%s3 + $0x4c] sm:$0xf]
        %v4775 = vld [vmem:[%s3 + $0x50] sm:$0xf]
        %v4776 = vld [vmem:[%s3 + $0x54] sm:$0xf]
        %v4777 = vld [vmem:[%s3 + $0x58] sm:$0xf]
        %v4778 = vld [vmem:[%s3 + $0x5c] sm:$0xf]
        %v4779 = vld [vmem:[%s3 + $0x60] sm:$0xf]
        %v4780 = vld [vmem:[%s3 + $0x64] sm:$0xf]
        %v4781 = vld [vmem:[%s3 + $0x68] sm:$0xf]
        %v4782 = vld [vmem:[%s3 + $0x6c] sm:$0xf]
        %v4783 = vld [vmem:[%s3 + $0x70] sm:$0xf]
        %v4784 = vld [vmem:[%s3 + $0x74] sm:$0xf]
        %v4785 = vld [vmem:[%s3 + $0x78] sm:$0xf]
        %v4786 = vld [vmem:[%s3 + $0x7c] sm:$0xf]
        %v4787 = vld [vmem:[%s3 + $0x80] sm:$0xf]
        %v4788 = vld [vmem:[%s3 + $0x84] sm:$0xf]
        %v4789 = vld [vmem:[%s3 + $0x88] sm:$0xf]
        %v4790 = vld [vmem:[%s3 + $0x8c] sm:$0xf]
        %v4791 = vld [vmem:[%s4] sm:$0x1]
        %v4793 = vlaneseq
        %v4794 = vshrl.u32 %v4793, 7
        %v4795 = vsub.s32 0, %v4794
        %v4796 = vrot.slane %v4791, %v4795
        %v4834 = vunpack.c.l.b16 %v4755
        %v4835 = vunpack.c.l.b16 %v4756
        %v4836 = vunpack.c.l.b16 %v4757
        %v4837 = vunpack.c.l.b16 %v4758
        %v4838 = vunpack.c.l.b16 %v4759
        %v4839 = vunpack.c.l.b16 %v4760
        %v4840 = vunpack.c.l.b16 %v4761
        %v4841 = vunpack.c.l.b16 %v4762
        %v4842 = vunpack.c.l.b16 %v4763
        %v4843 = vunpack.c.l.b16 %v4764
        %v4844 = vunpack.c.l.b16 %v4765
        %v4845 = vunpack.c.l.b16 %v4766
        %v4846 = vunpack.c.l.b16 %v4767
        %v4847 = vunpack.c.l.b16 %v4768
        %v4848 = vunpack.c.l.b16 %v4769
        %v4849 = vunpack.c.l.b16 %v4770
        %v4850 = vunpack.c.l.b16 %v4771
        %v4851 = vunpack.c.l.b16 %v4772
        %v4852 = vunpack.c.l.b16 %v4773
        %v4853 = vunpack.c.l.b16 %v4774
        %v4854 = vunpack.c.l.b16 %v4775
        %v4855 = vunpack.c.l.b16 %v4776
        %v4856 = vunpack.c.l.b16 %v4777
        %v4857 = vunpack.c.l.b16 %v4778
        %v4858 = vunpack.c.l.b16 %v4779
        %v4859 = vunpack.c.l.b16 %v4780
        %v4860 = vunpack.c.l.b16 %v4781
        %v4861 = vunpack.c.l.b16 %v4782
        %v4862 = vunpack.c.l.b16 %v4783
        %v4863 = vunpack.c.l.b16 %v4784
        %v4864 = vunpack.c.l.b16 %v4785
        %v4865 = vunpack.c.l.b16 %v4786
        %v4866 = vunpack.c.l.b16 %v4787
        %v4867 = vunpack.c.l.b16 %v4788
        %v4868 = vunpack.c.l.b16 %v4789
        %v4869 = vunpack.c.l.b16 %v4790
        %v4870 = vpack.c.b16 %v4835, %v4834
        %v4871 = vpack.c.b16 %v4837, %v4836
        %v4872 = vpack.c.b16 %v4839, %v4838
        %v4873 = vpack.c.b16 %v4841, %v4840
        %v4874 = vpack.c.b16 %v4843, %v4842
        %v4875 = vpack.c.b16 %v4845, %v4844
        %v4876 = vpack.c.b16 %v4847, %v4846
        %v4877 = vpack.c.b16 %v4849, %v4848
        %v4878 = vpack.c.b16 %v4851, %v4850
        %v4879 = vpack.c.b16 %v4853, %v4852
        %v4880 = vpack.c.b16 %v4855, %v4854
        %v4881 = vpack.c.b16 %v4857, %v4856
        %v4882 = vpack.c.b16 %v4859, %v4858
        %v4883 = vpack.c.b16 %v4861, %v4860
        %v4884 = vpack.c.b16 %v4863, %v4862
        %v4885 = vpack.c.b16 %v4865, %v4864
        %v4886 = vpack.c.b16 %v4867, %v4866
        %v4887 = vpack.c.b16 %v4869, %v4868
        %v4907 = vsel %vm278, %v4745, 0
        %v4910 = vsel %vm278, %v4748, 0
        %v4913 = vsel %vm278, %v4751, 0
        %v4916 = vsel %vm278, %v4754, 0
        %4918 = vmatprep.subr.bf16.mxu0 0
        %4919 = vmatpush1.bf16.msra.mxu0 %v4870
        %4920 = vmatprep.subr.bf16.mxu0 0
        %4921 = vmatpush1.bf16.msra.mxu0 %v4871
        %4922 = vmatprep.subr.bf16.mxu0 0
        %4923 = vmatpush1.bf16.msra.mxu0 %v4872
        %4924 = vmatprep.subr.bf16.mxu0 0
        %4925 = vmatpush1.bf16.msra.mxu0 %v4873
        %4926 = vmatprep.subr.bf16.mxu0 0
        %4927 = vmatpush1.bf16.msra.mxu0 %v4874
        %4928 = vmatprep.subr.bf16.mxu0 0
        %4929 = vmatpush1.bf16.msra.mxu0 %v4875
        %4930 = vmatprep.subr.bf16.mxu0 0
        %4931 = vmatpush1.bf16.msra.mxu0 %v4876
        %4932 = vmatprep.subr.bf16.mxu0 0
        %4933 = vmatpush1.bf16.msra.mxu0 %v4877
        %4934 = vmatprep.subr.bf16.mxu0 0
        %4935 = vmatpush1.bf16.msra.mxu0 %v4878
        %4936 = vmatprep.subr.bf16.mxu0 0
        %4937 = vmatpush1.bf16.msra.mxu0 %v4879
        %4938 = vmatprep.subr.bf16.mxu0 0
        %4939 = vmatpush1.bf16.msra.mxu0 %v4880
        %4940 = vmatprep.subr.bf16.mxu0 0
        %4941 = vmatpush1.bf16.msra.mxu0 %v4881
        %4942 = vmatprep.subr.bf16.mxu0 0
        %4943 = vmatpush1.bf16.msra.mxu0 %v4882
        %4944 = vmatprep.subr.bf16.mxu0 0
        %4945 = vmatpush1.bf16.msra.mxu0 %v4883
        %4946 = vmatprep.subr.bf16.mxu0 0
        %4947 = vmatpush1.bf16.msra.mxu0 %v4884
        %4948 = vmatprep.subr.bf16.mxu0 0
        %4949 = vmatpush1.bf16.msra.mxu0 %v4885
        %4950 = vmatprep.mubr.bf16.mxu0 %v4744
        %4951 = vmatmul.mubr.bf16.gmra.mrb[0].mxu0 %v4743
        %v4952 = vpop.f32.mrb[0].mxu0
        %v4953 = vadd.f32 %v4796, %v4952
        %v4954 = vpop.f32.mrb[0].mxu0
        %v4955 = vpop.f32.mrb[0].mxu0
        %v4956 = vadd.f32 %v4796, %v4955
        %v4957 = vpop.f32.mrb[0].mxu0
        %4958 = vmatprep.mubr.bf16.mxu0 %v4747
        %4959 = vmatmul.mubr.bf16.gmra.mrb[0].mxu0 %v4746
        %v4960 = vpop.f32.mrb[0].mxu0
        %v4961 = vadd.f32 %v4796, %v4960
        %v4962 = vpop.f32.mrb[0].mxu0
        %v4963 = vpop.f32.mrb[0].mxu0
        %v4964 = vadd.f32 %v4796, %v4963
        %v4965 = vpop.f32.mrb[0].mxu0
        %4966 = vmatprep.mubr.bf16.mxu0 %v4750
        %4967 = vmatmul.mubr.bf16.gmra.mrb[0].mxu0 %v4749
        %v4968 = vpop.f32.mrb[0].mxu0
        %v4969 = vadd.f32 %v4796, %v4968
        %v4970 = vpop.f32.mrb[0].mxu0
        %v4971 = vpop.f32.mrb[0].mxu0
        %v4972 = vadd.f32 %v4796, %v4971
        %v4973 = vpop.f32.mrb[0].mxu0
        %4974 = vmatprep.mubr.bf16.mxu0 %v4753
        %4975 = vmatmul.mubr.bf16.gmra.mrb[0].mxu0 %v4752
        %v4976 = vpop.f32.mrb[0].mxu0
        %v4977 = vadd.f32 %v4796, %v4976
        %v4978 = vpop.f32.mrb[0].mxu0
        %v4979 = vpop.f32.mrb[0].mxu0
        %v4980 = vadd.f32 %v4796, %v4979
        %v4981 = vpop.f32.mrb[0].mxu0
        %4982 = vdwg.mxu0
        %4983 = vmatprep.subr.bf16.mxu0 0
        %4984 = vmatpush1.bf16.msra.mxu0 %v4886
        %4985 = vmatprep.subr.bf16.mxu0 0
        %4986 = vmatpush1.bf16.msra.mxu0 %v4887
        %4987 = vmatprep.subr.bf16.mxu0 0
        %4988 = vmatpush1.bf16.msra.mxu0 0
        %4989 = vmatprep.subr.bf16.mxu0 0
        %4990 = vmatpush1.bf16.msra.mxu0 0
        %4991 = vmatprep.subr.bf16.mxu0 0
        %4992 = vmatpush1.bf16.msra.mxu0 0
        %4993 = vmatprep.subr.bf16.mxu0 0
        %4994 = vmatpush1.bf16.msra.mxu0 0
        %4995 = vmatprep.subr.bf16.mxu0 0
        %4996 = vmatpush1.bf16.msra.mxu0 0
        %4997 = vmatprep.subr.bf16.mxu0 0
        %4998 = vmatpush1.bf16.msra.mxu0 0
        %4999 = vmatprep.subr.bf16.mxu0 0
        %5000 = vmatpush1.bf16.msra.mxu0 0
        %5001 = vmatprep.subr.bf16.mxu0 0
        %5002 = vmatpush1.bf16.msra.mxu0 0
        %5003 = vmatprep.subr.bf16.mxu0 0
        %5004 = vmatpush1.bf16.msra.mxu0 0
        %5005 = vmatprep.subr.bf16.mxu0 0
        %5006 = vmatpush1.bf16.msra.mxu0 0
        %5007 = vmatprep.subr.bf16.mxu0 0
        %5008 = vmatpush1.bf16.msra.mxu0 0
        %5009 = vmatprep.subr.bf16.mxu0 0
        %5010 = vmatpush1.bf16.msra.mxu0 0
        %5011 = vmatprep.subr.bf16.mxu0 0
        %5012 = vmatpush1.bf16.msra.mxu0 0
        %5013 = vmatprep.subr.bf16.mxu0 0
        %5014 = vmatpush1.bf16.msra.mxu0 0
        %5015 = vmatprep.mubr.bf16.mxu0 0
        %5016 = vmatmul.mubr.bf16.gmra.mrb[0].mxu0 %v4907
        %v5017 = vpop.f32.mrb[0].mxu0
        %v5018 = vadd.f32 %v4953, %v5017
        %v5019 = vpop.f32.mrb[0].mxu0
        %v5020 = vpop.f32.mrb[0].mxu0
        %v5021 = vadd.f32 %v4956, %v5020
        %v5022 = vpop.f32.mrb[0].mxu0
        %5023 = vmatprep.mubr.bf16.mxu0 0
        %5024 = vmatmul.mubr.bf16.gmra.mrb[0].mxu0 %v4910
        %v5025 = vpop.f32.mrb[0].mxu0
        %v5026 = vadd.f32 %v4961, %v5025
        %v5027 = vpop.f32.mrb[0].mxu0
        %v5028 = vpop.f32.mrb[0].mxu0
        %v5029 = vadd.f32 %v4964, %v5028
        %v5030 = vpop.f32.mrb[0].mxu0
        %5031 = vmatprep.mubr.bf16.mxu0 0
        %5032 = vmatmul.mubr.bf16.gmra.mrb[0].mxu0 %v4913
        %v5033 = vpop.f32.mrb[0].mxu0
        %v5034 = vadd.f32 %v4969, %v5033
        %v5035 = vpop.f32.mrb[0].mxu0
        %v5036 = vpop.f32.mrb[0].mxu0
        %v5037 = vadd.f32 %v4972, %v5036
        %v5038 = vpop.f32.mrb[0].mxu0
        %5039 = vmatprep.mubr.bf16.mxu0 0
        %5040 = vmatmul.mubr.bf16.gmra.mrb[0].mxu0 %v4916
        %v5041 = vpop.f32.mrb[0].mxu0
        %v5042 = vadd.f32 %v4977, %v5041
        %v5043 = vpop.f32.mrb[0].mxu0
        %v5044 = vpop.f32.mrb[0].mxu0
        %v5045 = vadd.f32 %v4980, %v5044
        %v5046 = vpop.f32.mrb[0].mxu0
        %5047 = vdwg.mxu0
        %v5048 = vmax.f32 %v5018, 0.0
        %v5049 = vmax.f32 %v5021, 0.0
        %v5050 = vmax.f32 %v5026, 0.0
        %v5051 = vmax.f32 %v5029, 0.0
        %v5052 = vmax.f32 %v5034, 0.0
        %v5053 = vmax.f32 %v5037, 0.0
        %v5054 = vmax.f32 %v5042, 0.0
        %v5055 = vmax.f32 %v5045, 0.0
        %v5064 = vcombine.high %v5048, %v5048
        %v5066 = vunpack.c.l.s4 1983009808
        %v5067 = vunpack.c.0.s8 %v5066
        %v5068 = vlaneseq
        %v5069 = vshrl.u32 %v5068, 7
        %v5070 = vsub.s32 %v5067, %v5069
        %v5071 = vrot.slane %v5048, %v5070
        %v5073 = vunpack.c.l.s4 1983009808
        %v5074 = vunpack.c.0.s8 %v5073
        %v5075 = vlaneseq
        %v5076 = vshrl.u32 %v5075, 7
        %v5077 = vsub.s32 %v5074, %v5076
        %v5078 = vrot.slane %v5064, %v5077
        %v5079 = vcombine.high %v5071, %v5071
        %v5080 = vcombine.high %v5078, %v5078
        %v5081 = vcombine.high %v5049, %v5049
        %v5083 = vunpack.c.l.s4 1983009808
        %v5084 = vunpack.c.0.s8 %v5083
        %v5085 = vlaneseq
        %v5086 = vshrl.u32 %v5085, 7
        %v5087 = vsub.s32 %v5084, %v5086
        %v5088 = vrot.slane %v5049, %v5087
        %v5090 = vunpack.c.l.s4 1983009808
        %v5091 = vunpack.c.0.s8 %v5090
        %v5092 = vlaneseq
        %v5093 = vshrl.u32 %v5092, 7
        %v5094 = vsub.s32 %v5091, %v5093
        %v5095 = vrot.slane %v5081, %v5094
        %v5096 = vcombine.high %v5088, %v5088
        %v5097 = vcombine.high %v5095, %v5095
        %v5098 = vcombine.high %v5050, %v5050
        %v5100 = vunpack.c.l.s4 1983009808
        %v5101 = vunpack.c.0.s8 %v5100
        %v5102 = vlaneseq
        %v5103 = vshrl.u32 %v5102, 7
        %v5104 = vsub.s32 %v5101, %v5103
        %v5105 = vrot.slane %v5050, %v5104
        %v5107 = vunpack.c.l.s4 1983009808
        %v5108 = vunpack.c.0.s8 %v5107
        %v5109 = vlaneseq
        %v5110 = vshrl.u32 %v5109, 7
        %v5111 = vsub.s32 %v5108, %v5110
        %v5112 = vrot.slane %v5098, %v5111
        %v5113 = vcombine.high %v5105, %v5105
        %v5114 = vcombine.high %v5112, %v5112
        %v5115 = vcombine.high %v5051, %v5051
        %v5117 = vunpack.c.l.s4 1983009808
        %v5118 = vunpack.c.0.s8 %v5117
        %v5119 = vlaneseq
        %v5120 = vshrl.u32 %v5119, 7
        %v5121 = vsub.s32 %v5118, %v5120
        %v5122 = vrot.slane %v5051, %v5121
        %v5124 = vunpack.c.l.s4 1983009808
        %v5125 = vunpack.c.0.s8 %v5124
        %v5126 = vlaneseq
        %v5127 = vshrl.u32 %v5126, 7
        %v5128 = vsub.s32 %v5125, %v5127
        %v5129 = vrot.slane %v5115, %v5128
        %v5130 = vcombine.high %v5122, %v5122
        %v5131 = vcombine.high %v5129, %v5129
        %v5132 = vcombine.high %v5052, %v5052
        %v5134 = vunpack.c.l.s4 1983009808
        %v5135 = vunpack.c.0.s8 %v5134
        %v5136 = vlaneseq
        %v5137 = vshrl.u32 %v5136, 7
        %v5138 = vsub.s32 %v5135, %v5137
        %v5139 = vrot.slane %v5052, %v5138
        %v5141 = vunpack.c.l.s4 1983009808
        %v5142 = vunpack.c.0.s8 %v5141
        %v5143 = vlaneseq
        %v5144 = vshrl.u32 %v5143, 7
        %v5145 = vsub.s32 %v5142, %v5144
        %v5146 = vrot.slane %v5132, %v5145
        %v5147 = vcombine.high %v5139, %v5139
        %v5148 = vcombine.high %v5146, %v5146
        %v5149 = vcombine.high %v5053, %v5053
        %v5151 = vunpack.c.l.s4 1983009808
        %v5152 = vunpack.c.0.s8 %v5151
        %v5153 = vlaneseq
        %v5154 = vshrl.u32 %v5153, 7
        %v5155 = vsub.s32 %v5152, %v5154
        %v5156 = vrot.slane %v5053, %v5155
        %v5158 = vunpack.c.l.s4 1983009808
        %v5159 = vunpack.c.0.s8 %v5158
        %v5160 = vlaneseq
        %v5161 = vshrl.u32 %v5160, 7
        %v5162 = vsub.s32 %v5159, %v5161
        %v5163 = vrot.slane %v5149, %v5162
        %v5164 = vcombine.high %v5156, %v5156
        %v5165 = vcombine.high %v5163, %v5163
        %v5166 = vcombine.high %v5054, %v5054
        %v5168 = vunpack.c.l.s4 1983009808
        %v5169 = vunpack.c.0.s8 %v5168
        %v5170 = vlaneseq
        %v5171 = vshrl.u32 %v5170, 7
        %v5172 = vsub.s32 %v5169, %v5171
        %v5173 = vrot.slane %v5054, %v5172
        %v5175 = vunpack.c.l.s4 1983009808
        %v5176 = vunpack.c.0.s8 %v5175
        %v5177 = vlaneseq
        %v5178 = vshrl.u32 %v5177, 7
        %v5179 = vsub.s32 %v5176, %v5178
        %v5180 = vrot.slane %v5166, %v5179
        %v5181 = vcombine.high %v5173, %v5173
        %v5182 = vcombine.high %v5180, %v5180
        %v5183 = vcombine.high %v5055, %v5055
        %v5185 = vunpack.c.l.s4 1983009808
        %v5186 = vunpack.c.0.s8 %v5185
        %v5187 = vlaneseq
        %v5188 = vshrl.u32 %v5187, 7
        %v5189 = vsub.s32 %v5186, %v5188
        %v5190 = vrot.slane %v5055, %v5189
        %v5192 = vunpack.c.l.s4 1983009808
        %v5193 = vunpack.c.0.s8 %v5192
        %v5194 = vlaneseq
        %v5195 = vshrl.u32 %v5194, 7
        %v5196 = vsub.s32 %v5193, %v5195
        %v5197 = vrot.slane %v5183, %v5196
        %v5198 = vcombine.high %v5190, %v5190
        %v5199 = vcombine.high %v5197, %v5197
        %vm5232 = vcmask 517120
        %v5233 = vsel %vm5232, %v5071, -inf
        %v5234 = vrot.slane %v5233, 4
        %v5235 = vmax.f32 %v5233, %v5234
        %v5236 = vrot.slane %v5235, 2
        %v5237 = vmax.f32 %v5235, %v5236
        %v5238 = vrot.slane %v5237, 1
        %v5239 = vmax.f32 %v5237, %v5238
        %v5240 = vsel %vm5232, %v5079, -inf
        %v5241 = vrot.slane %v5240, 4
        %v5242 = vmax.f32 %v5240, %v5241
        %v5243 = vrot.slane %v5242, 2
        %v5244 = vmax.f32 %v5242, %v5243
        %v5245 = vrot.slane %v5244, 1
        %v5246 = vmax.f32 %v5244, %v5245
        %v5247 = vsel %vm5232, %v5078, -inf
        %v5248 = vrot.slane %v5247, 4
        %v5249 = vmax.f32 %v5247, %v5248
        %v5250 = vrot.slane %v5249, 2
        %v5251 = vmax.f32 %v5249, %v5250
        %v5252 = vrot.slane %v5251, 1
        %v5253 = vmax.f32 %v5251, %v5252
        %v5254 = vsel %vm5232, %v5080, -inf
        %v5255 = vrot.slane %v5254, 4
        %v5256 = vmax.f32 %v5254, %v5255
        %v5257 = vrot.slane %v5256, 2
        %v5258 = vmax.f32 %v5256, %v5257
        %v5259 = vrot.slane %v5258, 1
        %v5260 = vmax.f32 %v5258, %v5259
        %v5261 = vsel %vm5232, %v5088, -inf
        %v5262 = vrot.slane %v5261, 4
        %v5263 = vmax.f32 %v5261, %v5262
        %v5264 = vrot.slane %v5263, 2
        %v5265 = vmax.f32 %v5263, %v5264
        %v5266 = vrot.slane %v5265, 1
        %v5267 = vmax.f32 %v5265, %v5266
        %v5268 = vsel %vm5232, %v5096, -inf
        %v5269 = vrot.slane %v5268, 4
        %v5270 = vmax.f32 %v5268, %v5269
        %v5271 = vrot.slane %v5270, 2
        %v5272 = vmax.f32 %v5270, %v5271
        %v5273 = vrot.slane %v5272, 1
        %v5274 = vmax.f32 %v5272, %v5273
        %v5275 = vsel %vm5232, %v5095, -inf
        %v5276 = vrot.slane %v5275, 4
        %v5277 = vmax.f32 %v5275, %v5276
        %v5278 = vrot.slane %v5277, 2
        %v5279 = vmax.f32 %v5277, %v5278
        %v5280 = vrot.slane %v5279, 1
        %v5281 = vmax.f32 %v5279, %v5280
        %v5282 = vsel %vm5232, %v5097, -inf
        %v5283 = vrot.slane %v5282, 4
        %v5284 = vmax.f32 %v5282, %v5283
        %v5285 = vrot.slane %v5284, 2
        %v5286 = vmax.f32 %v5284, %v5285
        %v5287 = vrot.slane %v5286, 1
        %v5288 = vmax.f32 %v5286, %v5287
        %v5289 = vsel %vm5232, %v5105, -inf
        %v5290 = vrot.slane %v5289, 4
        %v5291 = vmax.f32 %v5289, %v5290
        %v5292 = vrot.slane %v5291, 2
        %v5293 = vmax.f32 %v5291, %v5292
        %v5294 = vrot.slane %v5293, 1
        %v5295 = vmax.f32 %v5293, %v5294
        %v5296 = vsel %vm5232, %v5113, -inf
        %v5297 = vrot.slane %v5296, 4
        %v5298 = vmax.f32 %v5296, %v5297
        %v5299 = vrot.slane %v5298, 2
        %v5300 = vmax.f32 %v5298, %v5299
        %v5301 = vrot.slane %v5300, 1
        %v5302 = vmax.f32 %v5300, %v5301
        %v5303 = vsel %vm5232, %v5112, -inf
        %v5304 = vrot.slane %v5303, 4
        %v5305 = vmax.f32 %v5303, %v5304
        %v5306 = vrot.slane %v5305, 2
        %v5307 = vmax.f32 %v5305, %v5306
        %v5308 = vrot.slane %v5307, 1
        %v5309 = vmax.f32 %v5307, %v5308
        %v5310 = vsel %vm5232, %v5114, -inf
        %v5311 = vrot.slane %v5310, 4
        %v5312 = vmax.f32 %v5310, %v5311
        %v5313 = vrot.slane %v5312, 2
        %v5314 = vmax.f32 %v5312, %v5313
        %v5315 = vrot.slane %v5314, 1
        %v5316 = vmax.f32 %v5314, %v5315
        %v5317 = vsel %vm5232, %v5122, -inf
        %v5318 = vrot.slane %v5317, 4
        %v5319 = vmax.f32 %v5317, %v5318
        %v5320 = vrot.slane %v5319, 2
        %v5321 = vmax.f32 %v5319, %v5320
        %v5322 = vrot.slane %v5321, 1
        %v5323 = vmax.f32 %v5321, %v5322
        %v5324 = vsel %vm5232, %v5130, -inf
        %v5325 = vrot.slane %v5324, 4
        %v5326 = vmax.f32 %v5324, %v5325
        %v5327 = vrot.slane %v5326, 2
        %v5328 = vmax.f32 %v5326, %v5327
        %v5329 = vrot.slane %v5328, 1
        %v5330 = vmax.f32 %v5328, %v5329
        %v5331 = vsel %vm5232, %v5129, -inf
        %v5332 = vrot.slane %v5331, 4
        %v5333 = vmax.f32 %v5331, %v5332
        %v5334 = vrot.slane %v5333, 2
        %v5335 = vmax.f32 %v5333, %v5334
        %v5336 = vrot.slane %v5335, 1
        %v5337 = vmax.f32 %v5335, %v5336
        %v5338 = vsel %vm5232, %v5131, -inf
        %v5339 = vrot.slane %v5338, 4
        %v5340 = vmax.f32 %v5338, %v5339
        %v5341 = vrot.slane %v5340, 2
        %v5342 = vmax.f32 %v5340, %v5341
        %v5343 = vrot.slane %v5342, 1
        %v5344 = vmax.f32 %v5342, %v5343
        %v5345 = vsel %vm5232, %v5139, -inf
        %v5346 = vrot.slane %v5345, 4
        %v5347 = vmax.f32 %v5345, %v5346
        %v5348 = vrot.slane %v5347, 2
        %v5349 = vmax.f32 %v5347, %v5348
        %v5350 = vrot.slane %v5349, 1
        %v5351 = vmax.f32 %v5349, %v5350
        %v5352 = vsel %vm5232, %v5147, -inf
        %v5353 = vrot.slane %v5352, 4
        %v5354 = vmax.f32 %v5352, %v5353
        %v5355 = vrot.slane %v5354, 2
        %v5356 = vmax.f32 %v5354, %v5355
        %v5357 = vrot.slane %v5356, 1
        %v5358 = vmax.f32 %v5356, %v5357
        %v5359 = vsel %vm5232, %v5146, -inf
        %v5360 = vrot.slane %v5359, 4
        %v5361 = vmax.f32 %v5359, %v5360
        %v5362 = vrot.slane %v5361, 2
        %v5363 = vmax.f32 %v5361, %v5362
        %v5364 = vrot.slane %v5363, 1
        %v5365 = vmax.f32 %v5363, %v5364
        %v5366 = vsel %vm5232, %v5148, -inf
        %v5367 = vrot.slane %v5366, 4
        %v5368 = vmax.f32 %v5366, %v5367
        %v5369 = vrot.slane %v5368, 2
        %v5370 = vmax.f32 %v5368, %v5369
        %v5371 = vrot.slane %v5370, 1
        %v5372 = vmax.f32 %v5370, %v5371
        %v5373 = vsel %vm5232, %v5156, -inf
        %v5374 = vrot.slane %v5373, 4
        %v5375 = vmax.f32 %v5373, %v5374
        %v5376 = vrot.slane %v5375, 2
        %v5377 = vmax.f32 %v5375, %v5376
        %v5378 = vrot.slane %v5377, 1
        %v5379 = vmax.f32 %v5377, %v5378
        %v5380 = vsel %vm5232, %v5164, -inf
        %v5381 = vrot.slane %v5380, 4
        %v5382 = vmax.f32 %v5380, %v5381
        %v5383 = vrot.slane %v5382, 2
        %v5384 = vmax.f32 %v5382, %v5383
        %v5385 = vrot.slane %v5384, 1
        %v5386 = vmax.f32 %v5384, %v5385
        %v5387 = vsel %vm5232, %v5163, -inf
        %v5388 = vrot.slane %v5387, 4
        %v5389 = vmax.f32 %v5387, %v5388
        %v5390 = vrot.slane %v5389, 2
        %v5391 = vmax.f32 %v5389, %v5390
        %v5392 = vrot.slane %v5391, 1
        %v5393 = vmax.f32 %v5391, %v5392
        %v5394 = vsel %vm5232, %v5165, -inf
        %v5395 = vrot.slane %v5394, 4
        %v5396 = vmax.f32 %v5394, %v5395
        %v5397 = vrot.slane %v5396, 2
        %v5398 = vmax.f32 %v5396, %v5397
        %v5399 = vrot.slane %v5398, 1
        %v5400 = vmax.f32 %v5398, %v5399
        %v5401 = vsel %vm5232, %v5173, -inf
        %v5402 = vrot.slane %v5401, 4
        %v5403 = vmax.f32 %v5401, %v5402
        %v5404 = vrot.slane %v5403, 2
        %v5405 = vmax.f32 %v5403, %v5404
        %v5406 = vrot.slane %v5405, 1
        %v5407 = vmax.f32 %v5405, %v5406
        %v5408 = vsel %vm5232, %v5181, -inf
        %v5409 = vrot.slane %v5408, 4
        %v5410 = vmax.f32 %v5408, %v5409
        %v5411 = vrot.slane %v5410, 2
        %v5412 = vmax.f32 %v5410, %v5411
        %v5413 = vrot.slane %v5412, 1
        %v5414 = vmax.f32 %v5412, %v5413
        %v5415 = vsel %vm5232, %v5180, -inf
        %v5416 = vrot.slane %v5415, 4
        %v5417 = vmax.f32 %v5415, %v5416
        %v5418 = vrot.slane %v5417, 2
        %v5419 = vmax.f32 %v5417, %v5418
        %v5420 = vrot.slane %v5419, 1
        %v5421 = vmax.f32 %v5419, %v5420
        %v5422 = vsel %vm5232, %v5182, -inf
        %v5423 = vrot.slane %v5422, 4
        %v5424 = vmax.f32 %v5422, %v5423
        %v5425 = vrot.slane %v5424, 2
        %v5426 = vmax.f32 %v5424, %v5425
        %v5427 = vrot.slane %v5426, 1
        %v5428 = vmax.f32 %v5426, %v5427
        %v5429 = vsel %vm5232, %v5190, -inf
        %v5430 = vrot.slane %v5429, 4
        %v5431 = vmax.f32 %v5429, %v5430
        %v5432 = vrot.slane %v5431, 2
        %v5433 = vmax.f32 %v5431, %v5432
        %v5434 = vrot.slane %v5433, 1
        %v5435 = vmax.f32 %v5433, %v5434
        %v5436 = vsel %vm5232, %v5198, -inf
        %v5437 = vrot.slane %v5436, 4
        %v5438 = vmax.f32 %v5436, %v5437
        %v5439 = vrot.slane %v5438, 2
        %v5440 = vmax.f32 %v5438, %v5439
        %v5441 = vrot.slane %v5440, 1
        %v5442 = vmax.f32 %v5440, %v5441
        %v5443 = vsel %vm5232, %v5197, -inf
        %v5444 = vrot.slane %v5443, 4
        %v5445 = vmax.f32 %v5443, %v5444
        %v5446 = vrot.slane %v5445, 2
        %v5447 = vmax.f32 %v5445, %v5446
        %v5448 = vrot.slane %v5447, 1
        %v5449 = vmax.f32 %v5447, %v5448
        %v5450 = vsel %vm5232, %v5199, -inf
        %v5451 = vrot.slane %v5450, 4
        %v5452 = vmax.f32 %v5450, %v5451
        %v5453 = vrot.slane %v5452, 2
        %v5454 = vmax.f32 %v5452, %v5453
        %v5455 = vrot.slane %v5454, 1
        %v5456 = vmax.f32 %v5454, %v5455
        %vm5457 = vcmask 523264
        %v5458 = vsel %vm5457, %v5239, -inf
        %v5459 = vsel %vm5457, %v5267, -inf
        %v5460 = vmax.f32 %v5458, %v5459
        %v5461 = vsel %vm5457, %v5246, -inf
        %v5462 = vsel %vm5457, %v5274, -inf
        %v5463 = vmax.f32 %v5461, %v5462
        %v5464 = vsel %vm5457, %v5253, -inf
        %v5465 = vsel %vm5457, %v5281, -inf
        %v5466 = vmax.f32 %v5464, %v5465
        %v5467 = vsel %vm5457, %v5260, -inf
        %v5468 = vsel %vm5457, %v5288, -inf
        %v5469 = vmax.f32 %v5467, %v5468
        %v5470 = vsel %vm5457, %v5295, -inf
        %v5471 = vsel %vm5457, %v5323, -inf
        %v5472 = vmax.f32 %v5470, %v5471
        %v5473 = vsel %vm5457, %v5302, -inf
        %v5474 = vsel %vm5457, %v5330, -inf
        %v5475 = vmax.f32 %v5473, %v5474
        %v5476 = vsel %vm5457, %v5309, -inf
        %v5477 = vsel %vm5457, %v5337, -inf
        %v5478 = vmax.f32 %v5476, %v5477
        %v5479 = vsel %vm5457, %v5316, -inf
        %v5480 = vsel %vm5457, %v5344, -inf
        %v5481 = vmax.f32 %v5479, %v5480
        %v5482 = vsel %vm5457, %v5351, -inf
        %v5483 = vsel %vm5457, %v5379, -inf
        %v5484 = vmax.f32 %v5482, %v5483
        %v5485 = vsel %vm5457, %v5358, -inf
        %v5486 = vsel %vm5457, %v5386, -inf
        %v5487 = vmax.f32 %v5485, %v5486
        %v5488 = vsel %vm5457, %v5365, -inf
        %v5489 = vsel %vm5457, %v5393, -inf
        %v5490 = vmax.f32 %v5488, %v5489
        %v5491 = vsel %vm5457, %v5372, -inf
        %v5492 = vsel %vm5457, %v5400, -inf
        %v5493 = vmax.f32 %v5491, %v5492
        %v5494 = vsel %vm5457, %v5407, -inf
        %v5495 = vsel %vm5457, %v5435, -inf
        %v5496 = vmax.f32 %v5494, %v5495
        %v5497 = vsel %vm5457, %v5414, -inf
        %v5498 = vsel %vm5457, %v5442, -inf
        %v5499 = vmax.f32 %v5497, %v5498
        %v5500 = vsel %vm5457, %v5421, -inf
        %v5501 = vsel %vm5457, %v5449, -inf
        %v5502 = vmax.f32 %v5500, %v5501
        %v5503 = vsel %vm5457, %v5428, -inf
        %v5504 = vsel %vm5457, %v5456, -inf
        %v5505 = vmax.f32 %v5503, %v5504
        %v5506 = vpack.c.bf16 %v5460, %v5460
        %v5507 = vpack.c.bf16 %v5463, %v5463
        %v5508 = vpack.c.bf16 %v5466, %v5466
        %v5509 = vpack.c.bf16 %v5469, %v5469
        %v5510 = vpack.c.bf16 %v5472, %v5472
        %v5511 = vpack.c.bf16 %v5475, %v5475
        %v5512 = vpack.c.bf16 %v5478, %v5478
        %v5513 = vpack.c.bf16 %v5481, %v5481
        %v5514 = vpack.c.bf16 %v5484, %v5484
        %v5515 = vpack.c.bf16 %v5487, %v5487
        %v5516 = vpack.c.bf16 %v5490, %v5490
        %v5517 = vpack.c.bf16 %v5493, %v5493
        %v5518 = vpack.c.bf16 %v5496, %v5496
        %v5519 = vpack.c.bf16 %v5499, %v5499
        %v5520 = vpack.c.bf16 %v5502, %v5502
        %v5521 = vpack.c.bf16 %v5505, %v5505
        %v5538 = vunpack.c.l.b16 %v5506
        %v5539 = vunpack.c.l.b16 %v5507
        %v5540 = vunpack.c.l.b16 %v5508
        %v5541 = vunpack.c.l.b16 %v5509
        %v5542 = vunpack.c.l.b16 %v5510
        %v5543 = vunpack.c.l.b16 %v5511
        %v5544 = vunpack.c.l.b16 %v5512
        %v5545 = vunpack.c.l.b16 %v5513
        %v5546 = vunpack.c.l.b16 %v5514
        %v5547 = vunpack.c.l.b16 %v5515
        %v5548 = vunpack.c.l.b16 %v5516
        %v5549 = vunpack.c.l.b16 %v5517
        %v5550 = vunpack.c.l.b16 %v5518
        %v5551 = vunpack.c.l.b16 %v5519
        %v5552 = vunpack.c.l.b16 %v5520
        %v5553 = vunpack.c.l.b16 %v5521
        %v5554 = vpack.c.b16 %v5538, %v5538
        %v5555 = vpack.c.b16 %v5539, %v5539
        %v5556 = vpack.c.b16 %v5540, %v5540
        %v5557 = vpack.c.b16 %v5541, %v5541
        %v5558 = vpack.c.b16 %v5542, %v5542
        %v5559 = vpack.c.b16 %v5543, %v5543
        %v5560 = vpack.c.b16 %v5544, %v5544
        %v5561 = vpack.c.b16 %v5545, %v5545
        %v5562 = vpack.c.b16 %v5546, %v5546
        %v5563 = vpack.c.b16 %v5547, %v5547
        %v5564 = vpack.c.b16 %v5548, %v5548
        %v5565 = vpack.c.b16 %v5549, %v5549
        %v5566 = vpack.c.b16 %v5550, %v5550
        %v5567 = vpack.c.b16 %v5551, %v5551
        %v5568 = vpack.c.b16 %v5552, %v5552
        %v5569 = vpack.c.b16 %v5553, %v5553
        %v5570 = vunpack.c.l.b16 %v5554
        %v5571 = vunpack.c.l.b16 %v5555
        %v5572 = vunpack.c.l.b16 %v5556
        %v5573 = vunpack.c.l.b16 %v5557
        %v5574 = vunpack.c.l.b16 %v5558
        %v5575 = vunpack.c.l.b16 %v5559
        %v5576 = vunpack.c.l.b16 %v5560
        %v5577 = vunpack.c.l.b16 %v5561
        %v5578 = vunpack.c.l.b16 %v5562
        %v5579 = vunpack.c.l.b16 %v5563
        %v5580 = vunpack.c.l.b16 %v5564
        %v5581 = vunpack.c.l.b16 %v5565
        %v5582 = vunpack.c.l.b16 %v5566
        %v5583 = vunpack.c.l.b16 %v5567
        %v5584 = vunpack.c.l.b16 %v5568
        %v5585 = vunpack.c.l.b16 %v5569
        %v5586 = vsel %vm3744, %v5571, %v5570
        %v5587 = vsel %vm3746, %v5572, %v5586
        %v5588 = vsel %vm3748, %v5573, %v5587
        %v5589 = vsel %vm3744, %v5575, %v5574
        %v5590 = vsel %vm3746, %v5576, %v5589
        %v5591 = vsel %vm3748, %v5577, %v5590
        %v5592 = vsel %vm3744, %v5579, %v5578
        %v5593 = vsel %vm3746, %v5580, %v5592
        %v5594 = vsel %vm3748, %v5581, %v5593
        %v5595 = vsel %vm3744, %v5583, %v5582
        %v5596 = vsel %vm3746, %v5584, %v5595
        %v5597 = vsel %vm3748, %v5585, %v5596
        %v5598 = vpack.c.b16 %v5588, %v5588
        %v5599 = vpack.c.b16 %v5591, %v5591
        %v5600 = vpack.c.b16 %v5594, %v5594
        %v5601 = vpack.c.b16 %v5597, %v5597
        %s5606 = scalar_lea.vmem [#allocation4], 4
        %vm5607 = vcmask 518144
        %vm5608 = vsmask.f32 2306
        %vm5609 = vmand %vm5607, %vm5608
        %v5610 = vld [vmem:[%s5606] sm:$0x7]
        %v5611 = vsel %vm5609, %v5598, %v5610
        %5612 = vst [vmem:[%s5606] sm:$0x7] %v5611
        %v5613 = vld [vmem:[%s5606 + $0x4] sm:$0x7]
        %v5614 = vsel %vm5609, %v5599, %v5613
        %5615 = vst [vmem:[%s5606 + $0x4] sm:$0x7] %v5614
        %v5616 = vld [vmem:[%s5606 + $0x8] sm:$0x7]
        %v5617 = vsel %vm5609, %v5600, %v5616
        %5618 = vst [vmem:[%s5606 + $0x8] sm:$0x7] %v5617
        %v5619 = vld [vmem:[%s5606 + $0xc] sm:$0x7]
        %v5620 = vsel %vm5609, %v5601, %v5619
        %5621 = vst [vmem:[%s5606 + $0xc] sm:$0x7] %v5620
        %v5622 = vld [vmem:[#allocation4] sm:$0x3]
        %v5623 = vld [vmem:[#allocation4 + $0x4] sm:$0x3]
        %v5624 = vld [vmem:[#allocation4 + $0x8] sm:$0x3]
        %v5625 = vld [vmem:[#allocation4 + $0xc] sm:$0x3]
        %v5630 = vcombine.low %v5622, %v5623
        %v5631 = vcombine.low %v5624, %v5625
        %v5633 = vunpack.c.l.s4 1983009808
        %v5634 = vunpack.c.0.s8 %v5633
        %v5635 = vlaneseq
        %v5636 = vshrl.u32 %v5635, 7
        %v5637 = vsub.s32 %v5634, %v5636
        %v5638 = vrot.slane %v5630, %v5637
        %v5640 = vunpack.c.l.s4 1983009808
        %v5641 = vunpack.c.0.s8 %v5640
        %v5642 = vlaneseq
        %v5643 = vshrl.u32 %v5642, 7
        %v5644 = vsub.s32 %v5641, %v5643
        %v5645 = vrot.slane %v5631, %v5644
        %v5646 = vcombine.low %v5638, %v5645
        %5648 = vst.msk [vmem:[#allocation6] sm:$0xff] %vm5457, %v5646
        %v5649 = vld [vmem:[#allocation4] sm:$0x7]
        %v5650 = vld [vmem:[#allocation4 + $0x4] sm:$0x7]
        %v5651 = vld [vmem:[#allocation4 + $0x8] sm:$0x7]
        %v5652 = vld [vmem:[#allocation4 + $0xc] sm:$0x7]
        %v5658 = vunpack.c.l.s4 1983009808
        %v5659 = vunpack.c.0.s8 %v5658
        %v5660 = vlaneseq
        %v5661 = vshrl.u32 %v5660, 7
        %v5662 = vsub.s32 %v5659, %v5661
        %v5663 = vrot.slane %v5649, %v5662
        %v5664 = vcombine.high %v5663, %v5663
        %v5666 = vunpack.c.l.s4 1983009808
        %v5667 = vunpack.c.0.s8 %v5666
        %v5668 = vlaneseq
        %v5669 = vshrl.u32 %v5668, 7
        %v5670 = vsub.s32 %v5667, %v5669
        %v5671 = vrot.slane %v5650, %v5670
        %v5672 = vcombine.high %v5671, %v5671
        %v5674 = vunpack.c.l.s4 1983009808
        %v5675 = vunpack.c.0.s8 %v5674
        %v5676 = vlaneseq
        %v5677 = vshrl.u32 %v5676, 7
        %v5678 = vsub.s32 %v5675, %v5677
        %v5679 = vrot.slane %v5651, %v5678
        %v5680 = vcombine.high %v5679, %v5679
        %v5682 = vunpack.c.l.s4 1983009808
        %v5683 = vunpack.c.0.s8 %v5682
        %v5684 = vlaneseq
        %v5685 = vshrl.u32 %v5684, 7
        %v5686 = vsub.s32 %v5683, %v5685
        %v5687 = vrot.slane %v5652, %v5686
        %v5688 = vcombine.high %v5687, %v5687
        %vm5689 = vsmask.f32 1280
        %vm5690 = vsmask.f32 3336
        %vm5691 = vmor %vm5689, %vm5690
        %vm5692 = vsmask.f32 5392
        %vm5693 = vmor %vm5691, %vm5692
        %vm5694 = vsmask.f32 7448
        %vm5695 = vmor %vm5693, %vm5694
        %v5697 = vshrl.u32 %v5663, 16
        %v5699 = vrot.slane %v5697, 6
        %v5700 = vshll.u32 %v5663, 16
        %v5702 = vrot.slane %v5700, 7
        %v5703 = vor.u32 %v5699, %v5702
        %v5704 = vrot.slane %v5703, 2
        %v5706 = vshll.u32 %v5664, 16
        %v5708 = vrot.slane %v5706, 7
        %v5709 = vsel %vm5695, %v5704, %v5708
        %v5711 = vshrl.u32 %v5671, 16
        %v5713 = vrot.slane %v5711, 6
        %v5714 = vshll.u32 %v5671, 16
        %v5716 = vrot.slane %v5714, 7
        %v5717 = vor.u32 %v5713, %v5716
        %v5718 = vrot.slane %v5717, 2
        %v5720 = vshll.u32 %v5672, 16
        %v5722 = vrot.slane %v5720, 7
        %v5723 = vsel %vm5695, %v5718, %v5722
        %v5725 = vshrl.u32 %v5679, 16
        %v5727 = vrot.slane %v5725, 6
        %v5728 = vshll.u32 %v5679, 16
        %v5730 = vrot.slane %v5728, 7
        %v5731 = vor.u32 %v5727, %v5730
        %v5732 = vrot.slane %v5731, 2
        %v5734 = vshll.u32 %v5680, 16
        %v5736 = vrot.slane %v5734, 7
        %v5737 = vsel %vm5695, %v5732, %v5736
        %v5739 = vshrl.u32 %v5687, 16
        %v5741 = vrot.slane %v5739, 6
        %v5742 = vshll.u32 %v5687, 16
        %v5744 = vrot.slane %v5742, 7
        %v5745 = vor.u32 %v5741, %v5744
        %v5746 = vrot.slane %v5745, 2
        %v5748 = vshll.u32 %v5688, 16
        %v5750 = vrot.slane %v5748, 7
        %v5751 = vsel %vm5695, %v5746, %v5750
        %v5752 = vcombine.low %v5709, %v5723
        %v5753 = vcombine.low %v5737, %v5751
        %v5755 = vunpack.c.l.s4 1983009808
        %v5756 = vunpack.c.0.s8 %v5755
        %v5757 = vlaneseq
        %v5758 = vshrl.u32 %v5757, 7
        %v5759 = vsub.s32 %v5756, %v5758
        %v5760 = vrot.slane %v5752, %v5759
        %v5762 = vunpack.c.l.s4 1983009808
        %v5763 = vunpack.c.0.s8 %v5762
        %v5764 = vlaneseq
        %v5765 = vshrl.u32 %v5764, 7
        %v5766 = vsub.s32 %v5763, %v5765
        %v5767 = vrot.slane %v5753, %v5766
        %v5768 = vcombine.low %v5760, %v5767
        %5769 = vrot.lane.b32.xlu0 %v5768, 64
        %v5770 = vpop.permute.xlu0 %5769
        %vm5772 = vcmask 1048064
        %5773 = vst.msk [vmem:[#allocation6] sm:$0xff] %vm5772, %v5770
        %v5774 = vld [vmem:[#allocation4] sm:$0x6]
        %v5775 = vld [vmem:[#allocation4 + $0x4] sm:$0x6]
        %v5776 = vld [vmem:[#allocation4 + $0x8] sm:$0x6]
        %v5777 = vld [vmem:[#allocation4 + $0xc] sm:$0x6]
        %v5783 = vunpack.c.l.s4 1983009808
        %v5784 = vunpack.c.0.s8 %v5783
        %v5785 = vlaneseq
        %v5786 = vshrl.u32 %v5785, 7
        %v5787 = vsub.s32 %v5784, %v5786
        %v5788 = vrot.slane %v5774, %v5787
        %v5789 = vcombine.high %v5788, %v5788
        %v5791 = vunpack.c.l.s4 1983009808
        %v5792 = vunpack.c.0.s8 %v5791
        %v5793 = vlaneseq
        %v5794 = vshrl.u32 %v5793, 7
        %v5795 = vsub.s32 %v5792, %v5794
        %v5796 = vrot.slane %v5775, %v5795
        %v5797 = vcombine.high %v5796, %v5796
        %v5799 = vunpack.c.l.s4 1983009808
        %v5800 = vunpack.c.0.s8 %v5799
        %v5801 = vlaneseq
        %v5802 = vshrl.u32 %v5801, 7
        %v5803 = vsub.s32 %v5800, %v5802
        %v5804 = vrot.slane %v5776, %v5803
        %v5805 = vcombine.high %v5804, %v5804
        %v5807 = vunpack.c.l.s4 1983009808
        %v5808 = vunpack.c.0.s8 %v5807
        %v5809 = vlaneseq
        %v5810 = vshrl.u32 %v5809, 7
        %v5811 = vsub.s32 %v5808, %v5810
        %v5812 = vrot.slane %v5777, %v5811
        %v5813 = vcombine.high %v5812, %v5812
        %vm5814 = vcmask 1040384
        %vm5815 = vcmask 1042434
        %vm5816 = vmor %vm5814, %vm5815
        %vm5817 = vcmask 1044484
        %vm5818 = vmor %vm5816, %vm5817
        %vm5819 = vcmask 1046534
        %vm5820 = vmor %vm5818, %vm5819
        %v5821 = vrot.slane %v5788, 7
        %v5822 = vrot.slane %v5821, 2
        %v5823 = vrot.slane %v5789, 7
        %v5824 = vsel %vm5820, %v5822, %v5823
        %v5825 = vrot.slane %v5796, 7
        %v5826 = vrot.slane %v5825, 2
        %v5827 = vrot.slane %v5797, 7
        %v5828 = vsel %vm5820, %v5826, %v5827
        %v5829 = vrot.slane %v5804, 7
        %v5830 = vrot.slane %v5829, 2
        %v5831 = vrot.slane %v5805, 7
        %v5832 = vsel %vm5820, %v5830, %v5831
        %v5833 = vrot.slane %v5812, 7
        %v5834 = vrot.slane %v5833, 2
        %v5835 = vrot.slane %v5813, 7
        %v5836 = vsel %vm5820, %v5834, %v5835
        %v5837 = vcombine.low %v5824, %v5828
        %v5838 = vcombine.low %v5832, %v5836
        %v5840 = vunpack.c.l.s4 1983009808
        %v5841 = vunpack.c.0.s8 %v5840
        %v5842 = vlaneseq
        %v5843 = vshrl.u32 %v5842, 7
        %v5844 = vsub.s32 %v5841, %v5843
        %v5845 = vrot.slane %v5837, %v5844
        %v5847 = vunpack.c.l.s4 1983009808
        %v5848 = vunpack.c.0.s8 %v5847
        %v5849 = vlaneseq
        %v5850 = vshrl.u32 %v5849, 7
        %v5851 = vsub.s32 %v5848, %v5850
        %v5852 = vrot.slane %v5838, %v5851
        %v5853 = vcombine.low %v5845, %v5852
        %5855 = vst.msk [vmem:[#allocation6 + $0x8] sm:$0xff] %vm5457, %v5853
        %v5856 = vld [vmem:[%s5606] sm:$0x3]
        %v5857 = vld [vmem:[%s5606 + $0x4] sm:$0x3]
        %v5858 = vld [vmem:[%s5606 + $0x8] sm:$0x3]
        %v5859 = vld [vmem:[%s5606 + $0xc] sm:$0x3]
        %v5864 = vcombine.low %v5856, %v5857
        %v5865 = vcombine.low %v5858, %v5859
        %v5867 = vunpack.c.l.s4 1983009808
        %v5868 = vunpack.c.0.s8 %v5867
        %v5869 = vlaneseq
        %v5870 = vshrl.u32 %v5869, 7
        %v5871 = vsub.s32 %v5868, %v5870
        %v5872 = vrot.slane %v5864, %v5871
        %v5874 = vunpack.c.l.s4 1983009808
        %v5875 = vunpack.c.0.s8 %v5874
        %v5876 = vlaneseq
        %v5877 = vshrl.u32 %v5876, 7
        %v5878 = vsub.s32 %v5875, %v5877
        %v5879 = vrot.slane %v5865, %v5878
        %v5880 = vcombine.low %v5872, %v5879
        %5881 = vrot.lane.b32.xlu0 %v5880, 64
        %v5882 = vpop.permute.xlu0 %5881
        %5884 = vst.msk [vmem:[#allocation6 + $0x8] sm:$0xff] %vm5772, %v5882
        %v5885 = vld [vmem:[%s5606] sm:$0x7]
        %v5886 = vld [vmem:[%s5606 + $0x4] sm:$0x7]
        %v5887 = vld [vmem:[%s5606 + $0x8] sm:$0x7]
        %v5888 = vld [vmem:[%s5606 + $0xc] sm:$0x7]
        %v5894 = vunpack.c.l.s4 1983009808
        %v5895 = vunpack.c.0.s8 %v5894
        %v5896 = vlaneseq
        %v5897 = vshrl.u32 %v5896, 7
        %v5898 = vsub.s32 %v5895, %v5897
        %v5899 = vrot.slane %v5885, %v5898
        %v5900 = vcombine.high %v5899, %v5899
        %v5902 = vunpack.c.l.s4 1983009808
        %v5903 = vunpack.c.0.s8 %v5902
        %v5904 = vlaneseq
        %v5905 = vshrl.u32 %v5904, 7
        %v5906 = vsub.s32 %v5903, %v5905
        %v5907 = vrot.slane %v5886, %v5906
        %v5908 = vcombine.high %v5907, %v5907
        %v5910 = vunpack.c.l.s4 1983009808
        %v5911 = vunpack.c.0.s8 %v5910
        %v5912 = vlaneseq
        %v5913 = vshrl.u32 %v5912, 7
        %v5914 = vsub.s32 %v5911, %v5913
        %v5915 = vrot.slane %v5887, %v5914
        %v5916 = vcombine.high %v5915, %v5915
        %v5918 = vunpack.c.l.s4 1983009808
        %v5919 = vunpack.c.0.s8 %v5918
        %v5920 = vlaneseq
        %v5921 = vshrl.u32 %v5920, 7
        %v5922 = vsub.s32 %v5919, %v5921
        %v5923 = vrot.slane %v5888, %v5922
        %v5924 = vcombine.high %v5923, %v5923
        %v5926 = vshrl.u32 %v5899, 16
        %v5928 = vrot.slane %v5926, 6
        %v5929 = vshll.u32 %v5899, 16
        %v5931 = vrot.slane %v5929, 7
        %v5932 = vor.u32 %v5928, %v5931
        %v5933 = vrot.slane %v5932, 2
        %v5935 = vshll.u32 %v5900, 16
        %v5937 = vrot.slane %v5935, 7
        %v5938 = vsel %vm5695, %v5933, %v5937
        %v5940 = vshrl.u32 %v5907, 16
        %v5942 = vrot.slane %v5940, 6
        %v5943 = vshll.u32 %v5907, 16
        %v5945 = vrot.slane %v5943, 7
        %v5946 = vor.u32 %v5942, %v5945
        %v5947 = vrot.slane %v5946, 2
        %v5949 = vshll.u32 %v5908, 16
        %v5951 = vrot.slane %v5949, 7
        %v5952 = vsel %vm5695, %v5947, %v5951
        %v5954 = vshrl.u32 %v5915, 16
        %v5956 = vrot.slane %v5954, 6
        %v5957 = vshll.u32 %v5915, 16
        %v5959 = vrot.slane %v5957, 7
        %v5960 = vor.u32 %v5956, %v5959
        %v5961 = vrot.slane %v5960, 2
        %v5963 = vshll.u32 %v5916, 16
        %v5965 = vrot.slane %v5963, 7
        %v5966 = vsel %vm5695, %v5961, %v5965
        %v5968 = vshrl.u32 %v5923, 16
        %v5970 = vrot.slane %v5968, 6
        %v5971 = vshll.u32 %v5923, 16
        %v5973 = vrot.slane %v5971, 7
        %v5974 = vor.u32 %v5970, %v5973
        %v5975 = vrot.slane %v5974, 2
        %v5977 = vshll.u32 %v5924, 16
        %v5979 = vrot.slane %v5977, 7
        %v5980 = vsel %vm5695, %v5975, %v5979
        %v5981 = vcombine.low %v5938, %v5952
        %v5982 = vcombine.low %v5966, %v5980
        %v5984 = vunpack.c.l.s4 1983009808
        %v5985 = vunpack.c.0.s8 %v5984
        %v5986 = vlaneseq
        %v5987 = vshrl.u32 %v5986, 7
        %v5988 = vsub.s32 %v5985, %v5987
        %v5989 = vrot.slane %v5981, %v5988
        %v5991 = vunpack.c.l.s4 1983009808
        %v5992 = vunpack.c.0.s8 %v5991
        %v5993 = vlaneseq
        %v5994 = vshrl.u32 %v5993, 7
        %v5995 = vsub.s32 %v5992, %v5994
        %v5996 = vrot.slane %v5982, %v5995
        %v5997 = vcombine.low %v5989, %v5996
        %5999 = vst.msk [vmem:[#allocation6 + $0x10] sm:$0xff] %vm5457, %v5997
        %v6000 = vld [vmem:[%s5606] sm:$0x6]
        %v6001 = vld [vmem:[%s5606 + $0x4] sm:$0x6]
        %v6002 = vld [vmem:[%s5606 + $0x8] sm:$0x6]
        %v6003 = vld [vmem:[%s5606 + $0xc] sm:$0x6]
        %v6009 = vunpack.c.l.s4 1983009808
        %v6010 = vunpack.c.0.s8 %v6009
        %v6011 = vlaneseq
        %v6012 = vshrl.u32 %v6011, 7
        %v6013 = vsub.s32 %v6010, %v6012
        %v6014 = vrot.slane %v6000, %v6013
        %v6015 = vcombine.high %v6014, %v6014
        %v6017 = vunpack.c.l.s4 1983009808
        %v6018 = vunpack.c.0.s8 %v6017
        %v6019 = vlaneseq
        %v6020 = vshrl.u32 %v6019, 7
        %v6021 = vsub.s32 %v6018, %v6020
        %v6022 = vrot.slane %v6001, %v6021
        %v6023 = vcombine.high %v6022, %v6022
        %v6025 = vunpack.c.l.s4 1983009808
        %v6026 = vunpack.c.0.s8 %v6025
        %v6027 = vlaneseq
        %v6028 = vshrl.u32 %v6027, 7
        %v6029 = vsub.s32 %v6026, %v6028
        %v6030 = vrot.slane %v6002, %v6029
        %v6031 = vcombine.high %v6030, %v6030
        %v6033 = vunpack.c.l.s4 1983009808
        %v6034 = vunpack.c.0.s8 %v6033
        %v6035 = vlaneseq
        %v6036 = vshrl.u32 %v6035, 7
        %v6037 = vsub.s32 %v6034, %v6036
        %v6038 = vrot.slane %v6003, %v6037
        %v6039 = vcombine.high %v6038, %v6038
        %v6040 = vrot.slane %v6014, 7
        %v6041 = vrot.slane %v6040, 2
        %v6042 = vrot.slane %v6015, 7
        %v6043 = vsel %vm5820, %v6041, %v6042
        %v6044 = vrot.slane %v6022, 7
        %v6045 = vrot.slane %v6044, 2
        %v6046 = vrot.slane %v6023, 7
        %v6047 = vsel %vm5820, %v6045, %v6046
        %v6048 = vrot.slane %v6030, 7
        %v6049 = vrot.slane %v6048, 2
        %v6050 = vrot.slane %v6031, 7
        %v6051 = vsel %vm5820, %v6049, %v6050
        %v6052 = vrot.slane %v6038, 7
        %v6053 = vrot.slane %v6052, 2
        %v6054 = vrot.slane %v6039, 7
        %v6055 = vsel %vm5820, %v6053, %v6054
        %v6056 = vcombine.low %v6043, %v6047
        %v6057 = vcombine.low %v6051, %v6055
        %v6059 = vunpack.c.l.s4 1983009808
        %v6060 = vunpack.c.0.s8 %v6059
        %v6061 = vlaneseq
        %v6062 = vshrl.u32 %v6061, 7
        %v6063 = vsub.s32 %v6060, %v6062
        %v6064 = vrot.slane %v6056, %v6063
        %v6066 = vunpack.c.l.s4 1983009808
        %v6067 = vunpack.c.0.s8 %v6066
        %v6068 = vlaneseq
        %v6069 = vshrl.u32 %v6068, 7
        %v6070 = vsub.s32 %v6067, %v6069
        %v6071 = vrot.slane %v6057, %v6070
        %v6072 = vcombine.low %v6064, %v6071
        %6073 = vrot.lane.b32.xlu0 %v6072, 64
        %v6074 = vpop.permute.xlu0 %6073
        %6076 = vst.msk [vmem:[#allocation6 + $0x10] sm:$0xff] %vm5772, %v6074
        %s6077 = scalar_lea.vmem [#allocation4], 8
        %v6078 = vld [vmem:[%s6077] sm:$0x3]
        %v6079 = vld [vmem:[%s6077 + $0x4] sm:$0x3]
        %v6080 = vld [vmem:[%s6077 + $0x8] sm:$0x3]
        %v6081 = vld [vmem:[%s6077 + $0xc] sm:$0x3]
        %v6086 = vcombine.low %v6078, %v6079
        %v6087 = vcombine.low %v6080, %v6081
        %v6089 = vunpack.c.l.s4 1983009808
        %v6090 = vunpack.c.0.s8 %v6089
        %v6091 = vlaneseq
        %v6092 = vshrl.u32 %v6091, 7
        %v6093 = vsub.s32 %v6090, %v6092
        %v6094 = vrot.slane %v6086, %v6093
        %v6096 = vunpack.c.l.s4 1983009808
        %v6097 = vunpack.c.0.s8 %v6096
        %v6098 = vlaneseq
        %v6099 = vshrl.u32 %v6098, 7
        %v6100 = vsub.s32 %v6097, %v6099
        %v6101 = vrot.slane %v6087, %v6100
        %v6102 = vcombine.low %v6094, %v6101
        %6104 = vst.msk [vmem:[#allocation6 + $0x18] sm:$0xff] %vm5457, %v6102
        %v6105 = vld [vmem:[%s6077] sm:$0x7]
        %v6106 = vld [vmem:[%s6077 + $0x4] sm:$0x7]
        %v6107 = vld [vmem:[%s6077 + $0x8] sm:$0x7]
        %v6108 = vld [vmem:[%s6077 + $0xc] sm:$0x7]
        %v6114 = vunpack.c.l.s4 1983009808
        %v6115 = vunpack.c.0.s8 %v6114
        %v6116 = vlaneseq
        %v6117 = vshrl.u32 %v6116, 7
        %v6118 = vsub.s32 %v6115, %v6117
        %v6119 = vrot.slane %v6105, %v6118
        %v6120 = vcombine.high %v6119, %v6119
        %v6122 = vunpack.c.l.s4 1983009808
        %v6123 = vunpack.c.0.s8 %v6122
        %v6124 = vlaneseq
        %v6125 = vshrl.u32 %v6124, 7
        %v6126 = vsub.s32 %v6123, %v6125
        %v6127 = vrot.slane %v6106, %v6126
        %v6128 = vcombine.high %v6127, %v6127
        %v6130 = vunpack.c.l.s4 1983009808
        %v6131 = vunpack.c.0.s8 %v6130
        %v6132 = vlaneseq
        %v6133 = vshrl.u32 %v6132, 7
        %v6134 = vsub.s32 %v6131, %v6133
        %v6135 = vrot.slane %v6107, %v6134
        %v6136 = vcombine.high %v6135, %v6135
        %v6138 = vunpack.c.l.s4 1983009808
        %v6139 = vunpack.c.0.s8 %v6138
        %v6140 = vlaneseq
        %v6141 = vshrl.u32 %v6140, 7
        %v6142 = vsub.s32 %v6139, %v6141
        %v6143 = vrot.slane %v6108, %v6142
        %v6144 = vcombine.high %v6143, %v6143
        %v6146 = vshrl.u32 %v6119, 16
        %v6148 = vrot.slane %v6146, 6
        %v6149 = vshll.u32 %v6119, 16
        %v6151 = vrot.slane %v6149, 7
        %v6152 = vor.u32 %v6148, %v6151
        %v6153 = vrot.slane %v6152, 2
        %v6155 = vshll.u32 %v6120, 16
        %v6157 = vrot.slane %v6155, 7
        %v6158 = vsel %vm5695, %v6153, %v6157
        %v6160 = vshrl.u32 %v6127, 16
        %v6162 = vrot.slane %v6160, 6
        %v6163 = vshll.u32 %v6127, 16
        %v6165 = vrot.slane %v6163, 7
        %v6166 = vor.u32 %v6162, %v6165
        %v6167 = vrot.slane %v6166, 2
        %v6169 = vshll.u32 %v6128, 16
        %v6171 = vrot.slane %v6169, 7
        %v6172 = vsel %vm5695, %v6167, %v6171
        %v6174 = vshrl.u32 %v6135, 16
        %v6176 = vrot.slane %v6174, 6
        %v6177 = vshll.u32 %v6135, 16
        %v6179 = vrot.slane %v6177, 7
        %v6180 = vor.u32 %v6176, %v6179
        %v6181 = vrot.slane %v6180, 2
        %v6183 = vshll.u32 %v6136, 16
        %v6185 = vrot.slane %v6183, 7
        %v6186 = vsel %vm5695, %v6181, %v6185
        %v6188 = vshrl.u32 %v6143, 16
        %v6190 = vrot.slane %v6188, 6
        %v6191 = vshll.u32 %v6143, 16
        %v6193 = vrot.slane %v6191, 7
        %v6194 = vor.u32 %v6190, %v6193
        %v6195 = vrot.slane %v6194, 2
        %v6197 = vshll.u32 %v6144, 16
        %v6199 = vrot.slane %v6197, 7
        %v6200 = vsel %vm5695, %v6195, %v6199
        %v6201 = vcombine.low %v6158, %v6172
        %v6202 = vcombine.low %v6186, %v6200
        %v6204 = vunpack.c.l.s4 1983009808
        %v6205 = vunpack.c.0.s8 %v6204
        %v6206 = vlaneseq
        %v6207 = vshrl.u32 %v6206, 7
        %v6208 = vsub.s32 %v6205, %v6207
        %v6209 = vrot.slane %v6201, %v6208
        %v6211 = vunpack.c.l.s4 1983009808
        %v6212 = vunpack.c.0.s8 %v6211
        %v6213 = vlaneseq
        %v6214 = vshrl.u32 %v6213, 7
        %v6215 = vsub.s32 %v6212, %v6214
        %v6216 = vrot.slane %v6202, %v6215
        %v6217 = vcombine.low %v6209, %v6216
        %6218 = vrot.lane.b32.xlu0 %v6217, 64
        %v6219 = vpop.permute.xlu0 %6218
        %6221 = vst.msk [vmem:[#allocation6 + $0x18] sm:$0xff] %vm5772, %v6219
        %v6222 = vld [vmem:[%s6077] sm:$0x6]
        %v6223 = vld [vmem:[%s6077 + $0x4] sm:$0x6]
        %v6224 = vld [vmem:[%s6077 + $0x8] sm:$0x6]
        %v6225 = vld [vmem:[%s6077 + $0xc] sm:$0x6]
        %v6231 = vunpack.c.l.s4 1983009808
        %v6232 = vunpack.c.0.s8 %v6231
        %v6233 = vlaneseq
        %v6234 = vshrl.u32 %v6233, 7
        %v6235 = vsub.s32 %v6232, %v6234
        %v6236 = vrot.slane %v6222, %v6235
        %v6237 = vcombine.high %v6236, %v6236
        %v6239 = vunpack.c.l.s4 1983009808
        %v6240 = vunpack.c.0.s8 %v6239
        %v6241 = vlaneseq
        %v6242 = vshrl.u32 %v6241, 7
        %v6243 = vsub.s32 %v6240, %v6242
        %v6244 = vrot.slane %v6223, %v6243
        %v6245 = vcombine.high %v6244, %v6244
        %v6247 = vunpack.c.l.s4 1983009808
        %v6248 = vunpack.c.0.s8 %v6247
        %v6249 = vlaneseq
        %v6250 = vshrl.u32 %v6249, 7
        %v6251 = vsub.s32 %v6248, %v6250
        %v6252 = vrot.slane %v6224, %v6251
        %v6253 = vcombine.high %v6252, %v6252
        %v6255 = vunpack.c.l.s4 1983009808
        %v6256 = vunpack.c.0.s8 %v6255
        %v6257 = vlaneseq
        %v6258 = vshrl.u32 %v6257, 7
        %v6259 = vsub.s32 %v6256, %v6258
        %v6260 = vrot.slane %v6225, %v6259
        %v6261 = vcombine.high %v6260, %v6260
        %v6262 = vrot.slane %v6236, 7
        %v6263 = vrot.slane %v6262, 2
        %v6264 = vrot.slane %v6237, 7
        %v6265 = vsel %vm5820, %v6263, %v6264
        %v6266 = vrot.slane %v6244, 7
        %v6267 = vrot.slane %v6266, 2
        %v6268 = vrot.slane %v6245, 7
        %v6269 = vsel %vm5820, %v6267, %v6268
        %v6270 = vrot.slane %v6252, 7
        %v6271 = vrot.slane %v6270, 2
        %v6272 = vrot.slane %v6253, 7
        %v6273 = vsel %vm5820, %v6271, %v6272
        %v6274 = vrot.slane %v6260, 7
        %v6275 = vrot.slane %v6274, 2
        %v6276 = vrot.slane %v6261, 7
        %v6277 = vsel %vm5820, %v6275, %v6276
        %v6278 = vcombine.low %v6265, %v6269
        %v6279 = vcombine.low %v6273, %v6277
        %v6281 = vunpack.c.l.s4 1983009808
        %v6282 = vunpack.c.0.s8 %v6281
        %v6283 = vlaneseq
        %v6284 = vshrl.u32 %v6283, 7
        %v6285 = vsub.s32 %v6282, %v6284
        %v6286 = vrot.slane %v6278, %v6285
        %v6288 = vunpack.c.l.s4 1983009808
        %v6289 = vunpack.c.0.s8 %v6288
        %v6290 = vlaneseq
        %v6291 = vshrl.u32 %v6290, 7
        %v6292 = vsub.s32 %v6289, %v6291
        %v6293 = vrot.slane %v6279, %v6292
        %v6294 = vcombine.low %v6286, %v6293
        %6296 = vst.msk [vmem:[#allocation6 + $0x20] sm:$0xff] %vm5457, %v6294
        %v6297 = vld [vmem:[#allocation6] sm:$0xff]
        %v6298 = vld [vmem:[#allocation6 + $0x8] sm:$0xff]
        %v6299 = vld [vmem:[#allocation6 + $0x10] sm:$0xff]
        %v6300 = vld [vmem:[#allocation6 + $0x18] sm:$0xff]
        %v6301 = vld [vmem:[#allocation6 + $0x20] sm:$0xff]
        %v6302 = vld [vmem:[%s5] sm:$0xf]
        %v6303 = vld [vmem:[%s5 + $0x4] sm:$0xf]
        %v6304 = vld [vmem:[%s5 + $0x8] sm:$0xf]
        %v6305 = vld [vmem:[%s5 + $0xc] sm:$0xf]
        %v6306 = vld [vmem:[%s5 + $0x10] sm:$0xf]
        %v6307 = vld [vmem:[%s5 + $0x14] sm:$0xf]
        %v6308 = vld [vmem:[%s5 + $0x18] sm:$0xf]
        %v6309 = vld [vmem:[%s5 + $0x1c] sm:$0xf]
        %v6310 = vld [vmem:[%s5 + $0x20] sm:$0xf]
        %v6311 = vld [vmem:[%s5 + $0x24] sm:$0xf]
        %v6312 = vld [vmem:[%s5 + $0x28] sm:$0xf]
        %v6313 = vld [vmem:[%s5 + $0x2c] sm:$0xf]
        %v6314 = vld [vmem:[%s5 + $0x30] sm:$0xf]
        %v6315 = vld [vmem:[%s5 + $0x34] sm:$0xf]
        %v6316 = vld [vmem:[%s5 + $0x38] sm:$0xf]
        %v6317 = vld [vmem:[%s5 + $0x3c] sm:$0xf]
        %v6318 = vld [vmem:[%s5 + $0x40] sm:$0xf]
        %v6319 = vld [vmem:[%s5 + $0x44] sm:$0xf]
        %v6320 = vld [vmem:[%s5 + $0x48] sm:$0xf]
        %v6321 = vld [vmem:[%s5 + $0x4c] sm:$0xf]
        %v6322 = vld [vmem:[%s5 + $0x50] sm:$0xf]
        %v6323 = vld [vmem:[%s5 + $0x54] sm:$0xf]
        %v6324 = vld [vmem:[%s5 + $0x58] sm:$0xf]
        %v6325 = vld [vmem:[%s5 + $0x5c] sm:$0xf]
        %v6326 = vld [vmem:[%s5 + $0x60] sm:$0xf]
        %v6327 = vld [vmem:[%s5 + $0x64] sm:$0xf]
        %v6328 = vld [vmem:[%s5 + $0x68] sm:$0xf]
        %v6329 = vld [vmem:[%s5 + $0x6c] sm:$0xf]
        %v6330 = vld [vmem:[%s5 + $0x70] sm:$0xf]
        %v6331 = vld [vmem:[%s5 + $0x74] sm:$0xf]
        %v6332 = vld [vmem:[%s5 + $0x78] sm:$0xf]
        %v6333 = vld [vmem:[%s5 + $0x7c] sm:$0xf]
        %v6334 = vld [vmem:[%s5 + $0x80] sm:$0xf]
        %v6335 = vld [vmem:[%s5 + $0x84] sm:$0xf]
        %v6336 = vld [vmem:[%s5 + $0x88] sm:$0xf]
        %v6337 = vld [vmem:[%s5 + $0x8c] sm:$0xf]
        %v6338 = vld [vmem:[%s5 + $0x90] sm:$0xf]
        %v6339 = vld [vmem:[%s5 + $0x94] sm:$0xf]
        %v6340 = vld [vmem:[%s5 + $0x98] sm:$0xf]
        %v6341 = vld [vmem:[%s5 + $0x9c] sm:$0xf]
        %v6342 = vld [vmem:[%s5 + $0xa0] sm:$0xf]
        %v6343 = vld [vmem:[%s5 + $0xa4] sm:$0xf]
        %v6344 = vld [vmem:[%s5 + $0xa8] sm:$0xf]
        %v6345 = vld [vmem:[%s5 + $0xac] sm:$0xf]
        %v6346 = vld [vmem:[%s5 + $0xb0] sm:$0xf]
        %v6347 = vld [vmem:[%s5 + $0xb4] sm:$0xf]
        %v6348 = vld [vmem:[%s5 + $0xb8] sm:$0xf]
        %v6349 = vld [vmem:[%s5 + $0xbc] sm:$0xf]
        %v6350 = vld [vmem:[%s5 + $0xc0] sm:$0xf]
        %v6351 = vld [vmem:[%s5 + $0xc4] sm:$0xf]
        %v6352 = vld [vmem:[%s5 + $0xc8] sm:$0xf]
        %v6353 = vld [vmem:[%s5 + $0xcc] sm:$0xf]
        %v6354 = vld [vmem:[%s5 + $0xd0] sm:$0xf]
        %v6355 = vld [vmem:[%s5 + $0xd4] sm:$0xf]
        %v6356 = vld [vmem:[%s5 + $0xd8] sm:$0xf]
        %v6357 = vld [vmem:[%s5 + $0xdc] sm:$0xf]
        %v6358 = vld [vmem:[%s5 + $0xe0] sm:$0xf]
        %v6359 = vld [vmem:[%s5 + $0xe4] sm:$0xf]
        %v6360 = vld [vmem:[%s5 + $0xe8] sm:$0xf]
        %v6361 = vld [vmem:[%s5 + $0xec] sm:$0xf]
        %v6362 = vld [vmem:[%s5 + $0xf0] sm:$0xf]
        %v6363 = vld [vmem:[%s5 + $0xf4] sm:$0xf]
        %v6364 = vld [vmem:[%s5 + $0xf8] sm:$0xf]
        %v6365 = vld [vmem:[%s5 + $0xfc] sm:$0xf]
        %v6366 = vld [vmem:[%s5 + $0x100] sm:$0xf]
        %v6367 = vld [vmem:[%s5 + $0x104] sm:$0xf]
        %v6368 = vld [vmem:[%s5 + $0x108] sm:$0xf]
        %v6369 = vld [vmem:[%s5 + $0x10c] sm:$0xf]
        %v6370 = vld [vmem:[%s5 + $0x110] sm:$0xf]
        %v6371 = vld [vmem:[%s5 + $0x114] sm:$0xf]
        %v6372 = vld [vmem:[%s5 + $0x118] sm:$0xf]
        %v6373 = vld [vmem:[%s5 + $0x11c] sm:$0xf]
        %v6374 = vld [vmem:[%s6] sm:$0x1]
        %v6376 = vlaneseq
        %v6377 = vshrl.u32 %v6376, 7
        %v6378 = vsub.s32 0, %v6377
        %v6379 = vrot.slane %v6374, %v6378
        %v6453 = vunpack.c.l.b16 %v6302
        %v6454 = vunpack.c.l.b16 %v6303
        %v6455 = vunpack.c.l.b16 %v6304
        %v6456 = vunpack.c.l.b16 %v6305
        %v6457 = vunpack.c.l.b16 %v6306
        %v6458 = vunpack.c.l.b16 %v6307
        %v6459 = vunpack.c.l.b16 %v6308
        %v6460 = vunpack.c.l.b16 %v6309
        %v6461 = vunpack.c.l.b16 %v6310
        %v6462 = vunpack.c.l.b16 %v6311
        %v6463 = vunpack.c.l.b16 %v6312
        %v6464 = vunpack.c.l.b16 %v6313
        %v6465 = vunpack.c.l.b16 %v6314
        %v6466 = vunpack.c.l.b16 %v6315
        %v6467 = vunpack.c.l.b16 %v6316
        %v6468 = vunpack.c.l.b16 %v6317
        %v6469 = vunpack.c.l.b16 %v6318
        %v6470 = vunpack.c.l.b16 %v6319
        %v6471 = vunpack.c.l.b16 %v6320
        %v6472 = vunpack.c.l.b16 %v6321
        %v6473 = vunpack.c.l.b16 %v6322
        %v6474 = vunpack.c.l.b16 %v6323
        %v6475 = vunpack.c.l.b16 %v6324
        %v6476 = vunpack.c.l.b16 %v6325
        %v6477 = vunpack.c.l.b16 %v6326
        %v6478 = vunpack.c.l.b16 %v6327
        %v6479 = vunpack.c.l.b16 %v6328
        %v6480 = vunpack.c.l.b16 %v6329
        %v6481 = vunpack.c.l.b16 %v6330
        %v6482 = vunpack.c.l.b16 %v6331
        %v6483 = vunpack.c.l.b16 %v6332
        %v6484 = vunpack.c.l.b16 %v6333
        %v6485 = vunpack.c.l.b16 %v6334
        %v6486 = vunpack.c.l.b16 %v6335
        %v6487 = vunpack.c.l.b16 %v6336
        %v6488 = vunpack.c.l.b16 %v6337
        %v6489 = vunpack.c.l.b16 %v6338
        %v6490 = vunpack.c.l.b16 %v6339
        %v6491 = vunpack.c.l.b16 %v6340
        %v6492 = vunpack.c.l.b16 %v6341
        %v6493 = vunpack.c.l.b16 %v6342
        %v6494 = vunpack.c.l.b16 %v6343
        %v6495 = vunpack.c.l.b16 %v6344
        %v6496 = vunpack.c.l.b16 %v6345
        %v6497 = vunpack.c.l.b16 %v6346
        %v6498 = vunpack.c.l.b16 %v6347
        %v6499 = vunpack.c.l.b16 %v6348
        %v6500 = vunpack.c.l.b16 %v6349
        %v6501 = vunpack.c.l.b16 %v6350
        %v6502 = vunpack.c.l.b16 %v6351
        %v6503 = vunpack.c.l.b16 %v6352
        %v6504 = vunpack.c.l.b16 %v6353
        %v6505 = vunpack.c.l.b16 %v6354
        %v6506 = vunpack.c.l.b16 %v6355
        %v6507 = vunpack.c.l.b16 %v6356
        %v6508 = vunpack.c.l.b16 %v6357
        %v6509 = vunpack.c.l.b16 %v6358
        %v6510 = vunpack.c.l.b16 %v6359
        %v6511 = vunpack.c.l.b16 %v6360
        %v6512 = vunpack.c.l.b16 %v6361
        %v6513 = vunpack.c.l.b16 %v6362
        %v6514 = vunpack.c.l.b16 %v6363
        %v6515 = vunpack.c.l.b16 %v6364
        %v6516 = vunpack.c.l.b16 %v6365
        %v6517 = vunpack.c.l.b16 %v6366
        %v6518 = vunpack.c.l.b16 %v6367
        %v6519 = vunpack.c.l.b16 %v6368
        %v6520 = vunpack.c.l.b16 %v6369
        %v6521 = vunpack.c.l.b16 %v6370
        %v6522 = vunpack.c.l.b16 %v6371
        %v6523 = vunpack.c.l.b16 %v6372
        %v6524 = vunpack.c.l.b16 %v6373
        %v6525 = vpack.c.b16 %v6454, %v6453
        %v6526 = vpack.c.b16 %v6456, %v6455
        %v6527 = vpack.c.b16 %v6458, %v6457
        %v6528 = vpack.c.b16 %v6460, %v6459
        %v6529 = vpack.c.b16 %v6462, %v6461
        %v6530 = vpack.c.b16 %v6464, %v6463
        %v6531 = vpack.c.b16 %v6466, %v6465
        %v6532 = vpack.c.b16 %v6468, %v6467
        %v6533 = vpack.c.b16 %v6470, %v6469
        %v6534 = vpack.c.b16 %v6472, %v6471
        %v6535 = vpack.c.b16 %v6474, %v6473
        %v6536 = vpack.c.b16 %v6476, %v6475
        %v6537 = vpack.c.b16 %v6478, %v6477
        %v6538 = vpack.c.b16 %v6480, %v6479
        %v6539 = vpack.c.b16 %v6482, %v6481
        %v6540 = vpack.c.b16 %v6484, %v6483
        %v6541 = vpack.c.b16 %v6486, %v6485
        %v6542 = vpack.c.b16 %v6488, %v6487
        %v6543 = vpack.c.b16 %v6490, %v6489
        %v6544 = vpack.c.b16 %v6492, %v6491
        %v6545 = vpack.c.b16 %v6494, %v6493
        %v6546 = vpack.c.b16 %v6496, %v6495
        %v6547 = vpack.c.b16 %v6498, %v6497
        %v6548 = vpack.c.b16 %v6500, %v6499
        %v6549 = vpack.c.b16 %v6502, %v6501
        %v6550 = vpack.c.b16 %v6504, %v6503
        %v6551 = vpack.c.b16 %v6506, %v6505
        %v6552 = vpack.c.b16 %v6508, %v6507
        %v6553 = vpack.c.b16 %v6510, %v6509
        %v6554 = vpack.c.b16 %v6512, %v6511
        %v6555 = vpack.c.b16 %v6514, %v6513
        %v6556 = vpack.c.b16 %v6516, %v6515
        %v6557 = vpack.c.b16 %v6518, %v6517
        %v6558 = vpack.c.b16 %v6520, %v6519
        %v6559 = vpack.c.b16 %v6522, %v6521
        %v6560 = vpack.c.b16 %v6524, %v6523
        %v6598 = vsel %vm5457, %v6301, 0
        %6600 = vmatprep.subr.bf16.mxu0 0
        %6601 = vmatpush1.bf16.msra.mxu0 %v6525
        %6602 = vmatprep.subr.bf16.mxu0 0
        %6603 = vmatpush1.bf16.msra.mxu0 %v6526
        %6604 = vmatprep.subr.bf16.mxu0 0
        %6605 = vmatpush1.bf16.msra.mxu0 %v6527
        %6606 = vmatprep.subr.bf16.mxu0 0
        %6607 = vmatpush1.bf16.msra.mxu0 %v6528
        %6608 = vmatprep.subr.bf16.mxu0 0
        %6609 = vmatpush1.bf16.msra.mxu0 %v6529
        %6610 = vmatprep.subr.bf16.mxu0 0
        %6611 = vmatpush1.bf16.msra.mxu0 %v6530
        %6612 = vmatprep.subr.bf16.mxu0 0
        %6613 = vmatpush1.bf16.msra.mxu0 %v6531
        %6614 = vmatprep.subr.bf16.mxu0 0
        %6615 = vmatpush1.bf16.msra.mxu0 %v6532
        %6616 = vmatprep.subr.bf16.mxu0 0
        %6617 = vmatpush1.bf16.msra.mxu0 %v6533
        %6618 = vmatprep.subr.bf16.mxu0 0
        %6619 = vmatpush1.bf16.msra.mxu0 %v6534
        %6620 = vmatprep.subr.bf16.mxu0 0
        %6621 = vmatpush1.bf16.msra.mxu0 %v6535
        %6622 = vmatprep.subr.bf16.mxu0 0
        %6623 = vmatpush1.bf16.msra.mxu0 %v6536
        %6624 = vmatprep.subr.bf16.mxu0 0
        %6625 = vmatpush1.bf16.msra.mxu0 %v6537
        %6626 = vmatprep.subr.bf16.mxu0 0
        %6627 = vmatpush1.bf16.msra.mxu0 %v6538
        %6628 = vmatprep.subr.bf16.mxu0 0
        %6629 = vmatpush1.bf16.msra.mxu0 %v6539
        %6630 = vmatprep.subr.bf16.mxu0 0
        %6631 = vmatpush1.bf16.msra.mxu0 %v6540
        %6632 = vmatprep.mubr.bf16.mxu0 %v6298
        %6633 = vmatmul.mubr.bf16.gmra.mrb[0].mxu0 %v6297
        %v6634 = vpop.f32.mrb[0].mxu0
        %v6635 = vadd.f32 %v6379, %v6634
        %v6636 = vpop.f32.mrb[0].mxu0
        %v6637 = vpop.f32.mrb[0].mxu0
        %v6638 = vadd.f32 %v6379, %v6637
        %v6639 = vpop.f32.mrb[0].mxu0
        %6640 = vdwg.mxu0
        %6641 = vmatprep.subr.bf16.mxu0 0
        %6642 = vmatpush1.bf16.msra.mxu0 %v6541
        %6643 = vmatprep.subr.bf16.mxu0 0
        %6644 = vmatpush1.bf16.msra.mxu0 %v6542
        %6645 = vmatprep.subr.bf16.mxu0 0
        %6646 = vmatpush1.bf16.msra.mxu0 %v6543
        %6647 = vmatprep.subr.bf16.mxu0 0
        %6648 = vmatpush1.bf16.msra.mxu0 %v6544
        %6649 = vmatprep.subr.bf16.mxu0 0
        %6650 = vmatpush1.bf16.msra.mxu0 %v6545
        %6651 = vmatprep.subr.bf16.mxu0 0
        %6652 = vmatpush1.bf16.msra.mxu0 %v6546
        %6653 = vmatprep.subr.bf16.mxu0 0
        %6654 = vmatpush1.bf16.msra.mxu0 %v6547
        %6655 = vmatprep.subr.bf16.mxu0 0
        %6656 = vmatpush1.bf16.msra.mxu0 %v6548
        %6657 = vmatprep.subr.bf16.mxu0 0
        %6658 = vmatpush1.bf16.msra.mxu0 %v6549
        %6659 = vmatprep.subr.bf16.mxu0 0
        %6660 = vmatpush1.bf16.msra.mxu0 %v6550
        %6661 = vmatprep.subr.bf16.mxu0 0
        %6662 = vmatpush1.bf16.msra.mxu0 %v6551
        %6663 = vmatprep.subr.bf16.mxu0 0
        %6664 = vmatpush1.bf16.msra.mxu0 %v6552
        %6665 = vmatprep.subr.bf16.mxu0 0
        %6666 = vmatpush1.bf16.msra.mxu0 %v6553
        %6667 = vmatprep.subr.bf16.mxu0 0
        %6668 = vmatpush1.bf16.msra.mxu0 %v6554
        %6669 = vmatprep.subr.bf16.mxu0 0
        %6670 = vmatpush1.bf16.msra.mxu0 %v6555
        %6671 = vmatprep.subr.bf16.mxu0 0
        %6672 = vmatpush1.bf16.msra.mxu0 %v6556
        %6673 = vmatprep.mubr.bf16.mxu0 %v6300
        %6674 = vmatmul.mubr.bf16.gmra.mrb[0].mxu0 %v6299
        %v6675 = vpop.f32.mrb[0].mxu0
        %v6676 = vadd.f32 %v6635, %v6675
        %v6677 = vpop.f32.mrb[0].mxu0
        %v6678 = vpop.f32.mrb[0].mxu0
        %v6679 = vadd.f32 %v6638, %v6678
        %v6680 = vpop.f32.mrb[0].mxu0
        %6681 = vdwg.mxu0
        %6682 = vmatprep.subr.bf16.mxu0 0
        %6683 = vmatpush1.bf16.msra.mxu0 %v6557
        %6684 = vmatprep.subr.bf16.mxu0 0
        %6685 = vmatpush1.bf16.msra.mxu0 %v6558
        %6686 = vmatprep.subr.bf16.mxu0 0
        %6687 = vmatpush1.bf16.msra.mxu0 %v6559
        %6688 = vmatprep.subr.bf16.mxu0 0
        %6689 = vmatpush1.bf16.msra.mxu0 %v6560
        %6690 = vmatprep.subr.bf16.mxu0 0
        %6691 = vmatpush1.bf16.msra.mxu0 0
        %6692 = vmatprep.subr.bf16.mxu0 0
        %6693 = vmatpush1.bf16.msra.mxu0 0
        %6694 = vmatprep.subr.bf16.mxu0 0
        %6695 = vmatpush1.bf16.msra.mxu0 0
        %6696 = vmatprep.subr.bf16.mxu0 0
        %6697 = vmatpush1.bf16.msra.mxu0 0
        %6698 = vmatprep.subr.bf16.mxu0 0
        %6699 = vmatpush1.bf16.msra.mxu0 0
        %6700 = vmatprep.subr.bf16.mxu0 0
        %6701 = vmatpush1.bf16.msra.mxu0 0
        %6702 = vmatprep.subr.bf16.mxu0 0
        %6703 = vmatpush1.bf16.msra.mxu0 0
        %6704 = vmatprep.subr.bf16.mxu0 0
        %6705 = vmatpush1.bf16.msra.mxu0 0
        %6706 = vmatprep.subr.bf16.mxu0 0
        %6707 = vmatpush1.bf16.msra.mxu0 0
        %6708 = vmatprep.subr.bf16.mxu0 0
        %6709 = vmatpush1.bf16.msra.mxu0 0
        %6710 = vmatprep.subr.bf16.mxu0 0
        %6711 = vmatpush1.bf16.msra.mxu0 0
        %6712 = vmatprep.subr.bf16.mxu0 0
        %6713 = vmatpush1.bf16.msra.mxu0 0
        %6714 = vmatprep.mubr.bf16.mxu0 0
        %6715 = vmatmul.mubr.bf16.gmra.mrb[0].mxu0 %v6598
        %v6716 = vpop.f32.mrb[0].mxu0
        %v6717 = vadd.f32 %v6676, %v6716
        %v6718 = vpop.f32.mrb[0].mxu0
        %v6719 = vpop.f32.mrb[0].mxu0
        %v6720 = vadd.f32 %v6679, %v6719
        %v6721 = vpop.f32.mrb[0].mxu0
        %6722 = vdwg.mxu0
        %v6723 = vmax.f32 %v6717, 0.0
        %v6724 = vmax.f32 %v6720, 0.0
        %6725 = vst [vmem:[%s271] sm:$0xff] %v6723
        %6726 = vst [vmem:[%s271 + $0x8] sm:$0xff] %v6724
        %s6727 = sand.u32 %s181, 1
        %s6728 = scalar_lea.sflag [#allocation8], %s6727
        %s6729 = sand.u32 %s181, 1
        %s6730 = smul.addr %s6729, 16
        %s6731 = scalar_lea.vmem [#allocation7], %s6730
        // Predicated region
        $region49: #{grid_encoder_forward.1} parent=47 // pred_check
          %p6732 = pneg %p191
        $region50: #{grid_encoder_forward.1} parent=47 // pred_check_branch
          %6734 = sbr.rel (%p6732) target = $region52
        $region51: #{grid_encoder_forward.1} parent=47 // pred_region
          %s6736 = ssub.s32 256, 256
          %6737 = vsyncadd %s6728, %s6736
          %s6738 = smul.addr %s21, 2
          %s6739 = smul.addr %s6738, 128
          %s6740 = scalar_lea.hbm %s7, %s6739
          %s6741 = sshll.u32 %s6731, 4
          %s6742 = int_to_ptr.vmem [resolvable:$true] %s6741
          %6747 = dma.vmem_to_hbm [thread:$0]  %s6742, 256, %s6740, %s6728, 128, 128, 8
        $region52: #{grid_encoder_forward.1} parent=47 // pred_fallthru
          _
      $region48: #{grid_encoder_forward.1} parent=5 // pred_fallthru
        _
      %p6748 = scmp.le.s32.totalorder 2, %s16
      // Predicated region
      $region53: #{grid_encoder_forward.1} parent=5 // pred_check
        %p6749 = pneg %p6748
      $region54: #{grid_encoder_forward.1} parent=5 // pred_check_branch
        %6751 = sbr.rel (%p6749) target = $region56
      $region55: #{grid_encoder_forward.1} parent=5 // pred_region
        %s6752 = ssub.s32 %s16, 2
        // Predicated region
        $region57: #{grid_encoder_forward.1} parent=55 // pred_check
          %p6753 = pneg %p197
        $region58: #{grid_encoder_forward.1} parent=55 // pred_check_branch
          %6755 = sbr.rel (%p6753) target = $region60
        $region59: #{grid_encoder_forward.1} parent=55 // pred_region
          %s6756 = sand.u32 %s182, 1
          %s6757 = scalar_lea.sflag [#allocation8], %s6756
          %s6758 = sand.u32 %s182, 1
          %s6759 = smul.addr %s6758, 16
          %s6760 = scalar_lea.vmem [#allocation7], %s6759
          %6761 = dma.done %s6757, 256
        $region60: #{grid_encoder_forward.1} parent=55 // pred_fallthru
          _
      $region56: #{grid_encoder_forward.1} parent=5 // pred_fallthru
        _
    $region6: #{grid_encoder_forward.1} parent=1 // loop_footer
      %s20 = sadd.s32 1, %s16
    $region7: #{grid_encoder_forward.1} parent=1 // loop_footer_branch
      %15 = sbr.rel target = $region3
    $region8: #{grid_encoder_forward.1} parent=1 // loop_exit
      _
    %6762 = vsyncpa [#allocation8], 1
    %s6763 = scalar_lea.sflag [#allocation8], 1
    %6764 = vsyncpa %s6763, 1

</llo_original>
